<compile_context>
chip_gen: v7x
topology: tpu7x:2x2x1
jax: 0.10.0
libtpu: 0.0.40
codegen_flags: <defaults>
</compile_context>

<pallas_src>
import functools
import math

import jax
import jax.numpy as jnp
from jax import lax
from jax.experimental import pallas as pl
from jax.experimental.pallas import tpu as pltpu


def _round_up(x, m):
    return (x + m - 1) // m * m


def _vmem_budget_bytes():
    """Per-generation budget for the double-buffered output block."""
    try:
        cap = getattr(pltpu.get_tpu_info(), "vmem_capacity_bytes", None)
        if cap:
            # <= 3/8 of physical VMEM: ~24 MiB on v7x (64 MiB), 48 MiB on v5e/v6e.
            return int(max(8 << 20, min(int(cap) * 3 // 8, 48 << 20)))
    except Exception:
        pass
    return 12 << 20  # conservative fallback, safe on every generation


def _pe_kernel(fp_ref, o_ref):
    """One (block_rows, d_pad) tile of the sinusoidal table.

    fp_ref: (2, d_pad) f32 -- row 0 = per-column frequency (div_term repeated
            pairwise), row 1 = odd-column mask in {0.0, 1.0}.
    o_ref[p, c] = sin(pos * freq[c]) on even columns, cos(...) on odd columns,
    pos = global row index.  pos * freq is a single f32 multiply of exactly the
    operands the reference uses, so the trig argument is bit-identical.
    """
    ts, td = o_ref.shape
    row0 = pl.program_id(0) * ts
    pos = (lax.broadcasted_iota(jnp.int32, (ts, td), 0) + row0).astype(jnp.float32)
    freq = fp_ref[0:1, :]                  # (1, td), sublane-broadcast
    odd = fp_ref[1:2, :]                   # (1, td), exactly 0.0 / 1.0
    theta = pos * freq
    # masks are exactly 0/1 -> pure f32 blend selects sin or cos exactly
    o_ref[...] = (1.0 - odd) * jnp.sin(theta) + odd * jnp.cos(theta)


@functools.lru_cache(maxsize=None)
def _pe_table(max_len, d_model):
    """Build the (1, max_len, d_model) f32 table once via Pallas and cache it."""
    d_pad = _round_up(d_model, 128)
    s_pad8 = _round_up(max_len, 8)

    budget = _vmem_budget_bytes()
    # double-buffered output block must fit the budget
    max_block_rows = max(8, (budget // (2 * 4 * d_pad)) // 8 * 8)
    # always aim for >= 2 row blocks (megacore sharding of the "parallel" axis)
    target_rows = _round_up(pl.cdiv(s_pad8, 2), 8) if s_pad8 >= 16 else s_pad8
    block_rows = max(8, min(target_rows, max_block_rows, 4096))
    s_pad = _round_up(max_len, block_rows)
    grid = (s_pad // block_rows,)

    # Per-column constants, built exactly like the reference buffer:
    #   div_term = exp(arange(0, d, 2) * -(ln 10000 / d))
    half = jnp.arange(0, d_model, 2, dtype=jnp.float32)
    div_term = jnp.exp(half * jnp.float32(-(math.log(10000.0) / d_model)))
    freq = jnp.zeros((d_pad,), jnp.float32).at[:d_model].set(
        jnp.repeat(div_term, 2)[:d_model])
    odd = (jnp.arange(d_pad, dtype=jnp.int32) % 2).astype(jnp.float32)
    fp = jnp.stack([freq, odd], axis=0)            # single packed (2, d_pad) input

    out_block_bytes = block_rows * d_pad * 4
    vmem_limit = int(min(64 << 20,
                         max(2 * out_block_bytes + 2 * 2 * d_pad * 4 + (4 << 20),
                             16 << 20)))

    pe = pl.pallas_call(
        _pe_kernel,
        out_shape=jax.ShapeDtypeStruct((s_pad, d_pad), jnp.float32),
        grid=grid,
        in_specs=[pl.BlockSpec((2, d_pad), lambda i: (0, 0))],
        out_specs=pl.BlockSpec((block_rows, d_pad), lambda i: (i, 0)),
        compiler_params=pltpu.CompilerParams(
            dimension_semantics=("parallel",),
            vmem_limit_bytes=vmem_limit),
    )(fp)

    # Slice only if padding was actually added (avoids a pointless HBM copy on
    # aligned shapes such as max_len % block_rows == 0 and d_model % 128 == 0).
    if s_pad != max_len or d_pad != d_model:
        pe = pe[:max_len, :d_model]
    return pe[None, :, :]


def positional_embedding(x, max_len=512):
    """Equivalent of PositionalEmbedding(d_model, max_len).forward(x)."""
    seq_len = int(x.shape[1])
    d_model = int(x.shape[2])
    assert seq_len <= max_len, "sequence length exceeds max_len"
    pe = _pe_table(max_len, d_model)   # cached: the kernel runs once per (max_len, D)
    return pe if seq_len == max_len else pe[:, :seq_len]


def _reference_pe(seq_len, d_model):
    """Pure-JAX reference mirroring the PyTorch buffer construction."""
    position = jnp.arange(seq_len, dtype=jnp.float32)[:, None]
    div_term = jnp.exp(
        jnp.arange(0, d_model, 2, dtype=jnp.float32)
        * -(math.log(10000.0) / d_model))
    pe = jnp.zeros((seq_len, d_model), jnp.float32)
    pe = pe.at[:, 0::2].set(jnp.sin(position * div_term))
    pe = pe.at[:, 1::2].set(jnp.cos(position * div_term))
    return pe[None]


if __name__ == "__main__":
    key = jax.random.PRNGKey(0)
    B, S, D = 2, 8, 32
    x = jax.random.normal(key, (B, S, D), dtype=jnp.float32)

    out = jax.block_until_ready(positional_embedding(x))
    ref = _reference_pe(S, D)
    assert out.shape == (1, S, D), out.shape
    assert out.dtype == jnp.float32
    # f32 sin/cos at arguments up to a few hundred: allow a few e-5 of slack
    # between the in-kernel trig and XLA's (formula errors would be O(1)).
    assert jnp.allclose(out, ref, atol=5e-4, rtol=0), "mismatch vs reference"

    # Non-multiple-of-(8,128) shapes exercise the padding / tiling / slice path.
    S2, D2 = 200, 96
    x2 = jax.random.normal(key, (1, S2, D2), dtype=jnp.float32)
    out2 = jax.block_until_ready(positional_embedding(x2))
    ref2 = _reference_pe(S2, D2)
    assert out2.shape == (1, S2, D2)
    assert jnp.allclose(out2, ref2, atol=5e-4, rtol=0), "mismatch (padded case)"

    # Second call with the same (max_len, d_model) hits the cache (no rebuild).
    _ = jax.block_until_ready(positional_embedding(x2))

    print("KERNEL_OK")
</pallas_src>

<mosaic_0001>
module attributes {stable_mosaic.version = 11 : i64} {
  func.func @_pe_kernel(%arg0: i32, %arg1: memref<2x128xf32, #tpu.memory_space<vmem>>, %arg2: memref<256x128xf32, #tpu.memory_space<vmem>>) attributes {dimension_semantics = [#tpu.dimension_semantics<parallel>], iteration_bounds = array<i64: 2>, scalar_prefetch = 0 : i64, scratch_operands = 0 : i64, tpu.core_type = #tpu.core_type<tc>, window_params = [{pipeline_mode = #tpu.pipeline_mode<synchronous>, transform_indices = @transform_0, window_bounds = array<i64: 2, 128>}, {transform_indices = @transform_1, window_bounds = array<i64: 256, 128>}]} {
    %c256_i32 = arith.constant 256 : i32
    %0 = arith.muli %arg0, %c256_i32 : i32
    %1 = tpu.iota {dimensions = array<i32: 0>} : vector<256x128xi32>
    %2 = vector.broadcast %0 : i32 to vector<256x128xi32>
    %3 = arith.addi %1, %2 : vector<256x128xi32>
    %4 = arith.sitofp %3 : vector<256x128xi32> to vector<256x128xf32>
    %c0 = arith.constant 0 : index
    %c0_0 = arith.constant 0 : index
    %5 = vector.load %arg1[%c0, %c0_0] : memref<2x128xf32, #tpu.memory_space<vmem>>, vector<1x128xf32>
    %c1 = arith.constant 1 : index
    %c0_1 = arith.constant 0 : index
    %6 = vector.load %arg1[%c1, %c0_1] : memref<2x128xf32, #tpu.memory_space<vmem>>, vector<1x128xf32>
    %7 = vector.broadcast %5 : vector<1x128xf32> to vector<256x128xf32>
    %8 = arith.mulf %4, %7 : vector<256x128xf32>
    %cst = arith.constant 1.000000e+00 : f32
    %9 = vector.broadcast %cst : f32 to vector<1x128xf32>
    %10 = arith.subf %9, %6 : vector<1x128xf32>
    %11 = math.sin %8 : vector<256x128xf32>
    %12 = vector.broadcast %10 : vector<1x128xf32> to vector<256x128xf32>
    %13 = arith.mulf %12, %11 : vector<256x128xf32>
    %14 = math.cos %8 : vector<256x128xf32>
    %15 = vector.broadcast %6 : vector<1x128xf32> to vector<256x128xf32>
    %16 = arith.mulf %15, %14 : vector<256x128xf32>
    %17 = arith.addf %13, %16 : vector<256x128xf32>
    %c0_2 = arith.constant 0 : index
    %c0_3 = arith.constant 0 : index
    %18 = vector.load %arg2[%c0_2, %c0_3] : memref<256x128xf32, #tpu.memory_space<vmem>>, vector<256x128xf32>
    tpu.vector_store %arg2[%c0_2, %c0_3], %17 {strides = array<i32>} : memref<256x128xf32, #tpu.memory_space<vmem>>, vector<256x128xf32>,
    return
  }
  func.func @transform_0(%arg0: i32) -> (i32, i32) {
    %c0_i32 = arith.constant 0 : i32
    %c0_i32_0 = arith.constant 0 : i32
    %c0_i32_1 = arith.constant 0 : i32
    return %c0_i32, %c0_i32_0 : i32, i32
  }
  func.func @transform_1(%arg0: i32) -> (i32, i32) {
    %c0_i32 = arith.constant 0 : i32
    %c0_i32_0 = arith.constant 0 : i32
    return %arg0, %c0_i32 : i32, i32
  }
}

</mosaic_0001>

<llo_original>
// kernel: tpu_custom_call.1
$region0: #{tpu_custom_call.1}
  #allocation0 [shape = 'u32[]', space=smem, size = 0x4, offset = 0x4, fixed_abs, tag = 'smem constant byte address 0x4 - core index']
  #allocation1 [shape = 'u32[144,128]{1,0:T(1,128)}', space=vmem, size = 0x12000, scoped, tag = 'internal scratch']
  %s0 = inlined_call_operand.hbm [shape: f32[2,128], index: 0, kind: input, shape index: {}]
  %s1 = inlined_call_operand.hbm [shape: f32[512,128], index: 1, kind: output, shape index: {}]
  %s2 = sld [smem:[#allocation0]]
  $region41: #{tpu_custom_call.1} parent=0
    _
  %s4 = ssub.s32 1, %s2
  %s5 = scalar_select 0, %s4, %s2
  $region1: #{tpu_custom_call.1} parent=0
    #allocation2 [shape = 'u8[1024]{0}', space=vmem, size = 0x400, scoped, tag = 'input window, operand 0, single buffered']
    #allocation3 [shape = 's32[2]{0}', space=sflag, size = 0x8, scoped, tag = 'scoped memory for tpu_custom_call.1']
    #allocation4 [shape = 's32[2]{0}', space=sflag, size = 0x8, scoped, tag = 'scoped memory for tpu_custom_call.1']
    #allocation5 [shape = 'u8[262144]{0}', space=vmem, size = 0x40000, scoped, tag = 'output window, operand 0']
    %6 = vsyncpa [#allocation3], 0
    %7 = vsyncpa [#allocation4], 0
    %s8 = scalar_lea.sflag [#allocation4], 1
    %9 = vsyncpa %s8, 0
    loop: start=0, step=1, limit=4
    $region2: #{tpu_custom_call.1} parent=1 // loop_pre_header
      _
    $region3: #{tpu_custom_call.1} parent=1 // loop_header
      %s11 = sphi 0, %s15
      %p12 = scmp.ge.s32.totalorder %s11, 4
      %s19 = sphi 0, %s19
      %s21 = sphi 0, %s19
      %s22 = sphi 0, %s21
      %s36 = sphi 0, %s22
      %s42 = sphi 0, %s44
      %s45 = sphi 0, %s42
      %s46 = sphi 0, %s45
      %s62 = sphi 0, %s46
    $region4: #{tpu_custom_call.1} parent=1 // loop_header_branch
      %14 = sbr.rel (%p12) target = $region8
    $region5: #{tpu_custom_call.1} parent=1 // loop_body
      %s16 = ssub.s32 %s11, 1
      %s17 = ssub.s32 %s11, 2
      %s18 = sadd.s32 %s11, 1
      %s20 = sadd.s32 %s19, 1
      %p23 = scmp.eq.s32.totalorder %s11, 1
      %p24 = scmp.ne.s32.totalorder %s19, %s21
      %p25 = scmp.eq.s32.totalorder %s11, 0
      %p26 = por %p24, %p25
      %p27 = scmp.ne.s32.totalorder %s19, %s21
      %p28 = scmp.eq.s32.totalorder %s16, 1
      %p29 = por %p27, %p28
      %p30 = scmp.ne.s32.totalorder %s21, %s22
      %p31 = scmp.eq.s32.totalorder %s16, 0
      %p32 = por %p30, %p31
      %p33 = scmp.ne.s32.totalorder %s21, %s22
      %p34 = scmp.eq.s32.totalorder %s17, 1
      %p35 = por %p33, %p34
      %p37 = scmp.ne.s32.totalorder %s22, %s36
      %p38 = scmp.eq.s32.totalorder %s17, 0
      %p39 = por %p37, %p38
      %s40 = ssub.s32 %s11, %s18
      %p41 = scmp.eq.s32.totalorder %s40, 0
      %s43 = sadd.s32 %s42, 1
      %s44 = scalar_select %p41, %s42, %s43
      %p47 = pneg %p41
      %p48 = scmp.eq.s32.totalorder %s11, 1
      %p49 = por %p47, %p48
      %p50 = scmp.ne.s32.totalorder %s42, %s45
      %p51 = scmp.eq.s32.totalorder %s11, 0
      %p52 = por %p50, %p51
      %p53 = scmp.ne.s32.totalorder %s42, %s45
      %p54 = scmp.eq.s32.totalorder %s16, 1
      %p55 = por %p53, %p54
      %p56 = scmp.ne.s32.totalorder %s45, %s46
      %p57 = scmp.eq.s32.totalorder %s16, 0
      %p58 = por %p56, %p57
      %p59 = scmp.ne.s32.totalorder %s45, %s46
      %p60 = scmp.eq.s32.totalorder %s17, 1
      %p61 = por %p59, %p60
      %p63 = scmp.ne.s32.totalorder %s46, %s62
      %p64 = scmp.eq.s32.totalorder %s17, 0
      %p65 = por %p63, %p64
      %p66 = scmp.le.s32.totalorder 1, %s11
      %p67 = scmp.lt.s32.totalorder %s11, 3
      %p68 = pnand %p66, %p67
      %p69 = pneg %p68
      // Predicated region
      $region9: #{tpu_custom_call.1} parent=5 // pred_check
        _
      $region10: #{tpu_custom_call.1} parent=5 // pred_check_branch
        %71 = sbr.rel (%p68) target = $region12
      $region11: #{tpu_custom_call.1} parent=5 // pred_region
        %s72 = ssub.s32 %s11, 1
        // Predicated region
        $region13: #{tpu_custom_call.1} parent=11 // pred_check
          %p73 = pneg %p32
        $region14: #{tpu_custom_call.1} parent=11 // pred_check_branch
          %75 = sbr.rel (%p73) target = $region16
        $region15: #{tpu_custom_call.1} parent=11 // pred_region
          %s77 = ssub.s32 32, 32
          %78 = vsyncadd [#allocation3], %s77
          %s80 = sshll.u32 [#allocation2], 4
          %s81 = int_to_ptr.vmem [resolvable:$true] %s80
          %83 = dma.hbm_to_vmem [thread:$0]  %s0, 32, %s81, [#allocation3]
        $region16: #{tpu_custom_call.1} parent=11 // pred_fallthru
          _
      $region12: #{tpu_custom_call.1} parent=5 // pred_fallthru
        _
      %p84 = scmp.lt.s32.totalorder %s11, 2
      // Predicated region
      $region17: #{tpu_custom_call.1} parent=5 // pred_check
        %p85 = pneg %p84
      $region18: #{tpu_custom_call.1} parent=5 // pred_check_branch
        %87 = sbr.rel (%p85) target = $region20
      $region19: #{tpu_custom_call.1} parent=5 // pred_region
        _
      $region20: #{tpu_custom_call.1} parent=5 // pred_fallthru
        _
      %p88 = scmp.le.s32.totalorder 1, %s11
      %p89 = scmp.lt.s32.totalorder %s11, 3
      %p90 = pnand %p88, %p89
      %p91 = pneg %p90
      // Predicated region
      $region21: #{tpu_custom_call.1} parent=5 // pred_check
        _
      $region22: #{tpu_custom_call.1} parent=5 // pred_check_branch
        %93 = sbr.rel (%p90) target = $region24
      $region23: #{tpu_custom_call.1} parent=5 // pred_region
        %s94 = ssub.s32 %s11, 1
        // Predicated region
        $region25: #{tpu_custom_call.1} parent=23 // pred_check
          %p95 = pneg %p32
        $region26: #{tpu_custom_call.1} parent=23 // pred_check_branch
          %97 = sbr.rel (%p95) target = $region28
        $region27: #{tpu_custom_call.1} parent=23 // pred_region
          %98 = dma.done [#allocation3], 32
        $region28: #{tpu_custom_call.1} parent=23 // pred_fallthru
          _
        %p99 = pneg %p32
        %p100 = pneg %p29
        %p101 = pneg %p58
        %p102 = pneg %p55
        %s103 = sand.u32 %s45, 1
        %s104 = scalar_lea.sflag [#allocation4], %s103
        %s105 = sand.u32 %s45, 1
        %s106 = smul.addr %s105, 256
        %s107 = scalar_lea.vmem [#allocation5], %s106
        %s108 = smul.u32 32, %s16
        %s109 = smul.u32 %s16, 256
        %v110 = vlaneseq
        %v111 = vshrl.u32 %v110, 7
        %v112 = vadd.s32 %v111, 8
        %v113 = vadd.s32 %v111, 16
        %v114 = vadd.s32 %v111, 24
        %v115 = vadd.s32 %v111, 32
        %v116 = vadd.s32 %v111, 40
        %v117 = vadd.s32 %v111, 48
        %v118 = vadd.s32 %v111, 56
        %v119 = vadd.s32 %v111, 64
        %v120 = vadd.s32 %v111, 72
        %v121 = vadd.s32 %v111, 80
        %v122 = vadd.s32 %v111, 88
        %v123 = vadd.s32 %v111, 96
        %v124 = vadd.s32 %v111, 104
        %v125 = vadd.s32 %v111, 112
        %v126 = vadd.s32 %v111, 120
        %v127 = vadd.s32 %v111, 128
        %v128 = vadd.s32 %v111, 136
        %v129 = vadd.s32 %v111, 144
        %v130 = vadd.s32 %v111, 152
        %v131 = vadd.s32 %v111, 160
        %v132 = vadd.s32 %v111, 168
        %v133 = vadd.s32 %v111, 176
        %v134 = vadd.s32 %v111, 184
        %v135 = vadd.s32 %v111, 192
        %v136 = vadd.s32 %v111, 200
        %v137 = vadd.s32 %v111, 208
        %v138 = vadd.s32 %v111, 216
        %v139 = vadd.s32 %v111, 224
        %v140 = vadd.s32 %v111, 232
        %v141 = vadd.s32 %v111, 240
        %v142 = vadd.s32 %v111, 248
        %v143 = vstv %s109
        %v144 = vadd.s32 %v111, %v143
        %v145 = vadd.s32 %v112, %v143
        %v146 = vadd.s32 %v113, %v143
        %v147 = vadd.s32 %v114, %v143
        %v148 = vadd.s32 %v115, %v143
        %v149 = vadd.s32 %v116, %v143
        %v150 = vadd.s32 %v117, %v143
        %v151 = vadd.s32 %v118, %v143
        %v152 = vadd.s32 %v119, %v143
        %v153 = vadd.s32 %v120, %v143
        %v154 = vadd.s32 %v121, %v143
        %v155 = vadd.s32 %v122, %v143
        %v156 = vadd.s32 %v123, %v143
        %v157 = vadd.s32 %v124, %v143
        %v158 = vadd.s32 %v125, %v143
        %v159 = vadd.s32 %v126, %v143
        %v160 = vadd.s32 %v127, %v143
        %v161 = vadd.s32 %v128, %v143
        %v162 = vadd.s32 %v129, %v143
        %v163 = vadd.s32 %v130, %v143
        %v164 = vadd.s32 %v131, %v143
        %v165 = vadd.s32 %v132, %v143
        %v166 = vadd.s32 %v133, %v143
        %v167 = vadd.s32 %v134, %v143
        %v168 = vadd.s32 %v135, %v143
        %v169 = vadd.s32 %v136, %v143
        %v170 = vadd.s32 %v137, %v143
        %v171 = vadd.s32 %v138, %v143
        %v172 = vadd.s32 %v139, %v143
        %v173 = vadd.s32 %v140, %v143
        %v174 = vadd.s32 %v141, %v143
        %v175 = vadd.s32 %v142, %v143
        %v176 = vcvt.s32.f32 %v144
        %v177 = vcvt.s32.f32 %v145
        %v178 = vcvt.s32.f32 %v146
        %v179 = vcvt.s32.f32 %v147
        %v180 = vcvt.s32.f32 %v148
        %v181 = vcvt.s32.f32 %v149
        %v182 = vcvt.s32.f32 %v150
        %v183 = vcvt.s32.f32 %v151
        %v184 = vcvt.s32.f32 %v152
        %v185 = vcvt.s32.f32 %v153
        %v186 = vcvt.s32.f32 %v154
        %v187 = vcvt.s32.f32 %v155
        %v188 = vcvt.s32.f32 %v156
        %v189 = vcvt.s32.f32 %v157
        %v190 = vcvt.s32.f32 %v158
        %v191 = vcvt.s32.f32 %v159
        %v192 = vcvt.s32.f32 %v160
        %v193 = vcvt.s32.f32 %v161
        %v194 = vcvt.s32.f32 %v162
        %v195 = vcvt.s32.f32 %v163
        %v196 = vcvt.s32.f32 %v164
        %v197 = vcvt.s32.f32 %v165
        %v198 = vcvt.s32.f32 %v166
        %v199 = vcvt.s32.f32 %v167
        %v200 = vcvt.s32.f32 %v168
        %v201 = vcvt.s32.f32 %v169
        %v202 = vcvt.s32.f32 %v170
        %v203 = vcvt.s32.f32 %v171
        %v204 = vcvt.s32.f32 %v172
        %v205 = vcvt.s32.f32 %v173
        %v206 = vcvt.s32.f32 %v174
        %v207 = vcvt.s32.f32 %v175
        %v208 = vld [vmem:[#allocation2] sm:$0x1]
        %v209 = vld [vmem:[#allocation2 + $0x1] sm:$0x1]
        %v210 = vlaneseq
        %v211 = vshrl.u32 %v210, 7
        %v212 = vsub.s32 0, %v211
        %v213 = vrot.slane %v208, %v212
        %v214 = vmul.f32 %v176, %v213
        %v215 = vmul.f32 %v177, %v213
        %v216 = vmul.f32 %v178, %v213
        %v217 = vmul.f32 %v179, %v213
        %v218 = vmul.f32 %v180, %v213
        %v219 = vmul.f32 %v181, %v213
        %v220 = vmul.f32 %v182, %v213
        %v221 = vmul.f32 %v183, %v213
        %v222 = vmul.f32 %v184, %v213
        %v223 = vmul.f32 %v185, %v213
        %v224 = vmul.f32 %v186, %v213
        %v225 = vmul.f32 %v187, %v213
        %v226 = vmul.f32 %v188, %v213
        %v227 = vmul.f32 %v189, %v213
        %v228 = vmul.f32 %v190, %v213
        %v229 = vmul.f32 %v191, %v213
        %v230 = vmul.f32 %v192, %v213
        %v231 = vmul.f32 %v193, %v213
        %v232 = vmul.f32 %v194, %v213
        %v233 = vmul.f32 %v195, %v213
        %v234 = vmul.f32 %v196, %v213
        %v235 = vmul.f32 %v197, %v213
        %v236 = vmul.f32 %v198, %v213
        %v237 = vmul.f32 %v199, %v213
        %v238 = vmul.f32 %v200, %v213
        %v239 = vmul.f32 %v201, %v213
        %v240 = vmul.f32 %v202, %v213
        %v241 = vmul.f32 %v203, %v213
        %v242 = vmul.f32 %v204, %v213
        %v243 = vmul.f32 %v205, %v213
        %v244 = vmul.f32 %v206, %v213
        %v245 = vmul.f32 %v207, %v213
        %v246 = vsub.f32 1.0, %v209
        %v247 = vand.u32 2147483647, %v214
        %vm248 = vcmp.le.f32.partialorder %v247, 0.7853982
        %vm249 = vcmp.lt.s32.totalorder %v214, 0
        %v250 = vand.u32 %v214, 2139095040
        %v251 = vshrl.u32 %v250, 23
        %v252 = vsub.s32 %v251, 127
        %v253 = vand.u32 2147483647, %v214
        %v254 = vand.u32 %v253, 8388607
        %v255 = vor.u32 %v254, 8388608
        %v256 = vsub.s32 0, %v255
        %v257 = vadd.s32 %v252, 1
        %vm258 = vcmp.gt.s32.totalorder %v257, 0
        %v259 = vsel %vm258, %v257, 0
        %v260 = vshrl.u32 %v259, 5
        %v261 = vand.u32 %v259, 31
        %v262 = vsub.s32 32, %v261
        %v263 = vshrl.u32 683565275, %v262
        %v264 = vshll.u32 683565275, %v261
        %v265 = vshrl.u32 2475754826, %v262
        %v266 = vor.u32 %v264, %v265
        %v267 = vshll.u32 2475754826, %v261
        %v268 = vshrl.u32 2131351028, %v262
        %v269 = vor.u32 %v267, %v268
        %v270 = vshll.u32 2131351028, %v261
        %v271 = vshrl.u32 2102212464, %v262
        %v272 = vor.u32 %v270, %v271
        %v273 = vshll.u32 2102212464, %v261
        %v274 = vshrl.u32 920167782, %v262
        %v275 = vor.u32 %v273, %v274
        %v276 = vshll.u32 920167782, %v261
        %v277 = vshrl.u32 1326507024, %v262
        %v278 = vor.u32 %v276, %v277
        %vm279 = vcmp.lt.s32.totalorder %v260, 1
        %vm280 = vcmp.lt.s32.totalorder %v260, 2
        %vm281 = vcmp.lt.s32.totalorder %v260, 3
        %vm282 = vcmp.lt.s32.totalorder %v260, 4
        %v283 = vsel %vm279, %v263, %v266
        %v284 = vsel %vm282, %v272, 2102212464
        %v285 = vsel %vm281, %v269, %v284
        %v286 = vsel %vm280, %v283, %v285
        %v287 = vsel %vm279, %v266, %v269
        %v288 = vsel %vm282, %v275, 920167782
        %v289 = vsel %vm281, %v272, %v288
        %v290 = vsel %vm280, %v287, %v289
        %v291 = vsel %vm279, %v269, %v272
        %v292 = vsel %vm282, %v278, 1326507024
        %v293 = vsel %vm281, %v275, %v292
        %v294 = vsel %vm280, %v291, %v293
        %v295 = vshll.u32 %v255, 8
        %v296 = vmul.u32.u64.compose %v295, %v294
        %v297 = vextract.low.u32 %v296
        %v298 = vextract.high.u32 %v296
        %v299 = vmul.u32.u64.compose %v295, %v290
        %v300 = vextract.low.u32 %v299
        %v301 = vextract.high.u32 %v299
        %v302 = vmul.u32 %v295, %v286
        %v303 = vadd.s32 %v298, %v300
        %vm304 = vc.u32 %v298, %v300
        %v305 = vadd.s32 %v301, 1
        %v306 = vsel %vm304, %v305, %v301
        %v307 = vadd.s32 %v302, %v306
        %v308 = vadd.s32 %v307, 536870912
        %v309 = vshrl.u32 %v308, 30
        %v310 = vshll.u32 %v309, 30
        %v311 = vsub.s32 %v307, %v310
        %vm312 = vcmp.lt.s32.totalorder %v311, 0
        %v313 = vsub.s32 0, %v311
        %v314 = vsel %vm312, %v313, %v311
        %v315 = vclz %v314
        %v316 = vsub.s32 %v315, 2
        %vm317 = vcmp.gt.s32.totalorder 0, %v316
        %v318 = vsel %vm317, 0, %v316
        %v319 = vsub.s32 32, %v318
        %v320 = vshll.u32 %v311, %v318
        %v321 = vshrl.u32 %v303, %v319
        %v322 = vor.u32 %v320, %v321
        %v323 = vsub.s32 4294967266, %v318
        %v324 = vadd.s32 %v323, 127
        %v325 = vshll.u32 %v324, 23
        %v326 = vor.u32 4788187, %v325
        %v327 = vand.u32 2147483647, %v326
        %v329 = vcvt.s32.f32 %v322
        %v330 = vmul.f32 %v329, %v327
        %v331 = vxor.u32 %v330, 2147483648
        %v332 = vsel %vm249, %v331, %v330
        %v333 = vsub.s32 4, %v309
        %v334 = vsel %vm249, %v333, %v309
        %v335 = vsel %vm248, %v214, %v332
        %v336 = vsel %vm248, 0, %v334
        %v337 = vcosq.f32.pop %v335
        %v338 = vsinq.f32.pop %v335
        %vm339 = vweird.f32 %v214
        %v340 = vadd.s32 %v336, 3
        %v341 = vand.u32 %v340, 3
        %vm342 = vcmp.lt.s32.totalorder %v341, 2
        %vm343 = vcmp.eq.s32.totalorder %v341, 0
        %v344 = vxor.u32 %v338, 2147483648
        %v345 = vsel %vm343, %v337, %v344
        %vm346 = vcmp.eq.s32.totalorder %v341, 2
        %v347 = vxor.u32 %v337, 2147483648
        %v348 = vsel %vm346, %v347, %v338
        %v349 = vsel %vm342, %v345, %v348
        %v350 = vsel %vm339, nan, %v349
        %v351 = vand.u32 2147483647, %v215
        %vm352 = vcmp.le.f32.partialorder %v351, 0.7853982
        %vm353 = vcmp.lt.s32.totalorder %v215, 0
        %v354 = vand.u32 %v215, 2139095040
        %v355 = vshrl.u32 %v354, 23
        %v356 = vsub.s32 %v355, 127
        %v357 = vand.u32 2147483647, %v215
        %v358 = vand.u32 %v357, 8388607
        %v359 = vor.u32 %v358, 8388608
        %v360 = vsub.s32 0, %v359
        %v361 = vadd.s32 %v356, 1
        %vm362 = vcmp.gt.s32.totalorder %v361, 0
        %v363 = vsel %vm362, %v361, 0
        %v364 = vshrl.u32 %v363, 5
        %v365 = vand.u32 %v363, 31
        %v366 = vsub.s32 32, %v365
        %v367 = vshrl.u32 683565275, %v366
        %v368 = vshll.u32 683565275, %v365
        %v369 = vshrl.u32 2475754826, %v366
        %v370 = vor.u32 %v368, %v369
        %v371 = vshll.u32 2475754826, %v365
        %v372 = vshrl.u32 2131351028, %v366
        %v373 = vor.u32 %v371, %v372
        %v374 = vshll.u32 2131351028, %v365
        %v375 = vshrl.u32 2102212464, %v366
        %v376 = vor.u32 %v374, %v375
        %v377 = vshll.u32 2102212464, %v365
        %v378 = vshrl.u32 920167782, %v366
        %v379 = vor.u32 %v377, %v378
        %v380 = vshll.u32 920167782, %v365
        %v381 = vshrl.u32 1326507024, %v366
        %v382 = vor.u32 %v380, %v381
        %vm383 = vcmp.lt.s32.totalorder %v364, 1
        %vm384 = vcmp.lt.s32.totalorder %v364, 2
        %vm385 = vcmp.lt.s32.totalorder %v364, 3
        %vm386 = vcmp.lt.s32.totalorder %v364, 4
        %v387 = vsel %vm383, %v367, %v370
        %v388 = vsel %vm386, %v376, 2102212464
        %v389 = vsel %vm385, %v373, %v388
        %v390 = vsel %vm384, %v387, %v389
        %v391 = vsel %vm383, %v370, %v373
        %v392 = vsel %vm386, %v379, 920167782
        %v393 = vsel %vm385, %v376, %v392
        %v394 = vsel %vm384, %v391, %v393
        %v395 = vsel %vm383, %v373, %v376
        %v396 = vsel %vm386, %v382, 1326507024
        %v397 = vsel %vm385, %v379, %v396
        %v398 = vsel %vm384, %v395, %v397
        %v399 = vshll.u32 %v359, 8
        %v400 = vmul.u32.u64.compose %v399, %v398
        %v401 = vextract.low.u32 %v400
        %v402 = vextract.high.u32 %v400
        %v403 = vmul.u32.u64.compose %v399, %v394
        %v404 = vextract.low.u32 %v403
        %v405 = vextract.high.u32 %v403
        %v406 = vmul.u32 %v399, %v390
        %v407 = vadd.s32 %v402, %v404
        %vm408 = vc.u32 %v402, %v404
        %v409 = vadd.s32 %v405, 1
        %v410 = vsel %vm408, %v409, %v405
        %v411 = vadd.s32 %v406, %v410
        %v412 = vadd.s32 %v411, 536870912
        %v413 = vshrl.u32 %v412, 30
        %v414 = vshll.u32 %v413, 30
        %v415 = vsub.s32 %v411, %v414
        %vm416 = vcmp.lt.s32.totalorder %v415, 0
        %v417 = vsub.s32 0, %v415
        %v418 = vsel %vm416, %v417, %v415
        %v419 = vclz %v418
        %v420 = vsub.s32 %v419, 2
        %vm421 = vcmp.gt.s32.totalorder 0, %v420
        %v422 = vsel %vm421, 0, %v420
        %v423 = vsub.s32 32, %v422
        %v424 = vshll.u32 %v415, %v422
        %v425 = vshrl.u32 %v407, %v423
        %v426 = vor.u32 %v424, %v425
        %v427 = vsub.s32 4294967266, %v422
        %v428 = vadd.s32 %v427, 127
        %v429 = vshll.u32 %v428, 23
        %v430 = vor.u32 4788187, %v429
        %v431 = vand.u32 2147483647, %v430
        %v433 = vcvt.s32.f32 %v426
        %v434 = vmul.f32 %v433, %v431
        %v435 = vxor.u32 %v434, 2147483648
        %v436 = vsel %vm353, %v435, %v434
        %v437 = vsub.s32 4, %v413
        %v438 = vsel %vm353, %v437, %v413
        %v439 = vsel %vm352, %v215, %v436
        %v440 = vsel %vm352, 0, %v438
        %v441 = vcosq.f32.pop %v439
        %v442 = vsinq.f32.pop %v439
        %vm443 = vweird.f32 %v215
        %v444 = vadd.s32 %v440, 3
        %v445 = vand.u32 %v444, 3
        %vm446 = vcmp.lt.s32.totalorder %v445, 2
        %vm447 = vcmp.eq.s32.totalorder %v445, 0
        %v448 = vxor.u32 %v442, 2147483648
        %v449 = vsel %vm447, %v441, %v448
        %vm450 = vcmp.eq.s32.totalorder %v445, 2
        %v451 = vxor.u32 %v441, 2147483648
        %v452 = vsel %vm450, %v451, %v442
        %v453 = vsel %vm446, %v449, %v452
        %v454 = vsel %vm443, nan, %v453
        %v455 = vand.u32 2147483647, %v216
        %vm456 = vcmp.le.f32.partialorder %v455, 0.7853982
        %vm457 = vcmp.lt.s32.totalorder %v216, 0
        %v458 = vand.u32 %v216, 2139095040
        %v459 = vshrl.u32 %v458, 23
        %v460 = vsub.s32 %v459, 127
        %v461 = vand.u32 2147483647, %v216
        %v462 = vand.u32 %v461, 8388607
        %v463 = vor.u32 %v462, 8388608
        %v464 = vsub.s32 0, %v463
        %v465 = vadd.s32 %v460, 1
        %vm466 = vcmp.gt.s32.totalorder %v465, 0
        %v467 = vsel %vm466, %v465, 0
        %v468 = vshrl.u32 %v467, 5
        %v469 = vand.u32 %v467, 31
        %v470 = vsub.s32 32, %v469
        %v471 = vshrl.u32 683565275, %v470
        %v472 = vshll.u32 683565275, %v469
        %v473 = vshrl.u32 2475754826, %v470
        %v474 = vor.u32 %v472, %v473
        %v475 = vshll.u32 2475754826, %v469
        %v476 = vshrl.u32 2131351028, %v470
        %v477 = vor.u32 %v475, %v476
        %v478 = vshll.u32 2131351028, %v469
        %v479 = vshrl.u32 2102212464, %v470
        %v480 = vor.u32 %v478, %v479
        %v481 = vshll.u32 2102212464, %v469
        %v482 = vshrl.u32 920167782, %v470
        %v483 = vor.u32 %v481, %v482
        %v484 = vshll.u32 920167782, %v469
        %v485 = vshrl.u32 1326507024, %v470
        %v486 = vor.u32 %v484, %v485
        %vm487 = vcmp.lt.s32.totalorder %v468, 1
        %vm488 = vcmp.lt.s32.totalorder %v468, 2
        %vm489 = vcmp.lt.s32.totalorder %v468, 3
        %vm490 = vcmp.lt.s32.totalorder %v468, 4
        %v491 = vsel %vm487, %v471, %v474
        %v492 = vsel %vm490, %v480, 2102212464
        %v493 = vsel %vm489, %v477, %v492
        %v494 = vsel %vm488, %v491, %v493
        %v495 = vsel %vm487, %v474, %v477
        %v496 = vsel %vm490, %v483, 920167782
        %v497 = vsel %vm489, %v480, %v496
        %v498 = vsel %vm488, %v495, %v497
        %v499 = vsel %vm487, %v477, %v480
        %v500 = vsel %vm490, %v486, 1326507024
        %v501 = vsel %vm489, %v483, %v500
        %v502 = vsel %vm488, %v499, %v501
        %v503 = vshll.u32 %v463, 8
        %v504 = vmul.u32.u64.compose %v503, %v502
        %v505 = vextract.low.u32 %v504
        %v506 = vextract.high.u32 %v504
        %v507 = vmul.u32.u64.compose %v503, %v498
        %v508 = vextract.low.u32 %v507
        %v509 = vextract.high.u32 %v507
        %v510 = vmul.u32 %v503, %v494
        %v511 = vadd.s32 %v506, %v508
        %vm512 = vc.u32 %v506, %v508
        %v513 = vadd.s32 %v509, 1
        %v514 = vsel %vm512, %v513, %v509
        %v515 = vadd.s32 %v510, %v514
        %v516 = vadd.s32 %v515, 536870912
        %v517 = vshrl.u32 %v516, 30
        %v518 = vshll.u32 %v517, 30
        %v519 = vsub.s32 %v515, %v518
        %vm520 = vcmp.lt.s32.totalorder %v519, 0
        %v521 = vsub.s32 0, %v519
        %v522 = vsel %vm520, %v521, %v519
        %v523 = vclz %v522
        %v524 = vsub.s32 %v523, 2
        %vm525 = vcmp.gt.s32.totalorder 0, %v524
        %v526 = vsel %vm525, 0, %v524
        %v527 = vsub.s32 32, %v526
        %v528 = vshll.u32 %v519, %v526
        %v529 = vshrl.u32 %v511, %v527
        %v530 = vor.u32 %v528, %v529
        %v531 = vsub.s32 4294967266, %v526
        %v532 = vadd.s32 %v531, 127
        %v533 = vshll.u32 %v532, 23
        %v534 = vor.u32 4788187, %v533
        %v535 = vand.u32 2147483647, %v534
        %v537 = vcvt.s32.f32 %v530
        %v538 = vmul.f32 %v537, %v535
        %v539 = vxor.u32 %v538, 2147483648
        %v540 = vsel %vm457, %v539, %v538
        %v541 = vsub.s32 4, %v517
        %v542 = vsel %vm457, %v541, %v517
        %v543 = vsel %vm456, %v216, %v540
        %v544 = vsel %vm456, 0, %v542
        %v545 = vcosq.f32.pop %v543
        %v546 = vsinq.f32.pop %v543
        %vm547 = vweird.f32 %v216
        %v548 = vadd.s32 %v544, 3
        %v549 = vand.u32 %v548, 3
        %vm550 = vcmp.lt.s32.totalorder %v549, 2
        %vm551 = vcmp.eq.s32.totalorder %v549, 0
        %v552 = vxor.u32 %v546, 2147483648
        %v553 = vsel %vm551, %v545, %v552
        %vm554 = vcmp.eq.s32.totalorder %v549, 2
        %v555 = vxor.u32 %v545, 2147483648
        %v556 = vsel %vm554, %v555, %v546
        %v557 = vsel %vm550, %v553, %v556
        %v558 = vsel %vm547, nan, %v557
        %v559 = vand.u32 2147483647, %v217
        %vm560 = vcmp.le.f32.partialorder %v559, 0.7853982
        %vm561 = vcmp.lt.s32.totalorder %v217, 0
        %v562 = vand.u32 %v217, 2139095040
        %v563 = vshrl.u32 %v562, 23
        %v564 = vsub.s32 %v563, 127
        %v565 = vand.u32 2147483647, %v217
        %v566 = vand.u32 %v565, 8388607
        %v567 = vor.u32 %v566, 8388608
        %v568 = vsub.s32 0, %v567
        %v569 = vadd.s32 %v564, 1
        %vm570 = vcmp.gt.s32.totalorder %v569, 0
        %v571 = vsel %vm570, %v569, 0
        %v572 = vshrl.u32 %v571, 5
        %v573 = vand.u32 %v571, 31
        %v574 = vsub.s32 32, %v573
        %v575 = vshrl.u32 683565275, %v574
        %v576 = vshll.u32 683565275, %v573
        %v577 = vshrl.u32 2475754826, %v574
        %v578 = vor.u32 %v576, %v577
        %v579 = vshll.u32 2475754826, %v573
        %v580 = vshrl.u32 2131351028, %v574
        %v581 = vor.u32 %v579, %v580
        %v582 = vshll.u32 2131351028, %v573
        %v583 = vshrl.u32 2102212464, %v574
        %v584 = vor.u32 %v582, %v583
        %v585 = vshll.u32 2102212464, %v573
        %v586 = vshrl.u32 920167782, %v574
        %v587 = vor.u32 %v585, %v586
        %v588 = vshll.u32 920167782, %v573
        %v589 = vshrl.u32 1326507024, %v574
        %v590 = vor.u32 %v588, %v589
        %vm591 = vcmp.lt.s32.totalorder %v572, 1
        %vm592 = vcmp.lt.s32.totalorder %v572, 2
        %vm593 = vcmp.lt.s32.totalorder %v572, 3
        %vm594 = vcmp.lt.s32.totalorder %v572, 4
        %v595 = vsel %vm591, %v575, %v578
        %v596 = vsel %vm594, %v584, 2102212464
        %v597 = vsel %vm593, %v581, %v596
        %v598 = vsel %vm592, %v595, %v597
        %v599 = vsel %vm591, %v578, %v581
        %v600 = vsel %vm594, %v587, 920167782
        %v601 = vsel %vm593, %v584, %v600
        %v602 = vsel %vm592, %v599, %v601
        %v603 = vsel %vm591, %v581, %v584
        %v604 = vsel %vm594, %v590, 1326507024
        %v605 = vsel %vm593, %v587, %v604
        %v606 = vsel %vm592, %v603, %v605
        %v607 = vshll.u32 %v567, 8
        %v608 = vmul.u32.u64.compose %v607, %v606
        %v609 = vextract.low.u32 %v608
        %v610 = vextract.high.u32 %v608
        %v611 = vmul.u32.u64.compose %v607, %v602
        %v612 = vextract.low.u32 %v611
        %v613 = vextract.high.u32 %v611
        %v614 = vmul.u32 %v607, %v598
        %v615 = vadd.s32 %v610, %v612
        %vm616 = vc.u32 %v610, %v612
        %v617 = vadd.s32 %v613, 1
        %v618 = vsel %vm616, %v617, %v613
        %v619 = vadd.s32 %v614, %v618
        %v620 = vadd.s32 %v619, 536870912
        %v621 = vshrl.u32 %v620, 30
        %v622 = vshll.u32 %v621, 30
        %v623 = vsub.s32 %v619, %v622
        %vm624 = vcmp.lt.s32.totalorder %v623, 0
        %v625 = vsub.s32 0, %v623
        %v626 = vsel %vm624, %v625, %v623
        %v627 = vclz %v626
        %v628 = vsub.s32 %v627, 2
        %vm629 = vcmp.gt.s32.totalorder 0, %v628
        %v630 = vsel %vm629, 0, %v628
        %v631 = vsub.s32 32, %v630
        %v632 = vshll.u32 %v623, %v630
        %v633 = vshrl.u32 %v615, %v631
        %v634 = vor.u32 %v632, %v633
        %v635 = vsub.s32 4294967266, %v630
        %v636 = vadd.s32 %v635, 127
        %v637 = vshll.u32 %v636, 23
        %v638 = vor.u32 4788187, %v637
        %v639 = vand.u32 2147483647, %v638
        %v641 = vcvt.s32.f32 %v634
        %v642 = vmul.f32 %v641, %v639
        %v643 = vxor.u32 %v642, 2147483648
        %v644 = vsel %vm561, %v643, %v642
        %v645 = vsub.s32 4, %v621
        %v646 = vsel %vm561, %v645, %v621
        %v647 = vsel %vm560, %v217, %v644
        %v648 = vsel %vm560, 0, %v646
        %v649 = vcosq.f32.pop %v647
        %v650 = vsinq.f32.pop %v647
        %vm651 = vweird.f32 %v217
        %v652 = vadd.s32 %v648, 3
        %v653 = vand.u32 %v652, 3
        %vm654 = vcmp.lt.s32.totalorder %v653, 2
        %vm655 = vcmp.eq.s32.totalorder %v653, 0
        %v656 = vxor.u32 %v650, 2147483648
        %v657 = vsel %vm655, %v649, %v656
        %vm658 = vcmp.eq.s32.totalorder %v653, 2
        %v659 = vxor.u32 %v649, 2147483648
        %v660 = vsel %vm658, %v659, %v650
        %v661 = vsel %vm654, %v657, %v660
        %v662 = vsel %vm651, nan, %v661
        %v663 = vand.u32 2147483647, %v218
        %vm664 = vcmp.le.f32.partialorder %v663, 0.7853982
        %vm665 = vcmp.lt.s32.totalorder %v218, 0
        %v666 = vand.u32 %v218, 2139095040
        %v667 = vshrl.u32 %v666, 23
        %v668 = vsub.s32 %v667, 127
        %v669 = vand.u32 2147483647, %v218
        %v670 = vand.u32 %v669, 8388607
        %v671 = vor.u32 %v670, 8388608
        %v672 = vsub.s32 0, %v671
        %v673 = vadd.s32 %v668, 1
        %vm674 = vcmp.gt.s32.totalorder %v673, 0
        %v675 = vsel %vm674, %v673, 0
        %v676 = vshrl.u32 %v675, 5
        %v677 = vand.u32 %v675, 31
        %v678 = vsub.s32 32, %v677
        %v679 = vshrl.u32 683565275, %v678
        %v680 = vshll.u32 683565275, %v677
        %v681 = vshrl.u32 2475754826, %v678
        %v682 = vor.u32 %v680, %v681
        %v683 = vshll.u32 2475754826, %v677
        %v684 = vshrl.u32 2131351028, %v678
        %v685 = vor.u32 %v683, %v684
        %v686 = vshll.u32 2131351028, %v677
        %v687 = vshrl.u32 2102212464, %v678
        %v688 = vor.u32 %v686, %v687
        %v689 = vshll.u32 2102212464, %v677
        %v690 = vshrl.u32 920167782, %v678
        %v691 = vor.u32 %v689, %v690
        %v692 = vshll.u32 920167782, %v677
        %v693 = vshrl.u32 1326507024, %v678
        %v694 = vor.u32 %v692, %v693
        %vm695 = vcmp.lt.s32.totalorder %v676, 1
        %vm696 = vcmp.lt.s32.totalorder %v676, 2
        %vm697 = vcmp.lt.s32.totalorder %v676, 3
        %vm698 = vcmp.lt.s32.totalorder %v676, 4
        %v699 = vsel %vm695, %v679, %v682
        %v700 = vsel %vm698, %v688, 2102212464
        %v701 = vsel %vm697, %v685, %v700
        %v702 = vsel %vm696, %v699, %v701
        %v703 = vsel %vm695, %v682, %v685
        %v704 = vsel %vm698, %v691, 920167782
        %v705 = vsel %vm697, %v688, %v704
        %v706 = vsel %vm696, %v703, %v705
        %v707 = vsel %vm695, %v685, %v688
        %v708 = vsel %vm698, %v694, 1326507024
        %v709 = vsel %vm697, %v691, %v708
        %v710 = vsel %vm696, %v707, %v709
        %v711 = vshll.u32 %v671, 8
        %v712 = vmul.u32.u64.compose %v711, %v710
        %v713 = vextract.low.u32 %v712
        %v714 = vextract.high.u32 %v712
        %v715 = vmul.u32.u64.compose %v711, %v706
        %v716 = vextract.low.u32 %v715
        %v717 = vextract.high.u32 %v715
        %v718 = vmul.u32 %v711, %v702
        %v719 = vadd.s32 %v714, %v716
        %vm720 = vc.u32 %v714, %v716
        %v721 = vadd.s32 %v717, 1
        %v722 = vsel %vm720, %v721, %v717
        %v723 = vadd.s32 %v718, %v722
        %v724 = vadd.s32 %v723, 536870912
        %v725 = vshrl.u32 %v724, 30
        %v726 = vshll.u32 %v725, 30
        %v727 = vsub.s32 %v723, %v726
        %vm728 = vcmp.lt.s32.totalorder %v727, 0
        %v729 = vsub.s32 0, %v727
        %v730 = vsel %vm728, %v729, %v727
        %v731 = vclz %v730
        %v732 = vsub.s32 %v731, 2
        %vm733 = vcmp.gt.s32.totalorder 0, %v732
        %v734 = vsel %vm733, 0, %v732
        %v735 = vsub.s32 32, %v734
        %v736 = vshll.u32 %v727, %v734
        %v737 = vshrl.u32 %v719, %v735
        %v738 = vor.u32 %v736, %v737
        %v739 = vsub.s32 4294967266, %v734
        %v740 = vadd.s32 %v739, 127
        %v741 = vshll.u32 %v740, 23
        %v742 = vor.u32 4788187, %v741
        %v743 = vand.u32 2147483647, %v742
        %v745 = vcvt.s32.f32 %v738
        %v746 = vmul.f32 %v745, %v743
        %v747 = vxor.u32 %v746, 2147483648
        %v748 = vsel %vm665, %v747, %v746
        %v749 = vsub.s32 4, %v725
        %v750 = vsel %vm665, %v749, %v725
        %v751 = vsel %vm664, %v218, %v748
        %v752 = vsel %vm664, 0, %v750
        %v753 = vcosq.f32.pop %v751
        %v754 = vsinq.f32.pop %v751
        %vm755 = vweird.f32 %v218
        %v756 = vadd.s32 %v752, 3
        %v757 = vand.u32 %v756, 3
        %vm758 = vcmp.lt.s32.totalorder %v757, 2
        %vm759 = vcmp.eq.s32.totalorder %v757, 0
        %v760 = vxor.u32 %v754, 2147483648
        %v761 = vsel %vm759, %v753, %v760
        %vm762 = vcmp.eq.s32.totalorder %v757, 2
        %v763 = vxor.u32 %v753, 2147483648
        %v764 = vsel %vm762, %v763, %v754
        %v765 = vsel %vm758, %v761, %v764
        %v766 = vsel %vm755, nan, %v765
        %v767 = vand.u32 2147483647, %v219
        %vm768 = vcmp.le.f32.partialorder %v767, 0.7853982
        %vm769 = vcmp.lt.s32.totalorder %v219, 0
        %v770 = vand.u32 %v219, 2139095040
        %v771 = vshrl.u32 %v770, 23
        %v772 = vsub.s32 %v771, 127
        %v773 = vand.u32 2147483647, %v219
        %v774 = vand.u32 %v773, 8388607
        %v775 = vor.u32 %v774, 8388608
        %v776 = vsub.s32 0, %v775
        %v777 = vadd.s32 %v772, 1
        %vm778 = vcmp.gt.s32.totalorder %v777, 0
        %v779 = vsel %vm778, %v777, 0
        %v780 = vshrl.u32 %v779, 5
        %v781 = vand.u32 %v779, 31
        %v782 = vsub.s32 32, %v781
        %v783 = vshrl.u32 683565275, %v782
        %v784 = vshll.u32 683565275, %v781
        %v785 = vshrl.u32 2475754826, %v782
        %v786 = vor.u32 %v784, %v785
        %v787 = vshll.u32 2475754826, %v781
        %v788 = vshrl.u32 2131351028, %v782
        %v789 = vor.u32 %v787, %v788
        %v790 = vshll.u32 2131351028, %v781
        %v791 = vshrl.u32 2102212464, %v782
        %v792 = vor.u32 %v790, %v791
        %v793 = vshll.u32 2102212464, %v781
        %v794 = vshrl.u32 920167782, %v782
        %v795 = vor.u32 %v793, %v794
        %v796 = vshll.u32 920167782, %v781
        %v797 = vshrl.u32 1326507024, %v782
        %v798 = vor.u32 %v796, %v797
        %vm799 = vcmp.lt.s32.totalorder %v780, 1
        %vm800 = vcmp.lt.s32.totalorder %v780, 2
        %vm801 = vcmp.lt.s32.totalorder %v780, 3
        %vm802 = vcmp.lt.s32.totalorder %v780, 4
        %v803 = vsel %vm799, %v783, %v786
        %v804 = vsel %vm802, %v792, 2102212464
        %v805 = vsel %vm801, %v789, %v804
        %v806 = vsel %vm800, %v803, %v805
        %v807 = vsel %vm799, %v786, %v789
        %v808 = vsel %vm802, %v795, 920167782
        %v809 = vsel %vm801, %v792, %v808
        %v810 = vsel %vm800, %v807, %v809
        %v811 = vsel %vm799, %v789, %v792
        %v812 = vsel %vm802, %v798, 1326507024
        %v813 = vsel %vm801, %v795, %v812
        %v814 = vsel %vm800, %v811, %v813
        %v815 = vshll.u32 %v775, 8
        %v816 = vmul.u32.u64.compose %v815, %v814
        %v817 = vextract.low.u32 %v816
        %v818 = vextract.high.u32 %v816
        %v819 = vmul.u32.u64.compose %v815, %v810
        %v820 = vextract.low.u32 %v819
        %v821 = vextract.high.u32 %v819
        %v822 = vmul.u32 %v815, %v806
        %v823 = vadd.s32 %v818, %v820
        %vm824 = vc.u32 %v818, %v820
        %v825 = vadd.s32 %v821, 1
        %v826 = vsel %vm824, %v825, %v821
        %v827 = vadd.s32 %v822, %v826
        %v828 = vadd.s32 %v827, 536870912
        %v829 = vshrl.u32 %v828, 30
        %v830 = vshll.u32 %v829, 30
        %v831 = vsub.s32 %v827, %v830
        %vm832 = vcmp.lt.s32.totalorder %v831, 0
        %v833 = vsub.s32 0, %v831
        %v834 = vsel %vm832, %v833, %v831
        %v835 = vclz %v834
        %v836 = vsub.s32 %v835, 2
        %vm837 = vcmp.gt.s32.totalorder 0, %v836
        %v838 = vsel %vm837, 0, %v836
        %v839 = vsub.s32 32, %v838
        %v840 = vshll.u32 %v831, %v838
        %v841 = vshrl.u32 %v823, %v839
        %v842 = vor.u32 %v840, %v841
        %v843 = vsub.s32 4294967266, %v838
        %v844 = vadd.s32 %v843, 127
        %v845 = vshll.u32 %v844, 23
        %v846 = vor.u32 4788187, %v845
        %v847 = vand.u32 2147483647, %v846
        %v849 = vcvt.s32.f32 %v842
        %v850 = vmul.f32 %v849, %v847
        %v851 = vxor.u32 %v850, 2147483648
        %v852 = vsel %vm769, %v851, %v850
        %v853 = vsub.s32 4, %v829
        %v854 = vsel %vm769, %v853, %v829
        %v855 = vsel %vm768, %v219, %v852
        %v856 = vsel %vm768, 0, %v854
        %v857 = vcosq.f32.pop %v855
        %v858 = vsinq.f32.pop %v855
        %vm859 = vweird.f32 %v219
        %v860 = vadd.s32 %v856, 3
        %v861 = vand.u32 %v860, 3
        %vm862 = vcmp.lt.s32.totalorder %v861, 2
        %vm863 = vcmp.eq.s32.totalorder %v861, 0
        %v864 = vxor.u32 %v858, 2147483648
        %v865 = vsel %vm863, %v857, %v864
        %vm866 = vcmp.eq.s32.totalorder %v861, 2
        %v867 = vxor.u32 %v857, 2147483648
        %v868 = vsel %vm866, %v867, %v858
        %v869 = vsel %vm862, %v865, %v868
        %v870 = vsel %vm859, nan, %v869
        %v871 = vand.u32 2147483647, %v220
        %vm872 = vcmp.le.f32.partialorder %v871, 0.7853982
        %vm873 = vcmp.lt.s32.totalorder %v220, 0
        %v874 = vand.u32 %v220, 2139095040
        %v875 = vshrl.u32 %v874, 23
        %v876 = vsub.s32 %v875, 127
        %v877 = vand.u32 2147483647, %v220
        %v878 = vand.u32 %v877, 8388607
        %v879 = vor.u32 %v878, 8388608
        %v880 = vsub.s32 0, %v879
        %v881 = vadd.s32 %v876, 1
        %vm882 = vcmp.gt.s32.totalorder %v881, 0
        %v883 = vsel %vm882, %v881, 0
        %v884 = vshrl.u32 %v883, 5
        %v885 = vand.u32 %v883, 31
        %v886 = vsub.s32 32, %v885
        %v887 = vshrl.u32 683565275, %v886
        %v888 = vshll.u32 683565275, %v885
        %v889 = vshrl.u32 2475754826, %v886
        %v890 = vor.u32 %v888, %v889
        %v891 = vshll.u32 2475754826, %v885
        %v892 = vshrl.u32 2131351028, %v886
        %v893 = vor.u32 %v891, %v892
        %v894 = vshll.u32 2131351028, %v885
        %v895 = vshrl.u32 2102212464, %v886
        %v896 = vor.u32 %v894, %v895
        %v897 = vshll.u32 2102212464, %v885
        %v898 = vshrl.u32 920167782, %v886
        %v899 = vor.u32 %v897, %v898
        %v900 = vshll.u32 920167782, %v885
        %v901 = vshrl.u32 1326507024, %v886
        %v902 = vor.u32 %v900, %v901
        %vm903 = vcmp.lt.s32.totalorder %v884, 1
        %vm904 = vcmp.lt.s32.totalorder %v884, 2
        %vm905 = vcmp.lt.s32.totalorder %v884, 3
        %vm906 = vcmp.lt.s32.totalorder %v884, 4
        %v907 = vsel %vm903, %v887, %v890
        %v908 = vsel %vm906, %v896, 2102212464
        %v909 = vsel %vm905, %v893, %v908
        %v910 = vsel %vm904, %v907, %v909
        %v911 = vsel %vm903, %v890, %v893
        %v912 = vsel %vm906, %v899, 920167782
        %v913 = vsel %vm905, %v896, %v912
        %v914 = vsel %vm904, %v911, %v913
        %v915 = vsel %vm903, %v893, %v896
        %v916 = vsel %vm906, %v902, 1326507024
        %v917 = vsel %vm905, %v899, %v916
        %v918 = vsel %vm904, %v915, %v917
        %v919 = vshll.u32 %v879, 8
        %v920 = vmul.u32.u64.compose %v919, %v918
        %v921 = vextract.low.u32 %v920
        %v922 = vextract.high.u32 %v920
        %v923 = vmul.u32.u64.compose %v919, %v914
        %v924 = vextract.low.u32 %v923
        %v925 = vextract.high.u32 %v923
        %v926 = vmul.u32 %v919, %v910
        %v927 = vadd.s32 %v922, %v924
        %vm928 = vc.u32 %v922, %v924
        %v929 = vadd.s32 %v925, 1
        %v930 = vsel %vm928, %v929, %v925
        %v931 = vadd.s32 %v926, %v930
        %v932 = vadd.s32 %v931, 536870912
        %v933 = vshrl.u32 %v932, 30
        %v934 = vshll.u32 %v933, 30
        %v935 = vsub.s32 %v931, %v934
        %vm936 = vcmp.lt.s32.totalorder %v935, 0
        %v937 = vsub.s32 0, %v935
        %v938 = vsel %vm936, %v937, %v935
        %v939 = vclz %v938
        %v940 = vsub.s32 %v939, 2
        %vm941 = vcmp.gt.s32.totalorder 0, %v940
        %v942 = vsel %vm941, 0, %v940
        %v943 = vsub.s32 32, %v942
        %v944 = vshll.u32 %v935, %v942
        %v945 = vshrl.u32 %v927, %v943
        %v946 = vor.u32 %v944, %v945
        %v947 = vsub.s32 4294967266, %v942
        %v948 = vadd.s32 %v947, 127
        %v949 = vshll.u32 %v948, 23
        %v950 = vor.u32 4788187, %v949
        %v951 = vand.u32 2147483647, %v950
        %v953 = vcvt.s32.f32 %v946
        %v954 = vmul.f32 %v953, %v951
        %v955 = vxor.u32 %v954, 2147483648
        %v956 = vsel %vm873, %v955, %v954
        %v957 = vsub.s32 4, %v933
        %v958 = vsel %vm873, %v957, %v933
        %v959 = vsel %vm872, %v220, %v956
        %v960 = vsel %vm872, 0, %v958
        %v961 = vcosq.f32.pop %v959
        %v962 = vsinq.f32.pop %v959
        %vm963 = vweird.f32 %v220
        %v964 = vadd.s32 %v960, 3
        %v965 = vand.u32 %v964, 3
        %vm966 = vcmp.lt.s32.totalorder %v965, 2
        %vm967 = vcmp.eq.s32.totalorder %v965, 0
        %v968 = vxor.u32 %v962, 2147483648
        %v969 = vsel %vm967, %v961, %v968
        %vm970 = vcmp.eq.s32.totalorder %v965, 2
        %v971 = vxor.u32 %v961, 2147483648
        %v972 = vsel %vm970, %v971, %v962
        %v973 = vsel %vm966, %v969, %v972
        %v974 = vsel %vm963, nan, %v973
        %v975 = vand.u32 2147483647, %v221
        %vm976 = vcmp.le.f32.partialorder %v975, 0.7853982
        %vm977 = vcmp.lt.s32.totalorder %v221, 0
        %v978 = vand.u32 %v221, 2139095040
        %v979 = vshrl.u32 %v978, 23
        %v980 = vsub.s32 %v979, 127
        %v981 = vand.u32 2147483647, %v221
        %v982 = vand.u32 %v981, 8388607
        %v983 = vor.u32 %v982, 8388608
        %v984 = vsub.s32 0, %v983
        %v985 = vadd.s32 %v980, 1
        %vm986 = vcmp.gt.s32.totalorder %v985, 0
        %v987 = vsel %vm986, %v985, 0
        %v988 = vshrl.u32 %v987, 5
        %v989 = vand.u32 %v987, 31
        %v990 = vsub.s32 32, %v989
        %v991 = vshrl.u32 683565275, %v990
        %v992 = vshll.u32 683565275, %v989
        %v993 = vshrl.u32 2475754826, %v990
        %v994 = vor.u32 %v992, %v993
        %v995 = vshll.u32 2475754826, %v989
        %v996 = vshrl.u32 2131351028, %v990
        %v997 = vor.u32 %v995, %v996
        %v998 = vshll.u32 2131351028, %v989
        %v999 = vshrl.u32 2102212464, %v990
        %v1000 = vor.u32 %v998, %v999
        %v1001 = vshll.u32 2102212464, %v989
        %v1002 = vshrl.u32 920167782, %v990
        %v1003 = vor.u32 %v1001, %v1002
        %v1004 = vshll.u32 920167782, %v989
        %v1005 = vshrl.u32 1326507024, %v990
        %v1006 = vor.u32 %v1004, %v1005
        %vm1007 = vcmp.lt.s32.totalorder %v988, 1
        %vm1008 = vcmp.lt.s32.totalorder %v988, 2
        %vm1009 = vcmp.lt.s32.totalorder %v988, 3
        %vm1010 = vcmp.lt.s32.totalorder %v988, 4
        %v1011 = vsel %vm1007, %v991, %v994
        %v1012 = vsel %vm1010, %v1000, 2102212464
        %v1013 = vsel %vm1009, %v997, %v1012
        %v1014 = vsel %vm1008, %v1011, %v1013
        %v1015 = vsel %vm1007, %v994, %v997
        %v1016 = vsel %vm1010, %v1003, 920167782
        %v1017 = vsel %vm1009, %v1000, %v1016
        %v1018 = vsel %vm1008, %v1015, %v1017
        %v1019 = vsel %vm1007, %v997, %v1000
        %v1020 = vsel %vm1010, %v1006, 1326507024
        %v1021 = vsel %vm1009, %v1003, %v1020
        %v1022 = vsel %vm1008, %v1019, %v1021
        %v1023 = vshll.u32 %v983, 8
        %v1024 = vmul.u32.u64.compose %v1023, %v1022
        %v1025 = vextract.low.u32 %v1024
        %v1026 = vextract.high.u32 %v1024
        %v1027 = vmul.u32.u64.compose %v1023, %v1018
        %v1028 = vextract.low.u32 %v1027
        %v1029 = vextract.high.u32 %v1027
        %v1030 = vmul.u32 %v1023, %v1014
        %v1031 = vadd.s32 %v1026, %v1028
        %vm1032 = vc.u32 %v1026, %v1028
        %v1033 = vadd.s32 %v1029, 1
        %v1034 = vsel %vm1032, %v1033, %v1029
        %v1035 = vadd.s32 %v1030, %v1034
        %v1036 = vadd.s32 %v1035, 536870912
        %v1037 = vshrl.u32 %v1036, 30
        %v1038 = vshll.u32 %v1037, 30
        %v1039 = vsub.s32 %v1035, %v1038
        %vm1040 = vcmp.lt.s32.totalorder %v1039, 0
        %v1041 = vsub.s32 0, %v1039
        %v1042 = vsel %vm1040, %v1041, %v1039
        %v1043 = vclz %v1042
        %v1044 = vsub.s32 %v1043, 2
        %vm1045 = vcmp.gt.s32.totalorder 0, %v1044
        %v1046 = vsel %vm1045, 0, %v1044
        %v1047 = vsub.s32 32, %v1046
        %v1048 = vshll.u32 %v1039, %v1046
        %v1049 = vshrl.u32 %v1031, %v1047
        %v1050 = vor.u32 %v1048, %v1049
        %v1051 = vsub.s32 4294967266, %v1046
        %v1052 = vadd.s32 %v1051, 127
        %v1053 = vshll.u32 %v1052, 23
        %v1054 = vor.u32 4788187, %v1053
        %v1055 = vand.u32 2147483647, %v1054
        %v1057 = vcvt.s32.f32 %v1050
        %v1058 = vmul.f32 %v1057, %v1055
        %v1059 = vxor.u32 %v1058, 2147483648
        %v1060 = vsel %vm977, %v1059, %v1058
        %v1061 = vsub.s32 4, %v1037
        %v1062 = vsel %vm977, %v1061, %v1037
        %v1063 = vsel %vm976, %v221, %v1060
        %v1064 = vsel %vm976, 0, %v1062
        %v1065 = vcosq.f32.pop %v1063
        %v1066 = vsinq.f32.pop %v1063
        %vm1067 = vweird.f32 %v221
        %v1068 = vadd.s32 %v1064, 3
        %v1069 = vand.u32 %v1068, 3
        %vm1070 = vcmp.lt.s32.totalorder %v1069, 2
        %vm1071 = vcmp.eq.s32.totalorder %v1069, 0
        %v1072 = vxor.u32 %v1066, 2147483648
        %v1073 = vsel %vm1071, %v1065, %v1072
        %vm1074 = vcmp.eq.s32.totalorder %v1069, 2
        %v1075 = vxor.u32 %v1065, 2147483648
        %v1076 = vsel %vm1074, %v1075, %v1066
        %v1077 = vsel %vm1070, %v1073, %v1076
        %v1078 = vsel %vm1067, nan, %v1077
        %v1079 = vand.u32 2147483647, %v222
        %vm1080 = vcmp.le.f32.partialorder %v1079, 0.7853982
        %vm1081 = vcmp.lt.s32.totalorder %v222, 0
        %v1082 = vand.u32 %v222, 2139095040
        %v1083 = vshrl.u32 %v1082, 23
        %v1084 = vsub.s32 %v1083, 127
        %v1085 = vand.u32 2147483647, %v222
        %v1086 = vand.u32 %v1085, 8388607
        %v1087 = vor.u32 %v1086, 8388608
        %v1088 = vsub.s32 0, %v1087
        %v1089 = vadd.s32 %v1084, 1
        %vm1090 = vcmp.gt.s32.totalorder %v1089, 0
        %v1091 = vsel %vm1090, %v1089, 0
        %v1092 = vshrl.u32 %v1091, 5
        %v1093 = vand.u32 %v1091, 31
        %v1094 = vsub.s32 32, %v1093
        %v1095 = vshrl.u32 683565275, %v1094
        %v1096 = vshll.u32 683565275, %v1093
        %v1097 = vshrl.u32 2475754826, %v1094
        %v1098 = vor.u32 %v1096, %v1097
        %v1099 = vshll.u32 2475754826, %v1093
        %v1100 = vshrl.u32 2131351028, %v1094
        %v1101 = vor.u32 %v1099, %v1100
        %v1102 = vshll.u32 2131351028, %v1093
        %v1103 = vshrl.u32 2102212464, %v1094
        %v1104 = vor.u32 %v1102, %v1103
        %v1105 = vshll.u32 2102212464, %v1093
        %v1106 = vshrl.u32 920167782, %v1094
        %v1107 = vor.u32 %v1105, %v1106
        %v1108 = vshll.u32 920167782, %v1093
        %v1109 = vshrl.u32 1326507024, %v1094
        %v1110 = vor.u32 %v1108, %v1109
        %vm1111 = vcmp.lt.s32.totalorder %v1092, 1
        %vm1112 = vcmp.lt.s32.totalorder %v1092, 2
        %vm1113 = vcmp.lt.s32.totalorder %v1092, 3
        %vm1114 = vcmp.lt.s32.totalorder %v1092, 4
        %v1115 = vsel %vm1111, %v1095, %v1098
        %v1116 = vsel %vm1114, %v1104, 2102212464
        %v1117 = vsel %vm1113, %v1101, %v1116
        %v1118 = vsel %vm1112, %v1115, %v1117
        %v1119 = vsel %vm1111, %v1098, %v1101
        %v1120 = vsel %vm1114, %v1107, 920167782
        %v1121 = vsel %vm1113, %v1104, %v1120
        %v1122 = vsel %vm1112, %v1119, %v1121
        %v1123 = vsel %vm1111, %v1101, %v1104
        %v1124 = vsel %vm1114, %v1110, 1326507024
        %v1125 = vsel %vm1113, %v1107, %v1124
        %v1126 = vsel %vm1112, %v1123, %v1125
        %v1127 = vshll.u32 %v1087, 8
        %v1128 = vmul.u32.u64.compose %v1127, %v1126
        %v1129 = vextract.low.u32 %v1128
        %v1130 = vextract.high.u32 %v1128
        %v1131 = vmul.u32.u64.compose %v1127, %v1122
        %v1132 = vextract.low.u32 %v1131
        %v1133 = vextract.high.u32 %v1131
        %v1134 = vmul.u32 %v1127, %v1118
        %v1135 = vadd.s32 %v1130, %v1132
        %vm1136 = vc.u32 %v1130, %v1132
        %v1137 = vadd.s32 %v1133, 1
        %v1138 = vsel %vm1136, %v1137, %v1133
        %v1139 = vadd.s32 %v1134, %v1138
        %v1140 = vadd.s32 %v1139, 536870912
        %v1141 = vshrl.u32 %v1140, 30
        %v1142 = vshll.u32 %v1141, 30
        %v1143 = vsub.s32 %v1139, %v1142
        %vm1144 = vcmp.lt.s32.totalorder %v1143, 0
        %v1145 = vsub.s32 0, %v1143
        %v1146 = vsel %vm1144, %v1145, %v1143
        %v1147 = vclz %v1146
        %v1148 = vsub.s32 %v1147, 2
        %vm1149 = vcmp.gt.s32.totalorder 0, %v1148
        %v1150 = vsel %vm1149, 0, %v1148
        %v1151 = vsub.s32 32, %v1150
        %v1152 = vshll.u32 %v1143, %v1150
        %v1153 = vshrl.u32 %v1135, %v1151
        %v1154 = vor.u32 %v1152, %v1153
        %v1155 = vsub.s32 4294967266, %v1150
        %v1156 = vadd.s32 %v1155, 127
        %v1157 = vshll.u32 %v1156, 23
        %v1158 = vor.u32 4788187, %v1157
        %v1159 = vand.u32 2147483647, %v1158
        %v1161 = vcvt.s32.f32 %v1154
        %v1162 = vmul.f32 %v1161, %v1159
        %v1163 = vxor.u32 %v1162, 2147483648
        %v1164 = vsel %vm1081, %v1163, %v1162
        %v1165 = vsub.s32 4, %v1141
        %v1166 = vsel %vm1081, %v1165, %v1141
        %v1167 = vsel %vm1080, %v222, %v1164
        %v1168 = vsel %vm1080, 0, %v1166
        %v1169 = vcosq.f32.pop %v1167
        %v1170 = vsinq.f32.pop %v1167
        %vm1171 = vweird.f32 %v222
        %v1172 = vadd.s32 %v1168, 3
        %v1173 = vand.u32 %v1172, 3
        %vm1174 = vcmp.lt.s32.totalorder %v1173, 2
        %vm1175 = vcmp.eq.s32.totalorder %v1173, 0
        %v1176 = vxor.u32 %v1170, 2147483648
        %v1177 = vsel %vm1175, %v1169, %v1176
        %vm1178 = vcmp.eq.s32.totalorder %v1173, 2
        %v1179 = vxor.u32 %v1169, 2147483648
        %v1180 = vsel %vm1178, %v1179, %v1170
        %v1181 = vsel %vm1174, %v1177, %v1180
        %v1182 = vsel %vm1171, nan, %v1181
        %v1183 = vand.u32 2147483647, %v223
        %vm1184 = vcmp.le.f32.partialorder %v1183, 0.7853982
        %vm1185 = vcmp.lt.s32.totalorder %v223, 0
        %v1186 = vand.u32 %v223, 2139095040
        %v1187 = vshrl.u32 %v1186, 23
        %v1188 = vsub.s32 %v1187, 127
        %v1189 = vand.u32 2147483647, %v223
        %v1190 = vand.u32 %v1189, 8388607
        %v1191 = vor.u32 %v1190, 8388608
        %v1192 = vsub.s32 0, %v1191
        %v1193 = vadd.s32 %v1188, 1
        %vm1194 = vcmp.gt.s32.totalorder %v1193, 0
        %v1195 = vsel %vm1194, %v1193, 0
        %v1196 = vshrl.u32 %v1195, 5
        %v1197 = vand.u32 %v1195, 31
        %v1198 = vsub.s32 32, %v1197
        %v1199 = vshrl.u32 683565275, %v1198
        %v1200 = vshll.u32 683565275, %v1197
        %v1201 = vshrl.u32 2475754826, %v1198
        %v1202 = vor.u32 %v1200, %v1201
        %v1203 = vshll.u32 2475754826, %v1197
        %v1204 = vshrl.u32 2131351028, %v1198
        %v1205 = vor.u32 %v1203, %v1204
        %v1206 = vshll.u32 2131351028, %v1197
        %v1207 = vshrl.u32 2102212464, %v1198
        %v1208 = vor.u32 %v1206, %v1207
        %v1209 = vshll.u32 2102212464, %v1197
        %v1210 = vshrl.u32 920167782, %v1198
        %v1211 = vor.u32 %v1209, %v1210
        %v1212 = vshll.u32 920167782, %v1197
        %v1213 = vshrl.u32 1326507024, %v1198
        %v1214 = vor.u32 %v1212, %v1213
        %vm1215 = vcmp.lt.s32.totalorder %v1196, 1
        %vm1216 = vcmp.lt.s32.totalorder %v1196, 2
        %vm1217 = vcmp.lt.s32.totalorder %v1196, 3
        %vm1218 = vcmp.lt.s32.totalorder %v1196, 4
        %v1219 = vsel %vm1215, %v1199, %v1202
        %v1220 = vsel %vm1218, %v1208, 2102212464
        %v1221 = vsel %vm1217, %v1205, %v1220
        %v1222 = vsel %vm1216, %v1219, %v1221
        %v1223 = vsel %vm1215, %v1202, %v1205
        %v1224 = vsel %vm1218, %v1211, 920167782
        %v1225 = vsel %vm1217, %v1208, %v1224
        %v1226 = vsel %vm1216, %v1223, %v1225
        %v1227 = vsel %vm1215, %v1205, %v1208
        %v1228 = vsel %vm1218, %v1214, 1326507024
        %v1229 = vsel %vm1217, %v1211, %v1228
        %v1230 = vsel %vm1216, %v1227, %v1229
        %v1231 = vshll.u32 %v1191, 8
        %v1232 = vmul.u32.u64.compose %v1231, %v1230
        %v1233 = vextract.low.u32 %v1232
        %v1234 = vextract.high.u32 %v1232
        %v1235 = vmul.u32.u64.compose %v1231, %v1226
        %v1236 = vextract.low.u32 %v1235
        %v1237 = vextract.high.u32 %v1235
        %v1238 = vmul.u32 %v1231, %v1222
        %v1239 = vadd.s32 %v1234, %v1236
        %vm1240 = vc.u32 %v1234, %v1236
        %v1241 = vadd.s32 %v1237, 1
        %v1242 = vsel %vm1240, %v1241, %v1237
        %v1243 = vadd.s32 %v1238, %v1242
        %v1244 = vadd.s32 %v1243, 536870912
        %v1245 = vshrl.u32 %v1244, 30
        %v1246 = vshll.u32 %v1245, 30
        %v1247 = vsub.s32 %v1243, %v1246
        %vm1248 = vcmp.lt.s32.totalorder %v1247, 0
        %v1249 = vsub.s32 0, %v1247
        %v1250 = vsel %vm1248, %v1249, %v1247
        %v1251 = vclz %v1250
        %v1252 = vsub.s32 %v1251, 2
        %vm1253 = vcmp.gt.s32.totalorder 0, %v1252
        %v1254 = vsel %vm1253, 0, %v1252
        %v1255 = vsub.s32 32, %v1254
        %v1256 = vshll.u32 %v1247, %v1254
        %v1257 = vshrl.u32 %v1239, %v1255
        %v1258 = vor.u32 %v1256, %v1257
        %v1259 = vsub.s32 4294967266, %v1254
        %v1260 = vadd.s32 %v1259, 127
        %v1261 = vshll.u32 %v1260, 23
        %v1262 = vor.u32 4788187, %v1261
        %v1263 = vand.u32 2147483647, %v1262
        %v1265 = vcvt.s32.f32 %v1258
        %v1266 = vmul.f32 %v1265, %v1263
        %v1267 = vxor.u32 %v1266, 2147483648
        %v1268 = vsel %vm1185, %v1267, %v1266
        %v1269 = vsub.s32 4, %v1245
        %v1270 = vsel %vm1185, %v1269, %v1245
        %v1271 = vsel %vm1184, %v223, %v1268
        %v1272 = vsel %vm1184, 0, %v1270
        %v1273 = vcosq.f32.pop %v1271
        %v1274 = vsinq.f32.pop %v1271
        %vm1275 = vweird.f32 %v223
        %v1276 = vadd.s32 %v1272, 3
        %v1277 = vand.u32 %v1276, 3
        %vm1278 = vcmp.lt.s32.totalorder %v1277, 2
        %vm1279 = vcmp.eq.s32.totalorder %v1277, 0
        %v1280 = vxor.u32 %v1274, 2147483648
        %v1281 = vsel %vm1279, %v1273, %v1280
        %vm1282 = vcmp.eq.s32.totalorder %v1277, 2
        %v1283 = vxor.u32 %v1273, 2147483648
        %v1284 = vsel %vm1282, %v1283, %v1274
        %v1285 = vsel %vm1278, %v1281, %v1284
        %v1286 = vsel %vm1275, nan, %v1285
        %v1287 = vand.u32 2147483647, %v224
        %vm1288 = vcmp.le.f32.partialorder %v1287, 0.7853982
        %vm1289 = vcmp.lt.s32.totalorder %v224, 0
        %v1290 = vand.u32 %v224, 2139095040
        %v1291 = vshrl.u32 %v1290, 23
        %v1292 = vsub.s32 %v1291, 127
        %v1293 = vand.u32 2147483647, %v224
        %v1294 = vand.u32 %v1293, 8388607
        %v1295 = vor.u32 %v1294, 8388608
        %v1296 = vsub.s32 0, %v1295
        %v1297 = vadd.s32 %v1292, 1
        %vm1298 = vcmp.gt.s32.totalorder %v1297, 0
        %v1299 = vsel %vm1298, %v1297, 0
        %v1300 = vshrl.u32 %v1299, 5
        %v1301 = vand.u32 %v1299, 31
        %v1302 = vsub.s32 32, %v1301
        %v1303 = vshrl.u32 683565275, %v1302
        %v1304 = vshll.u32 683565275, %v1301
        %v1305 = vshrl.u32 2475754826, %v1302
        %v1306 = vor.u32 %v1304, %v1305
        %v1307 = vshll.u32 2475754826, %v1301
        %v1308 = vshrl.u32 2131351028, %v1302
        %v1309 = vor.u32 %v1307, %v1308
        %v1310 = vshll.u32 2131351028, %v1301
        %v1311 = vshrl.u32 2102212464, %v1302
        %v1312 = vor.u32 %v1310, %v1311
        %v1313 = vshll.u32 2102212464, %v1301
        %v1314 = vshrl.u32 920167782, %v1302
        %v1315 = vor.u32 %v1313, %v1314
        %v1316 = vshll.u32 920167782, %v1301
        %v1317 = vshrl.u32 1326507024, %v1302
        %v1318 = vor.u32 %v1316, %v1317
        %vm1319 = vcmp.lt.s32.totalorder %v1300, 1
        %vm1320 = vcmp.lt.s32.totalorder %v1300, 2
        %vm1321 = vcmp.lt.s32.totalorder %v1300, 3
        %vm1322 = vcmp.lt.s32.totalorder %v1300, 4
        %v1323 = vsel %vm1319, %v1303, %v1306
        %v1324 = vsel %vm1322, %v1312, 2102212464
        %v1325 = vsel %vm1321, %v1309, %v1324
        %v1326 = vsel %vm1320, %v1323, %v1325
        %v1327 = vsel %vm1319, %v1306, %v1309
        %v1328 = vsel %vm1322, %v1315, 920167782
        %v1329 = vsel %vm1321, %v1312, %v1328
        %v1330 = vsel %vm1320, %v1327, %v1329
        %v1331 = vsel %vm1319, %v1309, %v1312
        %v1332 = vsel %vm1322, %v1318, 1326507024
        %v1333 = vsel %vm1321, %v1315, %v1332
        %v1334 = vsel %vm1320, %v1331, %v1333
        %v1335 = vshll.u32 %v1295, 8
        %v1336 = vmul.u32.u64.compose %v1335, %v1334
        %v1337 = vextract.low.u32 %v1336
        %v1338 = vextract.high.u32 %v1336
        %v1339 = vmul.u32.u64.compose %v1335, %v1330
        %v1340 = vextract.low.u32 %v1339
        %v1341 = vextract.high.u32 %v1339
        %v1342 = vmul.u32 %v1335, %v1326
        %v1343 = vadd.s32 %v1338, %v1340
        %vm1344 = vc.u32 %v1338, %v1340
        %v1345 = vadd.s32 %v1341, 1
        %v1346 = vsel %vm1344, %v1345, %v1341
        %v1347 = vadd.s32 %v1342, %v1346
        %v1348 = vadd.s32 %v1347, 536870912
        %v1349 = vshrl.u32 %v1348, 30
        %v1350 = vshll.u32 %v1349, 30
        %v1351 = vsub.s32 %v1347, %v1350
        %vm1352 = vcmp.lt.s32.totalorder %v1351, 0
        %v1353 = vsub.s32 0, %v1351
        %v1354 = vsel %vm1352, %v1353, %v1351
        %v1355 = vclz %v1354
        %v1356 = vsub.s32 %v1355, 2
        %vm1357 = vcmp.gt.s32.totalorder 0, %v1356
        %v1358 = vsel %vm1357, 0, %v1356
        %v1359 = vsub.s32 32, %v1358
        %v1360 = vshll.u32 %v1351, %v1358
        %v1361 = vshrl.u32 %v1343, %v1359
        %v1362 = vor.u32 %v1360, %v1361
        %v1363 = vsub.s32 4294967266, %v1358
        %v1364 = vadd.s32 %v1363, 127
        %v1365 = vshll.u32 %v1364, 23
        %v1366 = vor.u32 4788187, %v1365
        %v1367 = vand.u32 2147483647, %v1366
        %v1369 = vcvt.s32.f32 %v1362
        %v1370 = vmul.f32 %v1369, %v1367
        %v1371 = vxor.u32 %v1370, 2147483648
        %v1372 = vsel %vm1289, %v1371, %v1370
        %v1373 = vsub.s32 4, %v1349
        %v1374 = vsel %vm1289, %v1373, %v1349
        %v1375 = vsel %vm1288, %v224, %v1372
        %v1376 = vsel %vm1288, 0, %v1374
        %v1377 = vcosq.f32.pop %v1375
        %v1378 = vsinq.f32.pop %v1375
        %vm1379 = vweird.f32 %v224
        %v1380 = vadd.s32 %v1376, 3
        %v1381 = vand.u32 %v1380, 3
        %vm1382 = vcmp.lt.s32.totalorder %v1381, 2
        %vm1383 = vcmp.eq.s32.totalorder %v1381, 0
        %v1384 = vxor.u32 %v1378, 2147483648
        %v1385 = vsel %vm1383, %v1377, %v1384
        %vm1386 = vcmp.eq.s32.totalorder %v1381, 2
        %v1387 = vxor.u32 %v1377, 2147483648
        %v1388 = vsel %vm1386, %v1387, %v1378
        %v1389 = vsel %vm1382, %v1385, %v1388
        %v1390 = vsel %vm1379, nan, %v1389
        %v1391 = vand.u32 2147483647, %v225
        %vm1392 = vcmp.le.f32.partialorder %v1391, 0.7853982
        %vm1393 = vcmp.lt.s32.totalorder %v225, 0
        %v1394 = vand.u32 %v225, 2139095040
        %v1395 = vshrl.u32 %v1394, 23
        %v1396 = vsub.s32 %v1395, 127
        %v1397 = vand.u32 2147483647, %v225
        %v1398 = vand.u32 %v1397, 8388607
        %v1399 = vor.u32 %v1398, 8388608
        %v1400 = vsub.s32 0, %v1399
        %v1401 = vadd.s32 %v1396, 1
        %vm1402 = vcmp.gt.s32.totalorder %v1401, 0
        %v1403 = vsel %vm1402, %v1401, 0
        %v1404 = vshrl.u32 %v1403, 5
        %v1405 = vand.u32 %v1403, 31
        %v1406 = vsub.s32 32, %v1405
        %v1407 = vshrl.u32 683565275, %v1406
        %v1408 = vshll.u32 683565275, %v1405
        %v1409 = vshrl.u32 2475754826, %v1406
        %v1410 = vor.u32 %v1408, %v1409
        %v1411 = vshll.u32 2475754826, %v1405
        %v1412 = vshrl.u32 2131351028, %v1406
        %v1413 = vor.u32 %v1411, %v1412
        %v1414 = vshll.u32 2131351028, %v1405
        %v1415 = vshrl.u32 2102212464, %v1406
        %v1416 = vor.u32 %v1414, %v1415
        %v1417 = vshll.u32 2102212464, %v1405
        %v1418 = vshrl.u32 920167782, %v1406
        %v1419 = vor.u32 %v1417, %v1418
        %v1420 = vshll.u32 920167782, %v1405
        %v1421 = vshrl.u32 1326507024, %v1406
        %v1422 = vor.u32 %v1420, %v1421
        %vm1423 = vcmp.lt.s32.totalorder %v1404, 1
        %vm1424 = vcmp.lt.s32.totalorder %v1404, 2
        %vm1425 = vcmp.lt.s32.totalorder %v1404, 3
        %vm1426 = vcmp.lt.s32.totalorder %v1404, 4
        %v1427 = vsel %vm1423, %v1407, %v1410
        %v1428 = vsel %vm1426, %v1416, 2102212464
        %v1429 = vsel %vm1425, %v1413, %v1428
        %v1430 = vsel %vm1424, %v1427, %v1429
        %v1431 = vsel %vm1423, %v1410, %v1413
        %v1432 = vsel %vm1426, %v1419, 920167782
        %v1433 = vsel %vm1425, %v1416, %v1432
        %v1434 = vsel %vm1424, %v1431, %v1433
        %v1435 = vsel %vm1423, %v1413, %v1416
        %v1436 = vsel %vm1426, %v1422, 1326507024
        %v1437 = vsel %vm1425, %v1419, %v1436
        %v1438 = vsel %vm1424, %v1435, %v1437
        %v1439 = vshll.u32 %v1399, 8
        %v1440 = vmul.u32.u64.compose %v1439, %v1438
        %v1441 = vextract.low.u32 %v1440
        %v1442 = vextract.high.u32 %v1440
        %v1443 = vmul.u32.u64.compose %v1439, %v1434
        %v1444 = vextract.low.u32 %v1443
        %v1445 = vextract.high.u32 %v1443
        %v1446 = vmul.u32 %v1439, %v1430
        %v1447 = vadd.s32 %v1442, %v1444
        %vm1448 = vc.u32 %v1442, %v1444
        %v1449 = vadd.s32 %v1445, 1
        %v1450 = vsel %vm1448, %v1449, %v1445
        %v1451 = vadd.s32 %v1446, %v1450
        %v1452 = vadd.s32 %v1451, 536870912
        %v1453 = vshrl.u32 %v1452, 30
        %v1454 = vshll.u32 %v1453, 30
        %v1455 = vsub.s32 %v1451, %v1454
        %vm1456 = vcmp.lt.s32.totalorder %v1455, 0
        %v1457 = vsub.s32 0, %v1455
        %v1458 = vsel %vm1456, %v1457, %v1455
        %v1459 = vclz %v1458
        %v1460 = vsub.s32 %v1459, 2
        %vm1461 = vcmp.gt.s32.totalorder 0, %v1460
        %v1462 = vsel %vm1461, 0, %v1460
        %v1463 = vsub.s32 32, %v1462
        %v1464 = vshll.u32 %v1455, %v1462
        %v1465 = vshrl.u32 %v1447, %v1463
        %v1466 = vor.u32 %v1464, %v1465
        %v1467 = vsub.s32 4294967266, %v1462
        %v1468 = vadd.s32 %v1467, 127
        %v1469 = vshll.u32 %v1468, 23
        %v1470 = vor.u32 4788187, %v1469
        %v1471 = vand.u32 2147483647, %v1470
        %v1473 = vcvt.s32.f32 %v1466
        %v1474 = vmul.f32 %v1473, %v1471
        %v1475 = vxor.u32 %v1474, 2147483648
        %v1476 = vsel %vm1393, %v1475, %v1474
        %v1477 = vsub.s32 4, %v1453
        %v1478 = vsel %vm1393, %v1477, %v1453
        %v1479 = vsel %vm1392, %v225, %v1476
        %v1480 = vsel %vm1392, 0, %v1478
        %v1481 = vcosq.f32.pop %v1479
        %v1482 = vsinq.f32.pop %v1479
        %vm1483 = vweird.f32 %v225
        %v1484 = vadd.s32 %v1480, 3
        %v1485 = vand.u32 %v1484, 3
        %vm1486 = vcmp.lt.s32.totalorder %v1485, 2
        %vm1487 = vcmp.eq.s32.totalorder %v1485, 0
        %v1488 = vxor.u32 %v1482, 2147483648
        %v1489 = vsel %vm1487, %v1481, %v1488
        %vm1490 = vcmp.eq.s32.totalorder %v1485, 2
        %v1491 = vxor.u32 %v1481, 2147483648
        %v1492 = vsel %vm1490, %v1491, %v1482
        %v1493 = vsel %vm1486, %v1489, %v1492
        %v1494 = vsel %vm1483, nan, %v1493
        %v1495 = vand.u32 2147483647, %v226
        %vm1496 = vcmp.le.f32.partialorder %v1495, 0.7853982
        %vm1497 = vcmp.lt.s32.totalorder %v226, 0
        %v1498 = vand.u32 %v226, 2139095040
        %v1499 = vshrl.u32 %v1498, 23
        %v1500 = vsub.s32 %v1499, 127
        %v1501 = vand.u32 2147483647, %v226
        %v1502 = vand.u32 %v1501, 8388607
        %v1503 = vor.u32 %v1502, 8388608
        %v1504 = vsub.s32 0, %v1503
        %v1505 = vadd.s32 %v1500, 1
        %vm1506 = vcmp.gt.s32.totalorder %v1505, 0
        %v1507 = vsel %vm1506, %v1505, 0
        %v1508 = vshrl.u32 %v1507, 5
        %v1509 = vand.u32 %v1507, 31
        %v1510 = vsub.s32 32, %v1509
        %v1511 = vshrl.u32 683565275, %v1510
        %v1512 = vshll.u32 683565275, %v1509
        %v1513 = vshrl.u32 2475754826, %v1510
        %v1514 = vor.u32 %v1512, %v1513
        %v1515 = vshll.u32 2475754826, %v1509
        %v1516 = vshrl.u32 2131351028, %v1510
        %v1517 = vor.u32 %v1515, %v1516
        %v1518 = vshll.u32 2131351028, %v1509
        %v1519 = vshrl.u32 2102212464, %v1510
        %v1520 = vor.u32 %v1518, %v1519
        %v1521 = vshll.u32 2102212464, %v1509
        %v1522 = vshrl.u32 920167782, %v1510
        %v1523 = vor.u32 %v1521, %v1522
        %v1524 = vshll.u32 920167782, %v1509
        %v1525 = vshrl.u32 1326507024, %v1510
        %v1526 = vor.u32 %v1524, %v1525
        %vm1527 = vcmp.lt.s32.totalorder %v1508, 1
        %vm1528 = vcmp.lt.s32.totalorder %v1508, 2
        %vm1529 = vcmp.lt.s32.totalorder %v1508, 3
        %vm1530 = vcmp.lt.s32.totalorder %v1508, 4
        %v1531 = vsel %vm1527, %v1511, %v1514
        %v1532 = vsel %vm1530, %v1520, 2102212464
        %v1533 = vsel %vm1529, %v1517, %v1532
        %v1534 = vsel %vm1528, %v1531, %v1533
        %v1535 = vsel %vm1527, %v1514, %v1517
        %v1536 = vsel %vm1530, %v1523, 920167782
        %v1537 = vsel %vm1529, %v1520, %v1536
        %v1538 = vsel %vm1528, %v1535, %v1537
        %v1539 = vsel %vm1527, %v1517, %v1520
        %v1540 = vsel %vm1530, %v1526, 1326507024
        %v1541 = vsel %vm1529, %v1523, %v1540
        %v1542 = vsel %vm1528, %v1539, %v1541
        %v1543 = vshll.u32 %v1503, 8
        %v1544 = vmul.u32.u64.compose %v1543, %v1542
        %v1545 = vextract.low.u32 %v1544
        %v1546 = vextract.high.u32 %v1544
        %v1547 = vmul.u32.u64.compose %v1543, %v1538
        %v1548 = vextract.low.u32 %v1547
        %v1549 = vextract.high.u32 %v1547
        %v1550 = vmul.u32 %v1543, %v1534
        %v1551 = vadd.s32 %v1546, %v1548
        %vm1552 = vc.u32 %v1546, %v1548
        %v1553 = vadd.s32 %v1549, 1
        %v1554 = vsel %vm1552, %v1553, %v1549
        %v1555 = vadd.s32 %v1550, %v1554
        %v1556 = vadd.s32 %v1555, 536870912
        %v1557 = vshrl.u32 %v1556, 30
        %v1558 = vshll.u32 %v1557, 30
        %v1559 = vsub.s32 %v1555, %v1558
        %vm1560 = vcmp.lt.s32.totalorder %v1559, 0
        %v1561 = vsub.s32 0, %v1559
        %v1562 = vsel %vm1560, %v1561, %v1559
        %v1563 = vclz %v1562
        %v1564 = vsub.s32 %v1563, 2
        %vm1565 = vcmp.gt.s32.totalorder 0, %v1564
        %v1566 = vsel %vm1565, 0, %v1564
        %v1567 = vsub.s32 32, %v1566
        %v1568 = vshll.u32 %v1559, %v1566
        %v1569 = vshrl.u32 %v1551, %v1567
        %v1570 = vor.u32 %v1568, %v1569
        %v1571 = vsub.s32 4294967266, %v1566
        %v1572 = vadd.s32 %v1571, 127
        %v1573 = vshll.u32 %v1572, 23
        %v1574 = vor.u32 4788187, %v1573
        %v1575 = vand.u32 2147483647, %v1574
        %v1577 = vcvt.s32.f32 %v1570
        %v1578 = vmul.f32 %v1577, %v1575
        %v1579 = vxor.u32 %v1578, 2147483648
        %v1580 = vsel %vm1497, %v1579, %v1578
        %v1581 = vsub.s32 4, %v1557
        %v1582 = vsel %vm1497, %v1581, %v1557
        %v1583 = vsel %vm1496, %v226, %v1580
        %v1584 = vsel %vm1496, 0, %v1582
        %v1585 = vcosq.f32.pop %v1583
        %v1586 = vsinq.f32.pop %v1583
        %vm1587 = vweird.f32 %v226
        %v1588 = vadd.s32 %v1584, 3
        %v1589 = vand.u32 %v1588, 3
        %vm1590 = vcmp.lt.s32.totalorder %v1589, 2
        %vm1591 = vcmp.eq.s32.totalorder %v1589, 0
        %v1592 = vxor.u32 %v1586, 2147483648
        %v1593 = vsel %vm1591, %v1585, %v1592
        %vm1594 = vcmp.eq.s32.totalorder %v1589, 2
        %v1595 = vxor.u32 %v1585, 2147483648
        %v1596 = vsel %vm1594, %v1595, %v1586
        %v1597 = vsel %vm1590, %v1593, %v1596
        %v1598 = vsel %vm1587, nan, %v1597
        %v1599 = vand.u32 2147483647, %v227
        %vm1600 = vcmp.le.f32.partialorder %v1599, 0.7853982
        %vm1601 = vcmp.lt.s32.totalorder %v227, 0
        %v1602 = vand.u32 %v227, 2139095040
        %v1603 = vshrl.u32 %v1602, 23
        %v1604 = vsub.s32 %v1603, 127
        %v1605 = vand.u32 2147483647, %v227
        %v1606 = vand.u32 %v1605, 8388607
        %v1607 = vor.u32 %v1606, 8388608
        %v1608 = vsub.s32 0, %v1607
        %v1609 = vadd.s32 %v1604, 1
        %vm1610 = vcmp.gt.s32.totalorder %v1609, 0
        %v1611 = vsel %vm1610, %v1609, 0
        %v1612 = vshrl.u32 %v1611, 5
        %v1613 = vand.u32 %v1611, 31
        %v1614 = vsub.s32 32, %v1613
        %v1615 = vshrl.u32 683565275, %v1614
        %v1616 = vshll.u32 683565275, %v1613
        %v1617 = vshrl.u32 2475754826, %v1614
        %v1618 = vor.u32 %v1616, %v1617
        %v1619 = vshll.u32 2475754826, %v1613
        %v1620 = vshrl.u32 2131351028, %v1614
        %v1621 = vor.u32 %v1619, %v1620
        %v1622 = vshll.u32 2131351028, %v1613
        %v1623 = vshrl.u32 2102212464, %v1614
        %v1624 = vor.u32 %v1622, %v1623
        %v1625 = vshll.u32 2102212464, %v1613
        %v1626 = vshrl.u32 920167782, %v1614
        %v1627 = vor.u32 %v1625, %v1626
        %v1628 = vshll.u32 920167782, %v1613
        %v1629 = vshrl.u32 1326507024, %v1614
        %v1630 = vor.u32 %v1628, %v1629
        %vm1631 = vcmp.lt.s32.totalorder %v1612, 1
        %vm1632 = vcmp.lt.s32.totalorder %v1612, 2
        %vm1633 = vcmp.lt.s32.totalorder %v1612, 3
        %vm1634 = vcmp.lt.s32.totalorder %v1612, 4
        %v1635 = vsel %vm1631, %v1615, %v1618
        %v1636 = vsel %vm1634, %v1624, 2102212464
        %v1637 = vsel %vm1633, %v1621, %v1636
        %v1638 = vsel %vm1632, %v1635, %v1637
        %v1639 = vsel %vm1631, %v1618, %v1621
        %v1640 = vsel %vm1634, %v1627, 920167782
        %v1641 = vsel %vm1633, %v1624, %v1640
        %v1642 = vsel %vm1632, %v1639, %v1641
        %v1643 = vsel %vm1631, %v1621, %v1624
        %v1644 = vsel %vm1634, %v1630, 1326507024
        %v1645 = vsel %vm1633, %v1627, %v1644
        %v1646 = vsel %vm1632, %v1643, %v1645
        %v1647 = vshll.u32 %v1607, 8
        %v1648 = vmul.u32.u64.compose %v1647, %v1646
        %v1649 = vextract.low.u32 %v1648
        %v1650 = vextract.high.u32 %v1648
        %v1651 = vmul.u32.u64.compose %v1647, %v1642
        %v1652 = vextract.low.u32 %v1651
        %v1653 = vextract.high.u32 %v1651
        %v1654 = vmul.u32 %v1647, %v1638
        %v1655 = vadd.s32 %v1650, %v1652
        %vm1656 = vc.u32 %v1650, %v1652
        %v1657 = vadd.s32 %v1653, 1
        %v1658 = vsel %vm1656, %v1657, %v1653
        %v1659 = vadd.s32 %v1654, %v1658
        %v1660 = vadd.s32 %v1659, 536870912
        %v1661 = vshrl.u32 %v1660, 30
        %v1662 = vshll.u32 %v1661, 30
        %v1663 = vsub.s32 %v1659, %v1662
        %vm1664 = vcmp.lt.s32.totalorder %v1663, 0
        %v1665 = vsub.s32 0, %v1663
        %v1666 = vsel %vm1664, %v1665, %v1663
        %v1667 = vclz %v1666
        %v1668 = vsub.s32 %v1667, 2
        %vm1669 = vcmp.gt.s32.totalorder 0, %v1668
        %v1670 = vsel %vm1669, 0, %v1668
        %v1671 = vsub.s32 32, %v1670
        %v1672 = vshll.u32 %v1663, %v1670
        %v1673 = vshrl.u32 %v1655, %v1671
        %v1674 = vor.u32 %v1672, %v1673
        %v1675 = vsub.s32 4294967266, %v1670
        %v1676 = vadd.s32 %v1675, 127
        %v1677 = vshll.u32 %v1676, 23
        %v1678 = vor.u32 4788187, %v1677
        %v1679 = vand.u32 2147483647, %v1678
        %v1681 = vcvt.s32.f32 %v1674
        %v1682 = vmul.f32 %v1681, %v1679
        %v1683 = vxor.u32 %v1682, 2147483648
        %v1684 = vsel %vm1601, %v1683, %v1682
        %v1685 = vsub.s32 4, %v1661
        %v1686 = vsel %vm1601, %v1685, %v1661
        %v1687 = vsel %vm1600, %v227, %v1684
        %v1688 = vsel %vm1600, 0, %v1686
        %v1689 = vcosq.f32.pop %v1687
        %v1690 = vsinq.f32.pop %v1687
        %vm1691 = vweird.f32 %v227
        %v1692 = vadd.s32 %v1688, 3
        %v1693 = vand.u32 %v1692, 3
        %vm1694 = vcmp.lt.s32.totalorder %v1693, 2
        %vm1695 = vcmp.eq.s32.totalorder %v1693, 0
        %v1696 = vxor.u32 %v1690, 2147483648
        %v1697 = vsel %vm1695, %v1689, %v1696
        %vm1698 = vcmp.eq.s32.totalorder %v1693, 2
        %v1699 = vxor.u32 %v1689, 2147483648
        %v1700 = vsel %vm1698, %v1699, %v1690
        %v1701 = vsel %vm1694, %v1697, %v1700
        %v1702 = vsel %vm1691, nan, %v1701
        %v1703 = vand.u32 2147483647, %v228
        %vm1704 = vcmp.le.f32.partialorder %v1703, 0.7853982
        %vm1705 = vcmp.lt.s32.totalorder %v228, 0
        %v1706 = vand.u32 %v228, 2139095040
        %v1707 = vshrl.u32 %v1706, 23
        %v1708 = vsub.s32 %v1707, 127
        %v1709 = vand.u32 2147483647, %v228
        %v1710 = vand.u32 %v1709, 8388607
        %v1711 = vor.u32 %v1710, 8388608
        %v1712 = vsub.s32 0, %v1711
        %v1713 = vadd.s32 %v1708, 1
        %vm1714 = vcmp.gt.s32.totalorder %v1713, 0
        %v1715 = vsel %vm1714, %v1713, 0
        %v1716 = vshrl.u32 %v1715, 5
        %v1717 = vand.u32 %v1715, 31
        %v1718 = vsub.s32 32, %v1717
        %v1719 = vshrl.u32 683565275, %v1718
        %v1720 = vshll.u32 683565275, %v1717
        %v1721 = vshrl.u32 2475754826, %v1718
        %v1722 = vor.u32 %v1720, %v1721
        %v1723 = vshll.u32 2475754826, %v1717
        %v1724 = vshrl.u32 2131351028, %v1718
        %v1725 = vor.u32 %v1723, %v1724
        %v1726 = vshll.u32 2131351028, %v1717
        %v1727 = vshrl.u32 2102212464, %v1718
        %v1728 = vor.u32 %v1726, %v1727
        %v1729 = vshll.u32 2102212464, %v1717
        %v1730 = vshrl.u32 920167782, %v1718
        %v1731 = vor.u32 %v1729, %v1730
        %v1732 = vshll.u32 920167782, %v1717
        %v1733 = vshrl.u32 1326507024, %v1718
        %v1734 = vor.u32 %v1732, %v1733
        %vm1735 = vcmp.lt.s32.totalorder %v1716, 1
        %vm1736 = vcmp.lt.s32.totalorder %v1716, 2
        %vm1737 = vcmp.lt.s32.totalorder %v1716, 3
        %vm1738 = vcmp.lt.s32.totalorder %v1716, 4
        %v1739 = vsel %vm1735, %v1719, %v1722
        %v1740 = vsel %vm1738, %v1728, 2102212464
        %v1741 = vsel %vm1737, %v1725, %v1740
        %v1742 = vsel %vm1736, %v1739, %v1741
        %v1743 = vsel %vm1735, %v1722, %v1725
        %v1744 = vsel %vm1738, %v1731, 920167782
        %v1745 = vsel %vm1737, %v1728, %v1744
        %v1746 = vsel %vm1736, %v1743, %v1745
        %v1747 = vsel %vm1735, %v1725, %v1728
        %v1748 = vsel %vm1738, %v1734, 1326507024
        %v1749 = vsel %vm1737, %v1731, %v1748
        %v1750 = vsel %vm1736, %v1747, %v1749
        %v1751 = vshll.u32 %v1711, 8
        %v1752 = vmul.u32.u64.compose %v1751, %v1750
        %v1753 = vextract.low.u32 %v1752
        %v1754 = vextract.high.u32 %v1752
        %v1755 = vmul.u32.u64.compose %v1751, %v1746
        %v1756 = vextract.low.u32 %v1755
        %v1757 = vextract.high.u32 %v1755
        %v1758 = vmul.u32 %v1751, %v1742
        %v1759 = vadd.s32 %v1754, %v1756
        %vm1760 = vc.u32 %v1754, %v1756
        %v1761 = vadd.s32 %v1757, 1
        %v1762 = vsel %vm1760, %v1761, %v1757
        %v1763 = vadd.s32 %v1758, %v1762
        %v1764 = vadd.s32 %v1763, 536870912
        %v1765 = vshrl.u32 %v1764, 30
        %v1766 = vshll.u32 %v1765, 30
        %v1767 = vsub.s32 %v1763, %v1766
        %vm1768 = vcmp.lt.s32.totalorder %v1767, 0
        %v1769 = vsub.s32 0, %v1767
        %v1770 = vsel %vm1768, %v1769, %v1767
        %v1771 = vclz %v1770
        %v1772 = vsub.s32 %v1771, 2
        %vm1773 = vcmp.gt.s32.totalorder 0, %v1772
        %v1774 = vsel %vm1773, 0, %v1772
        %v1775 = vsub.s32 32, %v1774
        %v1776 = vshll.u32 %v1767, %v1774
        %v1777 = vshrl.u32 %v1759, %v1775
        %v1778 = vor.u32 %v1776, %v1777
        %v1779 = vsub.s32 4294967266, %v1774
        %v1780 = vadd.s32 %v1779, 127
        %v1781 = vshll.u32 %v1780, 23
        %v1782 = vor.u32 4788187, %v1781
        %v1783 = vand.u32 2147483647, %v1782
        %v1785 = vcvt.s32.f32 %v1778
        %v1786 = vmul.f32 %v1785, %v1783
        %v1787 = vxor.u32 %v1786, 2147483648
        %v1788 = vsel %vm1705, %v1787, %v1786
        %v1789 = vsub.s32 4, %v1765
        %v1790 = vsel %vm1705, %v1789, %v1765
        %v1791 = vsel %vm1704, %v228, %v1788
        %v1792 = vsel %vm1704, 0, %v1790
        %v1793 = vcosq.f32.pop %v1791
        %v1794 = vsinq.f32.pop %v1791
        %vm1795 = vweird.f32 %v228
        %v1796 = vadd.s32 %v1792, 3
        %v1797 = vand.u32 %v1796, 3
        %vm1798 = vcmp.lt.s32.totalorder %v1797, 2
        %vm1799 = vcmp.eq.s32.totalorder %v1797, 0
        %v1800 = vxor.u32 %v1794, 2147483648
        %v1801 = vsel %vm1799, %v1793, %v1800
        %vm1802 = vcmp.eq.s32.totalorder %v1797, 2
        %v1803 = vxor.u32 %v1793, 2147483648
        %v1804 = vsel %vm1802, %v1803, %v1794
        %v1805 = vsel %vm1798, %v1801, %v1804
        %v1806 = vsel %vm1795, nan, %v1805
        %v1807 = vand.u32 2147483647, %v229
        %vm1808 = vcmp.le.f32.partialorder %v1807, 0.7853982
        %vm1809 = vcmp.lt.s32.totalorder %v229, 0
        %v1810 = vand.u32 %v229, 2139095040
        %v1811 = vshrl.u32 %v1810, 23
        %v1812 = vsub.s32 %v1811, 127
        %v1813 = vand.u32 2147483647, %v229
        %v1814 = vand.u32 %v1813, 8388607
        %v1815 = vor.u32 %v1814, 8388608
        %v1816 = vsub.s32 0, %v1815
        %v1817 = vadd.s32 %v1812, 1
        %vm1818 = vcmp.gt.s32.totalorder %v1817, 0
        %v1819 = vsel %vm1818, %v1817, 0
        %v1820 = vshrl.u32 %v1819, 5
        %v1821 = vand.u32 %v1819, 31
        %v1822 = vsub.s32 32, %v1821
        %v1823 = vshrl.u32 683565275, %v1822
        %v1824 = vshll.u32 683565275, %v1821
        %v1825 = vshrl.u32 2475754826, %v1822
        %v1826 = vor.u32 %v1824, %v1825
        %v1827 = vshll.u32 2475754826, %v1821
        %v1828 = vshrl.u32 2131351028, %v1822
        %v1829 = vor.u32 %v1827, %v1828
        %v1830 = vshll.u32 2131351028, %v1821
        %v1831 = vshrl.u32 2102212464, %v1822
        %v1832 = vor.u32 %v1830, %v1831
        %v1833 = vshll.u32 2102212464, %v1821
        %v1834 = vshrl.u32 920167782, %v1822
        %v1835 = vor.u32 %v1833, %v1834
        %v1836 = vshll.u32 920167782, %v1821
        %v1837 = vshrl.u32 1326507024, %v1822
        %v1838 = vor.u32 %v1836, %v1837
        %vm1839 = vcmp.lt.s32.totalorder %v1820, 1
        %vm1840 = vcmp.lt.s32.totalorder %v1820, 2
        %vm1841 = vcmp.lt.s32.totalorder %v1820, 3
        %vm1842 = vcmp.lt.s32.totalorder %v1820, 4
        %v1843 = vsel %vm1839, %v1823, %v1826
        %v1844 = vsel %vm1842, %v1832, 2102212464
        %v1845 = vsel %vm1841, %v1829, %v1844
        %v1846 = vsel %vm1840, %v1843, %v1845
        %v1847 = vsel %vm1839, %v1826, %v1829
        %v1848 = vsel %vm1842, %v1835, 920167782
        %v1849 = vsel %vm1841, %v1832, %v1848
        %v1850 = vsel %vm1840, %v1847, %v1849
        %v1851 = vsel %vm1839, %v1829, %v1832
        %v1852 = vsel %vm1842, %v1838, 1326507024
        %v1853 = vsel %vm1841, %v1835, %v1852
        %v1854 = vsel %vm1840, %v1851, %v1853
        %v1855 = vshll.u32 %v1815, 8
        %v1856 = vmul.u32.u64.compose %v1855, %v1854
        %v1857 = vextract.low.u32 %v1856
        %v1858 = vextract.high.u32 %v1856
        %v1859 = vmul.u32.u64.compose %v1855, %v1850
        %v1860 = vextract.low.u32 %v1859
        %v1861 = vextract.high.u32 %v1859
        %v1862 = vmul.u32 %v1855, %v1846
        %v1863 = vadd.s32 %v1858, %v1860
        %vm1864 = vc.u32 %v1858, %v1860
        %v1865 = vadd.s32 %v1861, 1
        %v1866 = vsel %vm1864, %v1865, %v1861
        %v1867 = vadd.s32 %v1862, %v1866
        %v1868 = vadd.s32 %v1867, 536870912
        %v1869 = vshrl.u32 %v1868, 30
        %v1870 = vshll.u32 %v1869, 30
        %v1871 = vsub.s32 %v1867, %v1870
        %vm1872 = vcmp.lt.s32.totalorder %v1871, 0
        %v1873 = vsub.s32 0, %v1871
        %v1874 = vsel %vm1872, %v1873, %v1871
        %v1875 = vclz %v1874
        %v1876 = vsub.s32 %v1875, 2
        %vm1877 = vcmp.gt.s32.totalorder 0, %v1876
        %v1878 = vsel %vm1877, 0, %v1876
        %v1879 = vsub.s32 32, %v1878
        %v1880 = vshll.u32 %v1871, %v1878
        %v1881 = vshrl.u32 %v1863, %v1879
        %v1882 = vor.u32 %v1880, %v1881
        %v1883 = vsub.s32 4294967266, %v1878
        %v1884 = vadd.s32 %v1883, 127
        %v1885 = vshll.u32 %v1884, 23
        %v1886 = vor.u32 4788187, %v1885
        %v1887 = vand.u32 2147483647, %v1886
        %v1889 = vcvt.s32.f32 %v1882
        %v1890 = vmul.f32 %v1889, %v1887
        %v1891 = vxor.u32 %v1890, 2147483648
        %v1892 = vsel %vm1809, %v1891, %v1890
        %v1893 = vsub.s32 4, %v1869
        %v1894 = vsel %vm1809, %v1893, %v1869
        %v1895 = vsel %vm1808, %v229, %v1892
        %v1896 = vsel %vm1808, 0, %v1894
        %v1897 = vcosq.f32.pop %v1895
        %v1898 = vsinq.f32.pop %v1895
        %vm1899 = vweird.f32 %v229
        %v1900 = vadd.s32 %v1896, 3
        %v1901 = vand.u32 %v1900, 3
        %vm1902 = vcmp.lt.s32.totalorder %v1901, 2
        %vm1903 = vcmp.eq.s32.totalorder %v1901, 0
        %v1904 = vxor.u32 %v1898, 2147483648
        %v1905 = vsel %vm1903, %v1897, %v1904
        %vm1906 = vcmp.eq.s32.totalorder %v1901, 2
        %v1907 = vxor.u32 %v1897, 2147483648
        %v1908 = vsel %vm1906, %v1907, %v1898
        %v1909 = vsel %vm1902, %v1905, %v1908
        %v1910 = vsel %vm1899, nan, %v1909
        %v1911 = vand.u32 2147483647, %v230
        %vm1912 = vcmp.le.f32.partialorder %v1911, 0.7853982
        %vm1913 = vcmp.lt.s32.totalorder %v230, 0
        %v1914 = vand.u32 %v230, 2139095040
        %v1915 = vshrl.u32 %v1914, 23
        %v1916 = vsub.s32 %v1915, 127
        %v1917 = vand.u32 2147483647, %v230
        %v1918 = vand.u32 %v1917, 8388607
        %v1919 = vor.u32 %v1918, 8388608
        %v1920 = vsub.s32 0, %v1919
        %v1921 = vadd.s32 %v1916, 1
        %vm1922 = vcmp.gt.s32.totalorder %v1921, 0
        %v1923 = vsel %vm1922, %v1921, 0
        %v1924 = vshrl.u32 %v1923, 5
        %v1925 = vand.u32 %v1923, 31
        %v1926 = vsub.s32 32, %v1925
        %v1927 = vshrl.u32 683565275, %v1926
        %v1928 = vshll.u32 683565275, %v1925
        %v1929 = vshrl.u32 2475754826, %v1926
        %v1930 = vor.u32 %v1928, %v1929
        %v1931 = vshll.u32 2475754826, %v1925
        %v1932 = vshrl.u32 2131351028, %v1926
        %v1933 = vor.u32 %v1931, %v1932
        %v1934 = vshll.u32 2131351028, %v1925
        %v1935 = vshrl.u32 2102212464, %v1926
        %v1936 = vor.u32 %v1934, %v1935
        %v1937 = vshll.u32 2102212464, %v1925
        %v1938 = vshrl.u32 920167782, %v1926
        %v1939 = vor.u32 %v1937, %v1938
        %v1940 = vshll.u32 920167782, %v1925
        %v1941 = vshrl.u32 1326507024, %v1926
        %v1942 = vor.u32 %v1940, %v1941
        %vm1943 = vcmp.lt.s32.totalorder %v1924, 1
        %vm1944 = vcmp.lt.s32.totalorder %v1924, 2
        %vm1945 = vcmp.lt.s32.totalorder %v1924, 3
        %vm1946 = vcmp.lt.s32.totalorder %v1924, 4
        %v1947 = vsel %vm1943, %v1927, %v1930
        %v1948 = vsel %vm1946, %v1936, 2102212464
        %v1949 = vsel %vm1945, %v1933, %v1948
        %v1950 = vsel %vm1944, %v1947, %v1949
        %v1951 = vsel %vm1943, %v1930, %v1933
        %v1952 = vsel %vm1946, %v1939, 920167782
        %v1953 = vsel %vm1945, %v1936, %v1952
        %v1954 = vsel %vm1944, %v1951, %v1953
        %v1955 = vsel %vm1943, %v1933, %v1936
        %v1956 = vsel %vm1946, %v1942, 1326507024
        %v1957 = vsel %vm1945, %v1939, %v1956
        %v1958 = vsel %vm1944, %v1955, %v1957
        %v1959 = vshll.u32 %v1919, 8
        %v1960 = vmul.u32.u64.compose %v1959, %v1958
        %v1961 = vextract.low.u32 %v1960
        %v1962 = vextract.high.u32 %v1960
        %v1963 = vmul.u32.u64.compose %v1959, %v1954
        %v1964 = vextract.low.u32 %v1963
        %v1965 = vextract.high.u32 %v1963
        %v1966 = vmul.u32 %v1959, %v1950
        %v1967 = vadd.s32 %v1962, %v1964
        %vm1968 = vc.u32 %v1962, %v1964
        %v1969 = vadd.s32 %v1965, 1
        %v1970 = vsel %vm1968, %v1969, %v1965
        %v1971 = vadd.s32 %v1966, %v1970
        %v1972 = vadd.s32 %v1971, 536870912
        %v1973 = vshrl.u32 %v1972, 30
        %v1974 = vshll.u32 %v1973, 30
        %v1975 = vsub.s32 %v1971, %v1974
        %vm1976 = vcmp.lt.s32.totalorder %v1975, 0
        %v1977 = vsub.s32 0, %v1975
        %v1978 = vsel %vm1976, %v1977, %v1975
        %v1979 = vclz %v1978
        %v1980 = vsub.s32 %v1979, 2
        %vm1981 = vcmp.gt.s32.totalorder 0, %v1980
        %v1982 = vsel %vm1981, 0, %v1980
        %v1983 = vsub.s32 32, %v1982
        %v1984 = vshll.u32 %v1975, %v1982
        %v1985 = vshrl.u32 %v1967, %v1983
        %v1986 = vor.u32 %v1984, %v1985
        %v1987 = vsub.s32 4294967266, %v1982
        %v1988 = vadd.s32 %v1987, 127
        %v1989 = vshll.u32 %v1988, 23
        %v1990 = vor.u32 4788187, %v1989
        %v1991 = vand.u32 2147483647, %v1990
        %v1993 = vcvt.s32.f32 %v1986
        %v1994 = vmul.f32 %v1993, %v1991
        %v1995 = vxor.u32 %v1994, 2147483648
        %v1996 = vsel %vm1913, %v1995, %v1994
        %v1997 = vsub.s32 4, %v1973
        %v1998 = vsel %vm1913, %v1997, %v1973
        %v1999 = vsel %vm1912, %v230, %v1996
        %v2000 = vsel %vm1912, 0, %v1998
        %v2001 = vcosq.f32.pop %v1999
        %v2002 = vsinq.f32.pop %v1999
        %vm2003 = vweird.f32 %v230
        %v2004 = vadd.s32 %v2000, 3
        %v2005 = vand.u32 %v2004, 3
        %vm2006 = vcmp.lt.s32.totalorder %v2005, 2
        %vm2007 = vcmp.eq.s32.totalorder %v2005, 0
        %v2008 = vxor.u32 %v2002, 2147483648
        %v2009 = vsel %vm2007, %v2001, %v2008
        %vm2010 = vcmp.eq.s32.totalorder %v2005, 2
        %v2011 = vxor.u32 %v2001, 2147483648
        %v2012 = vsel %vm2010, %v2011, %v2002
        %v2013 = vsel %vm2006, %v2009, %v2012
        %v2014 = vsel %vm2003, nan, %v2013
        %v2015 = vand.u32 2147483647, %v231
        %vm2016 = vcmp.le.f32.partialorder %v2015, 0.7853982
        %vm2017 = vcmp.lt.s32.totalorder %v231, 0
        %v2018 = vand.u32 %v231, 2139095040
        %v2019 = vshrl.u32 %v2018, 23
        %v2020 = vsub.s32 %v2019, 127
        %v2021 = vand.u32 2147483647, %v231
        %v2022 = vand.u32 %v2021, 8388607
        %v2023 = vor.u32 %v2022, 8388608
        %v2024 = vsub.s32 0, %v2023
        %v2025 = vadd.s32 %v2020, 1
        %vm2026 = vcmp.gt.s32.totalorder %v2025, 0
        %v2027 = vsel %vm2026, %v2025, 0
        %v2028 = vshrl.u32 %v2027, 5
        %v2029 = vand.u32 %v2027, 31
        %v2030 = vsub.s32 32, %v2029
        %v2031 = vshrl.u32 683565275, %v2030
        %v2032 = vshll.u32 683565275, %v2029
        %v2033 = vshrl.u32 2475754826, %v2030
        %v2034 = vor.u32 %v2032, %v2033
        %v2035 = vshll.u32 2475754826, %v2029
        %v2036 = vshrl.u32 2131351028, %v2030
        %v2037 = vor.u32 %v2035, %v2036
        %v2038 = vshll.u32 2131351028, %v2029
        %v2039 = vshrl.u32 2102212464, %v2030
        %v2040 = vor.u32 %v2038, %v2039
        %v2041 = vshll.u32 2102212464, %v2029
        %v2042 = vshrl.u32 920167782, %v2030
        %v2043 = vor.u32 %v2041, %v2042
        %v2044 = vshll.u32 920167782, %v2029
        %v2045 = vshrl.u32 1326507024, %v2030
        %v2046 = vor.u32 %v2044, %v2045
        %vm2047 = vcmp.lt.s32.totalorder %v2028, 1
        %vm2048 = vcmp.lt.s32.totalorder %v2028, 2
        %vm2049 = vcmp.lt.s32.totalorder %v2028, 3
        %vm2050 = vcmp.lt.s32.totalorder %v2028, 4
        %v2051 = vsel %vm2047, %v2031, %v2034
        %v2052 = vsel %vm2050, %v2040, 2102212464
        %v2053 = vsel %vm2049, %v2037, %v2052
        %v2054 = vsel %vm2048, %v2051, %v2053
        %v2055 = vsel %vm2047, %v2034, %v2037
        %v2056 = vsel %vm2050, %v2043, 920167782
        %v2057 = vsel %vm2049, %v2040, %v2056
        %v2058 = vsel %vm2048, %v2055, %v2057
        %v2059 = vsel %vm2047, %v2037, %v2040
        %v2060 = vsel %vm2050, %v2046, 1326507024
        %v2061 = vsel %vm2049, %v2043, %v2060
        %v2062 = vsel %vm2048, %v2059, %v2061
        %v2063 = vshll.u32 %v2023, 8
        %v2064 = vmul.u32.u64.compose %v2063, %v2062
        %v2065 = vextract.low.u32 %v2064
        %v2066 = vextract.high.u32 %v2064
        %v2067 = vmul.u32.u64.compose %v2063, %v2058
        %v2068 = vextract.low.u32 %v2067
        %v2069 = vextract.high.u32 %v2067
        %v2070 = vmul.u32 %v2063, %v2054
        %v2071 = vadd.s32 %v2066, %v2068
        %vm2072 = vc.u32 %v2066, %v2068
        %v2073 = vadd.s32 %v2069, 1
        %v2074 = vsel %vm2072, %v2073, %v2069
        %v2075 = vadd.s32 %v2070, %v2074
        %v2076 = vadd.s32 %v2075, 536870912
        %v2077 = vshrl.u32 %v2076, 30
        %v2078 = vshll.u32 %v2077, 30
        %v2079 = vsub.s32 %v2075, %v2078
        %vm2080 = vcmp.lt.s32.totalorder %v2079, 0
        %v2081 = vsub.s32 0, %v2079
        %v2082 = vsel %vm2080, %v2081, %v2079
        %v2083 = vclz %v2082
        %v2084 = vsub.s32 %v2083, 2
        %vm2085 = vcmp.gt.s32.totalorder 0, %v2084
        %v2086 = vsel %vm2085, 0, %v2084
        %v2087 = vsub.s32 32, %v2086
        %v2088 = vshll.u32 %v2079, %v2086
        %v2089 = vshrl.u32 %v2071, %v2087
        %v2090 = vor.u32 %v2088, %v2089
        %v2091 = vsub.s32 4294967266, %v2086
        %v2092 = vadd.s32 %v2091, 127
        %v2093 = vshll.u32 %v2092, 23
        %v2094 = vor.u32 4788187, %v2093
        %v2095 = vand.u32 2147483647, %v2094
        %v2097 = vcvt.s32.f32 %v2090
        %v2098 = vmul.f32 %v2097, %v2095
        %v2099 = vxor.u32 %v2098, 2147483648
        %v2100 = vsel %vm2017, %v2099, %v2098
        %v2101 = vsub.s32 4, %v2077
        %v2102 = vsel %vm2017, %v2101, %v2077
        %v2103 = vsel %vm2016, %v231, %v2100
        %v2104 = vsel %vm2016, 0, %v2102
        %v2105 = vcosq.f32.pop %v2103
        %v2106 = vsinq.f32.pop %v2103
        %vm2107 = vweird.f32 %v231
        %v2108 = vadd.s32 %v2104, 3
        %v2109 = vand.u32 %v2108, 3
        %vm2110 = vcmp.lt.s32.totalorder %v2109, 2
        %vm2111 = vcmp.eq.s32.totalorder %v2109, 0
        %v2112 = vxor.u32 %v2106, 2147483648
        %v2113 = vsel %vm2111, %v2105, %v2112
        %vm2114 = vcmp.eq.s32.totalorder %v2109, 2
        %v2115 = vxor.u32 %v2105, 2147483648
        %v2116 = vsel %vm2114, %v2115, %v2106
        %v2117 = vsel %vm2110, %v2113, %v2116
        %v2118 = vsel %vm2107, nan, %v2117
        %v2119 = vand.u32 2147483647, %v232
        %vm2120 = vcmp.le.f32.partialorder %v2119, 0.7853982
        %vm2121 = vcmp.lt.s32.totalorder %v232, 0
        %v2122 = vand.u32 %v232, 2139095040
        %v2123 = vshrl.u32 %v2122, 23
        %v2124 = vsub.s32 %v2123, 127
        %v2125 = vand.u32 2147483647, %v232
        %v2126 = vand.u32 %v2125, 8388607
        %v2127 = vor.u32 %v2126, 8388608
        %v2128 = vsub.s32 0, %v2127
        %v2129 = vadd.s32 %v2124, 1
        %vm2130 = vcmp.gt.s32.totalorder %v2129, 0
        %v2131 = vsel %vm2130, %v2129, 0
        %v2132 = vshrl.u32 %v2131, 5
        %v2133 = vand.u32 %v2131, 31
        %v2134 = vsub.s32 32, %v2133
        %v2135 = vshrl.u32 683565275, %v2134
        %v2136 = vshll.u32 683565275, %v2133
        %v2137 = vshrl.u32 2475754826, %v2134
        %v2138 = vor.u32 %v2136, %v2137
        %v2139 = vshll.u32 2475754826, %v2133
        %v2140 = vshrl.u32 2131351028, %v2134
        %v2141 = vor.u32 %v2139, %v2140
        %v2142 = vshll.u32 2131351028, %v2133
        %v2143 = vshrl.u32 2102212464, %v2134
        %v2144 = vor.u32 %v2142, %v2143
        %v2145 = vshll.u32 2102212464, %v2133
        %v2146 = vshrl.u32 920167782, %v2134
        %v2147 = vor.u32 %v2145, %v2146
        %v2148 = vshll.u32 920167782, %v2133
        %v2149 = vshrl.u32 1326507024, %v2134
        %v2150 = vor.u32 %v2148, %v2149
        %vm2151 = vcmp.lt.s32.totalorder %v2132, 1
        %vm2152 = vcmp.lt.s32.totalorder %v2132, 2
        %vm2153 = vcmp.lt.s32.totalorder %v2132, 3
        %vm2154 = vcmp.lt.s32.totalorder %v2132, 4
        %v2155 = vsel %vm2151, %v2135, %v2138
        %v2156 = vsel %vm2154, %v2144, 2102212464
        %v2157 = vsel %vm2153, %v2141, %v2156
        %v2158 = vsel %vm2152, %v2155, %v2157
        %v2159 = vsel %vm2151, %v2138, %v2141
        %v2160 = vsel %vm2154, %v2147, 920167782
        %v2161 = vsel %vm2153, %v2144, %v2160
        %v2162 = vsel %vm2152, %v2159, %v2161
        %v2163 = vsel %vm2151, %v2141, %v2144
        %v2164 = vsel %vm2154, %v2150, 1326507024
        %v2165 = vsel %vm2153, %v2147, %v2164
        %v2166 = vsel %vm2152, %v2163, %v2165
        %v2167 = vshll.u32 %v2127, 8
        %v2168 = vmul.u32.u64.compose %v2167, %v2166
        %v2169 = vextract.low.u32 %v2168
        %v2170 = vextract.high.u32 %v2168
        %v2171 = vmul.u32.u64.compose %v2167, %v2162
        %v2172 = vextract.low.u32 %v2171
        %v2173 = vextract.high.u32 %v2171
        %v2174 = vmul.u32 %v2167, %v2158
        %v2175 = vadd.s32 %v2170, %v2172
        %vm2176 = vc.u32 %v2170, %v2172
        %v2177 = vadd.s32 %v2173, 1
        %v2178 = vsel %vm2176, %v2177, %v2173
        %v2179 = vadd.s32 %v2174, %v2178
        %v2180 = vadd.s32 %v2179, 536870912
        %v2181 = vshrl.u32 %v2180, 30
        %v2182 = vshll.u32 %v2181, 30
        %v2183 = vsub.s32 %v2179, %v2182
        %vm2184 = vcmp.lt.s32.totalorder %v2183, 0
        %v2185 = vsub.s32 0, %v2183
        %v2186 = vsel %vm2184, %v2185, %v2183
        %v2187 = vclz %v2186
        %v2188 = vsub.s32 %v2187, 2
        %vm2189 = vcmp.gt.s32.totalorder 0, %v2188
        %v2190 = vsel %vm2189, 0, %v2188
        %v2191 = vsub.s32 32, %v2190
        %v2192 = vshll.u32 %v2183, %v2190
        %v2193 = vshrl.u32 %v2175, %v2191
        %v2194 = vor.u32 %v2192, %v2193
        %v2195 = vsub.s32 4294967266, %v2190
        %v2196 = vadd.s32 %v2195, 127
        %v2197 = vshll.u32 %v2196, 23
        %v2198 = vor.u32 4788187, %v2197
        %v2199 = vand.u32 2147483647, %v2198
        %v2201 = vcvt.s32.f32 %v2194
        %v2202 = vmul.f32 %v2201, %v2199
        %v2203 = vxor.u32 %v2202, 2147483648
        %v2204 = vsel %vm2121, %v2203, %v2202
        %v2205 = vsub.s32 4, %v2181
        %v2206 = vsel %vm2121, %v2205, %v2181
        %v2207 = vsel %vm2120, %v232, %v2204
        %v2208 = vsel %vm2120, 0, %v2206
        %v2209 = vcosq.f32.pop %v2207
        %v2210 = vsinq.f32.pop %v2207
        %vm2211 = vweird.f32 %v232
        %v2212 = vadd.s32 %v2208, 3
        %v2213 = vand.u32 %v2212, 3
        %vm2214 = vcmp.lt.s32.totalorder %v2213, 2
        %vm2215 = vcmp.eq.s32.totalorder %v2213, 0
        %v2216 = vxor.u32 %v2210, 2147483648
        %v2217 = vsel %vm2215, %v2209, %v2216
        %vm2218 = vcmp.eq.s32.totalorder %v2213, 2
        %v2219 = vxor.u32 %v2209, 2147483648
        %v2220 = vsel %vm2218, %v2219, %v2210
        %v2221 = vsel %vm2214, %v2217, %v2220
        %v2222 = vsel %vm2211, nan, %v2221
        %v2223 = vand.u32 2147483647, %v233
        %vm2224 = vcmp.le.f32.partialorder %v2223, 0.7853982
        %vm2225 = vcmp.lt.s32.totalorder %v233, 0
        %v2226 = vand.u32 %v233, 2139095040
        %v2227 = vshrl.u32 %v2226, 23
        %v2228 = vsub.s32 %v2227, 127
        %v2229 = vand.u32 2147483647, %v233
        %v2230 = vand.u32 %v2229, 8388607
        %v2231 = vor.u32 %v2230, 8388608
        %v2232 = vsub.s32 0, %v2231
        %v2233 = vadd.s32 %v2228, 1
        %vm2234 = vcmp.gt.s32.totalorder %v2233, 0
        %v2235 = vsel %vm2234, %v2233, 0
        %v2236 = vshrl.u32 %v2235, 5
        %v2237 = vand.u32 %v2235, 31
        %v2238 = vsub.s32 32, %v2237
        %v2239 = vshrl.u32 683565275, %v2238
        %v2240 = vshll.u32 683565275, %v2237
        %v2241 = vshrl.u32 2475754826, %v2238
        %v2242 = vor.u32 %v2240, %v2241
        %v2243 = vshll.u32 2475754826, %v2237
        %v2244 = vshrl.u32 2131351028, %v2238
        %v2245 = vor.u32 %v2243, %v2244
        %v2246 = vshll.u32 2131351028, %v2237
        %v2247 = vshrl.u32 2102212464, %v2238
        %v2248 = vor.u32 %v2246, %v2247
        %v2249 = vshll.u32 2102212464, %v2237
        %v2250 = vshrl.u32 920167782, %v2238
        %v2251 = vor.u32 %v2249, %v2250
        %v2252 = vshll.u32 920167782, %v2237
        %v2253 = vshrl.u32 1326507024, %v2238
        %v2254 = vor.u32 %v2252, %v2253
        %vm2255 = vcmp.lt.s32.totalorder %v2236, 1
        %vm2256 = vcmp.lt.s32.totalorder %v2236, 2
        %vm2257 = vcmp.lt.s32.totalorder %v2236, 3
        %vm2258 = vcmp.lt.s32.totalorder %v2236, 4
        %v2259 = vsel %vm2255, %v2239, %v2242
        %v2260 = vsel %vm2258, %v2248, 2102212464
        %v2261 = vsel %vm2257, %v2245, %v2260
        %v2262 = vsel %vm2256, %v2259, %v2261
        %v2263 = vsel %vm2255, %v2242, %v2245
        %v2264 = vsel %vm2258, %v2251, 920167782
        %v2265 = vsel %vm2257, %v2248, %v2264
        %v2266 = vsel %vm2256, %v2263, %v2265
        %v2267 = vsel %vm2255, %v2245, %v2248
        %v2268 = vsel %vm2258, %v2254, 1326507024
        %v2269 = vsel %vm2257, %v2251, %v2268
        %v2270 = vsel %vm2256, %v2267, %v2269
        %v2271 = vshll.u32 %v2231, 8
        %v2272 = vmul.u32.u64.compose %v2271, %v2270
        %v2273 = vextract.low.u32 %v2272
        %v2274 = vextract.high.u32 %v2272
        %v2275 = vmul.u32.u64.compose %v2271, %v2266
        %v2276 = vextract.low.u32 %v2275
        %v2277 = vextract.high.u32 %v2275
        %v2278 = vmul.u32 %v2271, %v2262
        %v2279 = vadd.s32 %v2274, %v2276
        %vm2280 = vc.u32 %v2274, %v2276
        %v2281 = vadd.s32 %v2277, 1
        %v2282 = vsel %vm2280, %v2281, %v2277
        %v2283 = vadd.s32 %v2278, %v2282
        %v2284 = vadd.s32 %v2283, 536870912
        %v2285 = vshrl.u32 %v2284, 30
        %v2286 = vshll.u32 %v2285, 30
        %v2287 = vsub.s32 %v2283, %v2286
        %vm2288 = vcmp.lt.s32.totalorder %v2287, 0
        %v2289 = vsub.s32 0, %v2287
        %v2290 = vsel %vm2288, %v2289, %v2287
        %v2291 = vclz %v2290
        %v2292 = vsub.s32 %v2291, 2
        %vm2293 = vcmp.gt.s32.totalorder 0, %v2292
        %v2294 = vsel %vm2293, 0, %v2292
        %v2295 = vsub.s32 32, %v2294
        %v2296 = vshll.u32 %v2287, %v2294
        %v2297 = vshrl.u32 %v2279, %v2295
        %v2298 = vor.u32 %v2296, %v2297
        %v2299 = vsub.s32 4294967266, %v2294
        %v2300 = vadd.s32 %v2299, 127
        %v2301 = vshll.u32 %v2300, 23
        %v2302 = vor.u32 4788187, %v2301
        %v2303 = vand.u32 2147483647, %v2302
        %v2305 = vcvt.s32.f32 %v2298
        %v2306 = vmul.f32 %v2305, %v2303
        %v2307 = vxor.u32 %v2306, 2147483648
        %v2308 = vsel %vm2225, %v2307, %v2306
        %v2309 = vsub.s32 4, %v2285
        %v2310 = vsel %vm2225, %v2309, %v2285
        %v2311 = vsel %vm2224, %v233, %v2308
        %v2312 = vsel %vm2224, 0, %v2310
        %v2313 = vcosq.f32.pop %v2311
        %v2314 = vsinq.f32.pop %v2311
        %vm2315 = vweird.f32 %v233
        %v2316 = vadd.s32 %v2312, 3
        %v2317 = vand.u32 %v2316, 3
        %vm2318 = vcmp.lt.s32.totalorder %v2317, 2
        %vm2319 = vcmp.eq.s32.totalorder %v2317, 0
        %v2320 = vxor.u32 %v2314, 2147483648
        %v2321 = vsel %vm2319, %v2313, %v2320
        %vm2322 = vcmp.eq.s32.totalorder %v2317, 2
        %v2323 = vxor.u32 %v2313, 2147483648
        %v2324 = vsel %vm2322, %v2323, %v2314
        %v2325 = vsel %vm2318, %v2321, %v2324
        %v2326 = vsel %vm2315, nan, %v2325
        %v2327 = vand.u32 2147483647, %v234
        %vm2328 = vcmp.le.f32.partialorder %v2327, 0.7853982
        %vm2329 = vcmp.lt.s32.totalorder %v234, 0
        %v2330 = vand.u32 %v234, 2139095040
        %v2331 = vshrl.u32 %v2330, 23
        %v2332 = vsub.s32 %v2331, 127
        %v2333 = vand.u32 2147483647, %v234
        %v2334 = vand.u32 %v2333, 8388607
        %v2335 = vor.u32 %v2334, 8388608
        %v2336 = vsub.s32 0, %v2335
        %v2337 = vadd.s32 %v2332, 1
        %vm2338 = vcmp.gt.s32.totalorder %v2337, 0
        %v2339 = vsel %vm2338, %v2337, 0
        %v2340 = vshrl.u32 %v2339, 5
        %v2341 = vand.u32 %v2339, 31
        %v2342 = vsub.s32 32, %v2341
        %v2343 = vshrl.u32 683565275, %v2342
        %v2344 = vshll.u32 683565275, %v2341
        %v2345 = vshrl.u32 2475754826, %v2342
        %v2346 = vor.u32 %v2344, %v2345
        %v2347 = vshll.u32 2475754826, %v2341
        %v2348 = vshrl.u32 2131351028, %v2342
        %v2349 = vor.u32 %v2347, %v2348
        %v2350 = vshll.u32 2131351028, %v2341
        %v2351 = vshrl.u32 2102212464, %v2342
        %v2352 = vor.u32 %v2350, %v2351
        %v2353 = vshll.u32 2102212464, %v2341
        %v2354 = vshrl.u32 920167782, %v2342
        %v2355 = vor.u32 %v2353, %v2354
        %v2356 = vshll.u32 920167782, %v2341
        %v2357 = vshrl.u32 1326507024, %v2342
        %v2358 = vor.u32 %v2356, %v2357
        %vm2359 = vcmp.lt.s32.totalorder %v2340, 1
        %vm2360 = vcmp.lt.s32.totalorder %v2340, 2
        %vm2361 = vcmp.lt.s32.totalorder %v2340, 3
        %vm2362 = vcmp.lt.s32.totalorder %v2340, 4
        %v2363 = vsel %vm2359, %v2343, %v2346
        %v2364 = vsel %vm2362, %v2352, 2102212464
        %v2365 = vsel %vm2361, %v2349, %v2364
        %v2366 = vsel %vm2360, %v2363, %v2365
        %v2367 = vsel %vm2359, %v2346, %v2349
        %v2368 = vsel %vm2362, %v2355, 920167782
        %v2369 = vsel %vm2361, %v2352, %v2368
        %v2370 = vsel %vm2360, %v2367, %v2369
        %v2371 = vsel %vm2359, %v2349, %v2352
        %v2372 = vsel %vm2362, %v2358, 1326507024
        %v2373 = vsel %vm2361, %v2355, %v2372
        %v2374 = vsel %vm2360, %v2371, %v2373
        %v2375 = vshll.u32 %v2335, 8
        %v2376 = vmul.u32.u64.compose %v2375, %v2374
        %v2377 = vextract.low.u32 %v2376
        %v2378 = vextract.high.u32 %v2376
        %v2379 = vmul.u32.u64.compose %v2375, %v2370
        %v2380 = vextract.low.u32 %v2379
        %v2381 = vextract.high.u32 %v2379
        %v2382 = vmul.u32 %v2375, %v2366
        %v2383 = vadd.s32 %v2378, %v2380
        %vm2384 = vc.u32 %v2378, %v2380
        %v2385 = vadd.s32 %v2381, 1
        %v2386 = vsel %vm2384, %v2385, %v2381
        %v2387 = vadd.s32 %v2382, %v2386
        %v2388 = vadd.s32 %v2387, 536870912
        %v2389 = vshrl.u32 %v2388, 30
        %v2390 = vshll.u32 %v2389, 30
        %v2391 = vsub.s32 %v2387, %v2390
        %vm2392 = vcmp.lt.s32.totalorder %v2391, 0
        %v2393 = vsub.s32 0, %v2391
        %v2394 = vsel %vm2392, %v2393, %v2391
        %v2395 = vclz %v2394
        %v2396 = vsub.s32 %v2395, 2
        %vm2397 = vcmp.gt.s32.totalorder 0, %v2396
        %v2398 = vsel %vm2397, 0, %v2396
        %v2399 = vsub.s32 32, %v2398
        %v2400 = vshll.u32 %v2391, %v2398
        %v2401 = vshrl.u32 %v2383, %v2399
        %v2402 = vor.u32 %v2400, %v2401
        %v2403 = vsub.s32 4294967266, %v2398
        %v2404 = vadd.s32 %v2403, 127
        %v2405 = vshll.u32 %v2404, 23
        %v2406 = vor.u32 4788187, %v2405
        %v2407 = vand.u32 2147483647, %v2406
        %v2409 = vcvt.s32.f32 %v2402
        %v2410 = vmul.f32 %v2409, %v2407
        %v2411 = vxor.u32 %v2410, 2147483648
        %v2412 = vsel %vm2329, %v2411, %v2410
        %v2413 = vsub.s32 4, %v2389
        %v2414 = vsel %vm2329, %v2413, %v2389
        %v2415 = vsel %vm2328, %v234, %v2412
        %v2416 = vsel %vm2328, 0, %v2414
        %v2417 = vcosq.f32.pop %v2415
        %v2418 = vsinq.f32.pop %v2415
        %vm2419 = vweird.f32 %v234
        %v2420 = vadd.s32 %v2416, 3
        %v2421 = vand.u32 %v2420, 3
        %vm2422 = vcmp.lt.s32.totalorder %v2421, 2
        %vm2423 = vcmp.eq.s32.totalorder %v2421, 0
        %v2424 = vxor.u32 %v2418, 2147483648
        %v2425 = vsel %vm2423, %v2417, %v2424
        %vm2426 = vcmp.eq.s32.totalorder %v2421, 2
        %v2427 = vxor.u32 %v2417, 2147483648
        %v2428 = vsel %vm2426, %v2427, %v2418
        %v2429 = vsel %vm2422, %v2425, %v2428
        %v2430 = vsel %vm2419, nan, %v2429
        %v2431 = vand.u32 2147483647, %v235
        %vm2432 = vcmp.le.f32.partialorder %v2431, 0.7853982
        %vm2433 = vcmp.lt.s32.totalorder %v235, 0
        %v2434 = vand.u32 %v235, 2139095040
        %v2435 = vshrl.u32 %v2434, 23
        %v2436 = vsub.s32 %v2435, 127
        %v2437 = vand.u32 2147483647, %v235
        %v2438 = vand.u32 %v2437, 8388607
        %v2439 = vor.u32 %v2438, 8388608
        %v2440 = vsub.s32 0, %v2439
        %v2441 = vadd.s32 %v2436, 1
        %vm2442 = vcmp.gt.s32.totalorder %v2441, 0
        %v2443 = vsel %vm2442, %v2441, 0
        %v2444 = vshrl.u32 %v2443, 5
        %v2445 = vand.u32 %v2443, 31
        %v2446 = vsub.s32 32, %v2445
        %v2447 = vshrl.u32 683565275, %v2446
        %v2448 = vshll.u32 683565275, %v2445
        %v2449 = vshrl.u32 2475754826, %v2446
        %v2450 = vor.u32 %v2448, %v2449
        %v2451 = vshll.u32 2475754826, %v2445
        %v2452 = vshrl.u32 2131351028, %v2446
        %v2453 = vor.u32 %v2451, %v2452
        %v2454 = vshll.u32 2131351028, %v2445
        %v2455 = vshrl.u32 2102212464, %v2446
        %v2456 = vor.u32 %v2454, %v2455
        %v2457 = vshll.u32 2102212464, %v2445
        %v2458 = vshrl.u32 920167782, %v2446
        %v2459 = vor.u32 %v2457, %v2458
        %v2460 = vshll.u32 920167782, %v2445
        %v2461 = vshrl.u32 1326507024, %v2446
        %v2462 = vor.u32 %v2460, %v2461
        %vm2463 = vcmp.lt.s32.totalorder %v2444, 1
        %vm2464 = vcmp.lt.s32.totalorder %v2444, 2
        %vm2465 = vcmp.lt.s32.totalorder %v2444, 3
        %vm2466 = vcmp.lt.s32.totalorder %v2444, 4
        %v2467 = vsel %vm2463, %v2447, %v2450
        %v2468 = vsel %vm2466, %v2456, 2102212464
        %v2469 = vsel %vm2465, %v2453, %v2468
        %v2470 = vsel %vm2464, %v2467, %v2469
        %v2471 = vsel %vm2463, %v2450, %v2453
        %v2472 = vsel %vm2466, %v2459, 920167782
        %v2473 = vsel %vm2465, %v2456, %v2472
        %v2474 = vsel %vm2464, %v2471, %v2473
        %v2475 = vsel %vm2463, %v2453, %v2456
        %v2476 = vsel %vm2466, %v2462, 1326507024
        %v2477 = vsel %vm2465, %v2459, %v2476
        %v2478 = vsel %vm2464, %v2475, %v2477
        %v2479 = vshll.u32 %v2439, 8
        %v2480 = vmul.u32.u64.compose %v2479, %v2478
        %v2481 = vextract.low.u32 %v2480
        %v2482 = vextract.high.u32 %v2480
        %v2483 = vmul.u32.u64.compose %v2479, %v2474
        %v2484 = vextract.low.u32 %v2483
        %v2485 = vextract.high.u32 %v2483
        %v2486 = vmul.u32 %v2479, %v2470
        %v2487 = vadd.s32 %v2482, %v2484
        %vm2488 = vc.u32 %v2482, %v2484
        %v2489 = vadd.s32 %v2485, 1
        %v2490 = vsel %vm2488, %v2489, %v2485
        %v2491 = vadd.s32 %v2486, %v2490
        %v2492 = vadd.s32 %v2491, 536870912
        %v2493 = vshrl.u32 %v2492, 30
        %v2494 = vshll.u32 %v2493, 30
        %v2495 = vsub.s32 %v2491, %v2494
        %vm2496 = vcmp.lt.s32.totalorder %v2495, 0
        %v2497 = vsub.s32 0, %v2495
        %v2498 = vsel %vm2496, %v2497, %v2495
        %v2499 = vclz %v2498
        %v2500 = vsub.s32 %v2499, 2
        %vm2501 = vcmp.gt.s32.totalorder 0, %v2500
        %v2502 = vsel %vm2501, 0, %v2500
        %v2503 = vsub.s32 32, %v2502
        %v2504 = vshll.u32 %v2495, %v2502
        %v2505 = vshrl.u32 %v2487, %v2503
        %v2506 = vor.u32 %v2504, %v2505
        %v2507 = vsub.s32 4294967266, %v2502
        %v2508 = vadd.s32 %v2507, 127
        %v2509 = vshll.u32 %v2508, 23
        %v2510 = vor.u32 4788187, %v2509
        %v2511 = vand.u32 2147483647, %v2510
        %v2513 = vcvt.s32.f32 %v2506
        %v2514 = vmul.f32 %v2513, %v2511
        %v2515 = vxor.u32 %v2514, 2147483648
        %v2516 = vsel %vm2433, %v2515, %v2514
        %v2517 = vsub.s32 4, %v2493
        %v2518 = vsel %vm2433, %v2517, %v2493
        %v2519 = vsel %vm2432, %v235, %v2516
        %v2520 = vsel %vm2432, 0, %v2518
        %v2521 = vcosq.f32.pop %v2519
        %v2522 = vsinq.f32.pop %v2519
        %vm2523 = vweird.f32 %v235
        %v2524 = vadd.s32 %v2520, 3
        %v2525 = vand.u32 %v2524, 3
        %vm2526 = vcmp.lt.s32.totalorder %v2525, 2
        %vm2527 = vcmp.eq.s32.totalorder %v2525, 0
        %v2528 = vxor.u32 %v2522, 2147483648
        %v2529 = vsel %vm2527, %v2521, %v2528
        %vm2530 = vcmp.eq.s32.totalorder %v2525, 2
        %v2531 = vxor.u32 %v2521, 2147483648
        %v2532 = vsel %vm2530, %v2531, %v2522
        %v2533 = vsel %vm2526, %v2529, %v2532
        %v2534 = vsel %vm2523, nan, %v2533
        %v2535 = vand.u32 2147483647, %v236
        %vm2536 = vcmp.le.f32.partialorder %v2535, 0.7853982
        %vm2537 = vcmp.lt.s32.totalorder %v236, 0
        %v2538 = vand.u32 %v236, 2139095040
        %v2539 = vshrl.u32 %v2538, 23
        %v2540 = vsub.s32 %v2539, 127
        %v2541 = vand.u32 2147483647, %v236
        %v2542 = vand.u32 %v2541, 8388607
        %v2543 = vor.u32 %v2542, 8388608
        %v2544 = vsub.s32 0, %v2543
        %v2545 = vadd.s32 %v2540, 1
        %vm2546 = vcmp.gt.s32.totalorder %v2545, 0
        %v2547 = vsel %vm2546, %v2545, 0
        %v2548 = vshrl.u32 %v2547, 5
        %v2549 = vand.u32 %v2547, 31
        %v2550 = vsub.s32 32, %v2549
        %v2551 = vshrl.u32 683565275, %v2550
        %v2552 = vshll.u32 683565275, %v2549
        %v2553 = vshrl.u32 2475754826, %v2550
        %v2554 = vor.u32 %v2552, %v2553
        %v2555 = vshll.u32 2475754826, %v2549
        %v2556 = vshrl.u32 2131351028, %v2550
        %v2557 = vor.u32 %v2555, %v2556
        %v2558 = vshll.u32 2131351028, %v2549
        %v2559 = vshrl.u32 2102212464, %v2550
        %v2560 = vor.u32 %v2558, %v2559
        %v2561 = vshll.u32 2102212464, %v2549
        %v2562 = vshrl.u32 920167782, %v2550
        %v2563 = vor.u32 %v2561, %v2562
        %v2564 = vshll.u32 920167782, %v2549
        %v2565 = vshrl.u32 1326507024, %v2550
        %v2566 = vor.u32 %v2564, %v2565
        %vm2567 = vcmp.lt.s32.totalorder %v2548, 1
        %vm2568 = vcmp.lt.s32.totalorder %v2548, 2
        %vm2569 = vcmp.lt.s32.totalorder %v2548, 3
        %vm2570 = vcmp.lt.s32.totalorder %v2548, 4
        %v2571 = vsel %vm2567, %v2551, %v2554
        %v2572 = vsel %vm2570, %v2560, 2102212464
        %v2573 = vsel %vm2569, %v2557, %v2572
        %v2574 = vsel %vm2568, %v2571, %v2573
        %v2575 = vsel %vm2567, %v2554, %v2557
        %v2576 = vsel %vm2570, %v2563, 920167782
        %v2577 = vsel %vm2569, %v2560, %v2576
        %v2578 = vsel %vm2568, %v2575, %v2577
        %v2579 = vsel %vm2567, %v2557, %v2560
        %v2580 = vsel %vm2570, %v2566, 1326507024
        %v2581 = vsel %vm2569, %v2563, %v2580
        %v2582 = vsel %vm2568, %v2579, %v2581
        %v2583 = vshll.u32 %v2543, 8
        %v2584 = vmul.u32.u64.compose %v2583, %v2582
        %v2585 = vextract.low.u32 %v2584
        %v2586 = vextract.high.u32 %v2584
        %v2587 = vmul.u32.u64.compose %v2583, %v2578
        %v2588 = vextract.low.u32 %v2587
        %v2589 = vextract.high.u32 %v2587
        %v2590 = vmul.u32 %v2583, %v2574
        %v2591 = vadd.s32 %v2586, %v2588
        %vm2592 = vc.u32 %v2586, %v2588
        %v2593 = vadd.s32 %v2589, 1
        %v2594 = vsel %vm2592, %v2593, %v2589
        %v2595 = vadd.s32 %v2590, %v2594
        %v2596 = vadd.s32 %v2595, 536870912
        %v2597 = vshrl.u32 %v2596, 30
        %v2598 = vshll.u32 %v2597, 30
        %v2599 = vsub.s32 %v2595, %v2598
        %vm2600 = vcmp.lt.s32.totalorder %v2599, 0
        %v2601 = vsub.s32 0, %v2599
        %v2602 = vsel %vm2600, %v2601, %v2599
        %v2603 = vclz %v2602
        %v2604 = vsub.s32 %v2603, 2
        %vm2605 = vcmp.gt.s32.totalorder 0, %v2604
        %v2606 = vsel %vm2605, 0, %v2604
        %v2607 = vsub.s32 32, %v2606
        %v2608 = vshll.u32 %v2599, %v2606
        %v2609 = vshrl.u32 %v2591, %v2607
        %v2610 = vor.u32 %v2608, %v2609
        %v2611 = vsub.s32 4294967266, %v2606
        %v2612 = vadd.s32 %v2611, 127
        %v2613 = vshll.u32 %v2612, 23
        %v2614 = vor.u32 4788187, %v2613
        %v2615 = vand.u32 2147483647, %v2614
        %v2617 = vcvt.s32.f32 %v2610
        %v2618 = vmul.f32 %v2617, %v2615
        %v2619 = vxor.u32 %v2618, 2147483648
        %v2620 = vsel %vm2537, %v2619, %v2618
        %v2621 = vsub.s32 4, %v2597
        %v2622 = vsel %vm2537, %v2621, %v2597
        %v2623 = vsel %vm2536, %v236, %v2620
        %v2624 = vsel %vm2536, 0, %v2622
        %v2625 = vcosq.f32.pop %v2623
        %v2626 = vsinq.f32.pop %v2623
        %vm2627 = vweird.f32 %v236
        %v2628 = vadd.s32 %v2624, 3
        %v2629 = vand.u32 %v2628, 3
        %vm2630 = vcmp.lt.s32.totalorder %v2629, 2
        %vm2631 = vcmp.eq.s32.totalorder %v2629, 0
        %v2632 = vxor.u32 %v2626, 2147483648
        %v2633 = vsel %vm2631, %v2625, %v2632
        %vm2634 = vcmp.eq.s32.totalorder %v2629, 2
        %v2635 = vxor.u32 %v2625, 2147483648
        %v2636 = vsel %vm2634, %v2635, %v2626
        %v2637 = vsel %vm2630, %v2633, %v2636
        %v2638 = vsel %vm2627, nan, %v2637
        %v2639 = vand.u32 2147483647, %v237
        %vm2640 = vcmp.le.f32.partialorder %v2639, 0.7853982
        %vm2641 = vcmp.lt.s32.totalorder %v237, 0
        %v2642 = vand.u32 %v237, 2139095040
        %v2643 = vshrl.u32 %v2642, 23
        %v2644 = vsub.s32 %v2643, 127
        %v2645 = vand.u32 2147483647, %v237
        %v2646 = vand.u32 %v2645, 8388607
        %v2647 = vor.u32 %v2646, 8388608
        %v2648 = vsub.s32 0, %v2647
        %v2649 = vadd.s32 %v2644, 1
        %vm2650 = vcmp.gt.s32.totalorder %v2649, 0
        %v2651 = vsel %vm2650, %v2649, 0
        %v2652 = vshrl.u32 %v2651, 5
        %v2653 = vand.u32 %v2651, 31
        %v2654 = vsub.s32 32, %v2653
        %v2655 = vshrl.u32 683565275, %v2654
        %v2656 = vshll.u32 683565275, %v2653
        %v2657 = vshrl.u32 2475754826, %v2654
        %v2658 = vor.u32 %v2656, %v2657
        %v2659 = vshll.u32 2475754826, %v2653
        %v2660 = vshrl.u32 2131351028, %v2654
        %v2661 = vor.u32 %v2659, %v2660
        %v2662 = vshll.u32 2131351028, %v2653
        %v2663 = vshrl.u32 2102212464, %v2654
        %v2664 = vor.u32 %v2662, %v2663
        %v2665 = vshll.u32 2102212464, %v2653
        %v2666 = vshrl.u32 920167782, %v2654
        %v2667 = vor.u32 %v2665, %v2666
        %v2668 = vshll.u32 920167782, %v2653
        %v2669 = vshrl.u32 1326507024, %v2654
        %v2670 = vor.u32 %v2668, %v2669
        %vm2671 = vcmp.lt.s32.totalorder %v2652, 1
        %vm2672 = vcmp.lt.s32.totalorder %v2652, 2
        %vm2673 = vcmp.lt.s32.totalorder %v2652, 3
        %vm2674 = vcmp.lt.s32.totalorder %v2652, 4
        %v2675 = vsel %vm2671, %v2655, %v2658
        %v2676 = vsel %vm2674, %v2664, 2102212464
        %v2677 = vsel %vm2673, %v2661, %v2676
        %v2678 = vsel %vm2672, %v2675, %v2677
        %v2679 = vsel %vm2671, %v2658, %v2661
        %v2680 = vsel %vm2674, %v2667, 920167782
        %v2681 = vsel %vm2673, %v2664, %v2680
        %v2682 = vsel %vm2672, %v2679, %v2681
        %v2683 = vsel %vm2671, %v2661, %v2664
        %v2684 = vsel %vm2674, %v2670, 1326507024
        %v2685 = vsel %vm2673, %v2667, %v2684
        %v2686 = vsel %vm2672, %v2683, %v2685
        %v2687 = vshll.u32 %v2647, 8
        %v2688 = vmul.u32.u64.compose %v2687, %v2686
        %v2689 = vextract.low.u32 %v2688
        %v2690 = vextract.high.u32 %v2688
        %v2691 = vmul.u32.u64.compose %v2687, %v2682
        %v2692 = vextract.low.u32 %v2691
        %v2693 = vextract.high.u32 %v2691
        %v2694 = vmul.u32 %v2687, %v2678
        %v2695 = vadd.s32 %v2690, %v2692
        %vm2696 = vc.u32 %v2690, %v2692
        %v2697 = vadd.s32 %v2693, 1
        %v2698 = vsel %vm2696, %v2697, %v2693
        %v2699 = vadd.s32 %v2694, %v2698
        %v2700 = vadd.s32 %v2699, 536870912
        %v2701 = vshrl.u32 %v2700, 30
        %v2702 = vshll.u32 %v2701, 30
        %v2703 = vsub.s32 %v2699, %v2702
        %vm2704 = vcmp.lt.s32.totalorder %v2703, 0
        %v2705 = vsub.s32 0, %v2703
        %v2706 = vsel %vm2704, %v2705, %v2703
        %v2707 = vclz %v2706
        %v2708 = vsub.s32 %v2707, 2
        %vm2709 = vcmp.gt.s32.totalorder 0, %v2708
        %v2710 = vsel %vm2709, 0, %v2708
        %v2711 = vsub.s32 32, %v2710
        %v2712 = vshll.u32 %v2703, %v2710
        %v2713 = vshrl.u32 %v2695, %v2711
        %v2714 = vor.u32 %v2712, %v2713
        %v2715 = vsub.s32 4294967266, %v2710
        %v2716 = vadd.s32 %v2715, 127
        %v2717 = vshll.u32 %v2716, 23
        %v2718 = vor.u32 4788187, %v2717
        %v2719 = vand.u32 2147483647, %v2718
        %v2721 = vcvt.s32.f32 %v2714
        %v2722 = vmul.f32 %v2721, %v2719
        %v2723 = vxor.u32 %v2722, 2147483648
        %v2724 = vsel %vm2641, %v2723, %v2722
        %v2725 = vsub.s32 4, %v2701
        %v2726 = vsel %vm2641, %v2725, %v2701
        %v2727 = vsel %vm2640, %v237, %v2724
        %v2728 = vsel %vm2640, 0, %v2726
        %v2729 = vcosq.f32.pop %v2727
        %v2730 = vsinq.f32.pop %v2727
        %vm2731 = vweird.f32 %v237
        %v2732 = vadd.s32 %v2728, 3
        %v2733 = vand.u32 %v2732, 3
        %vm2734 = vcmp.lt.s32.totalorder %v2733, 2
        %vm2735 = vcmp.eq.s32.totalorder %v2733, 0
        %v2736 = vxor.u32 %v2730, 2147483648
        %v2737 = vsel %vm2735, %v2729, %v2736
        %vm2738 = vcmp.eq.s32.totalorder %v2733, 2
        %v2739 = vxor.u32 %v2729, 2147483648
        %v2740 = vsel %vm2738, %v2739, %v2730
        %v2741 = vsel %vm2734, %v2737, %v2740
        %v2742 = vsel %vm2731, nan, %v2741
        %v2743 = vand.u32 2147483647, %v238
        %vm2744 = vcmp.le.f32.partialorder %v2743, 0.7853982
        %vm2745 = vcmp.lt.s32.totalorder %v238, 0
        %v2746 = vand.u32 %v238, 2139095040
        %v2747 = vshrl.u32 %v2746, 23
        %v2748 = vsub.s32 %v2747, 127
        %v2749 = vand.u32 2147483647, %v238
        %v2750 = vand.u32 %v2749, 8388607
        %v2751 = vor.u32 %v2750, 8388608
        %v2752 = vsub.s32 0, %v2751
        %v2753 = vadd.s32 %v2748, 1
        %vm2754 = vcmp.gt.s32.totalorder %v2753, 0
        %v2755 = vsel %vm2754, %v2753, 0
        %v2756 = vshrl.u32 %v2755, 5
        %v2757 = vand.u32 %v2755, 31
        %v2758 = vsub.s32 32, %v2757
        %v2759 = vshrl.u32 683565275, %v2758
        %v2760 = vshll.u32 683565275, %v2757
        %v2761 = vshrl.u32 2475754826, %v2758
        %v2762 = vor.u32 %v2760, %v2761
        %v2763 = vshll.u32 2475754826, %v2757
        %v2764 = vshrl.u32 2131351028, %v2758
        %v2765 = vor.u32 %v2763, %v2764
        %v2766 = vshll.u32 2131351028, %v2757
        %v2767 = vshrl.u32 2102212464, %v2758
        %v2768 = vor.u32 %v2766, %v2767
        %v2769 = vshll.u32 2102212464, %v2757
        %v2770 = vshrl.u32 920167782, %v2758
        %v2771 = vor.u32 %v2769, %v2770
        %v2772 = vshll.u32 920167782, %v2757
        %v2773 = vshrl.u32 1326507024, %v2758
        %v2774 = vor.u32 %v2772, %v2773
        %vm2775 = vcmp.lt.s32.totalorder %v2756, 1
        %vm2776 = vcmp.lt.s32.totalorder %v2756, 2
        %vm2777 = vcmp.lt.s32.totalorder %v2756, 3
        %vm2778 = vcmp.lt.s32.totalorder %v2756, 4
        %v2779 = vsel %vm2775, %v2759, %v2762
        %v2780 = vsel %vm2778, %v2768, 2102212464
        %v2781 = vsel %vm2777, %v2765, %v2780
        %v2782 = vsel %vm2776, %v2779, %v2781
        %v2783 = vsel %vm2775, %v2762, %v2765
        %v2784 = vsel %vm2778, %v2771, 920167782
        %v2785 = vsel %vm2777, %v2768, %v2784
        %v2786 = vsel %vm2776, %v2783, %v2785
        %v2787 = vsel %vm2775, %v2765, %v2768
        %v2788 = vsel %vm2778, %v2774, 1326507024
        %v2789 = vsel %vm2777, %v2771, %v2788
        %v2790 = vsel %vm2776, %v2787, %v2789
        %v2791 = vshll.u32 %v2751, 8
        %v2792 = vmul.u32.u64.compose %v2791, %v2790
        %v2793 = vextract.low.u32 %v2792
        %v2794 = vextract.high.u32 %v2792
        %v2795 = vmul.u32.u64.compose %v2791, %v2786
        %v2796 = vextract.low.u32 %v2795
        %v2797 = vextract.high.u32 %v2795
        %v2798 = vmul.u32 %v2791, %v2782
        %v2799 = vadd.s32 %v2794, %v2796
        %vm2800 = vc.u32 %v2794, %v2796
        %v2801 = vadd.s32 %v2797, 1
        %v2802 = vsel %vm2800, %v2801, %v2797
        %v2803 = vadd.s32 %v2798, %v2802
        %v2804 = vadd.s32 %v2803, 536870912
        %v2805 = vshrl.u32 %v2804, 30
        %v2806 = vshll.u32 %v2805, 30
        %v2807 = vsub.s32 %v2803, %v2806
        %vm2808 = vcmp.lt.s32.totalorder %v2807, 0
        %v2809 = vsub.s32 0, %v2807
        %v2810 = vsel %vm2808, %v2809, %v2807
        %v2811 = vclz %v2810
        %v2812 = vsub.s32 %v2811, 2
        %vm2813 = vcmp.gt.s32.totalorder 0, %v2812
        %v2814 = vsel %vm2813, 0, %v2812
        %v2815 = vsub.s32 32, %v2814
        %v2816 = vshll.u32 %v2807, %v2814
        %v2817 = vshrl.u32 %v2799, %v2815
        %v2818 = vor.u32 %v2816, %v2817
        %v2819 = vsub.s32 4294967266, %v2814
        %v2820 = vadd.s32 %v2819, 127
        %v2821 = vshll.u32 %v2820, 23
        %v2822 = vor.u32 4788187, %v2821
        %v2823 = vand.u32 2147483647, %v2822
        %v2825 = vcvt.s32.f32 %v2818
        %v2826 = vmul.f32 %v2825, %v2823
        %v2827 = vxor.u32 %v2826, 2147483648
        %v2828 = vsel %vm2745, %v2827, %v2826
        %v2829 = vsub.s32 4, %v2805
        %v2830 = vsel %vm2745, %v2829, %v2805
        %v2831 = vsel %vm2744, %v238, %v2828
        %v2832 = vsel %vm2744, 0, %v2830
        %v2833 = vcosq.f32.pop %v2831
        %v2834 = vsinq.f32.pop %v2831
        %vm2835 = vweird.f32 %v238
        %v2836 = vadd.s32 %v2832, 3
        %v2837 = vand.u32 %v2836, 3
        %vm2838 = vcmp.lt.s32.totalorder %v2837, 2
        %vm2839 = vcmp.eq.s32.totalorder %v2837, 0
        %v2840 = vxor.u32 %v2834, 2147483648
        %v2841 = vsel %vm2839, %v2833, %v2840
        %vm2842 = vcmp.eq.s32.totalorder %v2837, 2
        %v2843 = vxor.u32 %v2833, 2147483648
        %v2844 = vsel %vm2842, %v2843, %v2834
        %v2845 = vsel %vm2838, %v2841, %v2844
        %v2846 = vsel %vm2835, nan, %v2845
        %v2847 = vand.u32 2147483647, %v239
        %vm2848 = vcmp.le.f32.partialorder %v2847, 0.7853982
        %vm2849 = vcmp.lt.s32.totalorder %v239, 0
        %v2850 = vand.u32 %v239, 2139095040
        %v2851 = vshrl.u32 %v2850, 23
        %v2852 = vsub.s32 %v2851, 127
        %v2853 = vand.u32 2147483647, %v239
        %v2854 = vand.u32 %v2853, 8388607
        %v2855 = vor.u32 %v2854, 8388608
        %v2856 = vsub.s32 0, %v2855
        %v2857 = vadd.s32 %v2852, 1
        %vm2858 = vcmp.gt.s32.totalorder %v2857, 0
        %v2859 = vsel %vm2858, %v2857, 0
        %v2860 = vshrl.u32 %v2859, 5
        %v2861 = vand.u32 %v2859, 31
        %v2862 = vsub.s32 32, %v2861
        %v2863 = vshrl.u32 683565275, %v2862
        %v2864 = vshll.u32 683565275, %v2861
        %v2865 = vshrl.u32 2475754826, %v2862
        %v2866 = vor.u32 %v2864, %v2865
        %v2867 = vshll.u32 2475754826, %v2861
        %v2868 = vshrl.u32 2131351028, %v2862
        %v2869 = vor.u32 %v2867, %v2868
        %v2870 = vshll.u32 2131351028, %v2861
        %v2871 = vshrl.u32 2102212464, %v2862
        %v2872 = vor.u32 %v2870, %v2871
        %v2873 = vshll.u32 2102212464, %v2861
        %v2874 = vshrl.u32 920167782, %v2862
        %v2875 = vor.u32 %v2873, %v2874
        %v2876 = vshll.u32 920167782, %v2861
        %v2877 = vshrl.u32 1326507024, %v2862
        %v2878 = vor.u32 %v2876, %v2877
        %vm2879 = vcmp.lt.s32.totalorder %v2860, 1
        %vm2880 = vcmp.lt.s32.totalorder %v2860, 2
        %vm2881 = vcmp.lt.s32.totalorder %v2860, 3
        %vm2882 = vcmp.lt.s32.totalorder %v2860, 4
        %v2883 = vsel %vm2879, %v2863, %v2866
        %v2884 = vsel %vm2882, %v2872, 2102212464
        %v2885 = vsel %vm2881, %v2869, %v2884
        %v2886 = vsel %vm2880, %v2883, %v2885
        %v2887 = vsel %vm2879, %v2866, %v2869
        %v2888 = vsel %vm2882, %v2875, 920167782
        %v2889 = vsel %vm2881, %v2872, %v2888
        %v2890 = vsel %vm2880, %v2887, %v2889
        %v2891 = vsel %vm2879, %v2869, %v2872
        %v2892 = vsel %vm2882, %v2878, 1326507024
        %v2893 = vsel %vm2881, %v2875, %v2892
        %v2894 = vsel %vm2880, %v2891, %v2893
        %v2895 = vshll.u32 %v2855, 8
        %v2896 = vmul.u32.u64.compose %v2895, %v2894
        %v2897 = vextract.low.u32 %v2896
        %v2898 = vextract.high.u32 %v2896
        %v2899 = vmul.u32.u64.compose %v2895, %v2890
        %v2900 = vextract.low.u32 %v2899
        %v2901 = vextract.high.u32 %v2899
        %v2902 = vmul.u32 %v2895, %v2886
        %v2903 = vadd.s32 %v2898, %v2900
        %vm2904 = vc.u32 %v2898, %v2900
        %v2905 = vadd.s32 %v2901, 1
        %v2906 = vsel %vm2904, %v2905, %v2901
        %v2907 = vadd.s32 %v2902, %v2906
        %v2908 = vadd.s32 %v2907, 536870912
        %v2909 = vshrl.u32 %v2908, 30
        %v2910 = vshll.u32 %v2909, 30
        %v2911 = vsub.s32 %v2907, %v2910
        %vm2912 = vcmp.lt.s32.totalorder %v2911, 0
        %v2913 = vsub.s32 0, %v2911
        %v2914 = vsel %vm2912, %v2913, %v2911
        %v2915 = vclz %v2914
        %v2916 = vsub.s32 %v2915, 2
        %vm2917 = vcmp.gt.s32.totalorder 0, %v2916
        %v2918 = vsel %vm2917, 0, %v2916
        %v2919 = vsub.s32 32, %v2918
        %v2920 = vshll.u32 %v2911, %v2918
        %v2921 = vshrl.u32 %v2903, %v2919
        %v2922 = vor.u32 %v2920, %v2921
        %v2923 = vsub.s32 4294967266, %v2918
        %v2924 = vadd.s32 %v2923, 127
        %v2925 = vshll.u32 %v2924, 23
        %v2926 = vor.u32 4788187, %v2925
        %v2927 = vand.u32 2147483647, %v2926
        %v2929 = vcvt.s32.f32 %v2922
        %v2930 = vmul.f32 %v2929, %v2927
        %v2931 = vxor.u32 %v2930, 2147483648
        %v2932 = vsel %vm2849, %v2931, %v2930
        %v2933 = vsub.s32 4, %v2909
        %v2934 = vsel %vm2849, %v2933, %v2909
        %v2935 = vsel %vm2848, %v239, %v2932
        %v2936 = vsel %vm2848, 0, %v2934
        %v2937 = vcosq.f32.pop %v2935
        %v2938 = vsinq.f32.pop %v2935
        %vm2939 = vweird.f32 %v239
        %v2940 = vadd.s32 %v2936, 3
        %v2941 = vand.u32 %v2940, 3
        %vm2942 = vcmp.lt.s32.totalorder %v2941, 2
        %vm2943 = vcmp.eq.s32.totalorder %v2941, 0
        %v2944 = vxor.u32 %v2938, 2147483648
        %v2945 = vsel %vm2943, %v2937, %v2944
        %vm2946 = vcmp.eq.s32.totalorder %v2941, 2
        %v2947 = vxor.u32 %v2937, 2147483648
        %v2948 = vsel %vm2946, %v2947, %v2938
        %v2949 = vsel %vm2942, %v2945, %v2948
        %v2950 = vsel %vm2939, nan, %v2949
        %v2951 = vand.u32 2147483647, %v240
        %vm2952 = vcmp.le.f32.partialorder %v2951, 0.7853982
        %vm2953 = vcmp.lt.s32.totalorder %v240, 0
        %v2954 = vand.u32 %v240, 2139095040
        %v2955 = vshrl.u32 %v2954, 23
        %v2956 = vsub.s32 %v2955, 127
        %v2957 = vand.u32 2147483647, %v240
        %v2958 = vand.u32 %v2957, 8388607
        %v2959 = vor.u32 %v2958, 8388608
        %v2960 = vsub.s32 0, %v2959
        %v2961 = vadd.s32 %v2956, 1
        %vm2962 = vcmp.gt.s32.totalorder %v2961, 0
        %v2963 = vsel %vm2962, %v2961, 0
        %v2964 = vshrl.u32 %v2963, 5
        %v2965 = vand.u32 %v2963, 31
        %v2966 = vsub.s32 32, %v2965
        %v2967 = vshrl.u32 683565275, %v2966
        %v2968 = vshll.u32 683565275, %v2965
        %v2969 = vshrl.u32 2475754826, %v2966
        %v2970 = vor.u32 %v2968, %v2969
        %v2971 = vshll.u32 2475754826, %v2965
        %v2972 = vshrl.u32 2131351028, %v2966
        %v2973 = vor.u32 %v2971, %v2972
        %v2974 = vshll.u32 2131351028, %v2965
        %v2975 = vshrl.u32 2102212464, %v2966
        %v2976 = vor.u32 %v2974, %v2975
        %v2977 = vshll.u32 2102212464, %v2965
        %v2978 = vshrl.u32 920167782, %v2966
        %v2979 = vor.u32 %v2977, %v2978
        %v2980 = vshll.u32 920167782, %v2965
        %v2981 = vshrl.u32 1326507024, %v2966
        %v2982 = vor.u32 %v2980, %v2981
        %vm2983 = vcmp.lt.s32.totalorder %v2964, 1
        %vm2984 = vcmp.lt.s32.totalorder %v2964, 2
        %vm2985 = vcmp.lt.s32.totalorder %v2964, 3
        %vm2986 = vcmp.lt.s32.totalorder %v2964, 4
        %v2987 = vsel %vm2983, %v2967, %v2970
        %v2988 = vsel %vm2986, %v2976, 2102212464
        %v2989 = vsel %vm2985, %v2973, %v2988
        %v2990 = vsel %vm2984, %v2987, %v2989
        %v2991 = vsel %vm2983, %v2970, %v2973
        %v2992 = vsel %vm2986, %v2979, 920167782
        %v2993 = vsel %vm2985, %v2976, %v2992
        %v2994 = vsel %vm2984, %v2991, %v2993
        %v2995 = vsel %vm2983, %v2973, %v2976
        %v2996 = vsel %vm2986, %v2982, 1326507024
        %v2997 = vsel %vm2985, %v2979, %v2996
        %v2998 = vsel %vm2984, %v2995, %v2997
        %v2999 = vshll.u32 %v2959, 8
        %v3000 = vmul.u32.u64.compose %v2999, %v2998
        %v3001 = vextract.low.u32 %v3000
        %v3002 = vextract.high.u32 %v3000
        %v3003 = vmul.u32.u64.compose %v2999, %v2994
        %v3004 = vextract.low.u32 %v3003
        %v3005 = vextract.high.u32 %v3003
        %v3006 = vmul.u32 %v2999, %v2990
        %v3007 = vadd.s32 %v3002, %v3004
        %vm3008 = vc.u32 %v3002, %v3004
        %v3009 = vadd.s32 %v3005, 1
        %v3010 = vsel %vm3008, %v3009, %v3005
        %v3011 = vadd.s32 %v3006, %v3010
        %v3012 = vadd.s32 %v3011, 536870912
        %v3013 = vshrl.u32 %v3012, 30
        %v3014 = vshll.u32 %v3013, 30
        %v3015 = vsub.s32 %v3011, %v3014
        %vm3016 = vcmp.lt.s32.totalorder %v3015, 0
        %v3017 = vsub.s32 0, %v3015
        %v3018 = vsel %vm3016, %v3017, %v3015
        %v3019 = vclz %v3018
        %v3020 = vsub.s32 %v3019, 2
        %vm3021 = vcmp.gt.s32.totalorder 0, %v3020
        %v3022 = vsel %vm3021, 0, %v3020
        %v3023 = vsub.s32 32, %v3022
        %v3024 = vshll.u32 %v3015, %v3022
        %v3025 = vshrl.u32 %v3007, %v3023
        %v3026 = vor.u32 %v3024, %v3025
        %v3027 = vsub.s32 4294967266, %v3022
        %v3028 = vadd.s32 %v3027, 127
        %v3029 = vshll.u32 %v3028, 23
        %v3030 = vor.u32 4788187, %v3029
        %v3031 = vand.u32 2147483647, %v3030
        %v3033 = vcvt.s32.f32 %v3026
        %v3034 = vmul.f32 %v3033, %v3031
        %v3035 = vxor.u32 %v3034, 2147483648
        %v3036 = vsel %vm2953, %v3035, %v3034
        %v3037 = vsub.s32 4, %v3013
        %v3038 = vsel %vm2953, %v3037, %v3013
        %v3039 = vsel %vm2952, %v240, %v3036
        %v3040 = vsel %vm2952, 0, %v3038
        %v3041 = vcosq.f32.pop %v3039
        %v3042 = vsinq.f32.pop %v3039
        %vm3043 = vweird.f32 %v240
        %v3044 = vadd.s32 %v3040, 3
        %v3045 = vand.u32 %v3044, 3
        %vm3046 = vcmp.lt.s32.totalorder %v3045, 2
        %vm3047 = vcmp.eq.s32.totalorder %v3045, 0
        %v3048 = vxor.u32 %v3042, 2147483648
        %v3049 = vsel %vm3047, %v3041, %v3048
        %vm3050 = vcmp.eq.s32.totalorder %v3045, 2
        %v3051 = vxor.u32 %v3041, 2147483648
        %v3052 = vsel %vm3050, %v3051, %v3042
        %v3053 = vsel %vm3046, %v3049, %v3052
        %v3054 = vsel %vm3043, nan, %v3053
        %v3055 = vand.u32 2147483647, %v241
        %vm3056 = vcmp.le.f32.partialorder %v3055, 0.7853982
        %vm3057 = vcmp.lt.s32.totalorder %v241, 0
        %v3058 = vand.u32 %v241, 2139095040
        %v3059 = vshrl.u32 %v3058, 23
        %v3060 = vsub.s32 %v3059, 127
        %v3061 = vand.u32 2147483647, %v241
        %v3062 = vand.u32 %v3061, 8388607
        %v3063 = vor.u32 %v3062, 8388608
        %v3064 = vsub.s32 0, %v3063
        %v3065 = vadd.s32 %v3060, 1
        %vm3066 = vcmp.gt.s32.totalorder %v3065, 0
        %v3067 = vsel %vm3066, %v3065, 0
        %v3068 = vshrl.u32 %v3067, 5
        %v3069 = vand.u32 %v3067, 31
        %v3070 = vsub.s32 32, %v3069
        %v3071 = vshrl.u32 683565275, %v3070
        %v3072 = vshll.u32 683565275, %v3069
        %v3073 = vshrl.u32 2475754826, %v3070
        %v3074 = vor.u32 %v3072, %v3073
        %v3075 = vshll.u32 2475754826, %v3069
        %v3076 = vshrl.u32 2131351028, %v3070
        %v3077 = vor.u32 %v3075, %v3076
        %v3078 = vshll.u32 2131351028, %v3069
        %v3079 = vshrl.u32 2102212464, %v3070
        %v3080 = vor.u32 %v3078, %v3079
        %v3081 = vshll.u32 2102212464, %v3069
        %v3082 = vshrl.u32 920167782, %v3070
        %v3083 = vor.u32 %v3081, %v3082
        %v3084 = vshll.u32 920167782, %v3069
        %v3085 = vshrl.u32 1326507024, %v3070
        %v3086 = vor.u32 %v3084, %v3085
        %vm3087 = vcmp.lt.s32.totalorder %v3068, 1
        %vm3088 = vcmp.lt.s32.totalorder %v3068, 2
        %vm3089 = vcmp.lt.s32.totalorder %v3068, 3
        %vm3090 = vcmp.lt.s32.totalorder %v3068, 4
        %v3091 = vsel %vm3087, %v3071, %v3074
        %v3092 = vsel %vm3090, %v3080, 2102212464
        %v3093 = vsel %vm3089, %v3077, %v3092
        %v3094 = vsel %vm3088, %v3091, %v3093
        %v3095 = vsel %vm3087, %v3074, %v3077
        %v3096 = vsel %vm3090, %v3083, 920167782
        %v3097 = vsel %vm3089, %v3080, %v3096
        %v3098 = vsel %vm3088, %v3095, %v3097
        %v3099 = vsel %vm3087, %v3077, %v3080
        %v3100 = vsel %vm3090, %v3086, 1326507024
        %v3101 = vsel %vm3089, %v3083, %v3100
        %v3102 = vsel %vm3088, %v3099, %v3101
        %v3103 = vshll.u32 %v3063, 8
        %v3104 = vmul.u32.u64.compose %v3103, %v3102
        %v3105 = vextract.low.u32 %v3104
        %v3106 = vextract.high.u32 %v3104
        %v3107 = vmul.u32.u64.compose %v3103, %v3098
        %v3108 = vextract.low.u32 %v3107
        %v3109 = vextract.high.u32 %v3107
        %v3110 = vmul.u32 %v3103, %v3094
        %v3111 = vadd.s32 %v3106, %v3108
        %vm3112 = vc.u32 %v3106, %v3108
        %v3113 = vadd.s32 %v3109, 1
        %v3114 = vsel %vm3112, %v3113, %v3109
        %v3115 = vadd.s32 %v3110, %v3114
        %v3116 = vadd.s32 %v3115, 536870912
        %v3117 = vshrl.u32 %v3116, 30
        %v3118 = vshll.u32 %v3117, 30
        %v3119 = vsub.s32 %v3115, %v3118
        %vm3120 = vcmp.lt.s32.totalorder %v3119, 0
        %v3121 = vsub.s32 0, %v3119
        %v3122 = vsel %vm3120, %v3121, %v3119
        %v3123 = vclz %v3122
        %v3124 = vsub.s32 %v3123, 2
        %vm3125 = vcmp.gt.s32.totalorder 0, %v3124
        %v3126 = vsel %vm3125, 0, %v3124
        %v3127 = vsub.s32 32, %v3126
        %v3128 = vshll.u32 %v3119, %v3126
        %v3129 = vshrl.u32 %v3111, %v3127
        %v3130 = vor.u32 %v3128, %v3129
        %v3131 = vsub.s32 4294967266, %v3126
        %v3132 = vadd.s32 %v3131, 127
        %v3133 = vshll.u32 %v3132, 23
        %v3134 = vor.u32 4788187, %v3133
        %v3135 = vand.u32 2147483647, %v3134
        %v3137 = vcvt.s32.f32 %v3130
        %v3138 = vmul.f32 %v3137, %v3135
        %v3139 = vxor.u32 %v3138, 2147483648
        %v3140 = vsel %vm3057, %v3139, %v3138
        %v3141 = vsub.s32 4, %v3117
        %v3142 = vsel %vm3057, %v3141, %v3117
        %v3143 = vsel %vm3056, %v241, %v3140
        %v3144 = vsel %vm3056, 0, %v3142
        %v3145 = vcosq.f32.pop %v3143
        %v3146 = vsinq.f32.pop %v3143
        %vm3147 = vweird.f32 %v241
        %v3148 = vadd.s32 %v3144, 3
        %v3149 = vand.u32 %v3148, 3
        %vm3150 = vcmp.lt.s32.totalorder %v3149, 2
        %vm3151 = vcmp.eq.s32.totalorder %v3149, 0
        %v3152 = vxor.u32 %v3146, 2147483648
        %v3153 = vsel %vm3151, %v3145, %v3152
        %vm3154 = vcmp.eq.s32.totalorder %v3149, 2
        %v3155 = vxor.u32 %v3145, 2147483648
        %v3156 = vsel %vm3154, %v3155, %v3146
        %v3157 = vsel %vm3150, %v3153, %v3156
        %v3158 = vsel %vm3147, nan, %v3157
        %v3159 = vand.u32 2147483647, %v242
        %vm3160 = vcmp.le.f32.partialorder %v3159, 0.7853982
        %vm3161 = vcmp.lt.s32.totalorder %v242, 0
        %v3162 = vand.u32 %v242, 2139095040
        %v3163 = vshrl.u32 %v3162, 23
        %v3164 = vsub.s32 %v3163, 127
        %v3165 = vand.u32 2147483647, %v242
        %v3166 = vand.u32 %v3165, 8388607
        %v3167 = vor.u32 %v3166, 8388608
        %v3168 = vsub.s32 0, %v3167
        %v3169 = vadd.s32 %v3164, 1
        %vm3170 = vcmp.gt.s32.totalorder %v3169, 0
        %v3171 = vsel %vm3170, %v3169, 0
        %v3172 = vshrl.u32 %v3171, 5
        %v3173 = vand.u32 %v3171, 31
        %v3174 = vsub.s32 32, %v3173
        %v3175 = vshrl.u32 683565275, %v3174
        %v3176 = vshll.u32 683565275, %v3173
        %v3177 = vshrl.u32 2475754826, %v3174
        %v3178 = vor.u32 %v3176, %v3177
        %v3179 = vshll.u32 2475754826, %v3173
        %v3180 = vshrl.u32 2131351028, %v3174
        %v3181 = vor.u32 %v3179, %v3180
        %v3182 = vshll.u32 2131351028, %v3173
        %v3183 = vshrl.u32 2102212464, %v3174
        %v3184 = vor.u32 %v3182, %v3183
        %v3185 = vshll.u32 2102212464, %v3173
        %v3186 = vshrl.u32 920167782, %v3174
        %v3187 = vor.u32 %v3185, %v3186
        %v3188 = vshll.u32 920167782, %v3173
        %v3189 = vshrl.u32 1326507024, %v3174
        %v3190 = vor.u32 %v3188, %v3189
        %vm3191 = vcmp.lt.s32.totalorder %v3172, 1
        %vm3192 = vcmp.lt.s32.totalorder %v3172, 2
        %vm3193 = vcmp.lt.s32.totalorder %v3172, 3
        %vm3194 = vcmp.lt.s32.totalorder %v3172, 4
        %v3195 = vsel %vm3191, %v3175, %v3178
        %v3196 = vsel %vm3194, %v3184, 2102212464
        %v3197 = vsel %vm3193, %v3181, %v3196
        %v3198 = vsel %vm3192, %v3195, %v3197
        %v3199 = vsel %vm3191, %v3178, %v3181
        %v3200 = vsel %vm3194, %v3187, 920167782
        %v3201 = vsel %vm3193, %v3184, %v3200
        %v3202 = vsel %vm3192, %v3199, %v3201
        %v3203 = vsel %vm3191, %v3181, %v3184
        %v3204 = vsel %vm3194, %v3190, 1326507024
        %v3205 = vsel %vm3193, %v3187, %v3204
        %v3206 = vsel %vm3192, %v3203, %v3205
        %v3207 = vshll.u32 %v3167, 8
        %v3208 = vmul.u32.u64.compose %v3207, %v3206
        %v3209 = vextract.low.u32 %v3208
        %v3210 = vextract.high.u32 %v3208
        %v3211 = vmul.u32.u64.compose %v3207, %v3202
        %v3212 = vextract.low.u32 %v3211
        %v3213 = vextract.high.u32 %v3211
        %v3214 = vmul.u32 %v3207, %v3198
        %v3215 = vadd.s32 %v3210, %v3212
        %vm3216 = vc.u32 %v3210, %v3212
        %v3217 = vadd.s32 %v3213, 1
        %v3218 = vsel %vm3216, %v3217, %v3213
        %v3219 = vadd.s32 %v3214, %v3218
        %v3220 = vadd.s32 %v3219, 536870912
        %v3221 = vshrl.u32 %v3220, 30
        %v3222 = vshll.u32 %v3221, 30
        %v3223 = vsub.s32 %v3219, %v3222
        %vm3224 = vcmp.lt.s32.totalorder %v3223, 0
        %v3225 = vsub.s32 0, %v3223
        %v3226 = vsel %vm3224, %v3225, %v3223
        %v3227 = vclz %v3226
        %v3228 = vsub.s32 %v3227, 2
        %vm3229 = vcmp.gt.s32.totalorder 0, %v3228
        %v3230 = vsel %vm3229, 0, %v3228
        %v3231 = vsub.s32 32, %v3230
        %v3232 = vshll.u32 %v3223, %v3230
        %v3233 = vshrl.u32 %v3215, %v3231
        %v3234 = vor.u32 %v3232, %v3233
        %v3235 = vsub.s32 4294967266, %v3230
        %v3236 = vadd.s32 %v3235, 127
        %v3237 = vshll.u32 %v3236, 23
        %v3238 = vor.u32 4788187, %v3237
        %v3239 = vand.u32 2147483647, %v3238
        %v3241 = vcvt.s32.f32 %v3234
        %v3242 = vmul.f32 %v3241, %v3239
        %v3243 = vxor.u32 %v3242, 2147483648
        %v3244 = vsel %vm3161, %v3243, %v3242
        %v3245 = vsub.s32 4, %v3221
        %v3246 = vsel %vm3161, %v3245, %v3221
        %v3247 = vsel %vm3160, %v242, %v3244
        %v3248 = vsel %vm3160, 0, %v3246
        %v3249 = vcosq.f32.pop %v3247
        %v3250 = vsinq.f32.pop %v3247
        %vm3251 = vweird.f32 %v242
        %v3252 = vadd.s32 %v3248, 3
        %v3253 = vand.u32 %v3252, 3
        %vm3254 = vcmp.lt.s32.totalorder %v3253, 2
        %vm3255 = vcmp.eq.s32.totalorder %v3253, 0
        %v3256 = vxor.u32 %v3250, 2147483648
        %v3257 = vsel %vm3255, %v3249, %v3256
        %vm3258 = vcmp.eq.s32.totalorder %v3253, 2
        %v3259 = vxor.u32 %v3249, 2147483648
        %v3260 = vsel %vm3258, %v3259, %v3250
        %v3261 = vsel %vm3254, %v3257, %v3260
        %v3262 = vsel %vm3251, nan, %v3261
        %v3263 = vand.u32 2147483647, %v243
        %vm3264 = vcmp.le.f32.partialorder %v3263, 0.7853982
        %vm3265 = vcmp.lt.s32.totalorder %v243, 0
        %v3266 = vand.u32 %v243, 2139095040
        %v3267 = vshrl.u32 %v3266, 23
        %v3268 = vsub.s32 %v3267, 127
        %v3269 = vand.u32 2147483647, %v243
        %v3270 = vand.u32 %v3269, 8388607
        %v3271 = vor.u32 %v3270, 8388608
        %v3272 = vsub.s32 0, %v3271
        %v3273 = vadd.s32 %v3268, 1
        %vm3274 = vcmp.gt.s32.totalorder %v3273, 0
        %v3275 = vsel %vm3274, %v3273, 0
        %v3276 = vshrl.u32 %v3275, 5
        %v3277 = vand.u32 %v3275, 31
        %v3278 = vsub.s32 32, %v3277
        %v3279 = vshrl.u32 683565275, %v3278
        %v3280 = vshll.u32 683565275, %v3277
        %v3281 = vshrl.u32 2475754826, %v3278
        %v3282 = vor.u32 %v3280, %v3281
        %v3283 = vshll.u32 2475754826, %v3277
        %v3284 = vshrl.u32 2131351028, %v3278
        %v3285 = vor.u32 %v3283, %v3284
        %v3286 = vshll.u32 2131351028, %v3277
        %v3287 = vshrl.u32 2102212464, %v3278
        %v3288 = vor.u32 %v3286, %v3287
        %v3289 = vshll.u32 2102212464, %v3277
        %v3290 = vshrl.u32 920167782, %v3278
        %v3291 = vor.u32 %v3289, %v3290
        %v3292 = vshll.u32 920167782, %v3277
        %v3293 = vshrl.u32 1326507024, %v3278
        %v3294 = vor.u32 %v3292, %v3293
        %vm3295 = vcmp.lt.s32.totalorder %v3276, 1
        %vm3296 = vcmp.lt.s32.totalorder %v3276, 2
        %vm3297 = vcmp.lt.s32.totalorder %v3276, 3
        %vm3298 = vcmp.lt.s32.totalorder %v3276, 4
        %v3299 = vsel %vm3295, %v3279, %v3282
        %v3300 = vsel %vm3298, %v3288, 2102212464
        %v3301 = vsel %vm3297, %v3285, %v3300
        %v3302 = vsel %vm3296, %v3299, %v3301
        %v3303 = vsel %vm3295, %v3282, %v3285
        %v3304 = vsel %vm3298, %v3291, 920167782
        %v3305 = vsel %vm3297, %v3288, %v3304
        %v3306 = vsel %vm3296, %v3303, %v3305
        %v3307 = vsel %vm3295, %v3285, %v3288
        %v3308 = vsel %vm3298, %v3294, 1326507024
        %v3309 = vsel %vm3297, %v3291, %v3308
        %v3310 = vsel %vm3296, %v3307, %v3309
        %v3311 = vshll.u32 %v3271, 8
        %v3312 = vmul.u32.u64.compose %v3311, %v3310
        %v3313 = vextract.low.u32 %v3312
        %v3314 = vextract.high.u32 %v3312
        %v3315 = vmul.u32.u64.compose %v3311, %v3306
        %v3316 = vextract.low.u32 %v3315
        %v3317 = vextract.high.u32 %v3315
        %v3318 = vmul.u32 %v3311, %v3302
        %v3319 = vadd.s32 %v3314, %v3316
        %vm3320 = vc.u32 %v3314, %v3316
        %v3321 = vadd.s32 %v3317, 1
        %v3322 = vsel %vm3320, %v3321, %v3317
        %v3323 = vadd.s32 %v3318, %v3322
        %v3324 = vadd.s32 %v3323, 536870912
        %v3325 = vshrl.u32 %v3324, 30
        %v3326 = vshll.u32 %v3325, 30
        %v3327 = vsub.s32 %v3323, %v3326
        %vm3328 = vcmp.lt.s32.totalorder %v3327, 0
        %v3329 = vsub.s32 0, %v3327
        %v3330 = vsel %vm3328, %v3329, %v3327
        %v3331 = vclz %v3330
        %v3332 = vsub.s32 %v3331, 2
        %vm3333 = vcmp.gt.s32.totalorder 0, %v3332
        %v3334 = vsel %vm3333, 0, %v3332
        %v3335 = vsub.s32 32, %v3334
        %v3336 = vshll.u32 %v3327, %v3334
        %v3337 = vshrl.u32 %v3319, %v3335
        %v3338 = vor.u32 %v3336, %v3337
        %v3339 = vsub.s32 4294967266, %v3334
        %v3340 = vadd.s32 %v3339, 127
        %v3341 = vshll.u32 %v3340, 23
        %v3342 = vor.u32 4788187, %v3341
        %v3343 = vand.u32 2147483647, %v3342
        %v3345 = vcvt.s32.f32 %v3338
        %v3346 = vmul.f32 %v3345, %v3343
        %v3347 = vxor.u32 %v3346, 2147483648
        %v3348 = vsel %vm3265, %v3347, %v3346
        %v3349 = vsub.s32 4, %v3325
        %v3350 = vsel %vm3265, %v3349, %v3325
        %v3351 = vsel %vm3264, %v243, %v3348
        %v3352 = vsel %vm3264, 0, %v3350
        %v3353 = vcosq.f32.pop %v3351
        %v3354 = vsinq.f32.pop %v3351
        %vm3355 = vweird.f32 %v243
        %v3356 = vadd.s32 %v3352, 3
        %v3357 = vand.u32 %v3356, 3
        %vm3358 = vcmp.lt.s32.totalorder %v3357, 2
        %vm3359 = vcmp.eq.s32.totalorder %v3357, 0
        %v3360 = vxor.u32 %v3354, 2147483648
        %v3361 = vsel %vm3359, %v3353, %v3360
        %vm3362 = vcmp.eq.s32.totalorder %v3357, 2
        %v3363 = vxor.u32 %v3353, 2147483648
        %v3364 = vsel %vm3362, %v3363, %v3354
        %v3365 = vsel %vm3358, %v3361, %v3364
        %v3366 = vsel %vm3355, nan, %v3365
        %v3367 = vand.u32 2147483647, %v244
        %vm3368 = vcmp.le.f32.partialorder %v3367, 0.7853982
        %vm3369 = vcmp.lt.s32.totalorder %v244, 0
        %v3370 = vand.u32 %v244, 2139095040
        %v3371 = vshrl.u32 %v3370, 23
        %v3372 = vsub.s32 %v3371, 127
        %v3373 = vand.u32 2147483647, %v244
        %v3374 = vand.u32 %v3373, 8388607
        %v3375 = vor.u32 %v3374, 8388608
        %v3376 = vsub.s32 0, %v3375
        %v3377 = vadd.s32 %v3372, 1
        %vm3378 = vcmp.gt.s32.totalorder %v3377, 0
        %v3379 = vsel %vm3378, %v3377, 0
        %v3380 = vshrl.u32 %v3379, 5
        %v3381 = vand.u32 %v3379, 31
        %v3382 = vsub.s32 32, %v3381
        %v3383 = vshrl.u32 683565275, %v3382
        %v3384 = vshll.u32 683565275, %v3381
        %v3385 = vshrl.u32 2475754826, %v3382
        %v3386 = vor.u32 %v3384, %v3385
        %v3387 = vshll.u32 2475754826, %v3381
        %v3388 = vshrl.u32 2131351028, %v3382
        %v3389 = vor.u32 %v3387, %v3388
        %v3390 = vshll.u32 2131351028, %v3381
        %v3391 = vshrl.u32 2102212464, %v3382
        %v3392 = vor.u32 %v3390, %v3391
        %v3393 = vshll.u32 2102212464, %v3381
        %v3394 = vshrl.u32 920167782, %v3382
        %v3395 = vor.u32 %v3393, %v3394
        %v3396 = vshll.u32 920167782, %v3381
        %v3397 = vshrl.u32 1326507024, %v3382
        %v3398 = vor.u32 %v3396, %v3397
        %vm3399 = vcmp.lt.s32.totalorder %v3380, 1
        %vm3400 = vcmp.lt.s32.totalorder %v3380, 2
        %vm3401 = vcmp.lt.s32.totalorder %v3380, 3
        %vm3402 = vcmp.lt.s32.totalorder %v3380, 4
        %v3403 = vsel %vm3399, %v3383, %v3386
        %v3404 = vsel %vm3402, %v3392, 2102212464
        %v3405 = vsel %vm3401, %v3389, %v3404
        %v3406 = vsel %vm3400, %v3403, %v3405
        %v3407 = vsel %vm3399, %v3386, %v3389
        %v3408 = vsel %vm3402, %v3395, 920167782
        %v3409 = vsel %vm3401, %v3392, %v3408
        %v3410 = vsel %vm3400, %v3407, %v3409
        %v3411 = vsel %vm3399, %v3389, %v3392
        %v3412 = vsel %vm3402, %v3398, 1326507024
        %v3413 = vsel %vm3401, %v3395, %v3412
        %v3414 = vsel %vm3400, %v3411, %v3413
        %v3415 = vshll.u32 %v3375, 8
        %v3416 = vmul.u32.u64.compose %v3415, %v3414
        %v3417 = vextract.low.u32 %v3416
        %v3418 = vextract.high.u32 %v3416
        %v3419 = vmul.u32.u64.compose %v3415, %v3410
        %v3420 = vextract.low.u32 %v3419
        %v3421 = vextract.high.u32 %v3419
        %v3422 = vmul.u32 %v3415, %v3406
        %v3423 = vadd.s32 %v3418, %v3420
        %vm3424 = vc.u32 %v3418, %v3420
        %v3425 = vadd.s32 %v3421, 1
        %v3426 = vsel %vm3424, %v3425, %v3421
        %v3427 = vadd.s32 %v3422, %v3426
        %v3428 = vadd.s32 %v3427, 536870912
        %v3429 = vshrl.u32 %v3428, 30
        %v3430 = vshll.u32 %v3429, 30
        %v3431 = vsub.s32 %v3427, %v3430
        %vm3432 = vcmp.lt.s32.totalorder %v3431, 0
        %v3433 = vsub.s32 0, %v3431
        %v3434 = vsel %vm3432, %v3433, %v3431
        %v3435 = vclz %v3434
        %v3436 = vsub.s32 %v3435, 2
        %vm3437 = vcmp.gt.s32.totalorder 0, %v3436
        %v3438 = vsel %vm3437, 0, %v3436
        %v3439 = vsub.s32 32, %v3438
        %v3440 = vshll.u32 %v3431, %v3438
        %v3441 = vshrl.u32 %v3423, %v3439
        %v3442 = vor.u32 %v3440, %v3441
        %v3443 = vsub.s32 4294967266, %v3438
        %v3444 = vadd.s32 %v3443, 127
        %v3445 = vshll.u32 %v3444, 23
        %v3446 = vor.u32 4788187, %v3445
        %v3447 = vand.u32 2147483647, %v3446
        %v3449 = vcvt.s32.f32 %v3442
        %v3450 = vmul.f32 %v3449, %v3447
        %v3451 = vxor.u32 %v3450, 2147483648
        %v3452 = vsel %vm3369, %v3451, %v3450
        %v3453 = vsub.s32 4, %v3429
        %v3454 = vsel %vm3369, %v3453, %v3429
        %v3455 = vsel %vm3368, %v244, %v3452
        %v3456 = vsel %vm3368, 0, %v3454
        %v3457 = vcosq.f32.pop %v3455
        %v3458 = vsinq.f32.pop %v3455
        %vm3459 = vweird.f32 %v244
        %v3460 = vadd.s32 %v3456, 3
        %v3461 = vand.u32 %v3460, 3
        %vm3462 = vcmp.lt.s32.totalorder %v3461, 2
        %vm3463 = vcmp.eq.s32.totalorder %v3461, 0
        %v3464 = vxor.u32 %v3458, 2147483648
        %v3465 = vsel %vm3463, %v3457, %v3464
        %vm3466 = vcmp.eq.s32.totalorder %v3461, 2
        %v3467 = vxor.u32 %v3457, 2147483648
        %v3468 = vsel %vm3466, %v3467, %v3458
        %v3469 = vsel %vm3462, %v3465, %v3468
        %v3470 = vsel %vm3459, nan, %v3469
        %v3471 = vand.u32 2147483647, %v245
        %vm3472 = vcmp.le.f32.partialorder %v3471, 0.7853982
        %vm3473 = vcmp.lt.s32.totalorder %v245, 0
        %v3474 = vand.u32 %v245, 2139095040
        %v3475 = vshrl.u32 %v3474, 23
        %v3476 = vsub.s32 %v3475, 127
        %v3477 = vand.u32 2147483647, %v245
        %v3478 = vand.u32 %v3477, 8388607
        %v3479 = vor.u32 %v3478, 8388608
        %v3480 = vsub.s32 0, %v3479
        %v3481 = vadd.s32 %v3476, 1
        %vm3482 = vcmp.gt.s32.totalorder %v3481, 0
        %v3483 = vsel %vm3482, %v3481, 0
        %v3484 = vshrl.u32 %v3483, 5
        %v3485 = vand.u32 %v3483, 31
        %v3486 = vsub.s32 32, %v3485
        %v3487 = vshrl.u32 683565275, %v3486
        %v3488 = vshll.u32 683565275, %v3485
        %v3489 = vshrl.u32 2475754826, %v3486
        %v3490 = vor.u32 %v3488, %v3489
        %v3491 = vshll.u32 2475754826, %v3485
        %v3492 = vshrl.u32 2131351028, %v3486
        %v3493 = vor.u32 %v3491, %v3492
        %v3494 = vshll.u32 2131351028, %v3485
        %v3495 = vshrl.u32 2102212464, %v3486
        %v3496 = vor.u32 %v3494, %v3495
        %v3497 = vshll.u32 2102212464, %v3485
        %v3498 = vshrl.u32 920167782, %v3486
        %v3499 = vor.u32 %v3497, %v3498
        %v3500 = vshll.u32 920167782, %v3485
        %v3501 = vshrl.u32 1326507024, %v3486
        %v3502 = vor.u32 %v3500, %v3501
        %vm3503 = vcmp.lt.s32.totalorder %v3484, 1
        %vm3504 = vcmp.lt.s32.totalorder %v3484, 2
        %vm3505 = vcmp.lt.s32.totalorder %v3484, 3
        %vm3506 = vcmp.lt.s32.totalorder %v3484, 4
        %v3507 = vsel %vm3503, %v3487, %v3490
        %v3508 = vsel %vm3506, %v3496, 2102212464
        %v3509 = vsel %vm3505, %v3493, %v3508
        %v3510 = vsel %vm3504, %v3507, %v3509
        %v3511 = vsel %vm3503, %v3490, %v3493
        %v3512 = vsel %vm3506, %v3499, 920167782
        %v3513 = vsel %vm3505, %v3496, %v3512
        %v3514 = vsel %vm3504, %v3511, %v3513
        %v3515 = vsel %vm3503, %v3493, %v3496
        %v3516 = vsel %vm3506, %v3502, 1326507024
        %v3517 = vsel %vm3505, %v3499, %v3516
        %v3518 = vsel %vm3504, %v3515, %v3517
        %v3519 = vshll.u32 %v3479, 8
        %v3520 = vmul.u32.u64.compose %v3519, %v3518
        %v3521 = vextract.low.u32 %v3520
        %v3522 = vextract.high.u32 %v3520
        %v3523 = vmul.u32.u64.compose %v3519, %v3514
        %v3524 = vextract.low.u32 %v3523
        %v3525 = vextract.high.u32 %v3523
        %v3526 = vmul.u32 %v3519, %v3510
        %v3527 = vadd.s32 %v3522, %v3524
        %vm3528 = vc.u32 %v3522, %v3524
        %v3529 = vadd.s32 %v3525, 1
        %v3530 = vsel %vm3528, %v3529, %v3525
        %v3531 = vadd.s32 %v3526, %v3530
        %v3532 = vadd.s32 %v3531, 536870912
        %v3533 = vshrl.u32 %v3532, 30
        %v3534 = vshll.u32 %v3533, 30
        %v3535 = vsub.s32 %v3531, %v3534
        %vm3536 = vcmp.lt.s32.totalorder %v3535, 0
        %v3537 = vsub.s32 0, %v3535
        %v3538 = vsel %vm3536, %v3537, %v3535
        %v3539 = vclz %v3538
        %v3540 = vsub.s32 %v3539, 2
        %vm3541 = vcmp.gt.s32.totalorder 0, %v3540
        %v3542 = vsel %vm3541, 0, %v3540
        %v3543 = vsub.s32 32, %v3542
        %v3544 = vshll.u32 %v3535, %v3542
        %v3545 = vshrl.u32 %v3527, %v3543
        %v3546 = vor.u32 %v3544, %v3545
        %v3547 = vsub.s32 4294967266, %v3542
        %v3548 = vadd.s32 %v3547, 127
        %v3549 = vshll.u32 %v3548, 23
        %v3550 = vor.u32 4788187, %v3549
        %v3551 = vand.u32 2147483647, %v3550
        %v3553 = vcvt.s32.f32 %v3546
        %v3554 = vmul.f32 %v3553, %v3551
        %v3555 = vxor.u32 %v3554, 2147483648
        %v3556 = vsel %vm3473, %v3555, %v3554
        %v3557 = vsub.s32 4, %v3533
        %v3558 = vsel %vm3473, %v3557, %v3533
        %v3559 = vsel %vm3472, %v245, %v3556
        %v3560 = vsel %vm3472, 0, %v3558
        %v3561 = vcosq.f32.pop %v3559
        %v3562 = vsinq.f32.pop %v3559
        %vm3563 = vweird.f32 %v245
        %v3564 = vadd.s32 %v3560, 3
        %v3565 = vand.u32 %v3564, 3
        %vm3566 = vcmp.lt.s32.totalorder %v3565, 2
        %vm3567 = vcmp.eq.s32.totalorder %v3565, 0
        %v3568 = vxor.u32 %v3562, 2147483648
        %v3569 = vsel %vm3567, %v3561, %v3568
        %vm3570 = vcmp.eq.s32.totalorder %v3565, 2
        %v3571 = vxor.u32 %v3561, 2147483648
        %v3572 = vsel %vm3570, %v3571, %v3562
        %v3573 = vsel %vm3566, %v3569, %v3572
        %v3574 = vsel %vm3563, nan, %v3573
        %v3575 = vlaneseq
        %v3576 = vshrl.u32 %v3575, 7
        %v3577 = vsub.s32 0, %v3576
        %v3578 = vrot.slane %v246, %v3577
        %v3579 = vmul.f32 %v3578, %v350
        %v3580 = vmul.f32 %v3578, %v454
        %v3581 = vmul.f32 %v3578, %v558
        %v3582 = vmul.f32 %v3578, %v662
        %v3583 = vmul.f32 %v3578, %v766
        %v3584 = vmul.f32 %v3578, %v870
        %v3585 = vmul.f32 %v3578, %v974
        %v3586 = vmul.f32 %v3578, %v1078
        %v3587 = vmul.f32 %v3578, %v1182
        %v3588 = vmul.f32 %v3578, %v1286
        %v3589 = vmul.f32 %v3578, %v1390
        %v3590 = vmul.f32 %v3578, %v1494
        %v3591 = vmul.f32 %v3578, %v1598
        %v3592 = vmul.f32 %v3578, %v1702
        %v3593 = vmul.f32 %v3578, %v1806
        %v3594 = vmul.f32 %v3578, %v1910
        %v3595 = vmul.f32 %v3578, %v2014
        %v3596 = vmul.f32 %v3578, %v2118
        %v3597 = vmul.f32 %v3578, %v2222
        %v3598 = vmul.f32 %v3578, %v2326
        %v3599 = vmul.f32 %v3578, %v2430
        %v3600 = vmul.f32 %v3578, %v2534
        %v3601 = vmul.f32 %v3578, %v2638
        %v3602 = vmul.f32 %v3578, %v2742
        %v3603 = vmul.f32 %v3578, %v2846
        %v3604 = vmul.f32 %v3578, %v2950
        %v3605 = vmul.f32 %v3578, %v3054
        %v3606 = vmul.f32 %v3578, %v3158
        %v3607 = vmul.f32 %v3578, %v3262
        %v3608 = vmul.f32 %v3578, %v3366
        %v3609 = vmul.f32 %v3578, %v3470
        %v3610 = vmul.f32 %v3578, %v3574
        %v3611 = vand.u32 2147483647, %v214
        %vm3612 = vcmp.le.f32.partialorder %v3611, 0.7853982
        %vm3613 = vcmp.lt.s32.totalorder %v214, 0
        %v3614 = vand.u32 %v214, 2139095040
        %v3615 = vshrl.u32 %v3614, 23
        %v3616 = vsub.s32 %v3615, 127
        %v3617 = vand.u32 2147483647, %v214
        %v3618 = vand.u32 %v3617, 8388607
        %v3619 = vor.u32 %v3618, 8388608
        %v3620 = vsub.s32 0, %v3619
        %v3621 = vadd.s32 %v3616, 1
        %vm3622 = vcmp.gt.s32.totalorder %v3621, 0
        %v3623 = vsel %vm3622, %v3621, 0
        %v3624 = vshrl.u32 %v3623, 5
        %v3625 = vand.u32 %v3623, 31
        %v3626 = vsub.s32 32, %v3625
        %v3627 = vshrl.u32 683565275, %v3626
        %v3628 = vshll.u32 683565275, %v3625
        %v3629 = vshrl.u32 2475754826, %v3626
        %v3630 = vor.u32 %v3628, %v3629
        %v3631 = vshll.u32 2475754826, %v3625
        %v3632 = vshrl.u32 2131351028, %v3626
        %v3633 = vor.u32 %v3631, %v3632
        %v3634 = vshll.u32 2131351028, %v3625
        %v3635 = vshrl.u32 2102212464, %v3626
        %v3636 = vor.u32 %v3634, %v3635
        %v3637 = vshll.u32 2102212464, %v3625
        %v3638 = vshrl.u32 920167782, %v3626
        %v3639 = vor.u32 %v3637, %v3638
        %v3640 = vshll.u32 920167782, %v3625
        %v3641 = vshrl.u32 1326507024, %v3626
        %v3642 = vor.u32 %v3640, %v3641
        %vm3643 = vcmp.lt.s32.totalorder %v3624, 1
        %vm3644 = vcmp.lt.s32.totalorder %v3624, 2
        %vm3645 = vcmp.lt.s32.totalorder %v3624, 3
        %vm3646 = vcmp.lt.s32.totalorder %v3624, 4
        %v3647 = vsel %vm3643, %v3627, %v3630
        %v3648 = vsel %vm3646, %v3636, 2102212464
        %v3649 = vsel %vm3645, %v3633, %v3648
        %v3650 = vsel %vm3644, %v3647, %v3649
        %v3651 = vsel %vm3643, %v3630, %v3633
        %v3652 = vsel %vm3646, %v3639, 920167782
        %v3653 = vsel %vm3645, %v3636, %v3652
        %v3654 = vsel %vm3644, %v3651, %v3653
        %v3655 = vsel %vm3643, %v3633, %v3636
        %v3656 = vsel %vm3646, %v3642, 1326507024
        %v3657 = vsel %vm3645, %v3639, %v3656
        %v3658 = vsel %vm3644, %v3655, %v3657
        %v3659 = vshll.u32 %v3619, 8
        %v3660 = vmul.u32.u64.compose %v3659, %v3658
        %v3661 = vextract.low.u32 %v3660
        %v3662 = vextract.high.u32 %v3660
        %v3663 = vmul.u32.u64.compose %v3659, %v3654
        %v3664 = vextract.low.u32 %v3663
        %v3665 = vextract.high.u32 %v3663
        %v3666 = vmul.u32 %v3659, %v3650
        %v3667 = vadd.s32 %v3662, %v3664
        %vm3668 = vc.u32 %v3662, %v3664
        %v3669 = vadd.s32 %v3665, 1
        %v3670 = vsel %vm3668, %v3669, %v3665
        %v3671 = vadd.s32 %v3666, %v3670
        %v3672 = vadd.s32 %v3671, 536870912
        %v3673 = vshrl.u32 %v3672, 30
        %v3674 = vshll.u32 %v3673, 30
        %v3675 = vsub.s32 %v3671, %v3674
        %vm3676 = vcmp.lt.s32.totalorder %v3675, 0
        %v3677 = vsub.s32 0, %v3675
        %v3678 = vsel %vm3676, %v3677, %v3675
        %v3679 = vclz %v3678
        %v3680 = vsub.s32 %v3679, 2
        %vm3681 = vcmp.gt.s32.totalorder 0, %v3680
        %v3682 = vsel %vm3681, 0, %v3680
        %v3683 = vsub.s32 32, %v3682
        %v3684 = vshll.u32 %v3675, %v3682
        %v3685 = vshrl.u32 %v3667, %v3683
        %v3686 = vor.u32 %v3684, %v3685
        %v3687 = vsub.s32 4294967266, %v3682
        %v3688 = vadd.s32 %v3687, 127
        %v3689 = vshll.u32 %v3688, 23
        %v3690 = vor.u32 4788187, %v3689
        %v3691 = vand.u32 2147483647, %v3690
        %v3693 = vcvt.s32.f32 %v3686
        %v3694 = vmul.f32 %v3693, %v3691
        %v3695 = vxor.u32 %v3694, 2147483648
        %v3696 = vsel %vm3613, %v3695, %v3694
        %v3697 = vsub.s32 4, %v3673
        %v3698 = vsel %vm3613, %v3697, %v3673
        %v3699 = vsel %vm3612, %v214, %v3696
        %v3700 = vsel %vm3612, 0, %v3698
        %v3701 = vcosq.f32.pop %v3699
        %v3702 = vsinq.f32.pop %v3699
        %vm3703 = vweird.f32 %v214
        %v3704 = vand.u32 %v3700, 3
        %vm3705 = vcmp.lt.s32.totalorder %v3704, 2
        %vm3706 = vcmp.eq.s32.totalorder %v3704, 0
        %v3707 = vxor.u32 %v3702, 2147483648
        %v3708 = vsel %vm3706, %v3701, %v3707
        %vm3709 = vcmp.eq.s32.totalorder %v3704, 2
        %v3710 = vxor.u32 %v3701, 2147483648
        %v3711 = vsel %vm3709, %v3710, %v3702
        %v3712 = vsel %vm3705, %v3708, %v3711
        %v3713 = vsel %vm3703, nan, %v3712
        %v3714 = vand.u32 2147483647, %v215
        %vm3715 = vcmp.le.f32.partialorder %v3714, 0.7853982
        %vm3716 = vcmp.lt.s32.totalorder %v215, 0
        %v3717 = vand.u32 %v215, 2139095040
        %v3718 = vshrl.u32 %v3717, 23
        %v3719 = vsub.s32 %v3718, 127
        %v3720 = vand.u32 2147483647, %v215
        %v3721 = vand.u32 %v3720, 8388607
        %v3722 = vor.u32 %v3721, 8388608
        %v3723 = vsub.s32 0, %v3722
        %v3724 = vadd.s32 %v3719, 1
        %vm3725 = vcmp.gt.s32.totalorder %v3724, 0
        %v3726 = vsel %vm3725, %v3724, 0
        %v3727 = vshrl.u32 %v3726, 5
        %v3728 = vand.u32 %v3726, 31
        %v3729 = vsub.s32 32, %v3728
        %v3730 = vshrl.u32 683565275, %v3729
        %v3731 = vshll.u32 683565275, %v3728
        %v3732 = vshrl.u32 2475754826, %v3729
        %v3733 = vor.u32 %v3731, %v3732
        %v3734 = vshll.u32 2475754826, %v3728
        %v3735 = vshrl.u32 2131351028, %v3729
        %v3736 = vor.u32 %v3734, %v3735
        %v3737 = vshll.u32 2131351028, %v3728
        %v3738 = vshrl.u32 2102212464, %v3729
        %v3739 = vor.u32 %v3737, %v3738
        %v3740 = vshll.u32 2102212464, %v3728
        %v3741 = vshrl.u32 920167782, %v3729
        %v3742 = vor.u32 %v3740, %v3741
        %v3743 = vshll.u32 920167782, %v3728
        %v3744 = vshrl.u32 1326507024, %v3729
        %v3745 = vor.u32 %v3743, %v3744
        %vm3746 = vcmp.lt.s32.totalorder %v3727, 1
        %vm3747 = vcmp.lt.s32.totalorder %v3727, 2
        %vm3748 = vcmp.lt.s32.totalorder %v3727, 3
        %vm3749 = vcmp.lt.s32.totalorder %v3727, 4
        %v3750 = vsel %vm3746, %v3730, %v3733
        %v3751 = vsel %vm3749, %v3739, 2102212464
        %v3752 = vsel %vm3748, %v3736, %v3751
        %v3753 = vsel %vm3747, %v3750, %v3752
        %v3754 = vsel %vm3746, %v3733, %v3736
        %v3755 = vsel %vm3749, %v3742, 920167782
        %v3756 = vsel %vm3748, %v3739, %v3755
        %v3757 = vsel %vm3747, %v3754, %v3756
        %v3758 = vsel %vm3746, %v3736, %v3739
        %v3759 = vsel %vm3749, %v3745, 1326507024
        %v3760 = vsel %vm3748, %v3742, %v3759
        %v3761 = vsel %vm3747, %v3758, %v3760
        %v3762 = vshll.u32 %v3722, 8
        %v3763 = vmul.u32.u64.compose %v3762, %v3761
        %v3764 = vextract.low.u32 %v3763
        %v3765 = vextract.high.u32 %v3763
        %v3766 = vmul.u32.u64.compose %v3762, %v3757
        %v3767 = vextract.low.u32 %v3766
        %v3768 = vextract.high.u32 %v3766
        %v3769 = vmul.u32 %v3762, %v3753
        %v3770 = vadd.s32 %v3765, %v3767
        %vm3771 = vc.u32 %v3765, %v3767
        %v3772 = vadd.s32 %v3768, 1
        %v3773 = vsel %vm3771, %v3772, %v3768
        %v3774 = vadd.s32 %v3769, %v3773
        %v3775 = vadd.s32 %v3774, 536870912
        %v3776 = vshrl.u32 %v3775, 30
        %v3777 = vshll.u32 %v3776, 30
        %v3778 = vsub.s32 %v3774, %v3777
        %vm3779 = vcmp.lt.s32.totalorder %v3778, 0
        %v3780 = vsub.s32 0, %v3778
        %v3781 = vsel %vm3779, %v3780, %v3778
        %v3782 = vclz %v3781
        %v3783 = vsub.s32 %v3782, 2
        %vm3784 = vcmp.gt.s32.totalorder 0, %v3783
        %v3785 = vsel %vm3784, 0, %v3783
        %v3786 = vsub.s32 32, %v3785
        %v3787 = vshll.u32 %v3778, %v3785
        %v3788 = vshrl.u32 %v3770, %v3786
        %v3789 = vor.u32 %v3787, %v3788
        %v3790 = vsub.s32 4294967266, %v3785
        %v3791 = vadd.s32 %v3790, 127
        %v3792 = vshll.u32 %v3791, 23
        %v3793 = vor.u32 4788187, %v3792
        %v3794 = vand.u32 2147483647, %v3793
        %v3796 = vcvt.s32.f32 %v3789
        %v3797 = vmul.f32 %v3796, %v3794
        %v3798 = vxor.u32 %v3797, 2147483648
        %v3799 = vsel %vm3716, %v3798, %v3797
        %v3800 = vsub.s32 4, %v3776
        %v3801 = vsel %vm3716, %v3800, %v3776
        %v3802 = vsel %vm3715, %v215, %v3799
        %v3803 = vsel %vm3715, 0, %v3801
        %v3804 = vcosq.f32.pop %v3802
        %v3805 = vsinq.f32.pop %v3802
        %vm3806 = vweird.f32 %v215
        %v3807 = vand.u32 %v3803, 3
        %vm3808 = vcmp.lt.s32.totalorder %v3807, 2
        %vm3809 = vcmp.eq.s32.totalorder %v3807, 0
        %v3810 = vxor.u32 %v3805, 2147483648
        %v3811 = vsel %vm3809, %v3804, %v3810
        %vm3812 = vcmp.eq.s32.totalorder %v3807, 2
        %v3813 = vxor.u32 %v3804, 2147483648
        %v3814 = vsel %vm3812, %v3813, %v3805
        %v3815 = vsel %vm3808, %v3811, %v3814
        %v3816 = vsel %vm3806, nan, %v3815
        %v3817 = vand.u32 2147483647, %v216
        %vm3818 = vcmp.le.f32.partialorder %v3817, 0.7853982
        %vm3819 = vcmp.lt.s32.totalorder %v216, 0
        %v3820 = vand.u32 %v216, 2139095040
        %v3821 = vshrl.u32 %v3820, 23
        %v3822 = vsub.s32 %v3821, 127
        %v3823 = vand.u32 2147483647, %v216
        %v3824 = vand.u32 %v3823, 8388607
        %v3825 = vor.u32 %v3824, 8388608
        %v3826 = vsub.s32 0, %v3825
        %v3827 = vadd.s32 %v3822, 1
        %vm3828 = vcmp.gt.s32.totalorder %v3827, 0
        %v3829 = vsel %vm3828, %v3827, 0
        %v3830 = vshrl.u32 %v3829, 5
        %v3831 = vand.u32 %v3829, 31
        %v3832 = vsub.s32 32, %v3831
        %v3833 = vshrl.u32 683565275, %v3832
        %v3834 = vshll.u32 683565275, %v3831
        %v3835 = vshrl.u32 2475754826, %v3832
        %v3836 = vor.u32 %v3834, %v3835
        %v3837 = vshll.u32 2475754826, %v3831
        %v3838 = vshrl.u32 2131351028, %v3832
        %v3839 = vor.u32 %v3837, %v3838
        %v3840 = vshll.u32 2131351028, %v3831
        %v3841 = vshrl.u32 2102212464, %v3832
        %v3842 = vor.u32 %v3840, %v3841
        %v3843 = vshll.u32 2102212464, %v3831
        %v3844 = vshrl.u32 920167782, %v3832
        %v3845 = vor.u32 %v3843, %v3844
        %v3846 = vshll.u32 920167782, %v3831
        %v3847 = vshrl.u32 1326507024, %v3832
        %v3848 = vor.u32 %v3846, %v3847
        %vm3849 = vcmp.lt.s32.totalorder %v3830, 1
        %vm3850 = vcmp.lt.s32.totalorder %v3830, 2
        %vm3851 = vcmp.lt.s32.totalorder %v3830, 3
        %vm3852 = vcmp.lt.s32.totalorder %v3830, 4
        %v3853 = vsel %vm3849, %v3833, %v3836
        %v3854 = vsel %vm3852, %v3842, 2102212464
        %v3855 = vsel %vm3851, %v3839, %v3854
        %v3856 = vsel %vm3850, %v3853, %v3855
        %v3857 = vsel %vm3849, %v3836, %v3839
        %v3858 = vsel %vm3852, %v3845, 920167782
        %v3859 = vsel %vm3851, %v3842, %v3858
        %v3860 = vsel %vm3850, %v3857, %v3859
        %v3861 = vsel %vm3849, %v3839, %v3842
        %v3862 = vsel %vm3852, %v3848, 1326507024
        %v3863 = vsel %vm3851, %v3845, %v3862
        %v3864 = vsel %vm3850, %v3861, %v3863
        %v3865 = vshll.u32 %v3825, 8
        %v3866 = vmul.u32.u64.compose %v3865, %v3864
        %v3867 = vextract.low.u32 %v3866
        %v3868 = vextract.high.u32 %v3866
        %v3869 = vmul.u32.u64.compose %v3865, %v3860
        %v3870 = vextract.low.u32 %v3869
        %v3871 = vextract.high.u32 %v3869
        %v3872 = vmul.u32 %v3865, %v3856
        %v3873 = vadd.s32 %v3868, %v3870
        %vm3874 = vc.u32 %v3868, %v3870
        %v3875 = vadd.s32 %v3871, 1
        %v3876 = vsel %vm3874, %v3875, %v3871
        %v3877 = vadd.s32 %v3872, %v3876
        %v3878 = vadd.s32 %v3877, 536870912
        %v3879 = vshrl.u32 %v3878, 30
        %v3880 = vshll.u32 %v3879, 30
        %v3881 = vsub.s32 %v3877, %v3880
        %vm3882 = vcmp.lt.s32.totalorder %v3881, 0
        %v3883 = vsub.s32 0, %v3881
        %v3884 = vsel %vm3882, %v3883, %v3881
        %v3885 = vclz %v3884
        %v3886 = vsub.s32 %v3885, 2
        %vm3887 = vcmp.gt.s32.totalorder 0, %v3886
        %v3888 = vsel %vm3887, 0, %v3886
        %v3889 = vsub.s32 32, %v3888
        %v3890 = vshll.u32 %v3881, %v3888
        %v3891 = vshrl.u32 %v3873, %v3889
        %v3892 = vor.u32 %v3890, %v3891
        %v3893 = vsub.s32 4294967266, %v3888
        %v3894 = vadd.s32 %v3893, 127
        %v3895 = vshll.u32 %v3894, 23
        %v3896 = vor.u32 4788187, %v3895
        %v3897 = vand.u32 2147483647, %v3896
        %v3899 = vcvt.s32.f32 %v3892
        %v3900 = vmul.f32 %v3899, %v3897
        %v3901 = vxor.u32 %v3900, 2147483648
        %v3902 = vsel %vm3819, %v3901, %v3900
        %v3903 = vsub.s32 4, %v3879
        %v3904 = vsel %vm3819, %v3903, %v3879
        %v3905 = vsel %vm3818, %v216, %v3902
        %v3906 = vsel %vm3818, 0, %v3904
        %v3907 = vcosq.f32.pop %v3905
        %v3908 = vsinq.f32.pop %v3905
        %vm3909 = vweird.f32 %v216
        %v3910 = vand.u32 %v3906, 3
        %vm3911 = vcmp.lt.s32.totalorder %v3910, 2
        %vm3912 = vcmp.eq.s32.totalorder %v3910, 0
        %v3913 = vxor.u32 %v3908, 2147483648
        %v3914 = vsel %vm3912, %v3907, %v3913
        %vm3915 = vcmp.eq.s32.totalorder %v3910, 2
        %v3916 = vxor.u32 %v3907, 2147483648
        %v3917 = vsel %vm3915, %v3916, %v3908
        %v3918 = vsel %vm3911, %v3914, %v3917
        %v3919 = vsel %vm3909, nan, %v3918
        %v3920 = vand.u32 2147483647, %v217
        %vm3921 = vcmp.le.f32.partialorder %v3920, 0.7853982
        %vm3922 = vcmp.lt.s32.totalorder %v217, 0
        %v3923 = vand.u32 %v217, 2139095040
        %v3924 = vshrl.u32 %v3923, 23
        %v3925 = vsub.s32 %v3924, 127
        %v3926 = vand.u32 2147483647, %v217
        %v3927 = vand.u32 %v3926, 8388607
        %v3928 = vor.u32 %v3927, 8388608
        %v3929 = vsub.s32 0, %v3928
        %v3930 = vadd.s32 %v3925, 1
        %vm3931 = vcmp.gt.s32.totalorder %v3930, 0
        %v3932 = vsel %vm3931, %v3930, 0
        %v3933 = vshrl.u32 %v3932, 5
        %v3934 = vand.u32 %v3932, 31
        %v3935 = vsub.s32 32, %v3934
        %v3936 = vshrl.u32 683565275, %v3935
        %v3937 = vshll.u32 683565275, %v3934
        %v3938 = vshrl.u32 2475754826, %v3935
        %v3939 = vor.u32 %v3937, %v3938
        %v3940 = vshll.u32 2475754826, %v3934
        %v3941 = vshrl.u32 2131351028, %v3935
        %v3942 = vor.u32 %v3940, %v3941
        %v3943 = vshll.u32 2131351028, %v3934
        %v3944 = vshrl.u32 2102212464, %v3935
        %v3945 = vor.u32 %v3943, %v3944
        %v3946 = vshll.u32 2102212464, %v3934
        %v3947 = vshrl.u32 920167782, %v3935
        %v3948 = vor.u32 %v3946, %v3947
        %v3949 = vshll.u32 920167782, %v3934
        %v3950 = vshrl.u32 1326507024, %v3935
        %v3951 = vor.u32 %v3949, %v3950
        %vm3952 = vcmp.lt.s32.totalorder %v3933, 1
        %vm3953 = vcmp.lt.s32.totalorder %v3933, 2
        %vm3954 = vcmp.lt.s32.totalorder %v3933, 3
        %vm3955 = vcmp.lt.s32.totalorder %v3933, 4
        %v3956 = vsel %vm3952, %v3936, %v3939
        %v3957 = vsel %vm3955, %v3945, 2102212464
        %v3958 = vsel %vm3954, %v3942, %v3957
        %v3959 = vsel %vm3953, %v3956, %v3958
        %v3960 = vsel %vm3952, %v3939, %v3942
        %v3961 = vsel %vm3955, %v3948, 920167782
        %v3962 = vsel %vm3954, %v3945, %v3961
        %v3963 = vsel %vm3953, %v3960, %v3962
        %v3964 = vsel %vm3952, %v3942, %v3945
        %v3965 = vsel %vm3955, %v3951, 1326507024
        %v3966 = vsel %vm3954, %v3948, %v3965
        %v3967 = vsel %vm3953, %v3964, %v3966
        %v3968 = vshll.u32 %v3928, 8
        %v3969 = vmul.u32.u64.compose %v3968, %v3967
        %v3970 = vextract.low.u32 %v3969
        %v3971 = vextract.high.u32 %v3969
        %v3972 = vmul.u32.u64.compose %v3968, %v3963
        %v3973 = vextract.low.u32 %v3972
        %v3974 = vextract.high.u32 %v3972
        %v3975 = vmul.u32 %v3968, %v3959
        %v3976 = vadd.s32 %v3971, %v3973
        %vm3977 = vc.u32 %v3971, %v3973
        %v3978 = vadd.s32 %v3974, 1
        %v3979 = vsel %vm3977, %v3978, %v3974
        %v3980 = vadd.s32 %v3975, %v3979
        %v3981 = vadd.s32 %v3980, 536870912
        %v3982 = vshrl.u32 %v3981, 30
        %v3983 = vshll.u32 %v3982, 30
        %v3984 = vsub.s32 %v3980, %v3983
        %vm3985 = vcmp.lt.s32.totalorder %v3984, 0
        %v3986 = vsub.s32 0, %v3984
        %v3987 = vsel %vm3985, %v3986, %v3984
        %v3988 = vclz %v3987
        %v3989 = vsub.s32 %v3988, 2
        %vm3990 = vcmp.gt.s32.totalorder 0, %v3989
        %v3991 = vsel %vm3990, 0, %v3989
        %v3992 = vsub.s32 32, %v3991
        %v3993 = vshll.u32 %v3984, %v3991
        %v3994 = vshrl.u32 %v3976, %v3992
        %v3995 = vor.u32 %v3993, %v3994
        %v3996 = vsub.s32 4294967266, %v3991
        %v3997 = vadd.s32 %v3996, 127
        %v3998 = vshll.u32 %v3997, 23
        %v3999 = vor.u32 4788187, %v3998
        %v4000 = vand.u32 2147483647, %v3999
        %v4002 = vcvt.s32.f32 %v3995
        %v4003 = vmul.f32 %v4002, %v4000
        %v4004 = vxor.u32 %v4003, 2147483648
        %v4005 = vsel %vm3922, %v4004, %v4003
        %v4006 = vsub.s32 4, %v3982
        %v4007 = vsel %vm3922, %v4006, %v3982
        %v4008 = vsel %vm3921, %v217, %v4005
        %v4009 = vsel %vm3921, 0, %v4007
        %v4010 = vcosq.f32.pop %v4008
        %v4011 = vsinq.f32.pop %v4008
        %vm4012 = vweird.f32 %v217
        %v4013 = vand.u32 %v4009, 3
        %vm4014 = vcmp.lt.s32.totalorder %v4013, 2
        %vm4015 = vcmp.eq.s32.totalorder %v4013, 0
        %v4016 = vxor.u32 %v4011, 2147483648
        %v4017 = vsel %vm4015, %v4010, %v4016
        %vm4018 = vcmp.eq.s32.totalorder %v4013, 2
        %v4019 = vxor.u32 %v4010, 2147483648
        %v4020 = vsel %vm4018, %v4019, %v4011
        %v4021 = vsel %vm4014, %v4017, %v4020
        %v4022 = vsel %vm4012, nan, %v4021
        %v4023 = vand.u32 2147483647, %v218
        %vm4024 = vcmp.le.f32.partialorder %v4023, 0.7853982
        %vm4025 = vcmp.lt.s32.totalorder %v218, 0
        %v4026 = vand.u32 %v218, 2139095040
        %v4027 = vshrl.u32 %v4026, 23
        %v4028 = vsub.s32 %v4027, 127
        %v4029 = vand.u32 2147483647, %v218
        %v4030 = vand.u32 %v4029, 8388607
        %v4031 = vor.u32 %v4030, 8388608
        %v4032 = vsub.s32 0, %v4031
        %v4033 = vadd.s32 %v4028, 1
        %vm4034 = vcmp.gt.s32.totalorder %v4033, 0
        %v4035 = vsel %vm4034, %v4033, 0
        %v4036 = vshrl.u32 %v4035, 5
        %v4037 = vand.u32 %v4035, 31
        %v4038 = vsub.s32 32, %v4037
        %v4039 = vshrl.u32 683565275, %v4038
        %v4040 = vshll.u32 683565275, %v4037
        %v4041 = vshrl.u32 2475754826, %v4038
        %v4042 = vor.u32 %v4040, %v4041
        %v4043 = vshll.u32 2475754826, %v4037
        %v4044 = vshrl.u32 2131351028, %v4038
        %v4045 = vor.u32 %v4043, %v4044
        %v4046 = vshll.u32 2131351028, %v4037
        %v4047 = vshrl.u32 2102212464, %v4038
        %v4048 = vor.u32 %v4046, %v4047
        %v4049 = vshll.u32 2102212464, %v4037
        %v4050 = vshrl.u32 920167782, %v4038
        %v4051 = vor.u32 %v4049, %v4050
        %v4052 = vshll.u32 920167782, %v4037
        %v4053 = vshrl.u32 1326507024, %v4038
        %v4054 = vor.u32 %v4052, %v4053
        %vm4055 = vcmp.lt.s32.totalorder %v4036, 1
        %vm4056 = vcmp.lt.s32.totalorder %v4036, 2
        %vm4057 = vcmp.lt.s32.totalorder %v4036, 3
        %vm4058 = vcmp.lt.s32.totalorder %v4036, 4
        %v4059 = vsel %vm4055, %v4039, %v4042
        %v4060 = vsel %vm4058, %v4048, 2102212464
        %v4061 = vsel %vm4057, %v4045, %v4060
        %v4062 = vsel %vm4056, %v4059, %v4061
        %v4063 = vsel %vm4055, %v4042, %v4045
        %v4064 = vsel %vm4058, %v4051, 920167782
        %v4065 = vsel %vm4057, %v4048, %v4064
        %v4066 = vsel %vm4056, %v4063, %v4065
        %v4067 = vsel %vm4055, %v4045, %v4048
        %v4068 = vsel %vm4058, %v4054, 1326507024
        %v4069 = vsel %vm4057, %v4051, %v4068
        %v4070 = vsel %vm4056, %v4067, %v4069
        %v4071 = vshll.u32 %v4031, 8
        %v4072 = vmul.u32.u64.compose %v4071, %v4070
        %v4073 = vextract.low.u32 %v4072
        %v4074 = vextract.high.u32 %v4072
        %v4075 = vmul.u32.u64.compose %v4071, %v4066
        %v4076 = vextract.low.u32 %v4075
        %v4077 = vextract.high.u32 %v4075
        %v4078 = vmul.u32 %v4071, %v4062
        %v4079 = vadd.s32 %v4074, %v4076
        %vm4080 = vc.u32 %v4074, %v4076
        %v4081 = vadd.s32 %v4077, 1
        %v4082 = vsel %vm4080, %v4081, %v4077
        %v4083 = vadd.s32 %v4078, %v4082
        %v4084 = vadd.s32 %v4083, 536870912
        %v4085 = vshrl.u32 %v4084, 30
        %v4086 = vshll.u32 %v4085, 30
        %v4087 = vsub.s32 %v4083, %v4086
        %vm4088 = vcmp.lt.s32.totalorder %v4087, 0
        %v4089 = vsub.s32 0, %v4087
        %v4090 = vsel %vm4088, %v4089, %v4087
        %v4091 = vclz %v4090
        %v4092 = vsub.s32 %v4091, 2
        %vm4093 = vcmp.gt.s32.totalorder 0, %v4092
        %v4094 = vsel %vm4093, 0, %v4092
        %v4095 = vsub.s32 32, %v4094
        %v4096 = vshll.u32 %v4087, %v4094
        %v4097 = vshrl.u32 %v4079, %v4095
        %v4098 = vor.u32 %v4096, %v4097
        %v4099 = vsub.s32 4294967266, %v4094
        %v4100 = vadd.s32 %v4099, 127
        %v4101 = vshll.u32 %v4100, 23
        %v4102 = vor.u32 4788187, %v4101
        %v4103 = vand.u32 2147483647, %v4102
        %v4105 = vcvt.s32.f32 %v4098
        %v4106 = vmul.f32 %v4105, %v4103
        %v4107 = vxor.u32 %v4106, 2147483648
        %v4108 = vsel %vm4025, %v4107, %v4106
        %v4109 = vsub.s32 4, %v4085
        %v4110 = vsel %vm4025, %v4109, %v4085
        %v4111 = vsel %vm4024, %v218, %v4108
        %v4112 = vsel %vm4024, 0, %v4110
        %v4113 = vcosq.f32.pop %v4111
        %v4114 = vsinq.f32.pop %v4111
        %vm4115 = vweird.f32 %v218
        %v4116 = vand.u32 %v4112, 3
        %vm4117 = vcmp.lt.s32.totalorder %v4116, 2
        %vm4118 = vcmp.eq.s32.totalorder %v4116, 0
        %v4119 = vxor.u32 %v4114, 2147483648
        %v4120 = vsel %vm4118, %v4113, %v4119
        %vm4121 = vcmp.eq.s32.totalorder %v4116, 2
        %v4122 = vxor.u32 %v4113, 2147483648
        %v4123 = vsel %vm4121, %v4122, %v4114
        %v4124 = vsel %vm4117, %v4120, %v4123
        %v4125 = vsel %vm4115, nan, %v4124
        %v4126 = vand.u32 2147483647, %v219
        %vm4127 = vcmp.le.f32.partialorder %v4126, 0.7853982
        %vm4128 = vcmp.lt.s32.totalorder %v219, 0
        %v4129 = vand.u32 %v219, 2139095040
        %v4130 = vshrl.u32 %v4129, 23
        %v4131 = vsub.s32 %v4130, 127
        %v4132 = vand.u32 2147483647, %v219
        %v4133 = vand.u32 %v4132, 8388607
        %v4134 = vor.u32 %v4133, 8388608
        %v4135 = vsub.s32 0, %v4134
        %v4136 = vadd.s32 %v4131, 1
        %vm4137 = vcmp.gt.s32.totalorder %v4136, 0
        %v4138 = vsel %vm4137, %v4136, 0
        %v4139 = vshrl.u32 %v4138, 5
        %v4140 = vand.u32 %v4138, 31
        %v4141 = vsub.s32 32, %v4140
        %v4142 = vshrl.u32 683565275, %v4141
        %v4143 = vshll.u32 683565275, %v4140
        %v4144 = vshrl.u32 2475754826, %v4141
        %v4145 = vor.u32 %v4143, %v4144
        %v4146 = vshll.u32 2475754826, %v4140
        %v4147 = vshrl.u32 2131351028, %v4141
        %v4148 = vor.u32 %v4146, %v4147
        %v4149 = vshll.u32 2131351028, %v4140
        %v4150 = vshrl.u32 2102212464, %v4141
        %v4151 = vor.u32 %v4149, %v4150
        %v4152 = vshll.u32 2102212464, %v4140
        %v4153 = vshrl.u32 920167782, %v4141
        %v4154 = vor.u32 %v4152, %v4153
        %v4155 = vshll.u32 920167782, %v4140
        %v4156 = vshrl.u32 1326507024, %v4141
        %v4157 = vor.u32 %v4155, %v4156
        %vm4158 = vcmp.lt.s32.totalorder %v4139, 1
        %vm4159 = vcmp.lt.s32.totalorder %v4139, 2
        %vm4160 = vcmp.lt.s32.totalorder %v4139, 3
        %vm4161 = vcmp.lt.s32.totalorder %v4139, 4
        %v4162 = vsel %vm4158, %v4142, %v4145
        %v4163 = vsel %vm4161, %v4151, 2102212464
        %v4164 = vsel %vm4160, %v4148, %v4163
        %v4165 = vsel %vm4159, %v4162, %v4164
        %v4166 = vsel %vm4158, %v4145, %v4148
        %v4167 = vsel %vm4161, %v4154, 920167782
        %v4168 = vsel %vm4160, %v4151, %v4167
        %v4169 = vsel %vm4159, %v4166, %v4168
        %v4170 = vsel %vm4158, %v4148, %v4151
        %v4171 = vsel %vm4161, %v4157, 1326507024
        %v4172 = vsel %vm4160, %v4154, %v4171
        %v4173 = vsel %vm4159, %v4170, %v4172
        %v4174 = vshll.u32 %v4134, 8
        %v4175 = vmul.u32.u64.compose %v4174, %v4173
        %v4176 = vextract.low.u32 %v4175
        %v4177 = vextract.high.u32 %v4175
        %v4178 = vmul.u32.u64.compose %v4174, %v4169
        %v4179 = vextract.low.u32 %v4178
        %v4180 = vextract.high.u32 %v4178
        %v4181 = vmul.u32 %v4174, %v4165
        %v4182 = vadd.s32 %v4177, %v4179
        %vm4183 = vc.u32 %v4177, %v4179
        %v4184 = vadd.s32 %v4180, 1
        %v4185 = vsel %vm4183, %v4184, %v4180
        %v4186 = vadd.s32 %v4181, %v4185
        %v4187 = vadd.s32 %v4186, 536870912
        %v4188 = vshrl.u32 %v4187, 30
        %v4189 = vshll.u32 %v4188, 30
        %v4190 = vsub.s32 %v4186, %v4189
        %vm4191 = vcmp.lt.s32.totalorder %v4190, 0
        %v4192 = vsub.s32 0, %v4190
        %v4193 = vsel %vm4191, %v4192, %v4190
        %v4194 = vclz %v4193
        %v4195 = vsub.s32 %v4194, 2
        %vm4196 = vcmp.gt.s32.totalorder 0, %v4195
        %v4197 = vsel %vm4196, 0, %v4195
        %v4198 = vsub.s32 32, %v4197
        %v4199 = vshll.u32 %v4190, %v4197
        %v4200 = vshrl.u32 %v4182, %v4198
        %v4201 = vor.u32 %v4199, %v4200
        %v4202 = vsub.s32 4294967266, %v4197
        %v4203 = vadd.s32 %v4202, 127
        %v4204 = vshll.u32 %v4203, 23
        %v4205 = vor.u32 4788187, %v4204
        %v4206 = vand.u32 2147483647, %v4205
        %v4208 = vcvt.s32.f32 %v4201
        %v4209 = vmul.f32 %v4208, %v4206
        %v4210 = vxor.u32 %v4209, 2147483648
        %v4211 = vsel %vm4128, %v4210, %v4209
        %v4212 = vsub.s32 4, %v4188
        %v4213 = vsel %vm4128, %v4212, %v4188
        %v4214 = vsel %vm4127, %v219, %v4211
        %v4215 = vsel %vm4127, 0, %v4213
        %v4216 = vcosq.f32.pop %v4214
        %v4217 = vsinq.f32.pop %v4214
        %vm4218 = vweird.f32 %v219
        %v4219 = vand.u32 %v4215, 3
        %vm4220 = vcmp.lt.s32.totalorder %v4219, 2
        %vm4221 = vcmp.eq.s32.totalorder %v4219, 0
        %v4222 = vxor.u32 %v4217, 2147483648
        %v4223 = vsel %vm4221, %v4216, %v4222
        %vm4224 = vcmp.eq.s32.totalorder %v4219, 2
        %v4225 = vxor.u32 %v4216, 2147483648
        %v4226 = vsel %vm4224, %v4225, %v4217
        %v4227 = vsel %vm4220, %v4223, %v4226
        %v4228 = vsel %vm4218, nan, %v4227
        %v4229 = vand.u32 2147483647, %v220
        %vm4230 = vcmp.le.f32.partialorder %v4229, 0.7853982
        %vm4231 = vcmp.lt.s32.totalorder %v220, 0
        %v4232 = vand.u32 %v220, 2139095040
        %v4233 = vshrl.u32 %v4232, 23
        %v4234 = vsub.s32 %v4233, 127
        %v4235 = vand.u32 2147483647, %v220
        %v4236 = vand.u32 %v4235, 8388607
        %v4237 = vor.u32 %v4236, 8388608
        %v4238 = vsub.s32 0, %v4237
        %v4239 = vadd.s32 %v4234, 1
        %vm4240 = vcmp.gt.s32.totalorder %v4239, 0
        %v4241 = vsel %vm4240, %v4239, 0
        %v4242 = vshrl.u32 %v4241, 5
        %v4243 = vand.u32 %v4241, 31
        %v4244 = vsub.s32 32, %v4243
        %v4245 = vshrl.u32 683565275, %v4244
        %v4246 = vshll.u32 683565275, %v4243
        %v4247 = vshrl.u32 2475754826, %v4244
        %v4248 = vor.u32 %v4246, %v4247
        %v4249 = vshll.u32 2475754826, %v4243
        %v4250 = vshrl.u32 2131351028, %v4244
        %v4251 = vor.u32 %v4249, %v4250
        %v4252 = vshll.u32 2131351028, %v4243
        %v4253 = vshrl.u32 2102212464, %v4244
        %v4254 = vor.u32 %v4252, %v4253
        %v4255 = vshll.u32 2102212464, %v4243
        %v4256 = vshrl.u32 920167782, %v4244
        %v4257 = vor.u32 %v4255, %v4256
        %v4258 = vshll.u32 920167782, %v4243
        %v4259 = vshrl.u32 1326507024, %v4244
        %v4260 = vor.u32 %v4258, %v4259
        %vm4261 = vcmp.lt.s32.totalorder %v4242, 1
        %vm4262 = vcmp.lt.s32.totalorder %v4242, 2
        %vm4263 = vcmp.lt.s32.totalorder %v4242, 3
        %vm4264 = vcmp.lt.s32.totalorder %v4242, 4
        %v4265 = vsel %vm4261, %v4245, %v4248
        %v4266 = vsel %vm4264, %v4254, 2102212464
        %v4267 = vsel %vm4263, %v4251, %v4266
        %v4268 = vsel %vm4262, %v4265, %v4267
        %v4269 = vsel %vm4261, %v4248, %v4251
        %v4270 = vsel %vm4264, %v4257, 920167782
        %v4271 = vsel %vm4263, %v4254, %v4270
        %v4272 = vsel %vm4262, %v4269, %v4271
        %v4273 = vsel %vm4261, %v4251, %v4254
        %v4274 = vsel %vm4264, %v4260, 1326507024
        %v4275 = vsel %vm4263, %v4257, %v4274
        %v4276 = vsel %vm4262, %v4273, %v4275
        %v4277 = vshll.u32 %v4237, 8
        %v4278 = vmul.u32.u64.compose %v4277, %v4276
        %v4279 = vextract.low.u32 %v4278
        %v4280 = vextract.high.u32 %v4278
        %v4281 = vmul.u32.u64.compose %v4277, %v4272
        %v4282 = vextract.low.u32 %v4281
        %v4283 = vextract.high.u32 %v4281
        %v4284 = vmul.u32 %v4277, %v4268
        %v4285 = vadd.s32 %v4280, %v4282
        %vm4286 = vc.u32 %v4280, %v4282
        %v4287 = vadd.s32 %v4283, 1
        %v4288 = vsel %vm4286, %v4287, %v4283
        %v4289 = vadd.s32 %v4284, %v4288
        %v4290 = vadd.s32 %v4289, 536870912
        %v4291 = vshrl.u32 %v4290, 30
        %v4292 = vshll.u32 %v4291, 30
        %v4293 = vsub.s32 %v4289, %v4292
        %vm4294 = vcmp.lt.s32.totalorder %v4293, 0
        %v4295 = vsub.s32 0, %v4293
        %v4296 = vsel %vm4294, %v4295, %v4293
        %v4297 = vclz %v4296
        %v4298 = vsub.s32 %v4297, 2
        %vm4299 = vcmp.gt.s32.totalorder 0, %v4298
        %v4300 = vsel %vm4299, 0, %v4298
        %v4301 = vsub.s32 32, %v4300
        %v4302 = vshll.u32 %v4293, %v4300
        %v4303 = vshrl.u32 %v4285, %v4301
        %v4304 = vor.u32 %v4302, %v4303
        %v4305 = vsub.s32 4294967266, %v4300
        %v4306 = vadd.s32 %v4305, 127
        %v4307 = vshll.u32 %v4306, 23
        %v4308 = vor.u32 4788187, %v4307
        %v4309 = vand.u32 2147483647, %v4308
        %v4311 = vcvt.s32.f32 %v4304
        %v4312 = vmul.f32 %v4311, %v4309
        %v4313 = vxor.u32 %v4312, 2147483648
        %v4314 = vsel %vm4231, %v4313, %v4312
        %v4315 = vsub.s32 4, %v4291
        %v4316 = vsel %vm4231, %v4315, %v4291
        %v4317 = vsel %vm4230, %v220, %v4314
        %v4318 = vsel %vm4230, 0, %v4316
        %v4319 = vcosq.f32.pop %v4317
        %v4320 = vsinq.f32.pop %v4317
        %vm4321 = vweird.f32 %v220
        %v4322 = vand.u32 %v4318, 3
        %vm4323 = vcmp.lt.s32.totalorder %v4322, 2
        %vm4324 = vcmp.eq.s32.totalorder %v4322, 0
        %v4325 = vxor.u32 %v4320, 2147483648
        %v4326 = vsel %vm4324, %v4319, %v4325
        %vm4327 = vcmp.eq.s32.totalorder %v4322, 2
        %v4328 = vxor.u32 %v4319, 2147483648
        %v4329 = vsel %vm4327, %v4328, %v4320
        %v4330 = vsel %vm4323, %v4326, %v4329
        %v4331 = vsel %vm4321, nan, %v4330
        %v4332 = vand.u32 2147483647, %v221
        %vm4333 = vcmp.le.f32.partialorder %v4332, 0.7853982
        %vm4334 = vcmp.lt.s32.totalorder %v221, 0
        %v4335 = vand.u32 %v221, 2139095040
        %v4336 = vshrl.u32 %v4335, 23
        %v4337 = vsub.s32 %v4336, 127
        %v4338 = vand.u32 2147483647, %v221
        %v4339 = vand.u32 %v4338, 8388607
        %v4340 = vor.u32 %v4339, 8388608
        %v4341 = vsub.s32 0, %v4340
        %v4342 = vadd.s32 %v4337, 1
        %vm4343 = vcmp.gt.s32.totalorder %v4342, 0
        %v4344 = vsel %vm4343, %v4342, 0
        %v4345 = vshrl.u32 %v4344, 5
        %v4346 = vand.u32 %v4344, 31
        %v4347 = vsub.s32 32, %v4346
        %v4348 = vshrl.u32 683565275, %v4347
        %v4349 = vshll.u32 683565275, %v4346
        %v4350 = vshrl.u32 2475754826, %v4347
        %v4351 = vor.u32 %v4349, %v4350
        %v4352 = vshll.u32 2475754826, %v4346
        %v4353 = vshrl.u32 2131351028, %v4347
        %v4354 = vor.u32 %v4352, %v4353
        %v4355 = vshll.u32 2131351028, %v4346
        %v4356 = vshrl.u32 2102212464, %v4347
        %v4357 = vor.u32 %v4355, %v4356
        %v4358 = vshll.u32 2102212464, %v4346
        %v4359 = vshrl.u32 920167782, %v4347
        %v4360 = vor.u32 %v4358, %v4359
        %v4361 = vshll.u32 920167782, %v4346
        %v4362 = vshrl.u32 1326507024, %v4347
        %v4363 = vor.u32 %v4361, %v4362
        %vm4364 = vcmp.lt.s32.totalorder %v4345, 1
        %vm4365 = vcmp.lt.s32.totalorder %v4345, 2
        %vm4366 = vcmp.lt.s32.totalorder %v4345, 3
        %vm4367 = vcmp.lt.s32.totalorder %v4345, 4
        %v4368 = vsel %vm4364, %v4348, %v4351
        %v4369 = vsel %vm4367, %v4357, 2102212464
        %v4370 = vsel %vm4366, %v4354, %v4369
        %v4371 = vsel %vm4365, %v4368, %v4370
        %v4372 = vsel %vm4364, %v4351, %v4354
        %v4373 = vsel %vm4367, %v4360, 920167782
        %v4374 = vsel %vm4366, %v4357, %v4373
        %v4375 = vsel %vm4365, %v4372, %v4374
        %v4376 = vsel %vm4364, %v4354, %v4357
        %v4377 = vsel %vm4367, %v4363, 1326507024
        %v4378 = vsel %vm4366, %v4360, %v4377
        %v4379 = vsel %vm4365, %v4376, %v4378
        %v4380 = vshll.u32 %v4340, 8
        %v4381 = vmul.u32.u64.compose %v4380, %v4379
        %v4382 = vextract.low.u32 %v4381
        %v4383 = vextract.high.u32 %v4381
        %v4384 = vmul.u32.u64.compose %v4380, %v4375
        %v4385 = vextract.low.u32 %v4384
        %v4386 = vextract.high.u32 %v4384
        %v4387 = vmul.u32 %v4380, %v4371
        %v4388 = vadd.s32 %v4383, %v4385
        %vm4389 = vc.u32 %v4383, %v4385
        %v4390 = vadd.s32 %v4386, 1
        %v4391 = vsel %vm4389, %v4390, %v4386
        %v4392 = vadd.s32 %v4387, %v4391
        %v4393 = vadd.s32 %v4392, 536870912
        %v4394 = vshrl.u32 %v4393, 30
        %v4395 = vshll.u32 %v4394, 30
        %v4396 = vsub.s32 %v4392, %v4395
        %vm4397 = vcmp.lt.s32.totalorder %v4396, 0
        %v4398 = vsub.s32 0, %v4396
        %v4399 = vsel %vm4397, %v4398, %v4396
        %v4400 = vclz %v4399
        %v4401 = vsub.s32 %v4400, 2
        %vm4402 = vcmp.gt.s32.totalorder 0, %v4401
        %v4403 = vsel %vm4402, 0, %v4401
        %v4404 = vsub.s32 32, %v4403
        %v4405 = vshll.u32 %v4396, %v4403
        %v4406 = vshrl.u32 %v4388, %v4404
        %v4407 = vor.u32 %v4405, %v4406
        %v4408 = vsub.s32 4294967266, %v4403
        %v4409 = vadd.s32 %v4408, 127
        %v4410 = vshll.u32 %v4409, 23
        %v4411 = vor.u32 4788187, %v4410
        %v4412 = vand.u32 2147483647, %v4411
        %v4414 = vcvt.s32.f32 %v4407
        %v4415 = vmul.f32 %v4414, %v4412
        %v4416 = vxor.u32 %v4415, 2147483648
        %v4417 = vsel %vm4334, %v4416, %v4415
        %v4418 = vsub.s32 4, %v4394
        %v4419 = vsel %vm4334, %v4418, %v4394
        %v4420 = vsel %vm4333, %v221, %v4417
        %v4421 = vsel %vm4333, 0, %v4419
        %v4422 = vcosq.f32.pop %v4420
        %v4423 = vsinq.f32.pop %v4420
        %vm4424 = vweird.f32 %v221
        %v4425 = vand.u32 %v4421, 3
        %vm4426 = vcmp.lt.s32.totalorder %v4425, 2
        %vm4427 = vcmp.eq.s32.totalorder %v4425, 0
        %v4428 = vxor.u32 %v4423, 2147483648
        %v4429 = vsel %vm4427, %v4422, %v4428
        %vm4430 = vcmp.eq.s32.totalorder %v4425, 2
        %v4431 = vxor.u32 %v4422, 2147483648
        %v4432 = vsel %vm4430, %v4431, %v4423
        %v4433 = vsel %vm4426, %v4429, %v4432
        %v4434 = vsel %vm4424, nan, %v4433
        %v4435 = vand.u32 2147483647, %v222
        %vm4436 = vcmp.le.f32.partialorder %v4435, 0.7853982
        %vm4437 = vcmp.lt.s32.totalorder %v222, 0
        %v4438 = vand.u32 %v222, 2139095040
        %v4439 = vshrl.u32 %v4438, 23
        %v4440 = vsub.s32 %v4439, 127
        %v4441 = vand.u32 2147483647, %v222
        %v4442 = vand.u32 %v4441, 8388607
        %v4443 = vor.u32 %v4442, 8388608
        %v4444 = vsub.s32 0, %v4443
        %v4445 = vadd.s32 %v4440, 1
        %vm4446 = vcmp.gt.s32.totalorder %v4445, 0
        %v4447 = vsel %vm4446, %v4445, 0
        %v4448 = vshrl.u32 %v4447, 5
        %v4449 = vand.u32 %v4447, 31
        %v4450 = vsub.s32 32, %v4449
        %v4451 = vshrl.u32 683565275, %v4450
        %v4452 = vshll.u32 683565275, %v4449
        %v4453 = vshrl.u32 2475754826, %v4450
        %v4454 = vor.u32 %v4452, %v4453
        %v4455 = vshll.u32 2475754826, %v4449
        %v4456 = vshrl.u32 2131351028, %v4450
        %v4457 = vor.u32 %v4455, %v4456
        %v4458 = vshll.u32 2131351028, %v4449
        %v4459 = vshrl.u32 2102212464, %v4450
        %v4460 = vor.u32 %v4458, %v4459
        %v4461 = vshll.u32 2102212464, %v4449
        %v4462 = vshrl.u32 920167782, %v4450
        %v4463 = vor.u32 %v4461, %v4462
        %v4464 = vshll.u32 920167782, %v4449
        %v4465 = vshrl.u32 1326507024, %v4450
        %v4466 = vor.u32 %v4464, %v4465
        %vm4467 = vcmp.lt.s32.totalorder %v4448, 1
        %vm4468 = vcmp.lt.s32.totalorder %v4448, 2
        %vm4469 = vcmp.lt.s32.totalorder %v4448, 3
        %vm4470 = vcmp.lt.s32.totalorder %v4448, 4
        %v4471 = vsel %vm4467, %v4451, %v4454
        %v4472 = vsel %vm4470, %v4460, 2102212464
        %v4473 = vsel %vm4469, %v4457, %v4472
        %v4474 = vsel %vm4468, %v4471, %v4473
        %v4475 = vsel %vm4467, %v4454, %v4457
        %v4476 = vsel %vm4470, %v4463, 920167782
        %v4477 = vsel %vm4469, %v4460, %v4476
        %v4478 = vsel %vm4468, %v4475, %v4477
        %v4479 = vsel %vm4467, %v4457, %v4460
        %v4480 = vsel %vm4470, %v4466, 1326507024
        %v4481 = vsel %vm4469, %v4463, %v4480
        %v4482 = vsel %vm4468, %v4479, %v4481
        %v4483 = vshll.u32 %v4443, 8
        %v4484 = vmul.u32.u64.compose %v4483, %v4482
        %v4485 = vextract.low.u32 %v4484
        %v4486 = vextract.high.u32 %v4484
        %v4487 = vmul.u32.u64.compose %v4483, %v4478
        %v4488 = vextract.low.u32 %v4487
        %v4489 = vextract.high.u32 %v4487
        %v4490 = vmul.u32 %v4483, %v4474
        %v4491 = vadd.s32 %v4486, %v4488
        %vm4492 = vc.u32 %v4486, %v4488
        %v4493 = vadd.s32 %v4489, 1
        %v4494 = vsel %vm4492, %v4493, %v4489
        %v4495 = vadd.s32 %v4490, %v4494
        %v4496 = vadd.s32 %v4495, 536870912
        %v4497 = vshrl.u32 %v4496, 30
        %v4498 = vshll.u32 %v4497, 30
        %v4499 = vsub.s32 %v4495, %v4498
        %vm4500 = vcmp.lt.s32.totalorder %v4499, 0
        %v4501 = vsub.s32 0, %v4499
        %v4502 = vsel %vm4500, %v4501, %v4499
        %v4503 = vclz %v4502
        %v4504 = vsub.s32 %v4503, 2
        %vm4505 = vcmp.gt.s32.totalorder 0, %v4504
        %v4506 = vsel %vm4505, 0, %v4504
        %v4507 = vsub.s32 32, %v4506
        %v4508 = vshll.u32 %v4499, %v4506
        %v4509 = vshrl.u32 %v4491, %v4507
        %v4510 = vor.u32 %v4508, %v4509
        %v4511 = vsub.s32 4294967266, %v4506
        %v4512 = vadd.s32 %v4511, 127
        %v4513 = vshll.u32 %v4512, 23
        %v4514 = vor.u32 4788187, %v4513
        %v4515 = vand.u32 2147483647, %v4514
        %v4517 = vcvt.s32.f32 %v4510
        %v4518 = vmul.f32 %v4517, %v4515
        %v4519 = vxor.u32 %v4518, 2147483648
        %v4520 = vsel %vm4437, %v4519, %v4518
        %v4521 = vsub.s32 4, %v4497
        %v4522 = vsel %vm4437, %v4521, %v4497
        %v4523 = vsel %vm4436, %v222, %v4520
        %v4524 = vsel %vm4436, 0, %v4522
        %v4525 = vcosq.f32.pop %v4523
        %v4526 = vsinq.f32.pop %v4523
        %vm4527 = vweird.f32 %v222
        %v4528 = vand.u32 %v4524, 3
        %vm4529 = vcmp.lt.s32.totalorder %v4528, 2
        %vm4530 = vcmp.eq.s32.totalorder %v4528, 0
        %v4531 = vxor.u32 %v4526, 2147483648
        %v4532 = vsel %vm4530, %v4525, %v4531
        %vm4533 = vcmp.eq.s32.totalorder %v4528, 2
        %v4534 = vxor.u32 %v4525, 2147483648
        %v4535 = vsel %vm4533, %v4534, %v4526
        %v4536 = vsel %vm4529, %v4532, %v4535
        %v4537 = vsel %vm4527, nan, %v4536
        %v4538 = vand.u32 2147483647, %v223
        %vm4539 = vcmp.le.f32.partialorder %v4538, 0.7853982
        %vm4540 = vcmp.lt.s32.totalorder %v223, 0
        %v4541 = vand.u32 %v223, 2139095040
        %v4542 = vshrl.u32 %v4541, 23
        %v4543 = vsub.s32 %v4542, 127
        %v4544 = vand.u32 2147483647, %v223
        %v4545 = vand.u32 %v4544, 8388607
        %v4546 = vor.u32 %v4545, 8388608
        %v4547 = vsub.s32 0, %v4546
        %v4548 = vadd.s32 %v4543, 1
        %vm4549 = vcmp.gt.s32.totalorder %v4548, 0
        %v4550 = vsel %vm4549, %v4548, 0
        %v4551 = vshrl.u32 %v4550, 5
        %v4552 = vand.u32 %v4550, 31
        %v4553 = vsub.s32 32, %v4552
        %v4554 = vshrl.u32 683565275, %v4553
        %v4555 = vshll.u32 683565275, %v4552
        %v4556 = vshrl.u32 2475754826, %v4553
        %v4557 = vor.u32 %v4555, %v4556
        %v4558 = vshll.u32 2475754826, %v4552
        %v4559 = vshrl.u32 2131351028, %v4553
        %v4560 = vor.u32 %v4558, %v4559
        %v4561 = vshll.u32 2131351028, %v4552
        %v4562 = vshrl.u32 2102212464, %v4553
        %v4563 = vor.u32 %v4561, %v4562
        %v4564 = vshll.u32 2102212464, %v4552
        %v4565 = vshrl.u32 920167782, %v4553
        %v4566 = vor.u32 %v4564, %v4565
        %v4567 = vshll.u32 920167782, %v4552
        %v4568 = vshrl.u32 1326507024, %v4553
        %v4569 = vor.u32 %v4567, %v4568
        %vm4570 = vcmp.lt.s32.totalorder %v4551, 1
        %vm4571 = vcmp.lt.s32.totalorder %v4551, 2
        %vm4572 = vcmp.lt.s32.totalorder %v4551, 3
        %vm4573 = vcmp.lt.s32.totalorder %v4551, 4
        %v4574 = vsel %vm4570, %v4554, %v4557
        %v4575 = vsel %vm4573, %v4563, 2102212464
        %v4576 = vsel %vm4572, %v4560, %v4575
        %v4577 = vsel %vm4571, %v4574, %v4576
        %v4578 = vsel %vm4570, %v4557, %v4560
        %v4579 = vsel %vm4573, %v4566, 920167782
        %v4580 = vsel %vm4572, %v4563, %v4579
        %v4581 = vsel %vm4571, %v4578, %v4580
        %v4582 = vsel %vm4570, %v4560, %v4563
        %v4583 = vsel %vm4573, %v4569, 1326507024
        %v4584 = vsel %vm4572, %v4566, %v4583
        %v4585 = vsel %vm4571, %v4582, %v4584
        %v4586 = vshll.u32 %v4546, 8
        %v4587 = vmul.u32.u64.compose %v4586, %v4585
        %v4588 = vextract.low.u32 %v4587
        %v4589 = vextract.high.u32 %v4587
        %v4590 = vmul.u32.u64.compose %v4586, %v4581
        %v4591 = vextract.low.u32 %v4590
        %v4592 = vextract.high.u32 %v4590
        %v4593 = vmul.u32 %v4586, %v4577
        %v4594 = vadd.s32 %v4589, %v4591
        %vm4595 = vc.u32 %v4589, %v4591
        %v4596 = vadd.s32 %v4592, 1
        %v4597 = vsel %vm4595, %v4596, %v4592
        %v4598 = vadd.s32 %v4593, %v4597
        %v4599 = vadd.s32 %v4598, 536870912
        %v4600 = vshrl.u32 %v4599, 30
        %v4601 = vshll.u32 %v4600, 30
        %v4602 = vsub.s32 %v4598, %v4601
        %vm4603 = vcmp.lt.s32.totalorder %v4602, 0
        %v4604 = vsub.s32 0, %v4602
        %v4605 = vsel %vm4603, %v4604, %v4602
        %v4606 = vclz %v4605
        %v4607 = vsub.s32 %v4606, 2
        %vm4608 = vcmp.gt.s32.totalorder 0, %v4607
        %v4609 = vsel %vm4608, 0, %v4607
        %v4610 = vsub.s32 32, %v4609
        %v4611 = vshll.u32 %v4602, %v4609
        %v4612 = vshrl.u32 %v4594, %v4610
        %v4613 = vor.u32 %v4611, %v4612
        %v4614 = vsub.s32 4294967266, %v4609
        %v4615 = vadd.s32 %v4614, 127
        %v4616 = vshll.u32 %v4615, 23
        %v4617 = vor.u32 4788187, %v4616
        %v4618 = vand.u32 2147483647, %v4617
        %v4620 = vcvt.s32.f32 %v4613
        %v4621 = vmul.f32 %v4620, %v4618
        %v4622 = vxor.u32 %v4621, 2147483648
        %v4623 = vsel %vm4540, %v4622, %v4621
        %v4624 = vsub.s32 4, %v4600
        %v4625 = vsel %vm4540, %v4624, %v4600
        %v4626 = vsel %vm4539, %v223, %v4623
        %v4627 = vsel %vm4539, 0, %v4625
        %v4628 = vcosq.f32.pop %v4626
        %v4629 = vsinq.f32.pop %v4626
        %vm4630 = vweird.f32 %v223
        %v4631 = vand.u32 %v4627, 3
        %vm4632 = vcmp.lt.s32.totalorder %v4631, 2
        %vm4633 = vcmp.eq.s32.totalorder %v4631, 0
        %v4634 = vxor.u32 %v4629, 2147483648
        %v4635 = vsel %vm4633, %v4628, %v4634
        %vm4636 = vcmp.eq.s32.totalorder %v4631, 2
        %v4637 = vxor.u32 %v4628, 2147483648
        %v4638 = vsel %vm4636, %v4637, %v4629
        %v4639 = vsel %vm4632, %v4635, %v4638
        %v4640 = vsel %vm4630, nan, %v4639
        %v4641 = vand.u32 2147483647, %v224
        %vm4642 = vcmp.le.f32.partialorder %v4641, 0.7853982
        %vm4643 = vcmp.lt.s32.totalorder %v224, 0
        %v4644 = vand.u32 %v224, 2139095040
        %v4645 = vshrl.u32 %v4644, 23
        %v4646 = vsub.s32 %v4645, 127
        %v4647 = vand.u32 2147483647, %v224
        %v4648 = vand.u32 %v4647, 8388607
        %v4649 = vor.u32 %v4648, 8388608
        %v4650 = vsub.s32 0, %v4649
        %v4651 = vadd.s32 %v4646, 1
        %vm4652 = vcmp.gt.s32.totalorder %v4651, 0
        %v4653 = vsel %vm4652, %v4651, 0
        %v4654 = vshrl.u32 %v4653, 5
        %v4655 = vand.u32 %v4653, 31
        %v4656 = vsub.s32 32, %v4655
        %v4657 = vshrl.u32 683565275, %v4656
        %v4658 = vshll.u32 683565275, %v4655
        %v4659 = vshrl.u32 2475754826, %v4656
        %v4660 = vor.u32 %v4658, %v4659
        %v4661 = vshll.u32 2475754826, %v4655
        %v4662 = vshrl.u32 2131351028, %v4656
        %v4663 = vor.u32 %v4661, %v4662
        %v4664 = vshll.u32 2131351028, %v4655
        %v4665 = vshrl.u32 2102212464, %v4656
        %v4666 = vor.u32 %v4664, %v4665
        %v4667 = vshll.u32 2102212464, %v4655
        %v4668 = vshrl.u32 920167782, %v4656
        %v4669 = vor.u32 %v4667, %v4668
        %v4670 = vshll.u32 920167782, %v4655
        %v4671 = vshrl.u32 1326507024, %v4656
        %v4672 = vor.u32 %v4670, %v4671
        %vm4673 = vcmp.lt.s32.totalorder %v4654, 1
        %vm4674 = vcmp.lt.s32.totalorder %v4654, 2
        %vm4675 = vcmp.lt.s32.totalorder %v4654, 3
        %vm4676 = vcmp.lt.s32.totalorder %v4654, 4
        %v4677 = vsel %vm4673, %v4657, %v4660
        %v4678 = vsel %vm4676, %v4666, 2102212464
        %v4679 = vsel %vm4675, %v4663, %v4678
        %v4680 = vsel %vm4674, %v4677, %v4679
        %v4681 = vsel %vm4673, %v4660, %v4663
        %v4682 = vsel %vm4676, %v4669, 920167782
        %v4683 = vsel %vm4675, %v4666, %v4682
        %v4684 = vsel %vm4674, %v4681, %v4683
        %v4685 = vsel %vm4673, %v4663, %v4666
        %v4686 = vsel %vm4676, %v4672, 1326507024
        %v4687 = vsel %vm4675, %v4669, %v4686
        %v4688 = vsel %vm4674, %v4685, %v4687
        %v4689 = vshll.u32 %v4649, 8
        %v4690 = vmul.u32.u64.compose %v4689, %v4688
        %v4691 = vextract.low.u32 %v4690
        %v4692 = vextract.high.u32 %v4690
        %v4693 = vmul.u32.u64.compose %v4689, %v4684
        %v4694 = vextract.low.u32 %v4693
        %v4695 = vextract.high.u32 %v4693
        %v4696 = vmul.u32 %v4689, %v4680
        %v4697 = vadd.s32 %v4692, %v4694
        %vm4698 = vc.u32 %v4692, %v4694
        %v4699 = vadd.s32 %v4695, 1
        %v4700 = vsel %vm4698, %v4699, %v4695
        %v4701 = vadd.s32 %v4696, %v4700
        %v4702 = vadd.s32 %v4701, 536870912
        %v4703 = vshrl.u32 %v4702, 30
        %v4704 = vshll.u32 %v4703, 30
        %v4705 = vsub.s32 %v4701, %v4704
        %vm4706 = vcmp.lt.s32.totalorder %v4705, 0
        %v4707 = vsub.s32 0, %v4705
        %v4708 = vsel %vm4706, %v4707, %v4705
        %v4709 = vclz %v4708
        %v4710 = vsub.s32 %v4709, 2
        %vm4711 = vcmp.gt.s32.totalorder 0, %v4710
        %v4712 = vsel %vm4711, 0, %v4710
        %v4713 = vsub.s32 32, %v4712
        %v4714 = vshll.u32 %v4705, %v4712
        %v4715 = vshrl.u32 %v4697, %v4713
        %v4716 = vor.u32 %v4714, %v4715
        %v4717 = vsub.s32 4294967266, %v4712
        %v4718 = vadd.s32 %v4717, 127
        %v4719 = vshll.u32 %v4718, 23
        %v4720 = vor.u32 4788187, %v4719
        %v4721 = vand.u32 2147483647, %v4720
        %v4723 = vcvt.s32.f32 %v4716
        %v4724 = vmul.f32 %v4723, %v4721
        %v4725 = vxor.u32 %v4724, 2147483648
        %v4726 = vsel %vm4643, %v4725, %v4724
        %v4727 = vsub.s32 4, %v4703
        %v4728 = vsel %vm4643, %v4727, %v4703
        %v4729 = vsel %vm4642, %v224, %v4726
        %v4730 = vsel %vm4642, 0, %v4728
        %v4731 = vcosq.f32.pop %v4729
        %v4732 = vsinq.f32.pop %v4729
        %vm4733 = vweird.f32 %v224
        %v4734 = vand.u32 %v4730, 3
        %vm4735 = vcmp.lt.s32.totalorder %v4734, 2
        %vm4736 = vcmp.eq.s32.totalorder %v4734, 0
        %v4737 = vxor.u32 %v4732, 2147483648
        %v4738 = vsel %vm4736, %v4731, %v4737
        %vm4739 = vcmp.eq.s32.totalorder %v4734, 2
        %v4740 = vxor.u32 %v4731, 2147483648
        %v4741 = vsel %vm4739, %v4740, %v4732
        %v4742 = vsel %vm4735, %v4738, %v4741
        %v4743 = vsel %vm4733, nan, %v4742
        %v4744 = vand.u32 2147483647, %v225
        %vm4745 = vcmp.le.f32.partialorder %v4744, 0.7853982
        %vm4746 = vcmp.lt.s32.totalorder %v225, 0
        %v4747 = vand.u32 %v225, 2139095040
        %v4748 = vshrl.u32 %v4747, 23
        %v4749 = vsub.s32 %v4748, 127
        %v4750 = vand.u32 2147483647, %v225
        %v4751 = vand.u32 %v4750, 8388607
        %v4752 = vor.u32 %v4751, 8388608
        %v4753 = vsub.s32 0, %v4752
        %v4754 = vadd.s32 %v4749, 1
        %vm4755 = vcmp.gt.s32.totalorder %v4754, 0
        %v4756 = vsel %vm4755, %v4754, 0
        %v4757 = vshrl.u32 %v4756, 5
        %v4758 = vand.u32 %v4756, 31
        %v4759 = vsub.s32 32, %v4758
        %v4760 = vshrl.u32 683565275, %v4759
        %v4761 = vshll.u32 683565275, %v4758
        %v4762 = vshrl.u32 2475754826, %v4759
        %v4763 = vor.u32 %v4761, %v4762
        %v4764 = vshll.u32 2475754826, %v4758
        %v4765 = vshrl.u32 2131351028, %v4759
        %v4766 = vor.u32 %v4764, %v4765
        %v4767 = vshll.u32 2131351028, %v4758
        %v4768 = vshrl.u32 2102212464, %v4759
        %v4769 = vor.u32 %v4767, %v4768
        %v4770 = vshll.u32 2102212464, %v4758
        %v4771 = vshrl.u32 920167782, %v4759
        %v4772 = vor.u32 %v4770, %v4771
        %v4773 = vshll.u32 920167782, %v4758
        %v4774 = vshrl.u32 1326507024, %v4759
        %v4775 = vor.u32 %v4773, %v4774
        %vm4776 = vcmp.lt.s32.totalorder %v4757, 1
        %vm4777 = vcmp.lt.s32.totalorder %v4757, 2
        %vm4778 = vcmp.lt.s32.totalorder %v4757, 3
        %vm4779 = vcmp.lt.s32.totalorder %v4757, 4
        %v4780 = vsel %vm4776, %v4760, %v4763
        %v4781 = vsel %vm4779, %v4769, 2102212464
        %v4782 = vsel %vm4778, %v4766, %v4781
        %v4783 = vsel %vm4777, %v4780, %v4782
        %v4784 = vsel %vm4776, %v4763, %v4766
        %v4785 = vsel %vm4779, %v4772, 920167782
        %v4786 = vsel %vm4778, %v4769, %v4785
        %v4787 = vsel %vm4777, %v4784, %v4786
        %v4788 = vsel %vm4776, %v4766, %v4769
        %v4789 = vsel %vm4779, %v4775, 1326507024
        %v4790 = vsel %vm4778, %v4772, %v4789
        %v4791 = vsel %vm4777, %v4788, %v4790
        %v4792 = vshll.u32 %v4752, 8
        %v4793 = vmul.u32.u64.compose %v4792, %v4791
        %v4794 = vextract.low.u32 %v4793
        %v4795 = vextract.high.u32 %v4793
        %v4796 = vmul.u32.u64.compose %v4792, %v4787
        %v4797 = vextract.low.u32 %v4796
        %v4798 = vextract.high.u32 %v4796
        %v4799 = vmul.u32 %v4792, %v4783
        %v4800 = vadd.s32 %v4795, %v4797
        %vm4801 = vc.u32 %v4795, %v4797
        %v4802 = vadd.s32 %v4798, 1
        %v4803 = vsel %vm4801, %v4802, %v4798
        %v4804 = vadd.s32 %v4799, %v4803
        %v4805 = vadd.s32 %v4804, 536870912
        %v4806 = vshrl.u32 %v4805, 30
        %v4807 = vshll.u32 %v4806, 30
        %v4808 = vsub.s32 %v4804, %v4807
        %vm4809 = vcmp.lt.s32.totalorder %v4808, 0
        %v4810 = vsub.s32 0, %v4808
        %v4811 = vsel %vm4809, %v4810, %v4808
        %v4812 = vclz %v4811
        %v4813 = vsub.s32 %v4812, 2
        %vm4814 = vcmp.gt.s32.totalorder 0, %v4813
        %v4815 = vsel %vm4814, 0, %v4813
        %v4816 = vsub.s32 32, %v4815
        %v4817 = vshll.u32 %v4808, %v4815
        %v4818 = vshrl.u32 %v4800, %v4816
        %v4819 = vor.u32 %v4817, %v4818
        %v4820 = vsub.s32 4294967266, %v4815
        %v4821 = vadd.s32 %v4820, 127
        %v4822 = vshll.u32 %v4821, 23
        %v4823 = vor.u32 4788187, %v4822
        %v4824 = vand.u32 2147483647, %v4823
        %v4826 = vcvt.s32.f32 %v4819
        %v4827 = vmul.f32 %v4826, %v4824
        %v4828 = vxor.u32 %v4827, 2147483648
        %v4829 = vsel %vm4746, %v4828, %v4827
        %v4830 = vsub.s32 4, %v4806
        %v4831 = vsel %vm4746, %v4830, %v4806
        %v4832 = vsel %vm4745, %v225, %v4829
        %v4833 = vsel %vm4745, 0, %v4831
        %v4834 = vcosq.f32.pop %v4832
        %v4835 = vsinq.f32.pop %v4832
        %vm4836 = vweird.f32 %v225
        %v4837 = vand.u32 %v4833, 3
        %vm4838 = vcmp.lt.s32.totalorder %v4837, 2
        %vm4839 = vcmp.eq.s32.totalorder %v4837, 0
        %v4840 = vxor.u32 %v4835, 2147483648
        %v4841 = vsel %vm4839, %v4834, %v4840
        %vm4842 = vcmp.eq.s32.totalorder %v4837, 2
        %v4843 = vxor.u32 %v4834, 2147483648
        %v4844 = vsel %vm4842, %v4843, %v4835
        %v4845 = vsel %vm4838, %v4841, %v4844
        %v4846 = vsel %vm4836, nan, %v4845
        %v4847 = vand.u32 2147483647, %v226
        %vm4848 = vcmp.le.f32.partialorder %v4847, 0.7853982
        %vm4849 = vcmp.lt.s32.totalorder %v226, 0
        %v4850 = vand.u32 %v226, 2139095040
        %v4851 = vshrl.u32 %v4850, 23
        %v4852 = vsub.s32 %v4851, 127
        %v4853 = vand.u32 2147483647, %v226
        %v4854 = vand.u32 %v4853, 8388607
        %v4855 = vor.u32 %v4854, 8388608
        %v4856 = vsub.s32 0, %v4855
        %v4857 = vadd.s32 %v4852, 1
        %vm4858 = vcmp.gt.s32.totalorder %v4857, 0
        %v4859 = vsel %vm4858, %v4857, 0
        %v4860 = vshrl.u32 %v4859, 5
        %v4861 = vand.u32 %v4859, 31
        %v4862 = vsub.s32 32, %v4861
        %v4863 = vshrl.u32 683565275, %v4862
        %v4864 = vshll.u32 683565275, %v4861
        %v4865 = vshrl.u32 2475754826, %v4862
        %v4866 = vor.u32 %v4864, %v4865
        %v4867 = vshll.u32 2475754826, %v4861
        %v4868 = vshrl.u32 2131351028, %v4862
        %v4869 = vor.u32 %v4867, %v4868
        %v4870 = vshll.u32 2131351028, %v4861
        %v4871 = vshrl.u32 2102212464, %v4862
        %v4872 = vor.u32 %v4870, %v4871
        %v4873 = vshll.u32 2102212464, %v4861
        %v4874 = vshrl.u32 920167782, %v4862
        %v4875 = vor.u32 %v4873, %v4874
        %v4876 = vshll.u32 920167782, %v4861
        %v4877 = vshrl.u32 1326507024, %v4862
        %v4878 = vor.u32 %v4876, %v4877
        %vm4879 = vcmp.lt.s32.totalorder %v4860, 1
        %vm4880 = vcmp.lt.s32.totalorder %v4860, 2
        %vm4881 = vcmp.lt.s32.totalorder %v4860, 3
        %vm4882 = vcmp.lt.s32.totalorder %v4860, 4
        %v4883 = vsel %vm4879, %v4863, %v4866
        %v4884 = vsel %vm4882, %v4872, 2102212464
        %v4885 = vsel %vm4881, %v4869, %v4884
        %v4886 = vsel %vm4880, %v4883, %v4885
        %v4887 = vsel %vm4879, %v4866, %v4869
        %v4888 = vsel %vm4882, %v4875, 920167782
        %v4889 = vsel %vm4881, %v4872, %v4888
        %v4890 = vsel %vm4880, %v4887, %v4889
        %v4891 = vsel %vm4879, %v4869, %v4872
        %v4892 = vsel %vm4882, %v4878, 1326507024
        %v4893 = vsel %vm4881, %v4875, %v4892
        %v4894 = vsel %vm4880, %v4891, %v4893
        %v4895 = vshll.u32 %v4855, 8
        %v4896 = vmul.u32.u64.compose %v4895, %v4894
        %v4897 = vextract.low.u32 %v4896
        %v4898 = vextract.high.u32 %v4896
        %v4899 = vmul.u32.u64.compose %v4895, %v4890
        %v4900 = vextract.low.u32 %v4899
        %v4901 = vextract.high.u32 %v4899
        %v4902 = vmul.u32 %v4895, %v4886
        %v4903 = vadd.s32 %v4898, %v4900
        %vm4904 = vc.u32 %v4898, %v4900
        %v4905 = vadd.s32 %v4901, 1
        %v4906 = vsel %vm4904, %v4905, %v4901
        %v4907 = vadd.s32 %v4902, %v4906
        %v4908 = vadd.s32 %v4907, 536870912
        %v4909 = vshrl.u32 %v4908, 30
        %v4910 = vshll.u32 %v4909, 30
        %v4911 = vsub.s32 %v4907, %v4910
        %vm4912 = vcmp.lt.s32.totalorder %v4911, 0
        %v4913 = vsub.s32 0, %v4911
        %v4914 = vsel %vm4912, %v4913, %v4911
        %v4915 = vclz %v4914
        %v4916 = vsub.s32 %v4915, 2
        %vm4917 = vcmp.gt.s32.totalorder 0, %v4916
        %v4918 = vsel %vm4917, 0, %v4916
        %v4919 = vsub.s32 32, %v4918
        %v4920 = vshll.u32 %v4911, %v4918
        %v4921 = vshrl.u32 %v4903, %v4919
        %v4922 = vor.u32 %v4920, %v4921
        %v4923 = vsub.s32 4294967266, %v4918
        %v4924 = vadd.s32 %v4923, 127
        %v4925 = vshll.u32 %v4924, 23
        %v4926 = vor.u32 4788187, %v4925
        %v4927 = vand.u32 2147483647, %v4926
        %v4929 = vcvt.s32.f32 %v4922
        %v4930 = vmul.f32 %v4929, %v4927
        %v4931 = vxor.u32 %v4930, 2147483648
        %v4932 = vsel %vm4849, %v4931, %v4930
        %v4933 = vsub.s32 4, %v4909
        %v4934 = vsel %vm4849, %v4933, %v4909
        %v4935 = vsel %vm4848, %v226, %v4932
        %v4936 = vsel %vm4848, 0, %v4934
        %v4937 = vcosq.f32.pop %v4935
        %v4938 = vsinq.f32.pop %v4935
        %vm4939 = vweird.f32 %v226
        %v4940 = vand.u32 %v4936, 3
        %vm4941 = vcmp.lt.s32.totalorder %v4940, 2
        %vm4942 = vcmp.eq.s32.totalorder %v4940, 0
        %v4943 = vxor.u32 %v4938, 2147483648
        %v4944 = vsel %vm4942, %v4937, %v4943
        %vm4945 = vcmp.eq.s32.totalorder %v4940, 2
        %v4946 = vxor.u32 %v4937, 2147483648
        %v4947 = vsel %vm4945, %v4946, %v4938
        %v4948 = vsel %vm4941, %v4944, %v4947
        %v4949 = vsel %vm4939, nan, %v4948
        %v4950 = vand.u32 2147483647, %v227
        %vm4951 = vcmp.le.f32.partialorder %v4950, 0.7853982
        %vm4952 = vcmp.lt.s32.totalorder %v227, 0
        %v4953 = vand.u32 %v227, 2139095040
        %v4954 = vshrl.u32 %v4953, 23
        %v4955 = vsub.s32 %v4954, 127
        %v4956 = vand.u32 2147483647, %v227
        %v4957 = vand.u32 %v4956, 8388607
        %v4958 = vor.u32 %v4957, 8388608
        %v4959 = vsub.s32 0, %v4958
        %v4960 = vadd.s32 %v4955, 1
        %vm4961 = vcmp.gt.s32.totalorder %v4960, 0
        %v4962 = vsel %vm4961, %v4960, 0
        %v4963 = vshrl.u32 %v4962, 5
        %v4964 = vand.u32 %v4962, 31
        %v4965 = vsub.s32 32, %v4964
        %v4966 = vshrl.u32 683565275, %v4965
        %v4967 = vshll.u32 683565275, %v4964
        %v4968 = vshrl.u32 2475754826, %v4965
        %v4969 = vor.u32 %v4967, %v4968
        %v4970 = vshll.u32 2475754826, %v4964
        %v4971 = vshrl.u32 2131351028, %v4965
        %v4972 = vor.u32 %v4970, %v4971
        %v4973 = vshll.u32 2131351028, %v4964
        %v4974 = vshrl.u32 2102212464, %v4965
        %v4975 = vor.u32 %v4973, %v4974
        %v4976 = vshll.u32 2102212464, %v4964
        %v4977 = vshrl.u32 920167782, %v4965
        %v4978 = vor.u32 %v4976, %v4977
        %v4979 = vshll.u32 920167782, %v4964
        %v4980 = vshrl.u32 1326507024, %v4965
        %v4981 = vor.u32 %v4979, %v4980
        %vm4982 = vcmp.lt.s32.totalorder %v4963, 1
        %vm4983 = vcmp.lt.s32.totalorder %v4963, 2
        %vm4984 = vcmp.lt.s32.totalorder %v4963, 3
        %vm4985 = vcmp.lt.s32.totalorder %v4963, 4
        %v4986 = vsel %vm4982, %v4966, %v4969
        %v4987 = vsel %vm4985, %v4975, 2102212464
        %v4988 = vsel %vm4984, %v4972, %v4987
        %v4989 = vsel %vm4983, %v4986, %v4988
        %v4990 = vsel %vm4982, %v4969, %v4972
        %v4991 = vsel %vm4985, %v4978, 920167782
        %v4992 = vsel %vm4984, %v4975, %v4991
        %v4993 = vsel %vm4983, %v4990, %v4992
        %v4994 = vsel %vm4982, %v4972, %v4975
        %v4995 = vsel %vm4985, %v4981, 1326507024
        %v4996 = vsel %vm4984, %v4978, %v4995
        %v4997 = vsel %vm4983, %v4994, %v4996
        %v4998 = vshll.u32 %v4958, 8
        %v4999 = vmul.u32.u64.compose %v4998, %v4997
        %v5000 = vextract.low.u32 %v4999
        %v5001 = vextract.high.u32 %v4999
        %v5002 = vmul.u32.u64.compose %v4998, %v4993
        %v5003 = vextract.low.u32 %v5002
        %v5004 = vextract.high.u32 %v5002
        %v5005 = vmul.u32 %v4998, %v4989
        %v5006 = vadd.s32 %v5001, %v5003
        %vm5007 = vc.u32 %v5001, %v5003
        %v5008 = vadd.s32 %v5004, 1
        %v5009 = vsel %vm5007, %v5008, %v5004
        %v5010 = vadd.s32 %v5005, %v5009
        %v5011 = vadd.s32 %v5010, 536870912
        %v5012 = vshrl.u32 %v5011, 30
        %v5013 = vshll.u32 %v5012, 30
        %v5014 = vsub.s32 %v5010, %v5013
        %vm5015 = vcmp.lt.s32.totalorder %v5014, 0
        %v5016 = vsub.s32 0, %v5014
        %v5017 = vsel %vm5015, %v5016, %v5014
        %v5018 = vclz %v5017
        %v5019 = vsub.s32 %v5018, 2
        %vm5020 = vcmp.gt.s32.totalorder 0, %v5019
        %v5021 = vsel %vm5020, 0, %v5019
        %v5022 = vsub.s32 32, %v5021
        %v5023 = vshll.u32 %v5014, %v5021
        %v5024 = vshrl.u32 %v5006, %v5022
        %v5025 = vor.u32 %v5023, %v5024
        %v5026 = vsub.s32 4294967266, %v5021
        %v5027 = vadd.s32 %v5026, 127
        %v5028 = vshll.u32 %v5027, 23
        %v5029 = vor.u32 4788187, %v5028
        %v5030 = vand.u32 2147483647, %v5029
        %v5032 = vcvt.s32.f32 %v5025
        %v5033 = vmul.f32 %v5032, %v5030
        %v5034 = vxor.u32 %v5033, 2147483648
        %v5035 = vsel %vm4952, %v5034, %v5033
        %v5036 = vsub.s32 4, %v5012
        %v5037 = vsel %vm4952, %v5036, %v5012
        %v5038 = vsel %vm4951, %v227, %v5035
        %v5039 = vsel %vm4951, 0, %v5037
        %v5040 = vcosq.f32.pop %v5038
        %v5041 = vsinq.f32.pop %v5038
        %vm5042 = vweird.f32 %v227
        %v5043 = vand.u32 %v5039, 3
        %vm5044 = vcmp.lt.s32.totalorder %v5043, 2
        %vm5045 = vcmp.eq.s32.totalorder %v5043, 0
        %v5046 = vxor.u32 %v5041, 2147483648
        %v5047 = vsel %vm5045, %v5040, %v5046
        %vm5048 = vcmp.eq.s32.totalorder %v5043, 2
        %v5049 = vxor.u32 %v5040, 2147483648
        %v5050 = vsel %vm5048, %v5049, %v5041
        %v5051 = vsel %vm5044, %v5047, %v5050
        %v5052 = vsel %vm5042, nan, %v5051
        %v5053 = vand.u32 2147483647, %v228
        %vm5054 = vcmp.le.f32.partialorder %v5053, 0.7853982
        %vm5055 = vcmp.lt.s32.totalorder %v228, 0
        %v5056 = vand.u32 %v228, 2139095040
        %v5057 = vshrl.u32 %v5056, 23
        %v5058 = vsub.s32 %v5057, 127
        %v5059 = vand.u32 2147483647, %v228
        %v5060 = vand.u32 %v5059, 8388607
        %v5061 = vor.u32 %v5060, 8388608
        %v5062 = vsub.s32 0, %v5061
        %v5063 = vadd.s32 %v5058, 1
        %vm5064 = vcmp.gt.s32.totalorder %v5063, 0
        %v5065 = vsel %vm5064, %v5063, 0
        %v5066 = vshrl.u32 %v5065, 5
        %v5067 = vand.u32 %v5065, 31
        %v5068 = vsub.s32 32, %v5067
        %v5069 = vshrl.u32 683565275, %v5068
        %v5070 = vshll.u32 683565275, %v5067
        %v5071 = vshrl.u32 2475754826, %v5068
        %v5072 = vor.u32 %v5070, %v5071
        %v5073 = vshll.u32 2475754826, %v5067
        %v5074 = vshrl.u32 2131351028, %v5068
        %v5075 = vor.u32 %v5073, %v5074
        %v5076 = vshll.u32 2131351028, %v5067
        %v5077 = vshrl.u32 2102212464, %v5068
        %v5078 = vor.u32 %v5076, %v5077
        %v5079 = vshll.u32 2102212464, %v5067
        %v5080 = vshrl.u32 920167782, %v5068
        %v5081 = vor.u32 %v5079, %v5080
        %v5082 = vshll.u32 920167782, %v5067
        %v5083 = vshrl.u32 1326507024, %v5068
        %v5084 = vor.u32 %v5082, %v5083
        %vm5085 = vcmp.lt.s32.totalorder %v5066, 1
        %vm5086 = vcmp.lt.s32.totalorder %v5066, 2
        %vm5087 = vcmp.lt.s32.totalorder %v5066, 3
        %vm5088 = vcmp.lt.s32.totalorder %v5066, 4
        %v5089 = vsel %vm5085, %v5069, %v5072
        %v5090 = vsel %vm5088, %v5078, 2102212464
        %v5091 = vsel %vm5087, %v5075, %v5090
        %v5092 = vsel %vm5086, %v5089, %v5091
        %v5093 = vsel %vm5085, %v5072, %v5075
        %v5094 = vsel %vm5088, %v5081, 920167782
        %v5095 = vsel %vm5087, %v5078, %v5094
        %v5096 = vsel %vm5086, %v5093, %v5095
        %v5097 = vsel %vm5085, %v5075, %v5078
        %v5098 = vsel %vm5088, %v5084, 1326507024
        %v5099 = vsel %vm5087, %v5081, %v5098
        %v5100 = vsel %vm5086, %v5097, %v5099
        %v5101 = vshll.u32 %v5061, 8
        %v5102 = vmul.u32.u64.compose %v5101, %v5100
        %v5103 = vextract.low.u32 %v5102
        %v5104 = vextract.high.u32 %v5102
        %v5105 = vmul.u32.u64.compose %v5101, %v5096
        %v5106 = vextract.low.u32 %v5105
        %v5107 = vextract.high.u32 %v5105
        %v5108 = vmul.u32 %v5101, %v5092
        %v5109 = vadd.s32 %v5104, %v5106
        %vm5110 = vc.u32 %v5104, %v5106
        %v5111 = vadd.s32 %v5107, 1
        %v5112 = vsel %vm5110, %v5111, %v5107
        %v5113 = vadd.s32 %v5108, %v5112
        %v5114 = vadd.s32 %v5113, 536870912
        %v5115 = vshrl.u32 %v5114, 30
        %v5116 = vshll.u32 %v5115, 30
        %v5117 = vsub.s32 %v5113, %v5116
        %vm5118 = vcmp.lt.s32.totalorder %v5117, 0
        %v5119 = vsub.s32 0, %v5117
        %v5120 = vsel %vm5118, %v5119, %v5117
        %v5121 = vclz %v5120
        %v5122 = vsub.s32 %v5121, 2
        %vm5123 = vcmp.gt.s32.totalorder 0, %v5122
        %v5124 = vsel %vm5123, 0, %v5122
        %v5125 = vsub.s32 32, %v5124
        %v5126 = vshll.u32 %v5117, %v5124
        %v5127 = vshrl.u32 %v5109, %v5125
        %v5128 = vor.u32 %v5126, %v5127
        %v5129 = vsub.s32 4294967266, %v5124
        %v5130 = vadd.s32 %v5129, 127
        %v5131 = vshll.u32 %v5130, 23
        %v5132 = vor.u32 4788187, %v5131
        %v5133 = vand.u32 2147483647, %v5132
        %v5135 = vcvt.s32.f32 %v5128
        %v5136 = vmul.f32 %v5135, %v5133
        %v5137 = vxor.u32 %v5136, 2147483648
        %v5138 = vsel %vm5055, %v5137, %v5136
        %v5139 = vsub.s32 4, %v5115
        %v5140 = vsel %vm5055, %v5139, %v5115
        %v5141 = vsel %vm5054, %v228, %v5138
        %v5142 = vsel %vm5054, 0, %v5140
        %v5143 = vcosq.f32.pop %v5141
        %v5144 = vsinq.f32.pop %v5141
        %vm5145 = vweird.f32 %v228
        %v5146 = vand.u32 %v5142, 3
        %vm5147 = vcmp.lt.s32.totalorder %v5146, 2
        %vm5148 = vcmp.eq.s32.totalorder %v5146, 0
        %v5149 = vxor.u32 %v5144, 2147483648
        %v5150 = vsel %vm5148, %v5143, %v5149
        %vm5151 = vcmp.eq.s32.totalorder %v5146, 2
        %v5152 = vxor.u32 %v5143, 2147483648
        %v5153 = vsel %vm5151, %v5152, %v5144
        %v5154 = vsel %vm5147, %v5150, %v5153
        %v5155 = vsel %vm5145, nan, %v5154
        %v5156 = vand.u32 2147483647, %v229
        %vm5157 = vcmp.le.f32.partialorder %v5156, 0.7853982
        %vm5158 = vcmp.lt.s32.totalorder %v229, 0
        %v5159 = vand.u32 %v229, 2139095040
        %v5160 = vshrl.u32 %v5159, 23
        %v5161 = vsub.s32 %v5160, 127
        %v5162 = vand.u32 2147483647, %v229
        %v5163 = vand.u32 %v5162, 8388607
        %v5164 = vor.u32 %v5163, 8388608
        %v5165 = vsub.s32 0, %v5164
        %v5166 = vadd.s32 %v5161, 1
        %vm5167 = vcmp.gt.s32.totalorder %v5166, 0
        %v5168 = vsel %vm5167, %v5166, 0
        %v5169 = vshrl.u32 %v5168, 5
        %v5170 = vand.u32 %v5168, 31
        %v5171 = vsub.s32 32, %v5170
        %v5172 = vshrl.u32 683565275, %v5171
        %v5173 = vshll.u32 683565275, %v5170
        %v5174 = vshrl.u32 2475754826, %v5171
        %v5175 = vor.u32 %v5173, %v5174
        %v5176 = vshll.u32 2475754826, %v5170
        %v5177 = vshrl.u32 2131351028, %v5171
        %v5178 = vor.u32 %v5176, %v5177
        %v5179 = vshll.u32 2131351028, %v5170
        %v5180 = vshrl.u32 2102212464, %v5171
        %v5181 = vor.u32 %v5179, %v5180
        %v5182 = vshll.u32 2102212464, %v5170
        %v5183 = vshrl.u32 920167782, %v5171
        %v5184 = vor.u32 %v5182, %v5183
        %v5185 = vshll.u32 920167782, %v5170
        %v5186 = vshrl.u32 1326507024, %v5171
        %v5187 = vor.u32 %v5185, %v5186
        %vm5188 = vcmp.lt.s32.totalorder %v5169, 1
        %vm5189 = vcmp.lt.s32.totalorder %v5169, 2
        %vm5190 = vcmp.lt.s32.totalorder %v5169, 3
        %vm5191 = vcmp.lt.s32.totalorder %v5169, 4
        %v5192 = vsel %vm5188, %v5172, %v5175
        %v5193 = vsel %vm5191, %v5181, 2102212464
        %v5194 = vsel %vm5190, %v5178, %v5193
        %v5195 = vsel %vm5189, %v5192, %v5194
        %v5196 = vsel %vm5188, %v5175, %v5178
        %v5197 = vsel %vm5191, %v5184, 920167782
        %v5198 = vsel %vm5190, %v5181, %v5197
        %v5199 = vsel %vm5189, %v5196, %v5198
        %v5200 = vsel %vm5188, %v5178, %v5181
        %v5201 = vsel %vm5191, %v5187, 1326507024
        %v5202 = vsel %vm5190, %v5184, %v5201
        %v5203 = vsel %vm5189, %v5200, %v5202
        %v5204 = vshll.u32 %v5164, 8
        %v5205 = vmul.u32.u64.compose %v5204, %v5203
        %v5206 = vextract.low.u32 %v5205
        %v5207 = vextract.high.u32 %v5205
        %v5208 = vmul.u32.u64.compose %v5204, %v5199
        %v5209 = vextract.low.u32 %v5208
        %v5210 = vextract.high.u32 %v5208
        %v5211 = vmul.u32 %v5204, %v5195
        %v5212 = vadd.s32 %v5207, %v5209
        %vm5213 = vc.u32 %v5207, %v5209
        %v5214 = vadd.s32 %v5210, 1
        %v5215 = vsel %vm5213, %v5214, %v5210
        %v5216 = vadd.s32 %v5211, %v5215
        %v5217 = vadd.s32 %v5216, 536870912
        %v5218 = vshrl.u32 %v5217, 30
        %v5219 = vshll.u32 %v5218, 30
        %v5220 = vsub.s32 %v5216, %v5219
        %vm5221 = vcmp.lt.s32.totalorder %v5220, 0
        %v5222 = vsub.s32 0, %v5220
        %v5223 = vsel %vm5221, %v5222, %v5220
        %v5224 = vclz %v5223
        %v5225 = vsub.s32 %v5224, 2
        %vm5226 = vcmp.gt.s32.totalorder 0, %v5225
        %v5227 = vsel %vm5226, 0, %v5225
        %v5228 = vsub.s32 32, %v5227
        %v5229 = vshll.u32 %v5220, %v5227
        %v5230 = vshrl.u32 %v5212, %v5228
        %v5231 = vor.u32 %v5229, %v5230
        %v5232 = vsub.s32 4294967266, %v5227
        %v5233 = vadd.s32 %v5232, 127
        %v5234 = vshll.u32 %v5233, 23
        %v5235 = vor.u32 4788187, %v5234
        %v5236 = vand.u32 2147483647, %v5235
        %v5238 = vcvt.s32.f32 %v5231
        %v5239 = vmul.f32 %v5238, %v5236
        %v5240 = vxor.u32 %v5239, 2147483648
        %v5241 = vsel %vm5158, %v5240, %v5239
        %v5242 = vsub.s32 4, %v5218
        %v5243 = vsel %vm5158, %v5242, %v5218
        %v5244 = vsel %vm5157, %v229, %v5241
        %v5245 = vsel %vm5157, 0, %v5243
        %v5246 = vcosq.f32.pop %v5244
        %v5247 = vsinq.f32.pop %v5244
        %vm5248 = vweird.f32 %v229
        %v5249 = vand.u32 %v5245, 3
        %vm5250 = vcmp.lt.s32.totalorder %v5249, 2
        %vm5251 = vcmp.eq.s32.totalorder %v5249, 0
        %v5252 = vxor.u32 %v5247, 2147483648
        %v5253 = vsel %vm5251, %v5246, %v5252
        %vm5254 = vcmp.eq.s32.totalorder %v5249, 2
        %v5255 = vxor.u32 %v5246, 2147483648
        %v5256 = vsel %vm5254, %v5255, %v5247
        %v5257 = vsel %vm5250, %v5253, %v5256
        %v5258 = vsel %vm5248, nan, %v5257
        %v5259 = vand.u32 2147483647, %v230
        %vm5260 = vcmp.le.f32.partialorder %v5259, 0.7853982
        %vm5261 = vcmp.lt.s32.totalorder %v230, 0
        %v5262 = vand.u32 %v230, 2139095040
        %v5263 = vshrl.u32 %v5262, 23
        %v5264 = vsub.s32 %v5263, 127
        %v5265 = vand.u32 2147483647, %v230
        %v5266 = vand.u32 %v5265, 8388607
        %v5267 = vor.u32 %v5266, 8388608
        %v5268 = vsub.s32 0, %v5267
        %v5269 = vadd.s32 %v5264, 1
        %vm5270 = vcmp.gt.s32.totalorder %v5269, 0
        %v5271 = vsel %vm5270, %v5269, 0
        %v5272 = vshrl.u32 %v5271, 5
        %v5273 = vand.u32 %v5271, 31
        %v5274 = vsub.s32 32, %v5273
        %v5275 = vshrl.u32 683565275, %v5274
        %v5276 = vshll.u32 683565275, %v5273
        %v5277 = vshrl.u32 2475754826, %v5274
        %v5278 = vor.u32 %v5276, %v5277
        %v5279 = vshll.u32 2475754826, %v5273
        %v5280 = vshrl.u32 2131351028, %v5274
        %v5281 = vor.u32 %v5279, %v5280
        %v5282 = vshll.u32 2131351028, %v5273
        %v5283 = vshrl.u32 2102212464, %v5274
        %v5284 = vor.u32 %v5282, %v5283
        %v5285 = vshll.u32 2102212464, %v5273
        %v5286 = vshrl.u32 920167782, %v5274
        %v5287 = vor.u32 %v5285, %v5286
        %v5288 = vshll.u32 920167782, %v5273
        %v5289 = vshrl.u32 1326507024, %v5274
        %v5290 = vor.u32 %v5288, %v5289
        %vm5291 = vcmp.lt.s32.totalorder %v5272, 1
        %vm5292 = vcmp.lt.s32.totalorder %v5272, 2
        %vm5293 = vcmp.lt.s32.totalorder %v5272, 3
        %vm5294 = vcmp.lt.s32.totalorder %v5272, 4
        %v5295 = vsel %vm5291, %v5275, %v5278
        %v5296 = vsel %vm5294, %v5284, 2102212464
        %v5297 = vsel %vm5293, %v5281, %v5296
        %v5298 = vsel %vm5292, %v5295, %v5297
        %v5299 = vsel %vm5291, %v5278, %v5281
        %v5300 = vsel %vm5294, %v5287, 920167782
        %v5301 = vsel %vm5293, %v5284, %v5300
        %v5302 = vsel %vm5292, %v5299, %v5301
        %v5303 = vsel %vm5291, %v5281, %v5284
        %v5304 = vsel %vm5294, %v5290, 1326507024
        %v5305 = vsel %vm5293, %v5287, %v5304
        %v5306 = vsel %vm5292, %v5303, %v5305
        %v5307 = vshll.u32 %v5267, 8
        %v5308 = vmul.u32.u64.compose %v5307, %v5306
        %v5309 = vextract.low.u32 %v5308
        %v5310 = vextract.high.u32 %v5308
        %v5311 = vmul.u32.u64.compose %v5307, %v5302
        %v5312 = vextract.low.u32 %v5311
        %v5313 = vextract.high.u32 %v5311
        %v5314 = vmul.u32 %v5307, %v5298
        %v5315 = vadd.s32 %v5310, %v5312
        %vm5316 = vc.u32 %v5310, %v5312
        %v5317 = vadd.s32 %v5313, 1
        %v5318 = vsel %vm5316, %v5317, %v5313
        %v5319 = vadd.s32 %v5314, %v5318
        %v5320 = vadd.s32 %v5319, 536870912
        %v5321 = vshrl.u32 %v5320, 30
        %v5322 = vshll.u32 %v5321, 30
        %v5323 = vsub.s32 %v5319, %v5322
        %vm5324 = vcmp.lt.s32.totalorder %v5323, 0
        %v5325 = vsub.s32 0, %v5323
        %v5326 = vsel %vm5324, %v5325, %v5323
        %v5327 = vclz %v5326
        %v5328 = vsub.s32 %v5327, 2
        %vm5329 = vcmp.gt.s32.totalorder 0, %v5328
        %v5330 = vsel %vm5329, 0, %v5328
        %v5331 = vsub.s32 32, %v5330
        %v5332 = vshll.u32 %v5323, %v5330
        %v5333 = vshrl.u32 %v5315, %v5331
        %v5334 = vor.u32 %v5332, %v5333
        %v5335 = vsub.s32 4294967266, %v5330
        %v5336 = vadd.s32 %v5335, 127
        %v5337 = vshll.u32 %v5336, 23
        %v5338 = vor.u32 4788187, %v5337
        %v5339 = vand.u32 2147483647, %v5338
        %v5341 = vcvt.s32.f32 %v5334
        %v5342 = vmul.f32 %v5341, %v5339
        %v5343 = vxor.u32 %v5342, 2147483648
        %v5344 = vsel %vm5261, %v5343, %v5342
        %v5345 = vsub.s32 4, %v5321
        %v5346 = vsel %vm5261, %v5345, %v5321
        %v5347 = vsel %vm5260, %v230, %v5344
        %v5348 = vsel %vm5260, 0, %v5346
        %v5349 = vcosq.f32.pop %v5347
        %v5350 = vsinq.f32.pop %v5347
        %vm5351 = vweird.f32 %v230
        %v5352 = vand.u32 %v5348, 3
        %vm5353 = vcmp.lt.s32.totalorder %v5352, 2
        %vm5354 = vcmp.eq.s32.totalorder %v5352, 0
        %v5355 = vxor.u32 %v5350, 2147483648
        %v5356 = vsel %vm5354, %v5349, %v5355
        %vm5357 = vcmp.eq.s32.totalorder %v5352, 2
        %v5358 = vxor.u32 %v5349, 2147483648
        %v5359 = vsel %vm5357, %v5358, %v5350
        %v5360 = vsel %vm5353, %v5356, %v5359
        %v5361 = vsel %vm5351, nan, %v5360
        %v5362 = vand.u32 2147483647, %v231
        %vm5363 = vcmp.le.f32.partialorder %v5362, 0.7853982
        %vm5364 = vcmp.lt.s32.totalorder %v231, 0
        %v5365 = vand.u32 %v231, 2139095040
        %v5366 = vshrl.u32 %v5365, 23
        %v5367 = vsub.s32 %v5366, 127
        %v5368 = vand.u32 2147483647, %v231
        %v5369 = vand.u32 %v5368, 8388607
        %v5370 = vor.u32 %v5369, 8388608
        %v5371 = vsub.s32 0, %v5370
        %v5372 = vadd.s32 %v5367, 1
        %vm5373 = vcmp.gt.s32.totalorder %v5372, 0
        %v5374 = vsel %vm5373, %v5372, 0
        %v5375 = vshrl.u32 %v5374, 5
        %v5376 = vand.u32 %v5374, 31
        %v5377 = vsub.s32 32, %v5376
        %v5378 = vshrl.u32 683565275, %v5377
        %v5379 = vshll.u32 683565275, %v5376
        %v5380 = vshrl.u32 2475754826, %v5377
        %v5381 = vor.u32 %v5379, %v5380
        %v5382 = vshll.u32 2475754826, %v5376
        %v5383 = vshrl.u32 2131351028, %v5377
        %v5384 = vor.u32 %v5382, %v5383
        %v5385 = vshll.u32 2131351028, %v5376
        %v5386 = vshrl.u32 2102212464, %v5377
        %v5387 = vor.u32 %v5385, %v5386
        %v5388 = vshll.u32 2102212464, %v5376
        %v5389 = vshrl.u32 920167782, %v5377
        %v5390 = vor.u32 %v5388, %v5389
        %v5391 = vshll.u32 920167782, %v5376
        %v5392 = vshrl.u32 1326507024, %v5377
        %v5393 = vor.u32 %v5391, %v5392
        %vm5394 = vcmp.lt.s32.totalorder %v5375, 1
        %vm5395 = vcmp.lt.s32.totalorder %v5375, 2
        %vm5396 = vcmp.lt.s32.totalorder %v5375, 3
        %vm5397 = vcmp.lt.s32.totalorder %v5375, 4
        %v5398 = vsel %vm5394, %v5378, %v5381
        %v5399 = vsel %vm5397, %v5387, 2102212464
        %v5400 = vsel %vm5396, %v5384, %v5399
        %v5401 = vsel %vm5395, %v5398, %v5400
        %v5402 = vsel %vm5394, %v5381, %v5384
        %v5403 = vsel %vm5397, %v5390, 920167782
        %v5404 = vsel %vm5396, %v5387, %v5403
        %v5405 = vsel %vm5395, %v5402, %v5404
        %v5406 = vsel %vm5394, %v5384, %v5387
        %v5407 = vsel %vm5397, %v5393, 1326507024
        %v5408 = vsel %vm5396, %v5390, %v5407
        %v5409 = vsel %vm5395, %v5406, %v5408
        %v5410 = vshll.u32 %v5370, 8
        %v5411 = vmul.u32.u64.compose %v5410, %v5409
        %v5412 = vextract.low.u32 %v5411
        %v5413 = vextract.high.u32 %v5411
        %v5414 = vmul.u32.u64.compose %v5410, %v5405
        %v5415 = vextract.low.u32 %v5414
        %v5416 = vextract.high.u32 %v5414
        %v5417 = vmul.u32 %v5410, %v5401
        %v5418 = vadd.s32 %v5413, %v5415
        %vm5419 = vc.u32 %v5413, %v5415
        %v5420 = vadd.s32 %v5416, 1
        %v5421 = vsel %vm5419, %v5420, %v5416
        %v5422 = vadd.s32 %v5417, %v5421
        %v5423 = vadd.s32 %v5422, 536870912
        %v5424 = vshrl.u32 %v5423, 30
        %v5425 = vshll.u32 %v5424, 30
        %v5426 = vsub.s32 %v5422, %v5425
        %vm5427 = vcmp.lt.s32.totalorder %v5426, 0
        %v5428 = vsub.s32 0, %v5426
        %v5429 = vsel %vm5427, %v5428, %v5426
        %v5430 = vclz %v5429
        %v5431 = vsub.s32 %v5430, 2
        %vm5432 = vcmp.gt.s32.totalorder 0, %v5431
        %v5433 = vsel %vm5432, 0, %v5431
        %v5434 = vsub.s32 32, %v5433
        %v5435 = vshll.u32 %v5426, %v5433
        %v5436 = vshrl.u32 %v5418, %v5434
        %v5437 = vor.u32 %v5435, %v5436
        %v5438 = vsub.s32 4294967266, %v5433
        %v5439 = vadd.s32 %v5438, 127
        %v5440 = vshll.u32 %v5439, 23
        %v5441 = vor.u32 4788187, %v5440
        %v5442 = vand.u32 2147483647, %v5441
        %v5444 = vcvt.s32.f32 %v5437
        %v5445 = vmul.f32 %v5444, %v5442
        %v5446 = vxor.u32 %v5445, 2147483648
        %v5447 = vsel %vm5364, %v5446, %v5445
        %v5448 = vsub.s32 4, %v5424
        %v5449 = vsel %vm5364, %v5448, %v5424
        %v5450 = vsel %vm5363, %v231, %v5447
        %v5451 = vsel %vm5363, 0, %v5449
        %v5452 = vcosq.f32.pop %v5450
        %v5453 = vsinq.f32.pop %v5450
        %vm5454 = vweird.f32 %v231
        %v5455 = vand.u32 %v5451, 3
        %vm5456 = vcmp.lt.s32.totalorder %v5455, 2
        %vm5457 = vcmp.eq.s32.totalorder %v5455, 0
        %v5458 = vxor.u32 %v5453, 2147483648
        %v5459 = vsel %vm5457, %v5452, %v5458
        %vm5460 = vcmp.eq.s32.totalorder %v5455, 2
        %v5461 = vxor.u32 %v5452, 2147483648
        %v5462 = vsel %vm5460, %v5461, %v5453
        %v5463 = vsel %vm5456, %v5459, %v5462
        %v5464 = vsel %vm5454, nan, %v5463
        %v5465 = vand.u32 2147483647, %v232
        %vm5466 = vcmp.le.f32.partialorder %v5465, 0.7853982
        %vm5467 = vcmp.lt.s32.totalorder %v232, 0
        %v5468 = vand.u32 %v232, 2139095040
        %v5469 = vshrl.u32 %v5468, 23
        %v5470 = vsub.s32 %v5469, 127
        %v5471 = vand.u32 2147483647, %v232
        %v5472 = vand.u32 %v5471, 8388607
        %v5473 = vor.u32 %v5472, 8388608
        %v5474 = vsub.s32 0, %v5473
        %v5475 = vadd.s32 %v5470, 1
        %vm5476 = vcmp.gt.s32.totalorder %v5475, 0
        %v5477 = vsel %vm5476, %v5475, 0
        %v5478 = vshrl.u32 %v5477, 5
        %v5479 = vand.u32 %v5477, 31
        %v5480 = vsub.s32 32, %v5479
        %v5481 = vshrl.u32 683565275, %v5480
        %v5482 = vshll.u32 683565275, %v5479
        %v5483 = vshrl.u32 2475754826, %v5480
        %v5484 = vor.u32 %v5482, %v5483
        %v5485 = vshll.u32 2475754826, %v5479
        %v5486 = vshrl.u32 2131351028, %v5480
        %v5487 = vor.u32 %v5485, %v5486
        %v5488 = vshll.u32 2131351028, %v5479
        %v5489 = vshrl.u32 2102212464, %v5480
        %v5490 = vor.u32 %v5488, %v5489
        %v5491 = vshll.u32 2102212464, %v5479
        %v5492 = vshrl.u32 920167782, %v5480
        %v5493 = vor.u32 %v5491, %v5492
        %v5494 = vshll.u32 920167782, %v5479
        %v5495 = vshrl.u32 1326507024, %v5480
        %v5496 = vor.u32 %v5494, %v5495
        %vm5497 = vcmp.lt.s32.totalorder %v5478, 1
        %vm5498 = vcmp.lt.s32.totalorder %v5478, 2
        %vm5499 = vcmp.lt.s32.totalorder %v5478, 3
        %vm5500 = vcmp.lt.s32.totalorder %v5478, 4
        %v5501 = vsel %vm5497, %v5481, %v5484
        %v5502 = vsel %vm5500, %v5490, 2102212464
        %v5503 = vsel %vm5499, %v5487, %v5502
        %v5504 = vsel %vm5498, %v5501, %v5503
        %v5505 = vsel %vm5497, %v5484, %v5487
        %v5506 = vsel %vm5500, %v5493, 920167782
        %v5507 = vsel %vm5499, %v5490, %v5506
        %v5508 = vsel %vm5498, %v5505, %v5507
        %v5509 = vsel %vm5497, %v5487, %v5490
        %v5510 = vsel %vm5500, %v5496, 1326507024
        %v5511 = vsel %vm5499, %v5493, %v5510
        %v5512 = vsel %vm5498, %v5509, %v5511
        %v5513 = vshll.u32 %v5473, 8
        %v5514 = vmul.u32.u64.compose %v5513, %v5512
        %v5515 = vextract.low.u32 %v5514
        %v5516 = vextract.high.u32 %v5514
        %v5517 = vmul.u32.u64.compose %v5513, %v5508
        %v5518 = vextract.low.u32 %v5517
        %v5519 = vextract.high.u32 %v5517
        %v5520 = vmul.u32 %v5513, %v5504
        %v5521 = vadd.s32 %v5516, %v5518
        %vm5522 = vc.u32 %v5516, %v5518
        %v5523 = vadd.s32 %v5519, 1
        %v5524 = vsel %vm5522, %v5523, %v5519
        %v5525 = vadd.s32 %v5520, %v5524
        %v5526 = vadd.s32 %v5525, 536870912
        %v5527 = vshrl.u32 %v5526, 30
        %v5528 = vshll.u32 %v5527, 30
        %v5529 = vsub.s32 %v5525, %v5528
        %vm5530 = vcmp.lt.s32.totalorder %v5529, 0
        %v5531 = vsub.s32 0, %v5529
        %v5532 = vsel %vm5530, %v5531, %v5529
        %v5533 = vclz %v5532
        %v5534 = vsub.s32 %v5533, 2
        %vm5535 = vcmp.gt.s32.totalorder 0, %v5534
        %v5536 = vsel %vm5535, 0, %v5534
        %v5537 = vsub.s32 32, %v5536
        %v5538 = vshll.u32 %v5529, %v5536
        %v5539 = vshrl.u32 %v5521, %v5537
        %v5540 = vor.u32 %v5538, %v5539
        %v5541 = vsub.s32 4294967266, %v5536
        %v5542 = vadd.s32 %v5541, 127
        %v5543 = vshll.u32 %v5542, 23
        %v5544 = vor.u32 4788187, %v5543
        %v5545 = vand.u32 2147483647, %v5544
        %v5547 = vcvt.s32.f32 %v5540
        %v5548 = vmul.f32 %v5547, %v5545
        %v5549 = vxor.u32 %v5548, 2147483648
        %v5550 = vsel %vm5467, %v5549, %v5548
        %v5551 = vsub.s32 4, %v5527
        %v5552 = vsel %vm5467, %v5551, %v5527
        %v5553 = vsel %vm5466, %v232, %v5550
        %v5554 = vsel %vm5466, 0, %v5552
        %v5555 = vcosq.f32.pop %v5553
        %v5556 = vsinq.f32.pop %v5553
        %vm5557 = vweird.f32 %v232
        %v5558 = vand.u32 %v5554, 3
        %vm5559 = vcmp.lt.s32.totalorder %v5558, 2
        %vm5560 = vcmp.eq.s32.totalorder %v5558, 0
        %v5561 = vxor.u32 %v5556, 2147483648
        %v5562 = vsel %vm5560, %v5555, %v5561
        %vm5563 = vcmp.eq.s32.totalorder %v5558, 2
        %v5564 = vxor.u32 %v5555, 2147483648
        %v5565 = vsel %vm5563, %v5564, %v5556
        %v5566 = vsel %vm5559, %v5562, %v5565
        %v5567 = vsel %vm5557, nan, %v5566
        %v5568 = vand.u32 2147483647, %v233
        %vm5569 = vcmp.le.f32.partialorder %v5568, 0.7853982
        %vm5570 = vcmp.lt.s32.totalorder %v233, 0
        %v5571 = vand.u32 %v233, 2139095040
        %v5572 = vshrl.u32 %v5571, 23
        %v5573 = vsub.s32 %v5572, 127
        %v5574 = vand.u32 2147483647, %v233
        %v5575 = vand.u32 %v5574, 8388607
        %v5576 = vor.u32 %v5575, 8388608
        %v5577 = vsub.s32 0, %v5576
        %v5578 = vadd.s32 %v5573, 1
        %vm5579 = vcmp.gt.s32.totalorder %v5578, 0
        %v5580 = vsel %vm5579, %v5578, 0
        %v5581 = vshrl.u32 %v5580, 5
        %v5582 = vand.u32 %v5580, 31
        %v5583 = vsub.s32 32, %v5582
        %v5584 = vshrl.u32 683565275, %v5583
        %v5585 = vshll.u32 683565275, %v5582
        %v5586 = vshrl.u32 2475754826, %v5583
        %v5587 = vor.u32 %v5585, %v5586
        %v5588 = vshll.u32 2475754826, %v5582
        %v5589 = vshrl.u32 2131351028, %v5583
        %v5590 = vor.u32 %v5588, %v5589
        %v5591 = vshll.u32 2131351028, %v5582
        %v5592 = vshrl.u32 2102212464, %v5583
        %v5593 = vor.u32 %v5591, %v5592
        %v5594 = vshll.u32 2102212464, %v5582
        %v5595 = vshrl.u32 920167782, %v5583
        %v5596 = vor.u32 %v5594, %v5595
        %v5597 = vshll.u32 920167782, %v5582
        %v5598 = vshrl.u32 1326507024, %v5583
        %v5599 = vor.u32 %v5597, %v5598
        %vm5600 = vcmp.lt.s32.totalorder %v5581, 1
        %vm5601 = vcmp.lt.s32.totalorder %v5581, 2
        %vm5602 = vcmp.lt.s32.totalorder %v5581, 3
        %vm5603 = vcmp.lt.s32.totalorder %v5581, 4
        %v5604 = vsel %vm5600, %v5584, %v5587
        %v5605 = vsel %vm5603, %v5593, 2102212464
        %v5606 = vsel %vm5602, %v5590, %v5605
        %v5607 = vsel %vm5601, %v5604, %v5606
        %v5608 = vsel %vm5600, %v5587, %v5590
        %v5609 = vsel %vm5603, %v5596, 920167782
        %v5610 = vsel %vm5602, %v5593, %v5609
        %v5611 = vsel %vm5601, %v5608, %v5610
        %v5612 = vsel %vm5600, %v5590, %v5593
        %v5613 = vsel %vm5603, %v5599, 1326507024
        %v5614 = vsel %vm5602, %v5596, %v5613
        %v5615 = vsel %vm5601, %v5612, %v5614
        %v5616 = vshll.u32 %v5576, 8
        %v5617 = vmul.u32.u64.compose %v5616, %v5615
        %v5618 = vextract.low.u32 %v5617
        %v5619 = vextract.high.u32 %v5617
        %v5620 = vmul.u32.u64.compose %v5616, %v5611
        %v5621 = vextract.low.u32 %v5620
        %v5622 = vextract.high.u32 %v5620
        %v5623 = vmul.u32 %v5616, %v5607
        %v5624 = vadd.s32 %v5619, %v5621
        %vm5625 = vc.u32 %v5619, %v5621
        %v5626 = vadd.s32 %v5622, 1
        %v5627 = vsel %vm5625, %v5626, %v5622
        %v5628 = vadd.s32 %v5623, %v5627
        %v5629 = vadd.s32 %v5628, 536870912
        %v5630 = vshrl.u32 %v5629, 30
        %v5631 = vshll.u32 %v5630, 30
        %v5632 = vsub.s32 %v5628, %v5631
        %vm5633 = vcmp.lt.s32.totalorder %v5632, 0
        %v5634 = vsub.s32 0, %v5632
        %v5635 = vsel %vm5633, %v5634, %v5632
        %v5636 = vclz %v5635
        %v5637 = vsub.s32 %v5636, 2
        %vm5638 = vcmp.gt.s32.totalorder 0, %v5637
        %v5639 = vsel %vm5638, 0, %v5637
        %v5640 = vsub.s32 32, %v5639
        %v5641 = vshll.u32 %v5632, %v5639
        %v5642 = vshrl.u32 %v5624, %v5640
        %v5643 = vor.u32 %v5641, %v5642
        %v5644 = vsub.s32 4294967266, %v5639
        %v5645 = vadd.s32 %v5644, 127
        %v5646 = vshll.u32 %v5645, 23
        %v5647 = vor.u32 4788187, %v5646
        %v5648 = vand.u32 2147483647, %v5647
        %v5650 = vcvt.s32.f32 %v5643
        %v5651 = vmul.f32 %v5650, %v5648
        %v5652 = vxor.u32 %v5651, 2147483648
        %v5653 = vsel %vm5570, %v5652, %v5651
        %v5654 = vsub.s32 4, %v5630
        %v5655 = vsel %vm5570, %v5654, %v5630
        %v5656 = vsel %vm5569, %v233, %v5653
        %v5657 = vsel %vm5569, 0, %v5655
        %v5658 = vcosq.f32.pop %v5656
        %v5659 = vsinq.f32.pop %v5656
        %vm5660 = vweird.f32 %v233
        %v5661 = vand.u32 %v5657, 3
        %vm5662 = vcmp.lt.s32.totalorder %v5661, 2
        %vm5663 = vcmp.eq.s32.totalorder %v5661, 0
        %v5664 = vxor.u32 %v5659, 2147483648
        %v5665 = vsel %vm5663, %v5658, %v5664
        %vm5666 = vcmp.eq.s32.totalorder %v5661, 2
        %v5667 = vxor.u32 %v5658, 2147483648
        %v5668 = vsel %vm5666, %v5667, %v5659
        %v5669 = vsel %vm5662, %v5665, %v5668
        %v5670 = vsel %vm5660, nan, %v5669
        %v5671 = vand.u32 2147483647, %v234
        %vm5672 = vcmp.le.f32.partialorder %v5671, 0.7853982
        %vm5673 = vcmp.lt.s32.totalorder %v234, 0
        %v5674 = vand.u32 %v234, 2139095040
        %v5675 = vshrl.u32 %v5674, 23
        %v5676 = vsub.s32 %v5675, 127
        %v5677 = vand.u32 2147483647, %v234
        %v5678 = vand.u32 %v5677, 8388607
        %v5679 = vor.u32 %v5678, 8388608
        %v5680 = vsub.s32 0, %v5679
        %v5681 = vadd.s32 %v5676, 1
        %vm5682 = vcmp.gt.s32.totalorder %v5681, 0
        %v5683 = vsel %vm5682, %v5681, 0
        %v5684 = vshrl.u32 %v5683, 5
        %v5685 = vand.u32 %v5683, 31
        %v5686 = vsub.s32 32, %v5685
        %v5687 = vshrl.u32 683565275, %v5686
        %v5688 = vshll.u32 683565275, %v5685
        %v5689 = vshrl.u32 2475754826, %v5686
        %v5690 = vor.u32 %v5688, %v5689
        %v5691 = vshll.u32 2475754826, %v5685
        %v5692 = vshrl.u32 2131351028, %v5686
        %v5693 = vor.u32 %v5691, %v5692
        %v5694 = vshll.u32 2131351028, %v5685
        %v5695 = vshrl.u32 2102212464, %v5686
        %v5696 = vor.u32 %v5694, %v5695
        %v5697 = vshll.u32 2102212464, %v5685
        %v5698 = vshrl.u32 920167782, %v5686
        %v5699 = vor.u32 %v5697, %v5698
        %v5700 = vshll.u32 920167782, %v5685
        %v5701 = vshrl.u32 1326507024, %v5686
        %v5702 = vor.u32 %v5700, %v5701
        %vm5703 = vcmp.lt.s32.totalorder %v5684, 1
        %vm5704 = vcmp.lt.s32.totalorder %v5684, 2
        %vm5705 = vcmp.lt.s32.totalorder %v5684, 3
        %vm5706 = vcmp.lt.s32.totalorder %v5684, 4
        %v5707 = vsel %vm5703, %v5687, %v5690
        %v5708 = vsel %vm5706, %v5696, 2102212464
        %v5709 = vsel %vm5705, %v5693, %v5708
        %v5710 = vsel %vm5704, %v5707, %v5709
        %v5711 = vsel %vm5703, %v5690, %v5693
        %v5712 = vsel %vm5706, %v5699, 920167782
        %v5713 = vsel %vm5705, %v5696, %v5712
        %v5714 = vsel %vm5704, %v5711, %v5713
        %v5715 = vsel %vm5703, %v5693, %v5696
        %v5716 = vsel %vm5706, %v5702, 1326507024
        %v5717 = vsel %vm5705, %v5699, %v5716
        %v5718 = vsel %vm5704, %v5715, %v5717
        %v5719 = vshll.u32 %v5679, 8
        %v5720 = vmul.u32.u64.compose %v5719, %v5718
        %v5721 = vextract.low.u32 %v5720
        %v5722 = vextract.high.u32 %v5720
        %v5723 = vmul.u32.u64.compose %v5719, %v5714
        %v5724 = vextract.low.u32 %v5723
        %v5725 = vextract.high.u32 %v5723
        %v5726 = vmul.u32 %v5719, %v5710
        %v5727 = vadd.s32 %v5722, %v5724
        %vm5728 = vc.u32 %v5722, %v5724
        %v5729 = vadd.s32 %v5725, 1
        %v5730 = vsel %vm5728, %v5729, %v5725
        %v5731 = vadd.s32 %v5726, %v5730
        %v5732 = vadd.s32 %v5731, 536870912
        %v5733 = vshrl.u32 %v5732, 30
        %v5734 = vshll.u32 %v5733, 30
        %v5735 = vsub.s32 %v5731, %v5734
        %vm5736 = vcmp.lt.s32.totalorder %v5735, 0
        %v5737 = vsub.s32 0, %v5735
        %v5738 = vsel %vm5736, %v5737, %v5735
        %v5739 = vclz %v5738
        %v5740 = vsub.s32 %v5739, 2
        %vm5741 = vcmp.gt.s32.totalorder 0, %v5740
        %v5742 = vsel %vm5741, 0, %v5740
        %v5743 = vsub.s32 32, %v5742
        %v5744 = vshll.u32 %v5735, %v5742
        %v5745 = vshrl.u32 %v5727, %v5743
        %v5746 = vor.u32 %v5744, %v5745
        %v5747 = vsub.s32 4294967266, %v5742
        %v5748 = vadd.s32 %v5747, 127
        %v5749 = vshll.u32 %v5748, 23
        %v5750 = vor.u32 4788187, %v5749
        %v5751 = vand.u32 2147483647, %v5750
        %v5753 = vcvt.s32.f32 %v5746
        %v5754 = vmul.f32 %v5753, %v5751
        %v5755 = vxor.u32 %v5754, 2147483648
        %v5756 = vsel %vm5673, %v5755, %v5754
        %v5757 = vsub.s32 4, %v5733
        %v5758 = vsel %vm5673, %v5757, %v5733
        %v5759 = vsel %vm5672, %v234, %v5756
        %v5760 = vsel %vm5672, 0, %v5758
        %v5761 = vcosq.f32.pop %v5759
        %v5762 = vsinq.f32.pop %v5759
        %vm5763 = vweird.f32 %v234
        %v5764 = vand.u32 %v5760, 3
        %vm5765 = vcmp.lt.s32.totalorder %v5764, 2
        %vm5766 = vcmp.eq.s32.totalorder %v5764, 0
        %v5767 = vxor.u32 %v5762, 2147483648
        %v5768 = vsel %vm5766, %v5761, %v5767
        %vm5769 = vcmp.eq.s32.totalorder %v5764, 2
        %v5770 = vxor.u32 %v5761, 2147483648
        %v5771 = vsel %vm5769, %v5770, %v5762
        %v5772 = vsel %vm5765, %v5768, %v5771
        %v5773 = vsel %vm5763, nan, %v5772
        %v5774 = vand.u32 2147483647, %v235
        %vm5775 = vcmp.le.f32.partialorder %v5774, 0.7853982
        %vm5776 = vcmp.lt.s32.totalorder %v235, 0
        %v5777 = vand.u32 %v235, 2139095040
        %v5778 = vshrl.u32 %v5777, 23
        %v5779 = vsub.s32 %v5778, 127
        %v5780 = vand.u32 2147483647, %v235
        %v5781 = vand.u32 %v5780, 8388607
        %v5782 = vor.u32 %v5781, 8388608
        %v5783 = vsub.s32 0, %v5782
        %v5784 = vadd.s32 %v5779, 1
        %vm5785 = vcmp.gt.s32.totalorder %v5784, 0
        %v5786 = vsel %vm5785, %v5784, 0
        %v5787 = vshrl.u32 %v5786, 5
        %v5788 = vand.u32 %v5786, 31
        %v5789 = vsub.s32 32, %v5788
        %v5790 = vshrl.u32 683565275, %v5789
        %v5791 = vshll.u32 683565275, %v5788
        %v5792 = vshrl.u32 2475754826, %v5789
        %v5793 = vor.u32 %v5791, %v5792
        %v5794 = vshll.u32 2475754826, %v5788
        %v5795 = vshrl.u32 2131351028, %v5789
        %v5796 = vor.u32 %v5794, %v5795
        %v5797 = vshll.u32 2131351028, %v5788
        %v5798 = vshrl.u32 2102212464, %v5789
        %v5799 = vor.u32 %v5797, %v5798
        %v5800 = vshll.u32 2102212464, %v5788
        %v5801 = vshrl.u32 920167782, %v5789
        %v5802 = vor.u32 %v5800, %v5801
        %v5803 = vshll.u32 920167782, %v5788
        %v5804 = vshrl.u32 1326507024, %v5789
        %v5805 = vor.u32 %v5803, %v5804
        %vm5806 = vcmp.lt.s32.totalorder %v5787, 1
        %vm5807 = vcmp.lt.s32.totalorder %v5787, 2
        %vm5808 = vcmp.lt.s32.totalorder %v5787, 3
        %vm5809 = vcmp.lt.s32.totalorder %v5787, 4
        %v5810 = vsel %vm5806, %v5790, %v5793
        %v5811 = vsel %vm5809, %v5799, 2102212464
        %v5812 = vsel %vm5808, %v5796, %v5811
        %v5813 = vsel %vm5807, %v5810, %v5812
        %v5814 = vsel %vm5806, %v5793, %v5796
        %v5815 = vsel %vm5809, %v5802, 920167782
        %v5816 = vsel %vm5808, %v5799, %v5815
        %v5817 = vsel %vm5807, %v5814, %v5816
        %v5818 = vsel %vm5806, %v5796, %v5799
        %v5819 = vsel %vm5809, %v5805, 1326507024
        %v5820 = vsel %vm5808, %v5802, %v5819
        %v5821 = vsel %vm5807, %v5818, %v5820
        %v5822 = vshll.u32 %v5782, 8
        %v5823 = vmul.u32.u64.compose %v5822, %v5821
        %v5824 = vextract.low.u32 %v5823
        %v5825 = vextract.high.u32 %v5823
        %v5826 = vmul.u32.u64.compose %v5822, %v5817
        %v5827 = vextract.low.u32 %v5826
        %v5828 = vextract.high.u32 %v5826
        %v5829 = vmul.u32 %v5822, %v5813
        %v5830 = vadd.s32 %v5825, %v5827
        %vm5831 = vc.u32 %v5825, %v5827
        %v5832 = vadd.s32 %v5828, 1
        %v5833 = vsel %vm5831, %v5832, %v5828
        %v5834 = vadd.s32 %v5829, %v5833
        %v5835 = vadd.s32 %v5834, 536870912
        %v5836 = vshrl.u32 %v5835, 30
        %v5837 = vshll.u32 %v5836, 30
        %v5838 = vsub.s32 %v5834, %v5837
        %vm5839 = vcmp.lt.s32.totalorder %v5838, 0
        %v5840 = vsub.s32 0, %v5838
        %v5841 = vsel %vm5839, %v5840, %v5838
        %v5842 = vclz %v5841
        %v5843 = vsub.s32 %v5842, 2
        %vm5844 = vcmp.gt.s32.totalorder 0, %v5843
        %v5845 = vsel %vm5844, 0, %v5843
        %v5846 = vsub.s32 32, %v5845
        %v5847 = vshll.u32 %v5838, %v5845
        %v5848 = vshrl.u32 %v5830, %v5846
        %v5849 = vor.u32 %v5847, %v5848
        %v5850 = vsub.s32 4294967266, %v5845
        %v5851 = vadd.s32 %v5850, 127
        %v5852 = vshll.u32 %v5851, 23
        %v5853 = vor.u32 4788187, %v5852
        %v5854 = vand.u32 2147483647, %v5853
        %v5856 = vcvt.s32.f32 %v5849
        %v5857 = vmul.f32 %v5856, %v5854
        %v5858 = vxor.u32 %v5857, 2147483648
        %v5859 = vsel %vm5776, %v5858, %v5857
        %v5860 = vsub.s32 4, %v5836
        %v5861 = vsel %vm5776, %v5860, %v5836
        %v5862 = vsel %vm5775, %v235, %v5859
        %v5863 = vsel %vm5775, 0, %v5861
        %v5864 = vcosq.f32.pop %v5862
        %v5865 = vsinq.f32.pop %v5862
        %vm5866 = vweird.f32 %v235
        %v5867 = vand.u32 %v5863, 3
        %vm5868 = vcmp.lt.s32.totalorder %v5867, 2
        %vm5869 = vcmp.eq.s32.totalorder %v5867, 0
        %v5870 = vxor.u32 %v5865, 2147483648
        %v5871 = vsel %vm5869, %v5864, %v5870
        %vm5872 = vcmp.eq.s32.totalorder %v5867, 2
        %v5873 = vxor.u32 %v5864, 2147483648
        %v5874 = vsel %vm5872, %v5873, %v5865
        %v5875 = vsel %vm5868, %v5871, %v5874
        %v5876 = vsel %vm5866, nan, %v5875
        %v5877 = vand.u32 2147483647, %v236
        %vm5878 = vcmp.le.f32.partialorder %v5877, 0.7853982
        %vm5879 = vcmp.lt.s32.totalorder %v236, 0
        %v5880 = vand.u32 %v236, 2139095040
        %v5881 = vshrl.u32 %v5880, 23
        %v5882 = vsub.s32 %v5881, 127
        %v5883 = vand.u32 2147483647, %v236
        %v5884 = vand.u32 %v5883, 8388607
        %v5885 = vor.u32 %v5884, 8388608
        %v5886 = vsub.s32 0, %v5885
        %v5887 = vadd.s32 %v5882, 1
        %vm5888 = vcmp.gt.s32.totalorder %v5887, 0
        %v5889 = vsel %vm5888, %v5887, 0
        %v5890 = vshrl.u32 %v5889, 5
        %v5891 = vand.u32 %v5889, 31
        %v5892 = vsub.s32 32, %v5891
        %v5893 = vshrl.u32 683565275, %v5892
        %v5894 = vshll.u32 683565275, %v5891
        %v5895 = vshrl.u32 2475754826, %v5892
        %v5896 = vor.u32 %v5894, %v5895
        %v5897 = vshll.u32 2475754826, %v5891
        %v5898 = vshrl.u32 2131351028, %v5892
        %v5899 = vor.u32 %v5897, %v5898
        %v5900 = vshll.u32 2131351028, %v5891
        %v5901 = vshrl.u32 2102212464, %v5892
        %v5902 = vor.u32 %v5900, %v5901
        %v5903 = vshll.u32 2102212464, %v5891
        %v5904 = vshrl.u32 920167782, %v5892
        %v5905 = vor.u32 %v5903, %v5904
        %v5906 = vshll.u32 920167782, %v5891
        %v5907 = vshrl.u32 1326507024, %v5892
        %v5908 = vor.u32 %v5906, %v5907
        %vm5909 = vcmp.lt.s32.totalorder %v5890, 1
        %vm5910 = vcmp.lt.s32.totalorder %v5890, 2
        %vm5911 = vcmp.lt.s32.totalorder %v5890, 3
        %vm5912 = vcmp.lt.s32.totalorder %v5890, 4
        %v5913 = vsel %vm5909, %v5893, %v5896
        %v5914 = vsel %vm5912, %v5902, 2102212464
        %v5915 = vsel %vm5911, %v5899, %v5914
        %v5916 = vsel %vm5910, %v5913, %v5915
        %v5917 = vsel %vm5909, %v5896, %v5899
        %v5918 = vsel %vm5912, %v5905, 920167782
        %v5919 = vsel %vm5911, %v5902, %v5918
        %v5920 = vsel %vm5910, %v5917, %v5919
        %v5921 = vsel %vm5909, %v5899, %v5902
        %v5922 = vsel %vm5912, %v5908, 1326507024
        %v5923 = vsel %vm5911, %v5905, %v5922
        %v5924 = vsel %vm5910, %v5921, %v5923
        %v5925 = vshll.u32 %v5885, 8
        %v5926 = vmul.u32.u64.compose %v5925, %v5924
        %v5927 = vextract.low.u32 %v5926
        %v5928 = vextract.high.u32 %v5926
        %v5929 = vmul.u32.u64.compose %v5925, %v5920
        %v5930 = vextract.low.u32 %v5929
        %v5931 = vextract.high.u32 %v5929
        %v5932 = vmul.u32 %v5925, %v5916
        %v5933 = vadd.s32 %v5928, %v5930
        %vm5934 = vc.u32 %v5928, %v5930
        %v5935 = vadd.s32 %v5931, 1
        %v5936 = vsel %vm5934, %v5935, %v5931
        %v5937 = vadd.s32 %v5932, %v5936
        %v5938 = vadd.s32 %v5937, 536870912
        %v5939 = vshrl.u32 %v5938, 30
        %v5940 = vshll.u32 %v5939, 30
        %v5941 = vsub.s32 %v5937, %v5940
        %vm5942 = vcmp.lt.s32.totalorder %v5941, 0
        %v5943 = vsub.s32 0, %v5941
        %v5944 = vsel %vm5942, %v5943, %v5941
        %v5945 = vclz %v5944
        %v5946 = vsub.s32 %v5945, 2
        %vm5947 = vcmp.gt.s32.totalorder 0, %v5946
        %v5948 = vsel %vm5947, 0, %v5946
        %v5949 = vsub.s32 32, %v5948
        %v5950 = vshll.u32 %v5941, %v5948
        %v5951 = vshrl.u32 %v5933, %v5949
        %v5952 = vor.u32 %v5950, %v5951
        %v5953 = vsub.s32 4294967266, %v5948
        %v5954 = vadd.s32 %v5953, 127
        %v5955 = vshll.u32 %v5954, 23
        %v5956 = vor.u32 4788187, %v5955
        %v5957 = vand.u32 2147483647, %v5956
        %v5959 = vcvt.s32.f32 %v5952
        %v5960 = vmul.f32 %v5959, %v5957
        %v5961 = vxor.u32 %v5960, 2147483648
        %v5962 = vsel %vm5879, %v5961, %v5960
        %v5963 = vsub.s32 4, %v5939
        %v5964 = vsel %vm5879, %v5963, %v5939
        %v5965 = vsel %vm5878, %v236, %v5962
        %v5966 = vsel %vm5878, 0, %v5964
        %v5967 = vcosq.f32.pop %v5965
        %v5968 = vsinq.f32.pop %v5965
        %vm5969 = vweird.f32 %v236
        %v5970 = vand.u32 %v5966, 3
        %vm5971 = vcmp.lt.s32.totalorder %v5970, 2
        %vm5972 = vcmp.eq.s32.totalorder %v5970, 0
        %v5973 = vxor.u32 %v5968, 2147483648
        %v5974 = vsel %vm5972, %v5967, %v5973
        %vm5975 = vcmp.eq.s32.totalorder %v5970, 2
        %v5976 = vxor.u32 %v5967, 2147483648
        %v5977 = vsel %vm5975, %v5976, %v5968
        %v5978 = vsel %vm5971, %v5974, %v5977
        %v5979 = vsel %vm5969, nan, %v5978
        %v5980 = vand.u32 2147483647, %v237
        %vm5981 = vcmp.le.f32.partialorder %v5980, 0.7853982
        %vm5982 = vcmp.lt.s32.totalorder %v237, 0
        %v5983 = vand.u32 %v237, 2139095040
        %v5984 = vshrl.u32 %v5983, 23
        %v5985 = vsub.s32 %v5984, 127
        %v5986 = vand.u32 2147483647, %v237
        %v5987 = vand.u32 %v5986, 8388607
        %v5988 = vor.u32 %v5987, 8388608
        %v5989 = vsub.s32 0, %v5988
        %v5990 = vadd.s32 %v5985, 1
        %vm5991 = vcmp.gt.s32.totalorder %v5990, 0
        %v5992 = vsel %vm5991, %v5990, 0
        %v5993 = vshrl.u32 %v5992, 5
        %v5994 = vand.u32 %v5992, 31
        %v5995 = vsub.s32 32, %v5994
        %v5996 = vshrl.u32 683565275, %v5995
        %v5997 = vshll.u32 683565275, %v5994
        %v5998 = vshrl.u32 2475754826, %v5995
        %v5999 = vor.u32 %v5997, %v5998
        %v6000 = vshll.u32 2475754826, %v5994
        %v6001 = vshrl.u32 2131351028, %v5995
        %v6002 = vor.u32 %v6000, %v6001
        %v6003 = vshll.u32 2131351028, %v5994
        %v6004 = vshrl.u32 2102212464, %v5995
        %v6005 = vor.u32 %v6003, %v6004
        %v6006 = vshll.u32 2102212464, %v5994
        %v6007 = vshrl.u32 920167782, %v5995
        %v6008 = vor.u32 %v6006, %v6007
        %v6009 = vshll.u32 920167782, %v5994
        %v6010 = vshrl.u32 1326507024, %v5995
        %v6011 = vor.u32 %v6009, %v6010
        %vm6012 = vcmp.lt.s32.totalorder %v5993, 1
        %vm6013 = vcmp.lt.s32.totalorder %v5993, 2
        %vm6014 = vcmp.lt.s32.totalorder %v5993, 3
        %vm6015 = vcmp.lt.s32.totalorder %v5993, 4
        %v6016 = vsel %vm6012, %v5996, %v5999
        %v6017 = vsel %vm6015, %v6005, 2102212464
        %v6018 = vsel %vm6014, %v6002, %v6017
        %v6019 = vsel %vm6013, %v6016, %v6018
        %v6020 = vsel %vm6012, %v5999, %v6002
        %v6021 = vsel %vm6015, %v6008, 920167782
        %v6022 = vsel %vm6014, %v6005, %v6021
        %v6023 = vsel %vm6013, %v6020, %v6022
        %v6024 = vsel %vm6012, %v6002, %v6005
        %v6025 = vsel %vm6015, %v6011, 1326507024
        %v6026 = vsel %vm6014, %v6008, %v6025
        %v6027 = vsel %vm6013, %v6024, %v6026
        %v6028 = vshll.u32 %v5988, 8
        %v6029 = vmul.u32.u64.compose %v6028, %v6027
        %v6030 = vextract.low.u32 %v6029
        %v6031 = vextract.high.u32 %v6029
        %v6032 = vmul.u32.u64.compose %v6028, %v6023
        %v6033 = vextract.low.u32 %v6032
        %v6034 = vextract.high.u32 %v6032
        %v6035 = vmul.u32 %v6028, %v6019
        %v6036 = vadd.s32 %v6031, %v6033
        %vm6037 = vc.u32 %v6031, %v6033
        %v6038 = vadd.s32 %v6034, 1
        %v6039 = vsel %vm6037, %v6038, %v6034
        %v6040 = vadd.s32 %v6035, %v6039
        %v6041 = vadd.s32 %v6040, 536870912
        %v6042 = vshrl.u32 %v6041, 30
        %v6043 = vshll.u32 %v6042, 30
        %v6044 = vsub.s32 %v6040, %v6043
        %vm6045 = vcmp.lt.s32.totalorder %v6044, 0
        %v6046 = vsub.s32 0, %v6044
        %v6047 = vsel %vm6045, %v6046, %v6044
        %v6048 = vclz %v6047
        %v6049 = vsub.s32 %v6048, 2
        %vm6050 = vcmp.gt.s32.totalorder 0, %v6049
        %v6051 = vsel %vm6050, 0, %v6049
        %v6052 = vsub.s32 32, %v6051
        %v6053 = vshll.u32 %v6044, %v6051
        %v6054 = vshrl.u32 %v6036, %v6052
        %v6055 = vor.u32 %v6053, %v6054
        %v6056 = vsub.s32 4294967266, %v6051
        %v6057 = vadd.s32 %v6056, 127
        %v6058 = vshll.u32 %v6057, 23
        %v6059 = vor.u32 4788187, %v6058
        %v6060 = vand.u32 2147483647, %v6059
        %v6062 = vcvt.s32.f32 %v6055
        %v6063 = vmul.f32 %v6062, %v6060
        %v6064 = vxor.u32 %v6063, 2147483648
        %v6065 = vsel %vm5982, %v6064, %v6063
        %v6066 = vsub.s32 4, %v6042
        %v6067 = vsel %vm5982, %v6066, %v6042
        %v6068 = vsel %vm5981, %v237, %v6065
        %v6069 = vsel %vm5981, 0, %v6067
        %v6070 = vcosq.f32.pop %v6068
        %v6071 = vsinq.f32.pop %v6068
        %vm6072 = vweird.f32 %v237
        %v6073 = vand.u32 %v6069, 3
        %vm6074 = vcmp.lt.s32.totalorder %v6073, 2
        %vm6075 = vcmp.eq.s32.totalorder %v6073, 0
        %v6076 = vxor.u32 %v6071, 2147483648
        %v6077 = vsel %vm6075, %v6070, %v6076
        %vm6078 = vcmp.eq.s32.totalorder %v6073, 2
        %v6079 = vxor.u32 %v6070, 2147483648
        %v6080 = vsel %vm6078, %v6079, %v6071
        %v6081 = vsel %vm6074, %v6077, %v6080
        %v6082 = vsel %vm6072, nan, %v6081
        %v6083 = vand.u32 2147483647, %v238
        %vm6084 = vcmp.le.f32.partialorder %v6083, 0.7853982
        %vm6085 = vcmp.lt.s32.totalorder %v238, 0
        %v6086 = vand.u32 %v238, 2139095040
        %v6087 = vshrl.u32 %v6086, 23
        %v6088 = vsub.s32 %v6087, 127
        %v6089 = vand.u32 2147483647, %v238
        %v6090 = vand.u32 %v6089, 8388607
        %v6091 = vor.u32 %v6090, 8388608
        %v6092 = vsub.s32 0, %v6091
        %v6093 = vadd.s32 %v6088, 1
        %vm6094 = vcmp.gt.s32.totalorder %v6093, 0
        %v6095 = vsel %vm6094, %v6093, 0
        %v6096 = vshrl.u32 %v6095, 5
        %v6097 = vand.u32 %v6095, 31
        %v6098 = vsub.s32 32, %v6097
        %v6099 = vshrl.u32 683565275, %v6098
        %v6100 = vshll.u32 683565275, %v6097
        %v6101 = vshrl.u32 2475754826, %v6098
        %v6102 = vor.u32 %v6100, %v6101
        %v6103 = vshll.u32 2475754826, %v6097
        %v6104 = vshrl.u32 2131351028, %v6098
        %v6105 = vor.u32 %v6103, %v6104
        %v6106 = vshll.u32 2131351028, %v6097
        %v6107 = vshrl.u32 2102212464, %v6098
        %v6108 = vor.u32 %v6106, %v6107
        %v6109 = vshll.u32 2102212464, %v6097
        %v6110 = vshrl.u32 920167782, %v6098
        %v6111 = vor.u32 %v6109, %v6110
        %v6112 = vshll.u32 920167782, %v6097
        %v6113 = vshrl.u32 1326507024, %v6098
        %v6114 = vor.u32 %v6112, %v6113
        %vm6115 = vcmp.lt.s32.totalorder %v6096, 1
        %vm6116 = vcmp.lt.s32.totalorder %v6096, 2
        %vm6117 = vcmp.lt.s32.totalorder %v6096, 3
        %vm6118 = vcmp.lt.s32.totalorder %v6096, 4
        %v6119 = vsel %vm6115, %v6099, %v6102
        %v6120 = vsel %vm6118, %v6108, 2102212464
        %v6121 = vsel %vm6117, %v6105, %v6120
        %v6122 = vsel %vm6116, %v6119, %v6121
        %v6123 = vsel %vm6115, %v6102, %v6105
        %v6124 = vsel %vm6118, %v6111, 920167782
        %v6125 = vsel %vm6117, %v6108, %v6124
        %v6126 = vsel %vm6116, %v6123, %v6125
        %v6127 = vsel %vm6115, %v6105, %v6108
        %v6128 = vsel %vm6118, %v6114, 1326507024
        %v6129 = vsel %vm6117, %v6111, %v6128
        %v6130 = vsel %vm6116, %v6127, %v6129
        %v6131 = vshll.u32 %v6091, 8
        %v6132 = vmul.u32.u64.compose %v6131, %v6130
        %v6133 = vextract.low.u32 %v6132
        %v6134 = vextract.high.u32 %v6132
        %v6135 = vmul.u32.u64.compose %v6131, %v6126
        %v6136 = vextract.low.u32 %v6135
        %v6137 = vextract.high.u32 %v6135
        %v6138 = vmul.u32 %v6131, %v6122
        %v6139 = vadd.s32 %v6134, %v6136
        %vm6140 = vc.u32 %v6134, %v6136
        %v6141 = vadd.s32 %v6137, 1
        %v6142 = vsel %vm6140, %v6141, %v6137
        %v6143 = vadd.s32 %v6138, %v6142
        %v6144 = vadd.s32 %v6143, 536870912
        %v6145 = vshrl.u32 %v6144, 30
        %v6146 = vshll.u32 %v6145, 30
        %v6147 = vsub.s32 %v6143, %v6146
        %vm6148 = vcmp.lt.s32.totalorder %v6147, 0
        %v6149 = vsub.s32 0, %v6147
        %v6150 = vsel %vm6148, %v6149, %v6147
        %v6151 = vclz %v6150
        %v6152 = vsub.s32 %v6151, 2
        %vm6153 = vcmp.gt.s32.totalorder 0, %v6152
        %v6154 = vsel %vm6153, 0, %v6152
        %v6155 = vsub.s32 32, %v6154
        %v6156 = vshll.u32 %v6147, %v6154
        %v6157 = vshrl.u32 %v6139, %v6155
        %v6158 = vor.u32 %v6156, %v6157
        %v6159 = vsub.s32 4294967266, %v6154
        %v6160 = vadd.s32 %v6159, 127
        %v6161 = vshll.u32 %v6160, 23
        %v6162 = vor.u32 4788187, %v6161
        %v6163 = vand.u32 2147483647, %v6162
        %v6165 = vcvt.s32.f32 %v6158
        %v6166 = vmul.f32 %v6165, %v6163
        %v6167 = vxor.u32 %v6166, 2147483648
        %v6168 = vsel %vm6085, %v6167, %v6166
        %v6169 = vsub.s32 4, %v6145
        %v6170 = vsel %vm6085, %v6169, %v6145
        %v6171 = vsel %vm6084, %v238, %v6168
        %v6172 = vsel %vm6084, 0, %v6170
        %v6173 = vcosq.f32.pop %v6171
        %v6174 = vsinq.f32.pop %v6171
        %vm6175 = vweird.f32 %v238
        %v6176 = vand.u32 %v6172, 3
        %vm6177 = vcmp.lt.s32.totalorder %v6176, 2
        %vm6178 = vcmp.eq.s32.totalorder %v6176, 0
        %v6179 = vxor.u32 %v6174, 2147483648
        %v6180 = vsel %vm6178, %v6173, %v6179
        %vm6181 = vcmp.eq.s32.totalorder %v6176, 2
        %v6182 = vxor.u32 %v6173, 2147483648
        %v6183 = vsel %vm6181, %v6182, %v6174
        %v6184 = vsel %vm6177, %v6180, %v6183
        %v6185 = vsel %vm6175, nan, %v6184
        %v6186 = vand.u32 2147483647, %v239
        %vm6187 = vcmp.le.f32.partialorder %v6186, 0.7853982
        %vm6188 = vcmp.lt.s32.totalorder %v239, 0
        %v6189 = vand.u32 %v239, 2139095040
        %v6190 = vshrl.u32 %v6189, 23
        %v6191 = vsub.s32 %v6190, 127
        %v6192 = vand.u32 2147483647, %v239
        %v6193 = vand.u32 %v6192, 8388607
        %v6194 = vor.u32 %v6193, 8388608
        %v6195 = vsub.s32 0, %v6194
        %v6196 = vadd.s32 %v6191, 1
        %vm6197 = vcmp.gt.s32.totalorder %v6196, 0
        %v6198 = vsel %vm6197, %v6196, 0
        %v6199 = vshrl.u32 %v6198, 5
        %v6200 = vand.u32 %v6198, 31
        %v6201 = vsub.s32 32, %v6200
        %v6202 = vshrl.u32 683565275, %v6201
        %v6203 = vshll.u32 683565275, %v6200
        %v6204 = vshrl.u32 2475754826, %v6201
        %v6205 = vor.u32 %v6203, %v6204
        %v6206 = vshll.u32 2475754826, %v6200
        %v6207 = vshrl.u32 2131351028, %v6201
        %v6208 = vor.u32 %v6206, %v6207
        %v6209 = vshll.u32 2131351028, %v6200
        %v6210 = vshrl.u32 2102212464, %v6201
        %v6211 = vor.u32 %v6209, %v6210
        %v6212 = vshll.u32 2102212464, %v6200
        %v6213 = vshrl.u32 920167782, %v6201
        %v6214 = vor.u32 %v6212, %v6213
        %v6215 = vshll.u32 920167782, %v6200
        %v6216 = vshrl.u32 1326507024, %v6201
        %v6217 = vor.u32 %v6215, %v6216
        %vm6218 = vcmp.lt.s32.totalorder %v6199, 1
        %vm6219 = vcmp.lt.s32.totalorder %v6199, 2
        %vm6220 = vcmp.lt.s32.totalorder %v6199, 3
        %vm6221 = vcmp.lt.s32.totalorder %v6199, 4
        %v6222 = vsel %vm6218, %v6202, %v6205
        %v6223 = vsel %vm6221, %v6211, 2102212464
        %v6224 = vsel %vm6220, %v6208, %v6223
        %v6225 = vsel %vm6219, %v6222, %v6224
        %v6226 = vsel %vm6218, %v6205, %v6208
        %v6227 = vsel %vm6221, %v6214, 920167782
        %v6228 = vsel %vm6220, %v6211, %v6227
        %v6229 = vsel %vm6219, %v6226, %v6228
        %v6230 = vsel %vm6218, %v6208, %v6211
        %v6231 = vsel %vm6221, %v6217, 1326507024
        %v6232 = vsel %vm6220, %v6214, %v6231
        %v6233 = vsel %vm6219, %v6230, %v6232
        %v6234 = vshll.u32 %v6194, 8
        %v6235 = vmul.u32.u64.compose %v6234, %v6233
        %v6236 = vextract.low.u32 %v6235
        %v6237 = vextract.high.u32 %v6235
        %v6238 = vmul.u32.u64.compose %v6234, %v6229
        %v6239 = vextract.low.u32 %v6238
        %v6240 = vextract.high.u32 %v6238
        %v6241 = vmul.u32 %v6234, %v6225
        %v6242 = vadd.s32 %v6237, %v6239
        %vm6243 = vc.u32 %v6237, %v6239
        %v6244 = vadd.s32 %v6240, 1
        %v6245 = vsel %vm6243, %v6244, %v6240
        %v6246 = vadd.s32 %v6241, %v6245
        %v6247 = vadd.s32 %v6246, 536870912
        %v6248 = vshrl.u32 %v6247, 30
        %v6249 = vshll.u32 %v6248, 30
        %v6250 = vsub.s32 %v6246, %v6249
        %vm6251 = vcmp.lt.s32.totalorder %v6250, 0
        %v6252 = vsub.s32 0, %v6250
        %v6253 = vsel %vm6251, %v6252, %v6250
        %v6254 = vclz %v6253
        %v6255 = vsub.s32 %v6254, 2
        %vm6256 = vcmp.gt.s32.totalorder 0, %v6255
        %v6257 = vsel %vm6256, 0, %v6255
        %v6258 = vsub.s32 32, %v6257
        %v6259 = vshll.u32 %v6250, %v6257
        %v6260 = vshrl.u32 %v6242, %v6258
        %v6261 = vor.u32 %v6259, %v6260
        %v6262 = vsub.s32 4294967266, %v6257
        %v6263 = vadd.s32 %v6262, 127
        %v6264 = vshll.u32 %v6263, 23
        %v6265 = vor.u32 4788187, %v6264
        %v6266 = vand.u32 2147483647, %v6265
        %v6268 = vcvt.s32.f32 %v6261
        %v6269 = vmul.f32 %v6268, %v6266
        %v6270 = vxor.u32 %v6269, 2147483648
        %v6271 = vsel %vm6188, %v6270, %v6269
        %v6272 = vsub.s32 4, %v6248
        %v6273 = vsel %vm6188, %v6272, %v6248
        %v6274 = vsel %vm6187, %v239, %v6271
        %v6275 = vsel %vm6187, 0, %v6273
        %v6276 = vcosq.f32.pop %v6274
        %v6277 = vsinq.f32.pop %v6274
        %vm6278 = vweird.f32 %v239
        %v6279 = vand.u32 %v6275, 3
        %vm6280 = vcmp.lt.s32.totalorder %v6279, 2
        %vm6281 = vcmp.eq.s32.totalorder %v6279, 0
        %v6282 = vxor.u32 %v6277, 2147483648
        %v6283 = vsel %vm6281, %v6276, %v6282
        %vm6284 = vcmp.eq.s32.totalorder %v6279, 2
        %v6285 = vxor.u32 %v6276, 2147483648
        %v6286 = vsel %vm6284, %v6285, %v6277
        %v6287 = vsel %vm6280, %v6283, %v6286
        %v6288 = vsel %vm6278, nan, %v6287
        %v6289 = vand.u32 2147483647, %v240
        %vm6290 = vcmp.le.f32.partialorder %v6289, 0.7853982
        %vm6291 = vcmp.lt.s32.totalorder %v240, 0
        %v6292 = vand.u32 %v240, 2139095040
        %v6293 = vshrl.u32 %v6292, 23
        %v6294 = vsub.s32 %v6293, 127
        %v6295 = vand.u32 2147483647, %v240
        %v6296 = vand.u32 %v6295, 8388607
        %v6297 = vor.u32 %v6296, 8388608
        %v6298 = vsub.s32 0, %v6297
        %v6299 = vadd.s32 %v6294, 1
        %vm6300 = vcmp.gt.s32.totalorder %v6299, 0
        %v6301 = vsel %vm6300, %v6299, 0
        %v6302 = vshrl.u32 %v6301, 5
        %v6303 = vand.u32 %v6301, 31
        %v6304 = vsub.s32 32, %v6303
        %v6305 = vshrl.u32 683565275, %v6304
        %v6306 = vshll.u32 683565275, %v6303
        %v6307 = vshrl.u32 2475754826, %v6304
        %v6308 = vor.u32 %v6306, %v6307
        %v6309 = vshll.u32 2475754826, %v6303
        %v6310 = vshrl.u32 2131351028, %v6304
        %v6311 = vor.u32 %v6309, %v6310
        %v6312 = vshll.u32 2131351028, %v6303
        %v6313 = vshrl.u32 2102212464, %v6304
        %v6314 = vor.u32 %v6312, %v6313
        %v6315 = vshll.u32 2102212464, %v6303
        %v6316 = vshrl.u32 920167782, %v6304
        %v6317 = vor.u32 %v6315, %v6316
        %v6318 = vshll.u32 920167782, %v6303
        %v6319 = vshrl.u32 1326507024, %v6304
        %v6320 = vor.u32 %v6318, %v6319
        %vm6321 = vcmp.lt.s32.totalorder %v6302, 1
        %vm6322 = vcmp.lt.s32.totalorder %v6302, 2
        %vm6323 = vcmp.lt.s32.totalorder %v6302, 3
        %vm6324 = vcmp.lt.s32.totalorder %v6302, 4
        %v6325 = vsel %vm6321, %v6305, %v6308
        %v6326 = vsel %vm6324, %v6314, 2102212464
        %v6327 = vsel %vm6323, %v6311, %v6326
        %v6328 = vsel %vm6322, %v6325, %v6327
        %v6329 = vsel %vm6321, %v6308, %v6311
        %v6330 = vsel %vm6324, %v6317, 920167782
        %v6331 = vsel %vm6323, %v6314, %v6330
        %v6332 = vsel %vm6322, %v6329, %v6331
        %v6333 = vsel %vm6321, %v6311, %v6314
        %v6334 = vsel %vm6324, %v6320, 1326507024
        %v6335 = vsel %vm6323, %v6317, %v6334
        %v6336 = vsel %vm6322, %v6333, %v6335
        %v6337 = vshll.u32 %v6297, 8
        %v6338 = vmul.u32.u64.compose %v6337, %v6336
        %v6339 = vextract.low.u32 %v6338
        %v6340 = vextract.high.u32 %v6338
        %v6341 = vmul.u32.u64.compose %v6337, %v6332
        %v6342 = vextract.low.u32 %v6341
        %v6343 = vextract.high.u32 %v6341
        %v6344 = vmul.u32 %v6337, %v6328
        %v6345 = vadd.s32 %v6340, %v6342
        %vm6346 = vc.u32 %v6340, %v6342
        %v6347 = vadd.s32 %v6343, 1
        %v6348 = vsel %vm6346, %v6347, %v6343
        %v6349 = vadd.s32 %v6344, %v6348
        %v6350 = vadd.s32 %v6349, 536870912
        %v6351 = vshrl.u32 %v6350, 30
        %v6352 = vshll.u32 %v6351, 30
        %v6353 = vsub.s32 %v6349, %v6352
        %vm6354 = vcmp.lt.s32.totalorder %v6353, 0
        %v6355 = vsub.s32 0, %v6353
        %v6356 = vsel %vm6354, %v6355, %v6353
        %v6357 = vclz %v6356
        %v6358 = vsub.s32 %v6357, 2
        %vm6359 = vcmp.gt.s32.totalorder 0, %v6358
        %v6360 = vsel %vm6359, 0, %v6358
        %v6361 = vsub.s32 32, %v6360
        %v6362 = vshll.u32 %v6353, %v6360
        %v6363 = vshrl.u32 %v6345, %v6361
        %v6364 = vor.u32 %v6362, %v6363
        %v6365 = vsub.s32 4294967266, %v6360
        %v6366 = vadd.s32 %v6365, 127
        %v6367 = vshll.u32 %v6366, 23
        %v6368 = vor.u32 4788187, %v6367
        %v6369 = vand.u32 2147483647, %v6368
        %v6371 = vcvt.s32.f32 %v6364
        %v6372 = vmul.f32 %v6371, %v6369
        %v6373 = vxor.u32 %v6372, 2147483648
        %v6374 = vsel %vm6291, %v6373, %v6372
        %v6375 = vsub.s32 4, %v6351
        %v6376 = vsel %vm6291, %v6375, %v6351
        %v6377 = vsel %vm6290, %v240, %v6374
        %v6378 = vsel %vm6290, 0, %v6376
        %v6379 = vcosq.f32.pop %v6377
        %v6380 = vsinq.f32.pop %v6377
        %vm6381 = vweird.f32 %v240
        %v6382 = vand.u32 %v6378, 3
        %vm6383 = vcmp.lt.s32.totalorder %v6382, 2
        %vm6384 = vcmp.eq.s32.totalorder %v6382, 0
        %v6385 = vxor.u32 %v6380, 2147483648
        %v6386 = vsel %vm6384, %v6379, %v6385
        %vm6387 = vcmp.eq.s32.totalorder %v6382, 2
        %v6388 = vxor.u32 %v6379, 2147483648
        %v6389 = vsel %vm6387, %v6388, %v6380
        %v6390 = vsel %vm6383, %v6386, %v6389
        %v6391 = vsel %vm6381, nan, %v6390
        %v6392 = vand.u32 2147483647, %v241
        %vm6393 = vcmp.le.f32.partialorder %v6392, 0.7853982
        %vm6394 = vcmp.lt.s32.totalorder %v241, 0
        %v6395 = vand.u32 %v241, 2139095040
        %v6396 = vshrl.u32 %v6395, 23
        %v6397 = vsub.s32 %v6396, 127
        %v6398 = vand.u32 2147483647, %v241
        %v6399 = vand.u32 %v6398, 8388607
        %v6400 = vor.u32 %v6399, 8388608
        %v6401 = vsub.s32 0, %v6400
        %v6402 = vadd.s32 %v6397, 1
        %vm6403 = vcmp.gt.s32.totalorder %v6402, 0
        %v6404 = vsel %vm6403, %v6402, 0
        %v6405 = vshrl.u32 %v6404, 5
        %v6406 = vand.u32 %v6404, 31
        %v6407 = vsub.s32 32, %v6406
        %v6408 = vshrl.u32 683565275, %v6407
        %v6409 = vshll.u32 683565275, %v6406
        %v6410 = vshrl.u32 2475754826, %v6407
        %v6411 = vor.u32 %v6409, %v6410
        %v6412 = vshll.u32 2475754826, %v6406
        %v6413 = vshrl.u32 2131351028, %v6407
        %v6414 = vor.u32 %v6412, %v6413
        %v6415 = vshll.u32 2131351028, %v6406
        %v6416 = vshrl.u32 2102212464, %v6407
        %v6417 = vor.u32 %v6415, %v6416
        %v6418 = vshll.u32 2102212464, %v6406
        %v6419 = vshrl.u32 920167782, %v6407
        %v6420 = vor.u32 %v6418, %v6419
        %v6421 = vshll.u32 920167782, %v6406
        %v6422 = vshrl.u32 1326507024, %v6407
        %v6423 = vor.u32 %v6421, %v6422
        %vm6424 = vcmp.lt.s32.totalorder %v6405, 1
        %vm6425 = vcmp.lt.s32.totalorder %v6405, 2
        %vm6426 = vcmp.lt.s32.totalorder %v6405, 3
        %vm6427 = vcmp.lt.s32.totalorder %v6405, 4
        %v6428 = vsel %vm6424, %v6408, %v6411
        %v6429 = vsel %vm6427, %v6417, 2102212464
        %v6430 = vsel %vm6426, %v6414, %v6429
        %v6431 = vsel %vm6425, %v6428, %v6430
        %v6432 = vsel %vm6424, %v6411, %v6414
        %v6433 = vsel %vm6427, %v6420, 920167782
        %v6434 = vsel %vm6426, %v6417, %v6433
        %v6435 = vsel %vm6425, %v6432, %v6434
        %v6436 = vsel %vm6424, %v6414, %v6417
        %v6437 = vsel %vm6427, %v6423, 1326507024
        %v6438 = vsel %vm6426, %v6420, %v6437
        %v6439 = vsel %vm6425, %v6436, %v6438
        %v6440 = vshll.u32 %v6400, 8
        %v6441 = vmul.u32.u64.compose %v6440, %v6439
        %v6442 = vextract.low.u32 %v6441
        %v6443 = vextract.high.u32 %v6441
        %v6444 = vmul.u32.u64.compose %v6440, %v6435
        %v6445 = vextract.low.u32 %v6444
        %v6446 = vextract.high.u32 %v6444
        %v6447 = vmul.u32 %v6440, %v6431
        %v6448 = vadd.s32 %v6443, %v6445
        %vm6449 = vc.u32 %v6443, %v6445
        %v6450 = vadd.s32 %v6446, 1
        %v6451 = vsel %vm6449, %v6450, %v6446
        %v6452 = vadd.s32 %v6447, %v6451
        %v6453 = vadd.s32 %v6452, 536870912
        %v6454 = vshrl.u32 %v6453, 30
        %v6455 = vshll.u32 %v6454, 30
        %v6456 = vsub.s32 %v6452, %v6455
        %vm6457 = vcmp.lt.s32.totalorder %v6456, 0
        %v6458 = vsub.s32 0, %v6456
        %v6459 = vsel %vm6457, %v6458, %v6456
        %v6460 = vclz %v6459
        %v6461 = vsub.s32 %v6460, 2
        %vm6462 = vcmp.gt.s32.totalorder 0, %v6461
        %v6463 = vsel %vm6462, 0, %v6461
        %v6464 = vsub.s32 32, %v6463
        %v6465 = vshll.u32 %v6456, %v6463
        %v6466 = vshrl.u32 %v6448, %v6464
        %v6467 = vor.u32 %v6465, %v6466
        %v6468 = vsub.s32 4294967266, %v6463
        %v6469 = vadd.s32 %v6468, 127
        %v6470 = vshll.u32 %v6469, 23
        %v6471 = vor.u32 4788187, %v6470
        %v6472 = vand.u32 2147483647, %v6471
        %v6474 = vcvt.s32.f32 %v6467
        %v6475 = vmul.f32 %v6474, %v6472
        %v6476 = vxor.u32 %v6475, 2147483648
        %v6477 = vsel %vm6394, %v6476, %v6475
        %v6478 = vsub.s32 4, %v6454
        %v6479 = vsel %vm6394, %v6478, %v6454
        %v6480 = vsel %vm6393, %v241, %v6477
        %v6481 = vsel %vm6393, 0, %v6479
        %v6482 = vcosq.f32.pop %v6480
        %v6483 = vsinq.f32.pop %v6480
        %vm6484 = vweird.f32 %v241
        %v6485 = vand.u32 %v6481, 3
        %vm6486 = vcmp.lt.s32.totalorder %v6485, 2
        %vm6487 = vcmp.eq.s32.totalorder %v6485, 0
        %v6488 = vxor.u32 %v6483, 2147483648
        %v6489 = vsel %vm6487, %v6482, %v6488
        %vm6490 = vcmp.eq.s32.totalorder %v6485, 2
        %v6491 = vxor.u32 %v6482, 2147483648
        %v6492 = vsel %vm6490, %v6491, %v6483
        %v6493 = vsel %vm6486, %v6489, %v6492
        %v6494 = vsel %vm6484, nan, %v6493
        %v6495 = vand.u32 2147483647, %v242
        %vm6496 = vcmp.le.f32.partialorder %v6495, 0.7853982
        %vm6497 = vcmp.lt.s32.totalorder %v242, 0
        %v6498 = vand.u32 %v242, 2139095040
        %v6499 = vshrl.u32 %v6498, 23
        %v6500 = vsub.s32 %v6499, 127
        %v6501 = vand.u32 2147483647, %v242
        %v6502 = vand.u32 %v6501, 8388607
        %v6503 = vor.u32 %v6502, 8388608
        %v6504 = vsub.s32 0, %v6503
        %v6505 = vadd.s32 %v6500, 1
        %vm6506 = vcmp.gt.s32.totalorder %v6505, 0
        %v6507 = vsel %vm6506, %v6505, 0
        %v6508 = vshrl.u32 %v6507, 5
        %v6509 = vand.u32 %v6507, 31
        %v6510 = vsub.s32 32, %v6509
        %v6511 = vshrl.u32 683565275, %v6510
        %v6512 = vshll.u32 683565275, %v6509
        %v6513 = vshrl.u32 2475754826, %v6510
        %v6514 = vor.u32 %v6512, %v6513
        %v6515 = vshll.u32 2475754826, %v6509
        %v6516 = vshrl.u32 2131351028, %v6510
        %v6517 = vor.u32 %v6515, %v6516
        %v6518 = vshll.u32 2131351028, %v6509
        %v6519 = vshrl.u32 2102212464, %v6510
        %v6520 = vor.u32 %v6518, %v6519
        %v6521 = vshll.u32 2102212464, %v6509
        %v6522 = vshrl.u32 920167782, %v6510
        %v6523 = vor.u32 %v6521, %v6522
        %v6524 = vshll.u32 920167782, %v6509
        %v6525 = vshrl.u32 1326507024, %v6510
        %v6526 = vor.u32 %v6524, %v6525
        %vm6527 = vcmp.lt.s32.totalorder %v6508, 1
        %vm6528 = vcmp.lt.s32.totalorder %v6508, 2
        %vm6529 = vcmp.lt.s32.totalorder %v6508, 3
        %vm6530 = vcmp.lt.s32.totalorder %v6508, 4
        %v6531 = vsel %vm6527, %v6511, %v6514
        %v6532 = vsel %vm6530, %v6520, 2102212464
        %v6533 = vsel %vm6529, %v6517, %v6532
        %v6534 = vsel %vm6528, %v6531, %v6533
        %v6535 = vsel %vm6527, %v6514, %v6517
        %v6536 = vsel %vm6530, %v6523, 920167782
        %v6537 = vsel %vm6529, %v6520, %v6536
        %v6538 = vsel %vm6528, %v6535, %v6537
        %v6539 = vsel %vm6527, %v6517, %v6520
        %v6540 = vsel %vm6530, %v6526, 1326507024
        %v6541 = vsel %vm6529, %v6523, %v6540
        %v6542 = vsel %vm6528, %v6539, %v6541
        %v6543 = vshll.u32 %v6503, 8
        %v6544 = vmul.u32.u64.compose %v6543, %v6542
        %v6545 = vextract.low.u32 %v6544
        %v6546 = vextract.high.u32 %v6544
        %v6547 = vmul.u32.u64.compose %v6543, %v6538
        %v6548 = vextract.low.u32 %v6547
        %v6549 = vextract.high.u32 %v6547
        %v6550 = vmul.u32 %v6543, %v6534
        %v6551 = vadd.s32 %v6546, %v6548
        %vm6552 = vc.u32 %v6546, %v6548
        %v6553 = vadd.s32 %v6549, 1
        %v6554 = vsel %vm6552, %v6553, %v6549
        %v6555 = vadd.s32 %v6550, %v6554
        %v6556 = vadd.s32 %v6555, 536870912
        %v6557 = vshrl.u32 %v6556, 30
        %v6558 = vshll.u32 %v6557, 30
        %v6559 = vsub.s32 %v6555, %v6558
        %vm6560 = vcmp.lt.s32.totalorder %v6559, 0
        %v6561 = vsub.s32 0, %v6559
        %v6562 = vsel %vm6560, %v6561, %v6559
        %v6563 = vclz %v6562
        %v6564 = vsub.s32 %v6563, 2
        %vm6565 = vcmp.gt.s32.totalorder 0, %v6564
        %v6566 = vsel %vm6565, 0, %v6564
        %v6567 = vsub.s32 32, %v6566
        %v6568 = vshll.u32 %v6559, %v6566
        %v6569 = vshrl.u32 %v6551, %v6567
        %v6570 = vor.u32 %v6568, %v6569
        %v6571 = vsub.s32 4294967266, %v6566
        %v6572 = vadd.s32 %v6571, 127
        %v6573 = vshll.u32 %v6572, 23
        %v6574 = vor.u32 4788187, %v6573
        %v6575 = vand.u32 2147483647, %v6574
        %v6577 = vcvt.s32.f32 %v6570
        %v6578 = vmul.f32 %v6577, %v6575
        %v6579 = vxor.u32 %v6578, 2147483648
        %v6580 = vsel %vm6497, %v6579, %v6578
        %v6581 = vsub.s32 4, %v6557
        %v6582 = vsel %vm6497, %v6581, %v6557
        %v6583 = vsel %vm6496, %v242, %v6580
        %v6584 = vsel %vm6496, 0, %v6582
        %v6585 = vcosq.f32.pop %v6583
        %v6586 = vsinq.f32.pop %v6583
        %vm6587 = vweird.f32 %v242
        %v6588 = vand.u32 %v6584, 3
        %vm6589 = vcmp.lt.s32.totalorder %v6588, 2
        %vm6590 = vcmp.eq.s32.totalorder %v6588, 0
        %v6591 = vxor.u32 %v6586, 2147483648
        %v6592 = vsel %vm6590, %v6585, %v6591
        %vm6593 = vcmp.eq.s32.totalorder %v6588, 2
        %v6594 = vxor.u32 %v6585, 2147483648
        %v6595 = vsel %vm6593, %v6594, %v6586
        %v6596 = vsel %vm6589, %v6592, %v6595
        %v6597 = vsel %vm6587, nan, %v6596
        %v6598 = vand.u32 2147483647, %v243
        %vm6599 = vcmp.le.f32.partialorder %v6598, 0.7853982
        %vm6600 = vcmp.lt.s32.totalorder %v243, 0
        %v6601 = vand.u32 %v243, 2139095040
        %v6602 = vshrl.u32 %v6601, 23
        %v6603 = vsub.s32 %v6602, 127
        %v6604 = vand.u32 2147483647, %v243
        %v6605 = vand.u32 %v6604, 8388607
        %v6606 = vor.u32 %v6605, 8388608
        %v6607 = vsub.s32 0, %v6606
        %v6608 = vadd.s32 %v6603, 1
        %vm6609 = vcmp.gt.s32.totalorder %v6608, 0
        %v6610 = vsel %vm6609, %v6608, 0
        %v6611 = vshrl.u32 %v6610, 5
        %v6612 = vand.u32 %v6610, 31
        %v6613 = vsub.s32 32, %v6612
        %v6614 = vshrl.u32 683565275, %v6613
        %v6615 = vshll.u32 683565275, %v6612
        %v6616 = vshrl.u32 2475754826, %v6613
        %v6617 = vor.u32 %v6615, %v6616
        %v6618 = vshll.u32 2475754826, %v6612
        %v6619 = vshrl.u32 2131351028, %v6613
        %v6620 = vor.u32 %v6618, %v6619
        %v6621 = vshll.u32 2131351028, %v6612
        %v6622 = vshrl.u32 2102212464, %v6613
        %v6623 = vor.u32 %v6621, %v6622
        %v6624 = vshll.u32 2102212464, %v6612
        %v6625 = vshrl.u32 920167782, %v6613
        %v6626 = vor.u32 %v6624, %v6625
        %v6627 = vshll.u32 920167782, %v6612
        %v6628 = vshrl.u32 1326507024, %v6613
        %v6629 = vor.u32 %v6627, %v6628
        %vm6630 = vcmp.lt.s32.totalorder %v6611, 1
        %vm6631 = vcmp.lt.s32.totalorder %v6611, 2
        %vm6632 = vcmp.lt.s32.totalorder %v6611, 3
        %vm6633 = vcmp.lt.s32.totalorder %v6611, 4
        %v6634 = vsel %vm6630, %v6614, %v6617
        %v6635 = vsel %vm6633, %v6623, 2102212464
        %v6636 = vsel %vm6632, %v6620, %v6635
        %v6637 = vsel %vm6631, %v6634, %v6636
        %v6638 = vsel %vm6630, %v6617, %v6620
        %v6639 = vsel %vm6633, %v6626, 920167782
        %v6640 = vsel %vm6632, %v6623, %v6639
        %v6641 = vsel %vm6631, %v6638, %v6640
        %v6642 = vsel %vm6630, %v6620, %v6623
        %v6643 = vsel %vm6633, %v6629, 1326507024
        %v6644 = vsel %vm6632, %v6626, %v6643
        %v6645 = vsel %vm6631, %v6642, %v6644
        %v6646 = vshll.u32 %v6606, 8
        %v6647 = vmul.u32.u64.compose %v6646, %v6645
        %v6648 = vextract.low.u32 %v6647
        %v6649 = vextract.high.u32 %v6647
        %v6650 = vmul.u32.u64.compose %v6646, %v6641
        %v6651 = vextract.low.u32 %v6650
        %v6652 = vextract.high.u32 %v6650
        %v6653 = vmul.u32 %v6646, %v6637
        %v6654 = vadd.s32 %v6649, %v6651
        %vm6655 = vc.u32 %v6649, %v6651
        %v6656 = vadd.s32 %v6652, 1
        %v6657 = vsel %vm6655, %v6656, %v6652
        %v6658 = vadd.s32 %v6653, %v6657
        %v6659 = vadd.s32 %v6658, 536870912
        %v6660 = vshrl.u32 %v6659, 30
        %v6661 = vshll.u32 %v6660, 30
        %v6662 = vsub.s32 %v6658, %v6661
        %vm6663 = vcmp.lt.s32.totalorder %v6662, 0
        %v6664 = vsub.s32 0, %v6662
        %v6665 = vsel %vm6663, %v6664, %v6662
        %v6666 = vclz %v6665
        %v6667 = vsub.s32 %v6666, 2
        %vm6668 = vcmp.gt.s32.totalorder 0, %v6667
        %v6669 = vsel %vm6668, 0, %v6667
        %v6670 = vsub.s32 32, %v6669
        %v6671 = vshll.u32 %v6662, %v6669
        %v6672 = vshrl.u32 %v6654, %v6670
        %v6673 = vor.u32 %v6671, %v6672
        %v6674 = vsub.s32 4294967266, %v6669
        %v6675 = vadd.s32 %v6674, 127
        %v6676 = vshll.u32 %v6675, 23
        %v6677 = vor.u32 4788187, %v6676
        %v6678 = vand.u32 2147483647, %v6677
        %v6680 = vcvt.s32.f32 %v6673
        %v6681 = vmul.f32 %v6680, %v6678
        %v6682 = vxor.u32 %v6681, 2147483648
        %v6683 = vsel %vm6600, %v6682, %v6681
        %v6684 = vsub.s32 4, %v6660
        %v6685 = vsel %vm6600, %v6684, %v6660
        %v6686 = vsel %vm6599, %v243, %v6683
        %v6687 = vsel %vm6599, 0, %v6685
        %v6688 = vcosq.f32.pop %v6686
        %v6689 = vsinq.f32.pop %v6686
        %vm6690 = vweird.f32 %v243
        %v6691 = vand.u32 %v6687, 3
        %vm6692 = vcmp.lt.s32.totalorder %v6691, 2
        %vm6693 = vcmp.eq.s32.totalorder %v6691, 0
        %v6694 = vxor.u32 %v6689, 2147483648
        %v6695 = vsel %vm6693, %v6688, %v6694
        %vm6696 = vcmp.eq.s32.totalorder %v6691, 2
        %v6697 = vxor.u32 %v6688, 2147483648
        %v6698 = vsel %vm6696, %v6697, %v6689
        %v6699 = vsel %vm6692, %v6695, %v6698
        %v6700 = vsel %vm6690, nan, %v6699
        %v6701 = vand.u32 2147483647, %v244
        %vm6702 = vcmp.le.f32.partialorder %v6701, 0.7853982
        %vm6703 = vcmp.lt.s32.totalorder %v244, 0
        %v6704 = vand.u32 %v244, 2139095040
        %v6705 = vshrl.u32 %v6704, 23
        %v6706 = vsub.s32 %v6705, 127
        %v6707 = vand.u32 2147483647, %v244
        %v6708 = vand.u32 %v6707, 8388607
        %v6709 = vor.u32 %v6708, 8388608
        %v6710 = vsub.s32 0, %v6709
        %v6711 = vadd.s32 %v6706, 1
        %vm6712 = vcmp.gt.s32.totalorder %v6711, 0
        %v6713 = vsel %vm6712, %v6711, 0
        %v6714 = vshrl.u32 %v6713, 5
        %v6715 = vand.u32 %v6713, 31
        %v6716 = vsub.s32 32, %v6715
        %v6717 = vshrl.u32 683565275, %v6716
        %v6718 = vshll.u32 683565275, %v6715
        %v6719 = vshrl.u32 2475754826, %v6716
        %v6720 = vor.u32 %v6718, %v6719
        %v6721 = vshll.u32 2475754826, %v6715
        %v6722 = vshrl.u32 2131351028, %v6716
        %v6723 = vor.u32 %v6721, %v6722
        %v6724 = vshll.u32 2131351028, %v6715
        %v6725 = vshrl.u32 2102212464, %v6716
        %v6726 = vor.u32 %v6724, %v6725
        %v6727 = vshll.u32 2102212464, %v6715
        %v6728 = vshrl.u32 920167782, %v6716
        %v6729 = vor.u32 %v6727, %v6728
        %v6730 = vshll.u32 920167782, %v6715
        %v6731 = vshrl.u32 1326507024, %v6716
        %v6732 = vor.u32 %v6730, %v6731
        %vm6733 = vcmp.lt.s32.totalorder %v6714, 1
        %vm6734 = vcmp.lt.s32.totalorder %v6714, 2
        %vm6735 = vcmp.lt.s32.totalorder %v6714, 3
        %vm6736 = vcmp.lt.s32.totalorder %v6714, 4
        %v6737 = vsel %vm6733, %v6717, %v6720
        %v6738 = vsel %vm6736, %v6726, 2102212464
        %v6739 = vsel %vm6735, %v6723, %v6738
        %v6740 = vsel %vm6734, %v6737, %v6739
        %v6741 = vsel %vm6733, %v6720, %v6723
        %v6742 = vsel %vm6736, %v6729, 920167782
        %v6743 = vsel %vm6735, %v6726, %v6742
        %v6744 = vsel %vm6734, %v6741, %v6743
        %v6745 = vsel %vm6733, %v6723, %v6726
        %v6746 = vsel %vm6736, %v6732, 1326507024
        %v6747 = vsel %vm6735, %v6729, %v6746
        %v6748 = vsel %vm6734, %v6745, %v6747
        %v6749 = vshll.u32 %v6709, 8
        %v6750 = vmul.u32.u64.compose %v6749, %v6748
        %v6751 = vextract.low.u32 %v6750
        %v6752 = vextract.high.u32 %v6750
        %v6753 = vmul.u32.u64.compose %v6749, %v6744
        %v6754 = vextract.low.u32 %v6753
        %v6755 = vextract.high.u32 %v6753
        %v6756 = vmul.u32 %v6749, %v6740
        %v6757 = vadd.s32 %v6752, %v6754
        %vm6758 = vc.u32 %v6752, %v6754
        %v6759 = vadd.s32 %v6755, 1
        %v6760 = vsel %vm6758, %v6759, %v6755
        %v6761 = vadd.s32 %v6756, %v6760
        %v6762 = vadd.s32 %v6761, 536870912
        %v6763 = vshrl.u32 %v6762, 30
        %v6764 = vshll.u32 %v6763, 30
        %v6765 = vsub.s32 %v6761, %v6764
        %vm6766 = vcmp.lt.s32.totalorder %v6765, 0
        %v6767 = vsub.s32 0, %v6765
        %v6768 = vsel %vm6766, %v6767, %v6765
        %v6769 = vclz %v6768
        %v6770 = vsub.s32 %v6769, 2
        %vm6771 = vcmp.gt.s32.totalorder 0, %v6770
        %v6772 = vsel %vm6771, 0, %v6770
        %v6773 = vsub.s32 32, %v6772
        %v6774 = vshll.u32 %v6765, %v6772
        %v6775 = vshrl.u32 %v6757, %v6773
        %v6776 = vor.u32 %v6774, %v6775
        %v6777 = vsub.s32 4294967266, %v6772
        %v6778 = vadd.s32 %v6777, 127
        %v6779 = vshll.u32 %v6778, 23
        %v6780 = vor.u32 4788187, %v6779
        %v6781 = vand.u32 2147483647, %v6780
        %v6783 = vcvt.s32.f32 %v6776
        %v6784 = vmul.f32 %v6783, %v6781
        %v6785 = vxor.u32 %v6784, 2147483648
        %v6786 = vsel %vm6703, %v6785, %v6784
        %v6787 = vsub.s32 4, %v6763
        %v6788 = vsel %vm6703, %v6787, %v6763
        %v6789 = vsel %vm6702, %v244, %v6786
        %v6790 = vsel %vm6702, 0, %v6788
        %v6791 = vcosq.f32.pop %v6789
        %v6792 = vsinq.f32.pop %v6789
        %vm6793 = vweird.f32 %v244
        %v6794 = vand.u32 %v6790, 3
        %vm6795 = vcmp.lt.s32.totalorder %v6794, 2
        %vm6796 = vcmp.eq.s32.totalorder %v6794, 0
        %v6797 = vxor.u32 %v6792, 2147483648
        %v6798 = vsel %vm6796, %v6791, %v6797
        %vm6799 = vcmp.eq.s32.totalorder %v6794, 2
        %v6800 = vxor.u32 %v6791, 2147483648
        %v6801 = vsel %vm6799, %v6800, %v6792
        %v6802 = vsel %vm6795, %v6798, %v6801
        %v6803 = vsel %vm6793, nan, %v6802
        %v6804 = vand.u32 2147483647, %v245
        %vm6805 = vcmp.le.f32.partialorder %v6804, 0.7853982
        %vm6806 = vcmp.lt.s32.totalorder %v245, 0
        %v6807 = vand.u32 %v245, 2139095040
        %v6808 = vshrl.u32 %v6807, 23
        %v6809 = vsub.s32 %v6808, 127
        %v6810 = vand.u32 2147483647, %v245
        %v6811 = vand.u32 %v6810, 8388607
        %v6812 = vor.u32 %v6811, 8388608
        %v6813 = vsub.s32 0, %v6812
        %v6814 = vadd.s32 %v6809, 1
        %vm6815 = vcmp.gt.s32.totalorder %v6814, 0
        %v6816 = vsel %vm6815, %v6814, 0
        %v6817 = vshrl.u32 %v6816, 5
        %v6818 = vand.u32 %v6816, 31
        %v6819 = vsub.s32 32, %v6818
        %v6820 = vshrl.u32 683565275, %v6819
        %v6821 = vshll.u32 683565275, %v6818
        %v6822 = vshrl.u32 2475754826, %v6819
        %v6823 = vor.u32 %v6821, %v6822
        %v6824 = vshll.u32 2475754826, %v6818
        %v6825 = vshrl.u32 2131351028, %v6819
        %v6826 = vor.u32 %v6824, %v6825
        %v6827 = vshll.u32 2131351028, %v6818
        %v6828 = vshrl.u32 2102212464, %v6819
        %v6829 = vor.u32 %v6827, %v6828
        %v6830 = vshll.u32 2102212464, %v6818
        %v6831 = vshrl.u32 920167782, %v6819
        %v6832 = vor.u32 %v6830, %v6831
        %v6833 = vshll.u32 920167782, %v6818
        %v6834 = vshrl.u32 1326507024, %v6819
        %v6835 = vor.u32 %v6833, %v6834
        %vm6836 = vcmp.lt.s32.totalorder %v6817, 1
        %vm6837 = vcmp.lt.s32.totalorder %v6817, 2
        %vm6838 = vcmp.lt.s32.totalorder %v6817, 3
        %vm6839 = vcmp.lt.s32.totalorder %v6817, 4
        %v6840 = vsel %vm6836, %v6820, %v6823
        %v6841 = vsel %vm6839, %v6829, 2102212464
        %v6842 = vsel %vm6838, %v6826, %v6841
        %v6843 = vsel %vm6837, %v6840, %v6842
        %v6844 = vsel %vm6836, %v6823, %v6826
        %v6845 = vsel %vm6839, %v6832, 920167782
        %v6846 = vsel %vm6838, %v6829, %v6845
        %v6847 = vsel %vm6837, %v6844, %v6846
        %v6848 = vsel %vm6836, %v6826, %v6829
        %v6849 = vsel %vm6839, %v6835, 1326507024
        %v6850 = vsel %vm6838, %v6832, %v6849
        %v6851 = vsel %vm6837, %v6848, %v6850
        %v6852 = vshll.u32 %v6812, 8
        %v6853 = vmul.u32.u64.compose %v6852, %v6851
        %v6854 = vextract.low.u32 %v6853
        %v6855 = vextract.high.u32 %v6853
        %v6856 = vmul.u32.u64.compose %v6852, %v6847
        %v6857 = vextract.low.u32 %v6856
        %v6858 = vextract.high.u32 %v6856
        %v6859 = vmul.u32 %v6852, %v6843
        %v6860 = vadd.s32 %v6855, %v6857
        %vm6861 = vc.u32 %v6855, %v6857
        %v6862 = vadd.s32 %v6858, 1
        %v6863 = vsel %vm6861, %v6862, %v6858
        %v6864 = vadd.s32 %v6859, %v6863
        %v6865 = vadd.s32 %v6864, 536870912
        %v6866 = vshrl.u32 %v6865, 30
        %v6867 = vshll.u32 %v6866, 30
        %v6868 = vsub.s32 %v6864, %v6867
        %vm6869 = vcmp.lt.s32.totalorder %v6868, 0
        %v6870 = vsub.s32 0, %v6868
        %v6871 = vsel %vm6869, %v6870, %v6868
        %v6872 = vclz %v6871
        %v6873 = vsub.s32 %v6872, 2
        %vm6874 = vcmp.gt.s32.totalorder 0, %v6873
        %v6875 = vsel %vm6874, 0, %v6873
        %v6876 = vsub.s32 32, %v6875
        %v6877 = vshll.u32 %v6868, %v6875
        %v6878 = vshrl.u32 %v6860, %v6876
        %v6879 = vor.u32 %v6877, %v6878
        %v6880 = vsub.s32 4294967266, %v6875
        %v6881 = vadd.s32 %v6880, 127
        %v6882 = vshll.u32 %v6881, 23
        %v6883 = vor.u32 4788187, %v6882
        %v6884 = vand.u32 2147483647, %v6883
        %v6886 = vcvt.s32.f32 %v6879
        %v6887 = vmul.f32 %v6886, %v6884
        %v6888 = vxor.u32 %v6887, 2147483648
        %v6889 = vsel %vm6806, %v6888, %v6887
        %v6890 = vsub.s32 4, %v6866
        %v6891 = vsel %vm6806, %v6890, %v6866
        %v6892 = vsel %vm6805, %v245, %v6889
        %v6893 = vsel %vm6805, 0, %v6891
        %v6894 = vcosq.f32.pop %v6892
        %v6895 = vsinq.f32.pop %v6892
        %vm6896 = vweird.f32 %v245
        %v6897 = vand.u32 %v6893, 3
        %vm6898 = vcmp.lt.s32.totalorder %v6897, 2
        %vm6899 = vcmp.eq.s32.totalorder %v6897, 0
        %v6900 = vxor.u32 %v6895, 2147483648
        %v6901 = vsel %vm6899, %v6894, %v6900
        %vm6902 = vcmp.eq.s32.totalorder %v6897, 2
        %v6903 = vxor.u32 %v6894, 2147483648
        %v6904 = vsel %vm6902, %v6903, %v6895
        %v6905 = vsel %vm6898, %v6901, %v6904
        %v6906 = vsel %vm6896, nan, %v6905
        %v6907 = vlaneseq
        %v6908 = vshrl.u32 %v6907, 7
        %v6909 = vsub.s32 0, %v6908
        %v6910 = vrot.slane %v209, %v6909
        %v6911 = vmul.f32 %v6910, %v3713
        %v6912 = vmul.f32 %v6910, %v3816
        %v6913 = vmul.f32 %v6910, %v3919
        %v6914 = vmul.f32 %v6910, %v4022
        %v6915 = vmul.f32 %v6910, %v4125
        %v6916 = vmul.f32 %v6910, %v4228
        %v6917 = vmul.f32 %v6910, %v4331
        %v6918 = vmul.f32 %v6910, %v4434
        %v6919 = vmul.f32 %v6910, %v4537
        %v6920 = vmul.f32 %v6910, %v4640
        %v6921 = vmul.f32 %v6910, %v4743
        %v6922 = vmul.f32 %v6910, %v4846
        %v6923 = vmul.f32 %v6910, %v4949
        %v6924 = vmul.f32 %v6910, %v5052
        %v6925 = vmul.f32 %v6910, %v5155
        %v6926 = vmul.f32 %v6910, %v5258
        %v6927 = vmul.f32 %v6910, %v5361
        %v6928 = vmul.f32 %v6910, %v5464
        %v6929 = vmul.f32 %v6910, %v5567
        %v6930 = vmul.f32 %v6910, %v5670
        %v6931 = vmul.f32 %v6910, %v5773
        %v6932 = vmul.f32 %v6910, %v5876
        %v6933 = vmul.f32 %v6910, %v5979
        %v6934 = vmul.f32 %v6910, %v6082
        %v6935 = vmul.f32 %v6910, %v6185
        %v6936 = vmul.f32 %v6910, %v6288
        %v6937 = vmul.f32 %v6910, %v6391
        %v6938 = vmul.f32 %v6910, %v6494
        %v6939 = vmul.f32 %v6910, %v6597
        %v6940 = vmul.f32 %v6910, %v6700
        %v6941 = vmul.f32 %v6910, %v6803
        %v6942 = vmul.f32 %v6910, %v6906
        %v6943 = vadd.f32 %v3579, %v6911
        %v6944 = vadd.f32 %v3580, %v6912
        %v6945 = vadd.f32 %v3581, %v6913
        %v6946 = vadd.f32 %v3582, %v6914
        %v6947 = vadd.f32 %v3583, %v6915
        %v6948 = vadd.f32 %v3584, %v6916
        %v6949 = vadd.f32 %v3585, %v6917
        %v6950 = vadd.f32 %v3586, %v6918
        %v6951 = vadd.f32 %v3587, %v6919
        %v6952 = vadd.f32 %v3588, %v6920
        %v6953 = vadd.f32 %v3589, %v6921
        %v6954 = vadd.f32 %v3590, %v6922
        %v6955 = vadd.f32 %v3591, %v6923
        %v6956 = vadd.f32 %v3592, %v6924
        %v6957 = vadd.f32 %v3593, %v6925
        %v6958 = vadd.f32 %v3594, %v6926
        %v6959 = vadd.f32 %v3595, %v6927
        %v6960 = vadd.f32 %v3596, %v6928
        %v6961 = vadd.f32 %v3597, %v6929
        %v6962 = vadd.f32 %v3598, %v6930
        %v6963 = vadd.f32 %v3599, %v6931
        %v6964 = vadd.f32 %v3600, %v6932
        %v6965 = vadd.f32 %v3601, %v6933
        %v6966 = vadd.f32 %v3602, %v6934
        %v6967 = vadd.f32 %v3603, %v6935
        %v6968 = vadd.f32 %v3604, %v6936
        %v6969 = vadd.f32 %v3605, %v6937
        %v6970 = vadd.f32 %v3606, %v6938
        %v6971 = vadd.f32 %v3607, %v6939
        %v6972 = vadd.f32 %v3608, %v6940
        %v6973 = vadd.f32 %v3609, %v6941
        %v6974 = vadd.f32 %v3610, %v6942
        %6975 = vst [vmem:[%s107] sm:$0xff] %v6943
        %6976 = vst [vmem:[%s107 + $0x8] sm:$0xff] %v6944
        %6977 = vst [vmem:[%s107 + $0x10] sm:$0xff] %v6945
        %6978 = vst [vmem:[%s107 + $0x18] sm:$0xff] %v6946
        %6979 = vst [vmem:[%s107 + $0x20] sm:$0xff] %v6947
        %6980 = vst [vmem:[%s107 + $0x28] sm:$0xff] %v6948
        %6981 = vst [vmem:[%s107 + $0x30] sm:$0xff] %v6949
        %6982 = vst [vmem:[%s107 + $0x38] sm:$0xff] %v6950
        %6983 = vst [vmem:[%s107 + $0x40] sm:$0xff] %v6951
        %6984 = vst [vmem:[%s107 + $0x48] sm:$0xff] %v6952
        %6985 = vst [vmem:[%s107 + $0x50] sm:$0xff] %v6953
        %6986 = vst [vmem:[%s107 + $0x58] sm:$0xff] %v6954
        %6987 = vst [vmem:[%s107 + $0x60] sm:$0xff] %v6955
        %6988 = vst [vmem:[%s107 + $0x68] sm:$0xff] %v6956
        %6989 = vst [vmem:[%s107 + $0x70] sm:$0xff] %v6957
        %6990 = vst [vmem:[%s107 + $0x78] sm:$0xff] %v6958
        %6991 = vst [vmem:[%s107 + $0x80] sm:$0xff] %v6959
        %6992 = vst [vmem:[%s107 + $0x88] sm:$0xff] %v6960
        %6993 = vst [vmem:[%s107 + $0x90] sm:$0xff] %v6961
        %6994 = vst [vmem:[%s107 + $0x98] sm:$0xff] %v6962
        %6995 = vst [vmem:[%s107 + $0xa0] sm:$0xff] %v6963
        %6996 = vst [vmem:[%s107 + $0xa8] sm:$0xff] %v6964
        %6997 = vst [vmem:[%s107 + $0xb0] sm:$0xff] %v6965
        %6998 = vst [vmem:[%s107 + $0xb8] sm:$0xff] %v6966
        %6999 = vst [vmem:[%s107 + $0xc0] sm:$0xff] %v6967
        %7000 = vst [vmem:[%s107 + $0xc8] sm:$0xff] %v6968
        %7001 = vst [vmem:[%s107 + $0xd0] sm:$0xff] %v6969
        %7002 = vst [vmem:[%s107 + $0xd8] sm:$0xff] %v6970
        %7003 = vst [vmem:[%s107 + $0xe0] sm:$0xff] %v6971
        %7004 = vst [vmem:[%s107 + $0xe8] sm:$0xff] %v6972
        %7005 = vst [vmem:[%s107 + $0xf0] sm:$0xff] %v6973
        %7006 = vst [vmem:[%s107 + $0xf8] sm:$0xff] %v6974
        %s7007 = sand.u32 %s45, 1
        %s7008 = scalar_lea.sflag [#allocation4], %s7007
        %s7009 = sand.u32 %s45, 1
        %s7010 = smul.addr %s7009, 256
        %s7011 = scalar_lea.vmem [#allocation5], %s7010
        // Predicated region
        $region29: #{tpu_custom_call.1} parent=23 // pred_check
          %p7012 = pneg %p55
        $region30: #{tpu_custom_call.1} parent=23 // pred_check_branch
          %7014 = sbr.rel (%p7012) target = $region32
        $region31: #{tpu_custom_call.1} parent=23 // pred_region
          %s7015 = smul.u32 32, %s16
          %s7017 = ssub.s32 4096, 4096
          %7018 = vsyncadd %s7008, %s7017
          %s7019 = smul.addr %s7015, 128
          %s7020 = scalar_lea.hbm %s1, %s7019
          %s7021 = sshll.u32 %s7011, 4
          %s7022 = int_to_ptr.vmem [resolvable:$true] %s7021
          %7027 = dma.vmem_to_hbm [thread:$0]  %s7022, 4096, %s7020, %s7008, 128, 128, 8
        $region32: #{tpu_custom_call.1} parent=23 // pred_fallthru
          _
      $region24: #{tpu_custom_call.1} parent=5 // pred_fallthru
        _
      %p7028 = scmp.le.s32.totalorder 2, %s11
      // Predicated region
      $region33: #{tpu_custom_call.1} parent=5 // pred_check
        %p7029 = pneg %p7028
      $region34: #{tpu_custom_call.1} parent=5 // pred_check_branch
        %7031 = sbr.rel (%p7029) target = $region36
      $region35: #{tpu_custom_call.1} parent=5 // pred_region
        %s7032 = ssub.s32 %s11, 2
        // Predicated region
        $region37: #{tpu_custom_call.1} parent=35 // pred_check
          %p7033 = pneg %p61
        $region38: #{tpu_custom_call.1} parent=35 // pred_check_branch
          %7035 = sbr.rel (%p7033) target = $region40
        $region39: #{tpu_custom_call.1} parent=35 // pred_region
          %s7036 = sand.u32 %s46, 1
          %s7037 = scalar_lea.sflag [#allocation4], %s7036
          %s7038 = sand.u32 %s46, 1
          %s7039 = smul.addr %s7038, 256
          %s7040 = scalar_lea.vmem [#allocation5], %s7039
          %7041 = dma.done %s7037, 4096
        $region40: #{tpu_custom_call.1} parent=35 // pred_fallthru
          _
      $region36: #{tpu_custom_call.1} parent=5 // pred_fallthru
        _
    $region6: #{tpu_custom_call.1} parent=1 // loop_footer
      %s15 = sadd.s32 1, %s11
    $region7: #{tpu_custom_call.1} parent=1 // loop_footer_branch
      %10 = sbr.rel target = $region3
    $region8: #{tpu_custom_call.1} parent=1 // loop_exit
      _
    %7042 = vsyncpa [#allocation3], 1
    %s7043 = scalar_lea.sflag [#allocation3], 1
    %7044 = vsyncpa %s7043, 1
    %7045 = vsyncpa [#allocation4], 1
    %s7046 = scalar_lea.sflag [#allocation4], 1
    %7047 = vsyncpa %s7046, 1

</llo_original>
